<compile_context>
chip_gen: v7x
topology: tpu7x:2x2x1
jax: 0.10.0
libtpu: 0.0.40
codegen_flags: <defaults>
</compile_context>

<pallas_src>
import jax
import jax.numpy as jnp
from jax.experimental import pallas as pl
from jax.experimental.pallas import tpu as pltpu

# ----- problem sizes (MiniGrid-style obs, small CNN branch) ------------------
C_IN, H, W = 3, 7, 7                 # input channels, spatial
P = H * W                            # pixels per image (49)
C1, C2 = 16, 32                      # conv channel widths
FEAT = 128                           # features_dim
N_ACT = 7                            # action_space.n (MiniGrid)
N_IN = C_IN * P                      # 147  (NCHW-flat input)
N_H1 = C1 * P                        # 784  (NCHW-flat conv1 output)
N_H2 = C2 * P                        # 1568 (NCHW-flat conv2 output == n_flatten)
N_OUT_PAD = 128                      # lane-dense padded logits width
TB = 128                             # batch tile (MXU rows on v5e; half on v6e/v7x)


# ----- fused Pallas kernel: 4 chained MXU matmuls per batch tile --------------
def fused_kernel(x_ref, w1_ref, b1_ref, w2_ref, b2_ref,
                 wfc_ref, bfc_ref, wp_ref, bp_ref, o_ref):
    # x_ref: (TB, 147)   weights: full-array VMEM blocks   o_ref: (TB, 128)
    x = x_ref[...]
    h1 = jnp.maximum(
        jnp.dot(x, w1_ref[...], preferred_element_type=jnp.float32)
        + b1_ref[...], 0.0)                                   # (TB, 784)
    h2 = jnp.maximum(
        jnp.dot(h1, w2_ref[...], preferred_element_type=jnp.float32)
        + b2_ref[...], 0.0)                                   # (TB, 1568)
    z = jnp.maximum(
        jnp.dot(h2, wfc_ref[...], preferred_element_type=jnp.float32)
        + bfc_ref[...], 0.0)                                  # (TB, 128)
    o_ref[...] = (jnp.dot(z, wp_ref[...], preferred_element_type=jnp.float32)
                  + bp_ref[...])                              # (TB, 128)


def _build_call(num_tiles):
    full = lambda i: (0, 0)          # weights: same block every step (resident)
    batched = lambda i: (i, 0)       # activations: tile over batch
    return pl.pallas_call(
        fused_kernel,
        out_shape=jax.ShapeDtypeStruct((num_tiles * TB, N_OUT_PAD), jnp.float32),
        grid=(num_tiles,),
        in_specs=[
            pl.BlockSpec((TB, N_IN), batched),        # x
            pl.BlockSpec((N_IN, N_H1), full),         # W1d  (147, 784)
            pl.BlockSpec((1, N_H1), full),            # b1   (1, 784)
            pl.BlockSpec((N_H1, N_H2), full),         # W2d  (784, 1568)
            pl.BlockSpec((1, N_H2), full),            # b2   (1, 1568)
            pl.BlockSpec((N_H2, FEAT), full),         # Wfc  (1568, 128)
            pl.BlockSpec((1, FEAT), full),            # bfc  (1, 128)
            pl.BlockSpec((FEAT, N_OUT_PAD), full),    # Wp   (128, 128)
            pl.BlockSpec((1, N_OUT_PAD), full),       # bp   (1, 128)
        ],
        out_specs=pl.BlockSpec((TB, N_OUT_PAD), batched),
        compiler_params=pltpu.CompilerParams(
            dimension_semantics=("parallel",),
            vmem_limit_bytes=32 * 1024 * 1024),
    )


# ----- one-time parameter layout prep (PyTorch shapes -> kernel layouts) ------
def prepare_params(params):
    w1_pt, b1, w2_pt, b2, wfc_pt, bfc, wp_pt, bp = params
    eye_p = jnp.eye(P, dtype=jnp.float32)
    # Block-diagonal dense-ification of the 1x1 convs in NCHW-flat order:
    #   W1d[c*P+p, o*P+p'] = w1[o,c] * delta(p,p')
    w1d = jnp.kron(w1_pt.T, eye_p)                       # (147, 784)
    w2d = jnp.kron(w2_pt.T, eye_p)                       # (784, 1568)
    b1r = jnp.repeat(b1, P)[None, :]                     # (1, 784)
    b2r = jnp.repeat(b2, P)[None, :]                     # (1, 1568)
    wfc = wfc_pt.T                                       # (1568, 128); columns already
    #                                                      match the NCHW flatten order
    # Lane-dense policy head: pad n_actions -> 128 columns with zeros.
    wp = jnp.zeros((FEAT, N_OUT_PAD), jnp.float32).at[:, :N_ACT].set(wp_pt.T)
    bpp = jnp.zeros((1, N_OUT_PAD), jnp.float32).at[0, :N_ACT].set(bp)
    return (w1d, b1r, w2d, b2r, wfc, bfc[None, :], wp, bpp)


# ----- forward pass ------------------------------------------------------------
def forward(obs_nchw, kparams):
    """obs_nchw: (B, 3, 7, 7) float32 -> logits (B, N_ACT)."""
    b = obs_nchw.shape[0]
    x = obs_nchw.reshape(b, N_IN)                 # NCHW flatten; free reshape
    num_tiles = -(-b // TB)
    b_pad = num_tiles * TB
    if b_pad != b:
        x = jnp.pad(x, ((0, b_pad - b), (0, 0)))
    out = _build_call(num_tiles)(x, *kparams)
    return out[:b, :N_ACT]


# ----- pure-JAX reference mirroring the PyTorch module --------------------------
def torch_style_reference(obs_nchw, params):
    w1_pt, b1, w2_pt, b2, wfc_pt, bfc, wp_pt, bp = params
    h1 = jnp.einsum('bchw,oc->bohw', obs_nchw, w1_pt) + b1[None, :, None, None]
    h1 = jnp.maximum(h1, 0.0)
    h2 = jnp.einsum('bchw,oc->bohw', h1, w2_pt) + b2[None, :, None, None]
    h2 = jnp.maximum(h2, 0.0)
    flat = h2.reshape(obs_nchw.shape[0], -1)       # NCHW flatten
    z = jnp.maximum(flat @ wfc_pt.T + bfc, 0.0)
    return z @ wp_pt.T + bp


# ----- deterministic parameter init (synthetic, PyTorch shapes) -----------------
def init_params(key):
    ks = jax.random.split(key, 8)
    w1_pt = jax.random.normal(ks[0], (C1, C_IN), jnp.float32) * 0.2      # Conv2d(3,16,1x1)
    b1 = jax.random.normal(ks[1], (C1,), jnp.float32) * 0.05
    w2_pt = jax.random.normal(ks[2], (C2, C1), jnp.float32) * 0.1        # Conv2d(16,32,1x1)
    b2 = jax.random.normal(ks[3], (C2,), jnp.float32) * 0.05
    wfc_pt = jax.random.normal(ks[4], (FEAT, N_H2), jnp.float32) * 0.02  # Linear(1568,128)
    bfc = jax.random.normal(ks[5], (FEAT,), jnp.float32) * 0.05
    wp_pt = jax.random.normal(ks[6], (N_ACT, FEAT), jnp.float32) * 0.05  # Linear(128,7)
    bp = jax.random.normal(ks[7], (N_ACT,), jnp.float32) * 0.05
    return (w1_pt, b1, w2_pt, b2, wfc_pt, bfc, wp_pt, bp)


if __name__ == "__main__":
    key = jax.random.PRNGKey(0)
    k_obs, k_par = jax.random.split(key)
    B_DEMO = 256                                      # 2 batch tiles -> exercises the grid
    obs = jax.random.normal(k_obs, (B_DEMO, C_IN, H, W), jnp.float32)  # NCHW like PyTorch
    params = init_params(k_par)

    kparams = prepare_params(params)                  # one-time weight layout prep
    logits = jax.jit(forward)(obs, kparams)
    logits = jax.block_until_ready(logits)

    ref = torch_style_reference(obs, params)
    assert logits.shape == (B_DEMO, N_ACT), logits.shape
    assert jnp.allclose(logits, ref, rtol=1e-3, atol=1e-3), \
        float(jnp.max(jnp.abs(logits - ref)))

    # TODO(synk): predict_action's argmax/multinomial sampling is host-side glue
    # around forward() and is intentionally not part of the kernel.
    print("KERNEL_OK")
</pallas_src>

<mosaic_0001>
module attributes {stable_mosaic.version = 11 : i64} {
  func.func @fused_kernel(%arg0: i32, %arg1: memref<128x147xf32, #tpu.memory_space<vmem>>, %arg2: memref<147x784xf32, #tpu.memory_space<vmem>>, %arg3: memref<1x784xf32, #tpu.memory_space<vmem>>, %arg4: memref<784x1568xf32, #tpu.memory_space<vmem>>, %arg5: memref<1x1568xf32, #tpu.memory_space<vmem>>, %arg6: memref<1568x128xf32, #tpu.memory_space<vmem>>, %arg7: memref<1x128xf32, #tpu.memory_space<vmem>>, %arg8: memref<128x128xf32, #tpu.memory_space<vmem>>, %arg9: memref<1x128xf32, #tpu.memory_space<vmem>>, %arg10: memref<128x128xf32, #tpu.memory_space<vmem>>) attributes {dimension_semantics = [#tpu.dimension_semantics<parallel>], iteration_bounds = array<i64: 2>, scalar_prefetch = 0 : i64, scratch_operands = 0 : i64, tpu.core_type = #tpu.core_type<tc>, window_params = [{transform_indices = @transform_0, window_bounds = array<i64: 128, 147>}, {pipeline_mode = #tpu.pipeline_mode<synchronous>, transform_indices = @transform_1, window_bounds = array<i64: 147, 784>}, {pipeline_mode = #tpu.pipeline_mode<synchronous>, transform_indices = @transform_2, window_bounds = array<i64: 1, 784>}, {pipeline_mode = #tpu.pipeline_mode<synchronous>, transform_indices = @transform_3, window_bounds = array<i64: 784, 1568>}, {pipeline_mode = #tpu.pipeline_mode<synchronous>, transform_indices = @transform_4, window_bounds = array<i64: 1, 1568>}, {pipeline_mode = #tpu.pipeline_mode<synchronous>, transform_indices = @transform_5, window_bounds = array<i64: 1568, 128>}, {pipeline_mode = #tpu.pipeline_mode<synchronous>, transform_indices = @transform_6, window_bounds = array<i64: 1, 128>}, {pipeline_mode = #tpu.pipeline_mode<synchronous>, transform_indices = @transform_7, window_bounds = array<i64: 128, 128>}, {pipeline_mode = #tpu.pipeline_mode<synchronous>, transform_indices = @transform_8, window_bounds = array<i64: 1, 128>}, {transform_indices = @transform_9, window_bounds = array<i64: 128, 128>}]} {
    %c0 = arith.constant 0 : index
    %c0_0 = arith.constant 0 : index
    %0 = vector.load %arg1[%c0, %c0_0] : memref<128x147xf32, #tpu.memory_space<vmem>>, vector<128x147xf32>
    %c0_1 = arith.constant 0 : index
    %c0_2 = arith.constant 0 : index
    %1 = vector.load %arg2[%c0_1, %c0_2] : memref<147x784xf32, #tpu.memory_space<vmem>>, vector<147x784xf32>
    %cst = arith.constant dense<0.000000e+00> : vector<128x784xf32>
    %2 = tpu.matmul %0, %1, %cst {dimension_numbers = #tpu.dot_dimension_numbers<[1], [0], [0], [1], [0, 0, 1, 1], [], []>} : vector<128x147xf32>, vector<147x784xf32>, vector<128x784xf32> -> vector<128x784xf32>
    %c0_3 = arith.constant 0 : index
    %c0_4 = arith.constant 0 : index
    %3 = vector.load %arg3[%c0_3, %c0_4] : memref<1x784xf32, #tpu.memory_space<vmem>>, vector<1x784xf32>
    %4 = vector.broadcast %3 : vector<1x784xf32> to vector<128x784xf32>
    %5 = arith.addf %2, %4 : vector<128x784xf32>
    %cst_5 = arith.constant 0.000000e+00 : f32
    %6 = vector.broadcast %cst_5 : f32 to vector<128x784xf32>
    %7 = arith.maximumf %5, %6 : vector<128x784xf32>
    %c0_6 = arith.constant 0 : index
    %c0_7 = arith.constant 0 : index
    %8 = vector.load %arg4[%c0_6, %c0_7] : memref<784x1568xf32, #tpu.memory_space<vmem>>, vector<784x1568xf32>
    %cst_8 = arith.constant dense<0.000000e+00> : vector<128x1568xf32>
    %9 = tpu.matmul %7, %8, %cst_8 {dimension_numbers = #tpu.dot_dimension_numbers<[1], [0], [0], [1], [0, 0, 1, 1], [], []>} : vector<128x784xf32>, vector<784x1568xf32>, vector<128x1568xf32> -> vector<128x1568xf32>
    %c0_9 = arith.constant 0 : index
    %c0_10 = arith.constant 0 : index
    %10 = vector.load %arg5[%c0_9, %c0_10] : memref<1x1568xf32, #tpu.memory_space<vmem>>, vector<1x1568xf32>
    %11 = vector.broadcast %10 : vector<1x1568xf32> to vector<128x1568xf32>
    %12 = arith.addf %9, %11 : vector<128x1568xf32>
    %cst_11 = arith.constant 0.000000e+00 : f32
    %13 = vector.broadcast %cst_11 : f32 to vector<128x1568xf32>
    %14 = arith.maximumf %12, %13 : vector<128x1568xf32>
    %c0_12 = arith.constant 0 : index
    %c0_13 = arith.constant 0 : index
    %15 = vector.load %arg6[%c0_12, %c0_13] : memref<1568x128xf32, #tpu.memory_space<vmem>>, vector<1568x128xf32>
    %cst_14 = arith.constant dense<0.000000e+00> : vector<128x128xf32>
    %16 = tpu.matmul %14, %15, %cst_14 {dimension_numbers = #tpu.dot_dimension_numbers<[1], [0], [0], [1], [0, 0, 1, 1], [], []>} : vector<128x1568xf32>, vector<1568x128xf32>, vector<128x128xf32> -> vector<128x128xf32>
    %c0_15 = arith.constant 0 : index
    %c0_16 = arith.constant 0 : index
    %17 = vector.load %arg7[%c0_15, %c0_16] : memref<1x128xf32, #tpu.memory_space<vmem>>, vector<1x128xf32>
    %18 = vector.broadcast %17 : vector<1x128xf32> to vector<128x128xf32>
    %19 = arith.addf %16, %18 : vector<128x128xf32>
    %cst_17 = arith.constant 0.000000e+00 : f32
    %20 = vector.broadcast %cst_17 : f32 to vector<128x128xf32>
    %21 = arith.maximumf %19, %20 : vector<128x128xf32>
    %c0_18 = arith.constant 0 : index
    %c0_19 = arith.constant 0 : index
    %22 = vector.load %arg8[%c0_18, %c0_19] : memref<128x128xf32, #tpu.memory_space<vmem>>, vector<128x128xf32>
    %cst_20 = arith.constant dense<0.000000e+00> : vector<128x128xf32>
    %23 = tpu.matmul %21, %22, %cst_20 {dimension_numbers = #tpu.dot_dimension_numbers<[1], [0], [0], [1], [0, 0, 1, 1], [], []>} : vector<128x128xf32>, vector<128x128xf32>, vector<128x128xf32> -> vector<128x128xf32>
    %c0_21 = arith.constant 0 : index
    %c0_22 = arith.constant 0 : index
    %24 = vector.load %arg9[%c0_21, %c0_22] : memref<1x128xf32, #tpu.memory_space<vmem>>, vector<1x128xf32>
    %25 = vector.broadcast %24 : vector<1x128xf32> to vector<128x128xf32>
    %26 = arith.addf %23, %25 : vector<128x128xf32>
    %c0_23 = arith.constant 0 : index
    %c0_24 = arith.constant 0 : index
    %27 = vector.load %arg10[%c0_23, %c0_24] : memref<128x128xf32, #tpu.memory_space<vmem>>, vector<128x128xf32>
    tpu.vector_store %arg10[%c0_23, %c0_24], %26 {strides = array<i32>} : memref<128x128xf32, #tpu.memory_space<vmem>>, vector<128x128xf32>,
    return
  }
  func.func @transform_0(%arg0: i32) -> (i32, i32) {
    %c0_i32 = arith.constant 0 : i32
    %c0_i32_0 = arith.constant 0 : i32
    return %arg0, %c0_i32 : i32, i32
  }
  func.func @transform_1(%arg0: i32) -> (i32, i32) {
    %c0_i32 = arith.constant 0 : i32
    %c0_i32_0 = arith.constant 0 : i32
    %c0_i32_1 = arith.constant 0 : i32
    return %c0_i32, %c0_i32_0 : i32, i32
  }
  func.func @transform_2(%arg0: i32) -> (i32, i32) {
    %c0_i32 = arith.constant 0 : i32
    %c0_i32_0 = arith.constant 0 : i32
    %c0_i32_1 = arith.constant 0 : i32
    return %c0_i32, %c0_i32_0 : i32, i32
  }
  func.func @transform_3(%arg0: i32) -> (i32, i32) {
    %c0_i32 = arith.constant 0 : i32
    %c0_i32_0 = arith.constant 0 : i32
    %c0_i32_1 = arith.constant 0 : i32
    return %c0_i32, %c0_i32_0 : i32, i32
  }
  func.func @transform_4(%arg0: i32) -> (i32, i32) {
    %c0_i32 = arith.constant 0 : i32
    %c0_i32_0 = arith.constant 0 : i32
    %c0_i32_1 = arith.constant 0 : i32
    return %c0_i32, %c0_i32_0 : i32, i32
  }
  func.func @transform_5(%arg0: i32) -> (i32, i32) {
    %c0_i32 = arith.constant 0 : i32
    %c0_i32_0 = arith.constant 0 : i32
    %c0_i32_1 = arith.constant 0 : i32
    return %c0_i32, %c0_i32_0 : i32, i32
  }
  func.func @transform_6(%arg0: i32) -> (i32, i32) {
    %c0_i32 = arith.constant 0 : i32
    %c0_i32_0 = arith.constant 0 : i32
    %c0_i32_1 = arith.constant 0 : i32
    return %c0_i32, %c0_i32_0 : i32, i32
  }
  func.func @transform_7(%arg0: i32) -> (i32, i32) {
    %c0_i32 = arith.constant 0 : i32
    %c0_i32_0 = arith.constant 0 : i32
    %c0_i32_1 = arith.constant 0 : i32
    return %c0_i32, %c0_i32_0 : i32, i32
  }
  func.func @transform_8(%arg0: i32) -> (i32, i32) {
    %c0_i32 = arith.constant 0 : i32
    %c0_i32_0 = arith.constant 0 : i32
    %c0_i32_1 = arith.constant 0 : i32
    return %c0_i32, %c0_i32_0 : i32, i32
  }
  func.func @transform_9(%arg0: i32) -> (i32, i32) {
    %c0_i32 = arith.constant 0 : i32
    %c0_i32_0 = arith.constant 0 : i32
    return %arg0, %c0_i32 : i32, i32
  }
}

</mosaic_0001>

<llo_original>
// kernel: forward.1
$region0: #{forward.1}
  #allocation0 [shape = 'u32[]', space=smem, size = 0x4, offset = 0x4, fixed_abs, tag = 'smem constant byte address 0x4 - core index']
  #allocation1 [shape = 'u32[144,128]{1,0:T(1,128)}', space=vmem, size = 0x12000, scoped, tag = 'internal scratch']
  %s0 = inlined_call_operand.vmem [shape: f32[256,147], index: 0, kind: input, shape index: {}]
  %s1 = inlined_call_operand.hbm [shape: f32[147,784], index: 1, kind: input, shape index: {}]
  %s2 = inlined_call_operand.hbm [shape: f32[1,784], index: 2, kind: input, shape index: {}]
  %s3 = inlined_call_operand.hbm [shape: f32[784,1568], index: 3, kind: input, shape index: {}]
  %s4 = inlined_call_operand.hbm [shape: f32[1,1568], index: 4, kind: input, shape index: {}]
  %s5 = inlined_call_operand.hbm [shape: f32[1568,128], index: 5, kind: input, shape index: {}]
  %s6 = inlined_call_operand.hbm [shape: f32[1,128], index: 6, kind: input, shape index: {}]
  %s7 = inlined_call_operand.hbm [shape: f32[128,128], index: 7, kind: input, shape index: {}]
  %s8 = inlined_call_operand.hbm [shape: f32[1,128], index: 8, kind: input, shape index: {}]
  %s9 = inlined_call_operand.vmem [shape: f32[256,128], index: 9, kind: output, shape index: {}]
  %s10 = sld [smem:[#allocation0]]
  $region101: #{forward.1} parent=0
    _
  %s12 = ssub.s32 1, %s10
  %s13 = scalar_select 0, %s12, %s10
  $region1: #{forward.1} parent=0
    #allocation2 [shape = 'u8[544768]{0}', space=vmem, size = 0x85000, scoped, tag = 'input window, operand 1, single buffered']
    #allocation3 [shape = 's32[2]{0}', space=sflag, size = 0x8, scoped, tag = 'scoped memory for forward.1']
    #allocation4 [shape = 'u8[3584]{0}', space=vmem, size = 0x1000, scoped, tag = 'input window, operand 2, single buffered']
    #allocation5 [shape = 's32[1]{0}', space=sflag, size = 0x4, scoped, tag = 'scoped memory for forward.1']
    #allocation6 [shape = 'u8[5218304]{0}', space=vmem, size = 0x4fa000, scoped, tag = 'input window, operand 3, single buffered']
    #allocation7 [shape = 'u8[6656]{0}', space=vmem, size = 0x1c00, scoped, tag = 'input window, operand 4, single buffered']
    #allocation8 [shape = 's32[1]{0}', space=sflag, size = 0x4, scoped, tag = 'scoped memory for forward.1']
    #allocation9 [shape = 'u8[802816]{0}', space=vmem, size = 0xc4000, scoped, tag = 'input window, operand 5, single buffered']
    #allocation10 [shape = 'u8[512]{0}', space=vmem, size = 0x400, scoped, tag = 'input window, operand 6, single buffered']
    #allocation11 [shape = 's32[1]{0}', space=sflag, size = 0x4, scoped, tag = 'scoped memory for forward.1']
    #allocation12 [shape = 'u8[65536]{0}', space=vmem, size = 0x10000, scoped, tag = 'input window, operand 7, single buffered']
    #allocation13 [shape = 'u8[512]{0}', space=vmem, size = 0x400, scoped, tag = 'input window, operand 8, single buffered']
    #allocation14 [shape = 's32[1]{0}', space=sflag, size = 0x4, scoped, tag = 'scoped memory for forward.1']
    %14 = vsyncpa [#allocation3], 0
    %15 = vsyncpa [#allocation5], 0
    %16 = vsyncpa [#allocation8], 0
    %17 = vsyncpa [#allocation11], 0
    %18 = vsyncpa [#allocation14], 0
    loop: start=0, step=1, limit=4
    $region2: #{forward.1} parent=1 // loop_pre_header
      _
    $region3: #{forward.1} parent=1 // loop_header
      %s20 = sphi 0, %s24
      %p21 = scmp.ge.s32.totalorder %s20, 4
      %s30 = sphi 0, %s32
      %s33 = sphi 0, %s30
      %s34 = sphi 0, %s33
      %s50 = sphi 0, %s34
      %s54 = sphi 0, %s54
      %s56 = sphi 0, %s54
      %s57 = sphi 0, %s56
      %s71 = sphi 0, %s57
      %s75 = sphi 0, %s75
      %s77 = sphi 0, %s75
      %s78 = sphi 0, %s77
      %s92 = sphi 0, %s78
      %s96 = sphi 0, %s96
      %s98 = sphi 0, %s96
      %s99 = sphi 0, %s98
      %s113 = sphi 0, %s99
      %s117 = sphi 0, %s117
      %s119 = sphi 0, %s117
      %s120 = sphi 0, %s119
      %s134 = sphi 0, %s120
      %s138 = sphi 0, %s138
      %s140 = sphi 0, %s138
      %s141 = sphi 0, %s140
      %s155 = sphi 0, %s141
      %s159 = sphi 0, %s159
      %s161 = sphi 0, %s159
      %s162 = sphi 0, %s161
      %s176 = sphi 0, %s162
      %s180 = sphi 0, %s180
      %s182 = sphi 0, %s180
      %s183 = sphi 0, %s182
      %s197 = sphi 0, %s183
      %s201 = sphi 0, %s201
      %s203 = sphi 0, %s201
      %s204 = sphi 0, %s203
      %s218 = sphi 0, %s204
      %s224 = sphi 0, %s226
      %s227 = sphi 0, %s224
      %s228 = sphi 0, %s227
      %s244 = sphi 0, %s228
    $region4: #{forward.1} parent=1 // loop_header_branch
      %23 = sbr.rel (%p21) target = $region8
    $region5: #{forward.1} parent=1 // loop_body
      %s25 = ssub.s32 %s20, 1
      %s26 = ssub.s32 %s20, 2
      %s27 = sadd.s32 %s20, 1
      %s28 = ssub.s32 %s20, %s27
      %p29 = scmp.eq.s32.totalorder %s28, 0
      %s31 = sadd.s32 %s30, 1
      %s32 = scalar_select %p29, %s30, %s31
      %p35 = pneg %p29
      %p36 = scmp.eq.s32.totalorder %s20, 1
      %p37 = por %p35, %p36
      %p38 = scmp.ne.s32.totalorder %s30, %s33
      %p39 = scmp.eq.s32.totalorder %s20, 0
      %p40 = por %p38, %p39
      %p41 = scmp.ne.s32.totalorder %s30, %s33
      %p42 = scmp.eq.s32.totalorder %s25, 1
      %p43 = por %p41, %p42
      %p44 = scmp.ne.s32.totalorder %s33, %s34
      %p45 = scmp.eq.s32.totalorder %s25, 0
      %p46 = por %p44, %p45
      %p47 = scmp.ne.s32.totalorder %s33, %s34
      %p48 = scmp.eq.s32.totalorder %s26, 1
      %p49 = por %p47, %p48
      %p51 = scmp.ne.s32.totalorder %s34, %s50
      %p52 = scmp.eq.s32.totalorder %s26, 0
      %p53 = por %p51, %p52
      %s55 = sadd.s32 %s54, 1
      %p58 = scmp.eq.s32.totalorder %s20, 1
      %p59 = scmp.ne.s32.totalorder %s54, %s56
      %p60 = scmp.eq.s32.totalorder %s20, 0
      %p61 = por %p59, %p60
      %p62 = scmp.ne.s32.totalorder %s54, %s56
      %p63 = scmp.eq.s32.totalorder %s25, 1
      %p64 = por %p62, %p63
      %p65 = scmp.ne.s32.totalorder %s56, %s57
      %p66 = scmp.eq.s32.totalorder %s25, 0
      %p67 = por %p65, %p66
      %p68 = scmp.ne.s32.totalorder %s56, %s57
      %p69 = scmp.eq.s32.totalorder %s26, 1
      %p70 = por %p68, %p69
      %p72 = scmp.ne.s32.totalorder %s57, %s71
      %p73 = scmp.eq.s32.totalorder %s26, 0
      %p74 = por %p72, %p73
      %s76 = sadd.s32 %s75, 1
      %p79 = scmp.eq.s32.totalorder %s20, 1
      %p80 = scmp.ne.s32.totalorder %s75, %s77
      %p81 = scmp.eq.s32.totalorder %s20, 0
      %p82 = por %p80, %p81
      %p83 = scmp.ne.s32.totalorder %s75, %s77
      %p84 = scmp.eq.s32.totalorder %s25, 1
      %p85 = por %p83, %p84
      %p86 = scmp.ne.s32.totalorder %s77, %s78
      %p87 = scmp.eq.s32.totalorder %s25, 0
      %p88 = por %p86, %p87
      %p89 = scmp.ne.s32.totalorder %s77, %s78
      %p90 = scmp.eq.s32.totalorder %s26, 1
      %p91 = por %p89, %p90
      %p93 = scmp.ne.s32.totalorder %s78, %s92
      %p94 = scmp.eq.s32.totalorder %s26, 0
      %p95 = por %p93, %p94
      %s97 = sadd.s32 %s96, 1
      %p100 = scmp.eq.s32.totalorder %s20, 1
      %p101 = scmp.ne.s32.totalorder %s96, %s98
      %p102 = scmp.eq.s32.totalorder %s20, 0
      %p103 = por %p101, %p102
      %p104 = scmp.ne.s32.totalorder %s96, %s98
      %p105 = scmp.eq.s32.totalorder %s25, 1
      %p106 = por %p104, %p105
      %p107 = scmp.ne.s32.totalorder %s98, %s99
      %p108 = scmp.eq.s32.totalorder %s25, 0
      %p109 = por %p107, %p108
      %p110 = scmp.ne.s32.totalorder %s98, %s99
      %p111 = scmp.eq.s32.totalorder %s26, 1
      %p112 = por %p110, %p111
      %p114 = scmp.ne.s32.totalorder %s99, %s113
      %p115 = scmp.eq.s32.totalorder %s26, 0
      %p116 = por %p114, %p115
      %s118 = sadd.s32 %s117, 1
      %p121 = scmp.eq.s32.totalorder %s20, 1
      %p122 = scmp.ne.s32.totalorder %s117, %s119
      %p123 = scmp.eq.s32.totalorder %s20, 0
      %p124 = por %p122, %p123
      %p125 = scmp.ne.s32.totalorder %s117, %s119
      %p126 = scmp.eq.s32.totalorder %s25, 1
      %p127 = por %p125, %p126
      %p128 = scmp.ne.s32.totalorder %s119, %s120
      %p129 = scmp.eq.s32.totalorder %s25, 0
      %p130 = por %p128, %p129
      %p131 = scmp.ne.s32.totalorder %s119, %s120
      %p132 = scmp.eq.s32.totalorder %s26, 1
      %p133 = por %p131, %p132
      %p135 = scmp.ne.s32.totalorder %s120, %s134
      %p136 = scmp.eq.s32.totalorder %s26, 0
      %p137 = por %p135, %p136
      %s139 = sadd.s32 %s138, 1
      %p142 = scmp.eq.s32.totalorder %s20, 1
      %p143 = scmp.ne.s32.totalorder %s138, %s140
      %p144 = scmp.eq.s32.totalorder %s20, 0
      %p145 = por %p143, %p144
      %p146 = scmp.ne.s32.totalorder %s138, %s140
      %p147 = scmp.eq.s32.totalorder %s25, 1
      %p148 = por %p146, %p147
      %p149 = scmp.ne.s32.totalorder %s140, %s141
      %p150 = scmp.eq.s32.totalorder %s25, 0
      %p151 = por %p149, %p150
      %p152 = scmp.ne.s32.totalorder %s140, %s141
      %p153 = scmp.eq.s32.totalorder %s26, 1
      %p154 = por %p152, %p153
      %p156 = scmp.ne.s32.totalorder %s141, %s155
      %p157 = scmp.eq.s32.totalorder %s26, 0
      %p158 = por %p156, %p157
      %s160 = sadd.s32 %s159, 1
      %p163 = scmp.eq.s32.totalorder %s20, 1
      %p164 = scmp.ne.s32.totalorder %s159, %s161
      %p165 = scmp.eq.s32.totalorder %s20, 0
      %p166 = por %p164, %p165
      %p167 = scmp.ne.s32.totalorder %s159, %s161
      %p168 = scmp.eq.s32.totalorder %s25, 1
      %p169 = por %p167, %p168
      %p170 = scmp.ne.s32.totalorder %s161, %s162
      %p171 = scmp.eq.s32.totalorder %s25, 0
      %p172 = por %p170, %p171
      %p173 = scmp.ne.s32.totalorder %s161, %s162
      %p174 = scmp.eq.s32.totalorder %s26, 1
      %p175 = por %p173, %p174
      %p177 = scmp.ne.s32.totalorder %s162, %s176
      %p178 = scmp.eq.s32.totalorder %s26, 0
      %p179 = por %p177, %p178
      %s181 = sadd.s32 %s180, 1
      %p184 = scmp.eq.s32.totalorder %s20, 1
      %p185 = scmp.ne.s32.totalorder %s180, %s182
      %p186 = scmp.eq.s32.totalorder %s20, 0
      %p187 = por %p185, %p186
      %p188 = scmp.ne.s32.totalorder %s180, %s182
      %p189 = scmp.eq.s32.totalorder %s25, 1
      %p190 = por %p188, %p189
      %p191 = scmp.ne.s32.totalorder %s182, %s183
      %p192 = scmp.eq.s32.totalorder %s25, 0
      %p193 = por %p191, %p192
      %p194 = scmp.ne.s32.totalorder %s182, %s183
      %p195 = scmp.eq.s32.totalorder %s26, 1
      %p196 = por %p194, %p195
      %p198 = scmp.ne.s32.totalorder %s183, %s197
      %p199 = scmp.eq.s32.totalorder %s26, 0
      %p200 = por %p198, %p199
      %s202 = sadd.s32 %s201, 1
      %p205 = scmp.eq.s32.totalorder %s20, 1
      %p206 = scmp.ne.s32.totalorder %s201, %s203
      %p207 = scmp.eq.s32.totalorder %s20, 0
      %p208 = por %p206, %p207
      %p209 = scmp.ne.s32.totalorder %s201, %s203
      %p210 = scmp.eq.s32.totalorder %s25, 1
      %p211 = por %p209, %p210
      %p212 = scmp.ne.s32.totalorder %s203, %s204
      %p213 = scmp.eq.s32.totalorder %s25, 0
      %p214 = por %p212, %p213
      %p215 = scmp.ne.s32.totalorder %s203, %s204
      %p216 = scmp.eq.s32.totalorder %s26, 1
      %p217 = por %p215, %p216
      %p219 = scmp.ne.s32.totalorder %s204, %s218
      %p220 = scmp.eq.s32.totalorder %s26, 0
      %p221 = por %p219, %p220
      %s222 = ssub.s32 %s20, %s27
      %p223 = scmp.eq.s32.totalorder %s222, 0
      %s225 = sadd.s32 %s224, 1
      %s226 = scalar_select %p223, %s224, %s225
      %p229 = pneg %p223
      %p230 = scmp.eq.s32.totalorder %s20, 1
      %p231 = por %p229, %p230
      %p232 = scmp.ne.s32.totalorder %s224, %s227
      %p233 = scmp.eq.s32.totalorder %s20, 0
      %p234 = por %p232, %p233
      %p235 = scmp.ne.s32.totalorder %s224, %s227
      %p236 = scmp.eq.s32.totalorder %s25, 1
      %p237 = por %p235, %p236
      %p238 = scmp.ne.s32.totalorder %s227, %s228
      %p239 = scmp.eq.s32.totalorder %s25, 0
      %p240 = por %p238, %p239
      %p241 = scmp.ne.s32.totalorder %s227, %s228
      %p242 = scmp.eq.s32.totalorder %s26, 1
      %p243 = por %p241, %p242
      %p245 = scmp.ne.s32.totalorder %s228, %s244
      %p246 = scmp.eq.s32.totalorder %s26, 0
      %p247 = por %p245, %p246
      %p248 = scmp.le.s32.totalorder 1, %s20
      %p249 = scmp.lt.s32.totalorder %s20, 3
      %p250 = pnand %p248, %p249
      %p251 = pneg %p250
      // Predicated region
      $region9: #{forward.1} parent=5 // pred_check
        _
      $region10: #{forward.1} parent=5 // pred_check_branch
        %253 = sbr.rel (%p250) target = $region12
      $region11: #{forward.1} parent=5 // pred_region
        %s254 = ssub.s32 %s20, 1
        // Predicated region
        $region13: #{forward.1} parent=11 // pred_check
          %p255 = pneg %p67
        $region14: #{forward.1} parent=11 // pred_check_branch
          %257 = sbr.rel (%p255) target = $region16
        $region15: #{forward.1} parent=11 // pred_region
          %s259 = ssub.s32 17024, 17024
          %260 = vsyncadd [#allocation3], %s259
          %s261 = sshll.u32 [#allocation2], 4
          %s262 = int_to_ptr.vmem [resolvable:$true] %s261
          %267 = dma.hbm_to_vmem [thread:$0]  %s1, 17024, %s262, [#allocation3], 896, 896, 56
        $region16: #{forward.1} parent=11 // pred_fallthru
          _
        // Predicated region
        $region17: #{forward.1} parent=11 // pred_check
          %p268 = pneg %p88
        $region18: #{forward.1} parent=11 // pred_check_branch
          %270 = sbr.rel (%p268) target = $region20
        $region19: #{forward.1} parent=11 // pred_region
          %s272 = ssub.s32 112, 112
          %273 = vsyncadd [#allocation5], %s272
          %s275 = sshll.u32 [#allocation4], 4
          %s276 = int_to_ptr.vmem [resolvable:$true] %s275
          %278 = dma.hbm_to_vmem [thread:$0]  %s2, 112, %s276, [#allocation5]
        $region20: #{forward.1} parent=11 // pred_fallthru
          _
        // Predicated region
        $region21: #{forward.1} parent=11 // pred_check
          %p279 = pneg %p109
        $region22: #{forward.1} parent=11 // pred_check_branch
          %281 = sbr.rel (%p279) target = $region24
        $region23: #{forward.1} parent=11 // pred_region
          %s283 = ssub.s32 163072, 163072
          %284 = vsyncadd [#allocation5], %s283
          %s285 = sshll.u32 [#allocation6], 4
          %s286 = int_to_ptr.vmem [resolvable:$true] %s285
          %291 = dma.hbm_to_vmem [thread:$0]  %s3, 163072, %s286, [#allocation5], 1664, 1664, 104
        $region24: #{forward.1} parent=11 // pred_fallthru
          _
        // Predicated region
        $region25: #{forward.1} parent=11 // pred_check
          %p292 = pneg %p130
        $region26: #{forward.1} parent=11 // pred_check_branch
          %294 = sbr.rel (%p292) target = $region28
        $region27: #{forward.1} parent=11 // pred_region
          %s296 = ssub.s32 208, 208
          %297 = vsyncadd [#allocation8], %s296
          %s299 = sshll.u32 [#allocation7], 4
          %s300 = int_to_ptr.vmem [resolvable:$true] %s299
          %302 = dma.hbm_to_vmem [thread:$0]  %s4, 208, %s300, [#allocation8]
        $region28: #{forward.1} parent=11 // pred_fallthru
          _
        // Predicated region
        $region29: #{forward.1} parent=11 // pred_check
          %p303 = pneg %p151
        $region30: #{forward.1} parent=11 // pred_check_branch
          %305 = sbr.rel (%p303) target = $region32
        $region31: #{forward.1} parent=11 // pred_region
          %s307 = ssub.s32 25088, 25088
          %308 = vsyncadd [#allocation8], %s307
          %s309 = sshll.u32 [#allocation9], 4
          %s310 = int_to_ptr.vmem [resolvable:$true] %s309
          %315 = dma.hbm_to_vmem [thread:$0]  %s5, 25088, %s310, [#allocation8], 128, 128, 8
        $region32: #{forward.1} parent=11 // pred_fallthru
          _
        // Predicated region
        $region33: #{forward.1} parent=11 // pred_check
          %p316 = pneg %p172
        $region34: #{forward.1} parent=11 // pred_check_branch
          %318 = sbr.rel (%p316) target = $region36
        $region35: #{forward.1} parent=11 // pred_region
          %s320 = ssub.s32 16, 16
          %321 = vsyncadd [#allocation11], %s320
          %s323 = sshll.u32 [#allocation10], 4
          %s324 = int_to_ptr.vmem [resolvable:$true] %s323
          %326 = dma.hbm_to_vmem [thread:$0]  %s6, 16, %s324, [#allocation11]
        $region36: #{forward.1} parent=11 // pred_fallthru
          _
        // Predicated region
        $region37: #{forward.1} parent=11 // pred_check
          %p327 = pneg %p193
        $region38: #{forward.1} parent=11 // pred_check_branch
          %329 = sbr.rel (%p327) target = $region40
        $region39: #{forward.1} parent=11 // pred_region
          %s331 = ssub.s32 2048, 2048
          %332 = vsyncadd [#allocation11], %s331
          %s333 = sshll.u32 [#allocation12], 4
          %s334 = int_to_ptr.vmem [resolvable:$true] %s333
          %339 = dma.hbm_to_vmem [thread:$0]  %s7, 2048, %s334, [#allocation11], 128, 128, 8
        $region40: #{forward.1} parent=11 // pred_fallthru
          _
        // Predicated region
        $region41: #{forward.1} parent=11 // pred_check
          %p340 = pneg %p214
        $region42: #{forward.1} parent=11 // pred_check_branch
          %342 = sbr.rel (%p340) target = $region44
        $region43: #{forward.1} parent=11 // pred_region
          %s344 = ssub.s32 16, 16
          %345 = vsyncadd [#allocation14], %s344
          %s347 = sshll.u32 [#allocation13], 4
          %s348 = int_to_ptr.vmem [resolvable:$true] %s347
          %350 = dma.hbm_to_vmem [thread:$0]  %s8, 16, %s348, [#allocation14]
        $region44: #{forward.1} parent=11 // pred_fallthru
          _
      $region12: #{forward.1} parent=5 // pred_fallthru
        _
      %p351 = scmp.lt.s32.totalorder %s20, 2
      // Predicated region
      $region45: #{forward.1} parent=5 // pred_check
        %p352 = pneg %p351
      $region46: #{forward.1} parent=5 // pred_check_branch
        %354 = sbr.rel (%p352) target = $region48
      $region47: #{forward.1} parent=5 // pred_region
        // Predicated region
        $region49: #{forward.1} parent=47 // pred_check
          %p355 = pneg %p40
        $region50: #{forward.1} parent=47 // pred_check_branch
          %357 = sbr.rel (%p355) target = $region52
        $region51: #{forward.1} parent=47 // pred_region
          %s358 = smul.u32 16, %s20
          %p359 = scmp.lt.s32.totalorder %s358, 31
          %s360 = scalar_select %p359, %s358, 31
          %s361 = smul.addr %s360, 2
          %s362 = smul.addr %s361, 8
          %s363 = scalar_lea.vmem %s0, %s362
          %s364 = smul.u32 16, %s20
        $region52: #{forward.1} parent=47 // pred_fallthru
          _
      $region48: #{forward.1} parent=5 // pred_fallthru
        _
      %p365 = scmp.le.s32.totalorder 1, %s20
      %p366 = scmp.lt.s32.totalorder %s20, 3
      %p367 = pnand %p365, %p366
      %p368 = pneg %p367
      // Predicated region
      $region53: #{forward.1} parent=5 // pred_check
        _
      $region54: #{forward.1} parent=5 // pred_check_branch
        %370 = sbr.rel (%p367) target = $region56
      $region55: #{forward.1} parent=5 // pred_region
        %s371 = ssub.s32 %s20, 1
        // Predicated region
        $region57: #{forward.1} parent=55 // pred_check
          %p372 = pneg %p67
        $region58: #{forward.1} parent=55 // pred_check_branch
          %374 = sbr.rel (%p372) target = $region60
        $region59: #{forward.1} parent=55 // pred_region
          %375 = dma.done [#allocation3], 17024
        $region60: #{forward.1} parent=55 // pred_fallthru
          _
        // Predicated region
        $region61: #{forward.1} parent=55 // pred_check
          %p376 = pneg %p88
        $region62: #{forward.1} parent=55 // pred_check_branch
          %378 = sbr.rel (%p376) target = $region64
        $region63: #{forward.1} parent=55 // pred_region
          %379 = dma.done [#allocation5], 112
        $region64: #{forward.1} parent=55 // pred_fallthru
          _
        // Predicated region
        $region65: #{forward.1} parent=55 // pred_check
          %p380 = pneg %p109
        $region66: #{forward.1} parent=55 // pred_check_branch
          %382 = sbr.rel (%p380) target = $region68
        $region67: #{forward.1} parent=55 // pred_region
          %383 = dma.done [#allocation5], 163072
        $region68: #{forward.1} parent=55 // pred_fallthru
          _
        // Predicated region
        $region69: #{forward.1} parent=55 // pred_check
          %p384 = pneg %p130
        $region70: #{forward.1} parent=55 // pred_check_branch
          %386 = sbr.rel (%p384) target = $region72
        $region71: #{forward.1} parent=55 // pred_region
          %387 = dma.done [#allocation8], 208
        $region72: #{forward.1} parent=55 // pred_fallthru
          _
        // Predicated region
        $region73: #{forward.1} parent=55 // pred_check
          %p388 = pneg %p151
        $region74: #{forward.1} parent=55 // pred_check_branch
          %390 = sbr.rel (%p388) target = $region76
        $region75: #{forward.1} parent=55 // pred_region
          %391 = dma.done [#allocation8], 25088
        $region76: #{forward.1} parent=55 // pred_fallthru
          _
        // Predicated region
        $region77: #{forward.1} parent=55 // pred_check
          %p392 = pneg %p172
        $region78: #{forward.1} parent=55 // pred_check_branch
          %394 = sbr.rel (%p392) target = $region80
        $region79: #{forward.1} parent=55 // pred_region
          %395 = dma.done [#allocation11], 16
        $region80: #{forward.1} parent=55 // pred_fallthru
          _
        // Predicated region
        $region81: #{forward.1} parent=55 // pred_check
          %p396 = pneg %p193
        $region82: #{forward.1} parent=55 // pred_check_branch
          %398 = sbr.rel (%p396) target = $region84
        $region83: #{forward.1} parent=55 // pred_region
          %399 = dma.done [#allocation11], 2048
        $region84: #{forward.1} parent=55 // pred_fallthru
          _
        // Predicated region
        $region85: #{forward.1} parent=55 // pred_check
          %p400 = pneg %p214
        $region86: #{forward.1} parent=55 // pred_check_branch
          %402 = sbr.rel (%p400) target = $region88
        $region87: #{forward.1} parent=55 // pred_region
          %403 = dma.done [#allocation14], 16
        $region88: #{forward.1} parent=55 // pred_fallthru
          _
        %s404 = smul.u32 16, %s25
        %p405 = scmp.lt.s32.totalorder %s404, 31
        %s406 = scalar_select %p405, %s404, 31
        %s407 = smul.addr %s406, 2
        %s408 = smul.addr %s407, 8
        %s409 = scalar_lea.vmem %s0, %s408
        %p410 = pneg %p46
        %p411 = pneg %p43
        %p412 = pneg %p67
        %p413 = pneg %p64
        %p414 = pneg %p88
        %p415 = pneg %p85
        %p416 = pneg %p109
        %p417 = pneg %p106
        %p418 = pneg %p130
        %p419 = pneg %p127
        %p420 = pneg %p151
        %p421 = pneg %p148
        %p422 = pneg %p172
        %p423 = pneg %p169
        %p424 = pneg %p193
        %p425 = pneg %p190
        %p426 = pneg %p214
        %p427 = pneg %p211
        %p428 = pneg %p240
        %p429 = pneg %p237
        %s430 = smul.u32 16, %s25
        %p431 = scmp.lt.s32.totalorder %s430, 31
        %s432 = scalar_select %p431, %s430, 31
        %s433 = smul.addr %s432, 8
        %s434 = scalar_lea.vmem %s9, %s433
        %s435 = smul.u32 16, %s25
        %p436 = scmp.lt.s32.totalorder %s435, 31
        %s437 = scalar_select %p436, %s435, 31
        %s438 = smul.addr %s437, 2
        %s439 = smul.addr %s438, 8
        %s440 = scalar_lea.vmem %s0, %s439
        %s441 = smul.u32 16, %s25
        %s442 = smul.u32 16, %s25
        %p443 = scmp.lt.s32.totalorder %s442, 31
        %s444 = scalar_select %p443, %s442, 31
        %s445 = smul.addr %s444, 8
        %s446 = scalar_lea.vmem %s9, %s445
        %s447 = smul.u32 16, %s25
        %v448 = vld [vmem:[%s440] sm:$0xff]
        %v449 = vld [vmem:[%s440 + $0x8] sm:$0xff]
        %v450 = vld [vmem:[%s440 + $0x10] sm:$0xff]
        %v451 = vld [vmem:[%s440 + $0x18] sm:$0xff]
        %v452 = vld [vmem:[%s440 + $0x20] sm:$0xff]
        %v453 = vld [vmem:[%s440 + $0x28] sm:$0xff]
        %v454 = vld [vmem:[%s440 + $0x30] sm:$0xff]
        %v455 = vld [vmem:[%s440 + $0x38] sm:$0xff]
        %v456 = vld [vmem:[%s440 + $0x40] sm:$0xff]
        %v457 = vld [vmem:[%s440 + $0x48] sm:$0xff]
        %v458 = vld [vmem:[%s440 + $0x50] sm:$0xff]
        %v459 = vld [vmem:[%s440 + $0x58] sm:$0xff]
        %v460 = vld [vmem:[%s440 + $0x60] sm:$0xff]
        %v461 = vld [vmem:[%s440 + $0x68] sm:$0xff]
        %v462 = vld [vmem:[%s440 + $0x70] sm:$0xff]
        %v463 = vld [vmem:[%s440 + $0x78] sm:$0xff]
        %v464 = vld [vmem:[%s440 + $0x80] sm:$0xff]
        %v465 = vld [vmem:[%s440 + $0x88] sm:$0xff]
        %v466 = vld [vmem:[%s440 + $0x90] sm:$0xff]
        %v467 = vld [vmem:[%s440 + $0x98] sm:$0xff]
        %v468 = vld [vmem:[%s440 + $0xa0] sm:$0xff]
        %v469 = vld [vmem:[%s440 + $0xa8] sm:$0xff]
        %v470 = vld [vmem:[%s440 + $0xb0] sm:$0xff]
        %v471 = vld [vmem:[%s440 + $0xb8] sm:$0xff]
        %v472 = vld [vmem:[%s440 + $0xc0] sm:$0xff]
        %v473 = vld [vmem:[%s440 + $0xc8] sm:$0xff]
        %v474 = vld [vmem:[%s440 + $0xd0] sm:$0xff]
        %v475 = vld [vmem:[%s440 + $0xd8] sm:$0xff]
        %v476 = vld [vmem:[%s440 + $0xe0] sm:$0xff]
        %v477 = vld [vmem:[%s440 + $0xe8] sm:$0xff]
        %v478 = vld [vmem:[%s440 + $0xf0] sm:$0xff]
        %v479 = vld [vmem:[%s440 + $0xf8] sm:$0xff]
        %v480 = vld [vmem:[#allocation2] sm:$0xff]
        %v481 = vld [vmem:[#allocation2 + $0x8] sm:$0xff]
        %v482 = vld [vmem:[#allocation2 + $0x10] sm:$0xff]
        %v483 = vld [vmem:[#allocation2 + $0x18] sm:$0xff]
        %v484 = vld [vmem:[#allocation2 + $0x20] sm:$0xff]
        %v485 = vld [vmem:[#allocation2 + $0x28] sm:$0xff]
        %v486 = vld [vmem:[#allocation2 + $0x30] sm:$0xff]
        %v487 = vld [vmem:[#allocation2 + $0x38] sm:$0xff]
        %v488 = vld [vmem:[#allocation2 + $0x40] sm:$0xff]
        %v489 = vld [vmem:[#allocation2 + $0x48] sm:$0xff]
        %v490 = vld [vmem:[#allocation2 + $0x50] sm:$0xff]
        %v491 = vld [vmem:[#allocation2 + $0x58] sm:$0xff]
        %v492 = vld [vmem:[#allocation2 + $0x60] sm:$0xff]
        %v493 = vld [vmem:[#allocation2 + $0x68] sm:$0xff]
        %v494 = vld [vmem:[#allocation2 + $0x70] sm:$0xff]
        %v495 = vld [vmem:[#allocation2 + $0x78] sm:$0xff]
        %v496 = vld [vmem:[#allocation2 + $0x80] sm:$0xff]
        %v497 = vld [vmem:[#allocation2 + $0x88] sm:$0xff]
        %v498 = vld [vmem:[#allocation2 + $0x90] sm:$0xff]
        %v499 = vld [vmem:[#allocation2 + $0x98] sm:$0xff]
        %v500 = vld [vmem:[#allocation2 + $0xa0] sm:$0xff]
        %v501 = vld [vmem:[#allocation2 + $0xa8] sm:$0xff]
        %v502 = vld [vmem:[#allocation2 + $0xb0] sm:$0xff]
        %v503 = vld [vmem:[#allocation2 + $0xb8] sm:$0xff]
        %v504 = vld [vmem:[#allocation2 + $0xc0] sm:$0xff]
        %v505 = vld [vmem:[#allocation2 + $0xc8] sm:$0xff]
        %v506 = vld [vmem:[#allocation2 + $0xd0] sm:$0xff]
        %v507 = vld [vmem:[#allocation2 + $0xd8] sm:$0xff]
        %v508 = vld [vmem:[#allocation2 + $0xe0] sm:$0xff]
        %v509 = vld [vmem:[#allocation2 + $0xe8] sm:$0xff]
        %v510 = vld [vmem:[#allocation2 + $0xf0] sm:$0xff]
        %v511 = vld [vmem:[#allocation2 + $0xf8] sm:$0xff]
        %v512 = vld [vmem:[#allocation2 + $0x100] sm:$0xff]
        %v513 = vld [vmem:[#allocation2 + $0x108] sm:$0xff]
        %v514 = vld [vmem:[#allocation2 + $0x110] sm:$0xff]
        %v515 = vld [vmem:[#allocation2 + $0x118] sm:$0xff]
        %v516 = vld [vmem:[#allocation2 + $0x120] sm:$0xff]
        %v517 = vld [vmem:[#allocation2 + $0x128] sm:$0xff]
        %v518 = vld [vmem:[#allocation2 + $0x130] sm:$0xff]
        %v519 = vld [vmem:[#allocation2 + $0x138] sm:$0xff]
        %v520 = vld [vmem:[#allocation2 + $0x140] sm:$0xff]
        %v521 = vld [vmem:[#allocation2 + $0x148] sm:$0xff]
        %v522 = vld [vmem:[#allocation2 + $0x150] sm:$0xff]
        %v523 = vld [vmem:[#allocation2 + $0x158] sm:$0xff]
        %v524 = vld [vmem:[#allocation2 + $0x160] sm:$0xff]
        %v525 = vld [vmem:[#allocation2 + $0x168] sm:$0xff]
        %v526 = vld [vmem:[#allocation2 + $0x170] sm:$0xff]
        %v527 = vld [vmem:[#allocation2 + $0x178] sm:$0xff]
        %v528 = vld [vmem:[#allocation2 + $0x180] sm:$0xff]
        %v529 = vld [vmem:[#allocation2 + $0x188] sm:$0xff]
        %v530 = vld [vmem:[#allocation2 + $0x190] sm:$0xff]
        %v531 = vld [vmem:[#allocation2 + $0x198] sm:$0xff]
        %v532 = vld [vmem:[#allocation2 + $0x1a0] sm:$0xff]
        %v533 = vld [vmem:[#allocation2 + $0x1a8] sm:$0xff]
        %v534 = vld [vmem:[#allocation2 + $0x1b0] sm:$0xff]
        %v535 = vld [vmem:[#allocation2 + $0x1b8] sm:$0xff]
        %v536 = vld [vmem:[#allocation2 + $0x1c0] sm:$0xff]
        %v537 = vld [vmem:[#allocation2 + $0x1c8] sm:$0xff]
        %v538 = vld [vmem:[#allocation2 + $0x1d0] sm:$0xff]
        %v539 = vld [vmem:[#allocation2 + $0x1d8] sm:$0xff]
        %v540 = vld [vmem:[#allocation2 + $0x1e0] sm:$0xff]
        %v541 = vld [vmem:[#allocation2 + $0x1e8] sm:$0xff]
        %v542 = vld [vmem:[#allocation2 + $0x1f0] sm:$0xff]
        %v543 = vld [vmem:[#allocation2 + $0x1f8] sm:$0xff]
        %v544 = vld [vmem:[#allocation2 + $0x200] sm:$0xff]
        %v545 = vld [vmem:[#allocation2 + $0x208] sm:$0xff]
        %v546 = vld [vmem:[#allocation2 + $0x210] sm:$0xff]
        %v547 = vld [vmem:[#allocation2 + $0x218] sm:$0xff]
        %v548 = vld [vmem:[#allocation2 + $0x220] sm:$0xff]
        %v549 = vld [vmem:[#allocation2 + $0x228] sm:$0xff]
        %v550 = vld [vmem:[#allocation2 + $0x230] sm:$0xff]
        %v551 = vld [vmem:[#allocation2 + $0x238] sm:$0xff]
        %v552 = vld [vmem:[#allocation2 + $0x240] sm:$0xff]
        %v553 = vld [vmem:[#allocation2 + $0x248] sm:$0xff]
        %v554 = vld [vmem:[#allocation2 + $0x250] sm:$0xff]
        %v555 = vld [vmem:[#allocation2 + $0x258] sm:$0xff]
        %v556 = vld [vmem:[#allocation2 + $0x260] sm:$0xff]
        %v557 = vld [vmem:[#allocation2 + $0x268] sm:$0xff]
        %v558 = vld [vmem:[#allocation2 + $0x270] sm:$0xff]
        %v559 = vld [vmem:[#allocation2 + $0x278] sm:$0xff]
        %v560 = vld [vmem:[#allocation2 + $0x280] sm:$0xff]
        %v561 = vld [vmem:[#allocation2 + $0x288] sm:$0xff]
        %v562 = vld [vmem:[#allocation2 + $0x290] sm:$0xff]
        %v563 = vld [vmem:[#allocation2 + $0x298] sm:$0xff]
        %v564 = vld [vmem:[#allocation2 + $0x2a0] sm:$0xff]
        %v565 = vld [vmem:[#allocation2 + $0x2a8] sm:$0xff]
        %v566 = vld [vmem:[#allocation2 + $0x2b0] sm:$0xff]
        %v567 = vld [vmem:[#allocation2 + $0x2b8] sm:$0xff]
        %v568 = vld [vmem:[#allocation2 + $0x2c0] sm:$0xff]
        %v569 = vld [vmem:[#allocation2 + $0x2c8] sm:$0xff]
        %v570 = vld [vmem:[#allocation2 + $0x2d0] sm:$0xff]
        %v571 = vld [vmem:[#allocation2 + $0x2d8] sm:$0xff]
        %v572 = vld [vmem:[#allocation2 + $0x2e0] sm:$0xff]
        %v573 = vld [vmem:[#allocation2 + $0x2e8] sm:$0xff]
        %v574 = vld [vmem:[#allocation2 + $0x2f0] sm:$0xff]
        %v575 = vld [vmem:[#allocation2 + $0x2f8] sm:$0xff]
        %v576 = vld [vmem:[#allocation2 + $0x300] sm:$0xff]
        %v577 = vld [vmem:[#allocation2 + $0x308] sm:$0xff]
        %v578 = vld [vmem:[#allocation2 + $0x310] sm:$0xff]
        %v579 = vld [vmem:[#allocation2 + $0x318] sm:$0xff]
        %v580 = vld [vmem:[#allocation2 + $0x320] sm:$0xff]
        %v581 = vld [vmem:[#allocation2 + $0x328] sm:$0xff]
        %v582 = vld [vmem:[#allocation2 + $0x330] sm:$0xff]
        %v583 = vld [vmem:[#allocation2 + $0x338] sm:$0xff]
        %v584 = vld [vmem:[#allocation2 + $0x340] sm:$0xff]
        %v585 = vld [vmem:[#allocation2 + $0x348] sm:$0xff]
        %v586 = vld [vmem:[#allocation2 + $0x350] sm:$0xff]
        %v587 = vld [vmem:[#allocation2 + $0x358] sm:$0xff]
        %v588 = vld [vmem:[#allocation2 + $0x360] sm:$0xff]
        %v589 = vld [vmem:[#allocation2 + $0x368] sm:$0xff]
        %v590 = vld [vmem:[#allocation2 + $0x370] sm:$0xff]
        %v591 = vld [vmem:[#allocation2 + $0x378] sm:$0xff]
        %v592 = vld [vmem:[#allocation2 + $0x380] sm:$0xff]
        %v593 = vld [vmem:[#allocation2 + $0x388] sm:$0xff]
        %v594 = vld [vmem:[#allocation2 + $0x390] sm:$0xff]
        %v595 = vld [vmem:[#allocation2 + $0x398] sm:$0xff]
        %v596 = vld [vmem:[#allocation2 + $0x3a0] sm:$0xff]
        %v597 = vld [vmem:[#allocation2 + $0x3a8] sm:$0xff]
        %v598 = vld [vmem:[#allocation2 + $0x3b0] sm:$0xff]
        %v599 = vld [vmem:[#allocation2 + $0x3b8] sm:$0xff]
        %v600 = vld [vmem:[#allocation2 + $0x3c0] sm:$0xff]
        %v601 = vld [vmem:[#allocation2 + $0x3c8] sm:$0xff]
        %v602 = vld [vmem:[#allocation2 + $0x3d0] sm:$0xff]
        %v603 = vld [vmem:[#allocation2 + $0x3d8] sm:$0xff]
        %v604 = vld [vmem:[#allocation2 + $0x3e0] sm:$0xff]
        %v605 = vld [vmem:[#allocation2 + $0x3e8] sm:$0xff]
        %v606 = vld [vmem:[#allocation2 + $0x3f0] sm:$0x7]
        %v607 = vld [vmem:[#allocation2 + $0x3f8] sm:$0x7]
        %v608 = vld [vmem:[#allocation2 + $0x400] sm:$0x7]
        %v609 = vld [vmem:[#allocation2 + $0x408] sm:$0x7]
        %v610 = vld [vmem:[#allocation2 + $0x410] sm:$0x7]
        %v611 = vld [vmem:[#allocation2 + $0x418] sm:$0x7]
        %v612 = vld [vmem:[#allocation2 + $0x420] sm:$0x7]
        %v613 = vld [vmem:[#allocation4] sm:$0x7f]
        %v615 = vlaneseq
        %v616 = vshrl.u32 %v615, 7
        %v617 = vsub.s32 0, %v616
        %v618 = vrot.slane %v613, %v617
        %v619 = vlaneseq
        %v620 = vshrl.u32 %v619, 7
        %v621 = vsub.s32 1, %v620
        %v622 = vrot.slane %v613, %v621
        %v623 = vlaneseq
        %v624 = vshrl.u32 %v623, 7
        %v625 = vsub.s32 2, %v624
        %v626 = vrot.slane %v613, %v625
        %v627 = vlaneseq
        %v628 = vshrl.u32 %v627, 7
        %v629 = vsub.s32 3, %v628
        %v630 = vrot.slane %v613, %v629
        %v631 = vlaneseq
        %v632 = vshrl.u32 %v631, 7
        %v633 = vsub.s32 4, %v632
        %v634 = vrot.slane %v613, %v633
        %v635 = vlaneseq
        %v636 = vshrl.u32 %v635, 7
        %v637 = vsub.s32 5, %v636
        %v638 = vrot.slane %v613, %v637
        %v639 = vlaneseq
        %v640 = vshrl.u32 %v639, 7
        %v641 = vsub.s32 6, %v640
        %v642 = vrot.slane %v613, %v641
        %vm650 = vcmask 154624
        %v652 = vsel %vm650, %v449, 0
        %v655 = vsel %vm650, %v451, 0
        %v658 = vsel %vm650, %v453, 0
        %v661 = vsel %vm650, %v455, 0
        %v664 = vsel %vm650, %v457, 0
        %v667 = vsel %vm650, %v459, 0
        %v670 = vsel %vm650, %v461, 0
        %v673 = vsel %vm650, %v463, 0
        %v676 = vsel %vm650, %v465, 0
        %v679 = vsel %vm650, %v467, 0
        %v682 = vsel %vm650, %v469, 0
        %v685 = vsel %vm650, %v471, 0
        %v688 = vsel %vm650, %v473, 0
        %v691 = vsel %vm650, %v475, 0
        %v694 = vsel %vm650, %v477, 0
        %v697 = vsel %vm650, %v479, 0
        %vm699 = vcmask 1042432
        %v701 = vsel %vm699, %v606, 0
        %v704 = vsel %vm699, %v607, 0
        %v707 = vsel %vm699, %v608, 0
        %v710 = vsel %vm699, %v609, 0
        %v713 = vsel %vm699, %v610, 0
        %v716 = vsel %vm699, %v611, 0
        %v719 = vsel %vm699, %v612, 0
        %721 = vmatprep.subr.mxu0 %v481
        %722 = vmatpush1.msra.mxu0 %v480
        %723 = vmatprep.subr.mxu0 %v488
        %724 = vmatpush1.msra.mxu0 %v487
        %725 = vmatprep.subr.mxu0 %v495
        %726 = vmatpush1.msra.mxu0 %v494
        %727 = vmatprep.subr.mxu0 %v502
        %728 = vmatpush1.msra.mxu0 %v501
        %729 = vmatprep.subr.mxu0 %v509
        %730 = vmatpush1.msra.mxu0 %v508
        %731 = vmatprep.subr.mxu0 %v516
        %732 = vmatpush1.msra.mxu0 %v515
        %733 = vmatprep.subr.mxu0 %v523
        %734 = vmatpush1.msra.mxu0 %v522
        %735 = vmatprep.subr.mxu0 %v530
        %736 = vmatpush1.msra.mxu0 %v529
        %737 = vmatprep.subr.mxu0 %v537
        %738 = vmatpush1.msra.mxu0 %v536
        %739 = vmatprep.subr.mxu0 %v544
        %740 = vmatpush1.msra.mxu0 %v543
        %741 = vmatprep.subr.mxu0 %v551
        %742 = vmatpush1.msra.mxu0 %v550
        %743 = vmatprep.subr.mxu0 %v558
        %744 = vmatpush1.msra.mxu0 %v557
        %745 = vmatprep.subr.mxu0 %v565
        %746 = vmatpush1.msra.mxu0 %v564
        %747 = vmatprep.subr.mxu0 %v572
        %748 = vmatpush1.msra.mxu0 %v571
        %749 = vmatprep.subr.mxu0 %v579
        %750 = vmatpush1.msra.mxu0 %v578
        %751 = vmatprep.subr.mxu0 %v586
        %752 = vmatpush1.msra.mxu0 %v585
        %753 = vmatprep.subr.mxu0 %v593
        %754 = vmatpush1.msra.mxu0 %v592
        %755 = vmatprep.subr.mxu0 %v600
        %756 = vmatpush1.msra.mxu0 %v599
        %757 = vmatprep.subr.mxu0 %v704
        %758 = vmatpush1.msra.mxu0 %v701
        %759 = vmatprep.subr.mxu0 0.0
        %760 = vmatpush1.msra.mxu0 0.0
        %761 = vmatprep.subr.mxu0 0.0
        %762 = vmatpush1.msra.mxu0 0.0
        %763 = vmatprep.subr.mxu0 0.0
        %764 = vmatpush1.msra.mxu0 0.0
        %765 = vmatprep.subr.mxu0 0.0
        %766 = vmatpush1.msra.mxu0 0.0
        %767 = vmatprep.subr.mxu0 0.0
        %768 = vmatpush1.msra.mxu0 0.0
        %769 = vmatprep.subr.mxu0 0.0
        %770 = vmatpush1.msra.mxu0 0.0
        %771 = vmatprep.subr.mxu0 0.0
        %772 = vmatpush1.msra.mxu0 0.0
        %773 = vmatprep.subr.mxu0 0.0
        %774 = vmatpush1.msra.mxu0 0.0
        %775 = vmatprep.subr.mxu0 0.0
        %776 = vmatpush1.msra.mxu0 0.0
        %777 = vmatprep.subr.mxu0 0.0
        %778 = vmatpush1.msra.mxu0 0.0
        %779 = vmatprep.subr.mxu0 0.0
        %780 = vmatpush1.msra.mxu0 0.0
        %781 = vmatprep.subr.mxu0 0.0
        %782 = vmatpush1.msra.mxu0 0.0
        %783 = vmatprep.subr.mxu0 0.0
        %784 = vmatpush1.msra.mxu0 0.0
        %785 = vmatprep.mubr.f32.mxu0 %v652
        %786 = vmatmul.mubr.f32.gmra.mrb[0].mxu0 %v448
        %v787 = vpop.f32.mrb[0].mxu0
        %v788 = vadd.f32 %v618, %v787
        %v789 = vpop.f32.mrb[0].mxu0
        %v790 = vadd.f32 %v622, %v789
        %791 = vmatprep.mubr.f32.mxu0 %v655
        %792 = vmatmul.mubr.f32.gmra.mrb[0].mxu0 %v450
        %v793 = vpop.f32.mrb[0].mxu0
        %v794 = vadd.f32 %v618, %v793
        %v795 = vpop.f32.mrb[0].mxu0
        %v796 = vadd.f32 %v622, %v795
        %797 = vmatprep.mubr.f32.mxu0 %v658
        %798 = vmatmul.mubr.f32.gmra.mrb[0].mxu0 %v452
        %v799 = vpop.f32.mrb[0].mxu0
        %v800 = vadd.f32 %v618, %v799
        %v801 = vpop.f32.mrb[0].mxu0
        %v802 = vadd.f32 %v622, %v801
        %803 = vmatprep.mubr.f32.mxu0 %v661
        %804 = vmatmul.mubr.f32.gmra.mrb[0].mxu0 %v454
        %v805 = vpop.f32.mrb[0].mxu0
        %v806 = vadd.f32 %v618, %v805
        %v807 = vpop.f32.mrb[0].mxu0
        %v808 = vadd.f32 %v622, %v807
        %809 = vmatprep.mubr.f32.mxu0 %v664
        %810 = vmatmul.mubr.f32.gmra.mrb[0].mxu0 %v456
        %v811 = vpop.f32.mrb[0].mxu0
        %v812 = vadd.f32 %v618, %v811
        %v813 = vpop.f32.mrb[0].mxu0
        %v814 = vadd.f32 %v622, %v813
        %815 = vmatprep.mubr.f32.mxu0 %v667
        %816 = vmatmul.mubr.f32.gmra.mrb[0].mxu0 %v458
        %v817 = vpop.f32.mrb[0].mxu0
        %v818 = vadd.f32 %v618, %v817
        %v819 = vpop.f32.mrb[0].mxu0
        %v820 = vadd.f32 %v622, %v819
        %821 = vmatprep.mubr.f32.mxu0 %v670
        %822 = vmatmul.mubr.f32.gmra.mrb[0].mxu0 %v460
        %v823 = vpop.f32.mrb[0].mxu0
        %v824 = vadd.f32 %v618, %v823
        %v825 = vpop.f32.mrb[0].mxu0
        %v826 = vadd.f32 %v622, %v825
        %827 = vmatprep.mubr.f32.mxu0 %v673
        %828 = vmatmul.mubr.f32.gmra.mrb[0].mxu0 %v462
        %v829 = vpop.f32.mrb[0].mxu0
        %v830 = vadd.f32 %v618, %v829
        %v831 = vpop.f32.mrb[0].mxu0
        %v832 = vadd.f32 %v622, %v831
        %833 = vmatprep.mubr.f32.mxu0 %v676
        %834 = vmatmul.mubr.f32.gmra.mrb[0].mxu0 %v464
        %v835 = vpop.f32.mrb[0].mxu0
        %v836 = vadd.f32 %v618, %v835
        %v837 = vpop.f32.mrb[0].mxu0
        %v838 = vadd.f32 %v622, %v837
        %839 = vmatprep.mubr.f32.mxu0 %v679
        %840 = vmatmul.mubr.f32.gmra.mrb[0].mxu0 %v466
        %v841 = vpop.f32.mrb[0].mxu0
        %v842 = vadd.f32 %v618, %v841
        %v843 = vpop.f32.mrb[0].mxu0
        %v844 = vadd.f32 %v622, %v843
        %845 = vmatprep.mubr.f32.mxu0 %v682
        %846 = vmatmul.mubr.f32.gmra.mrb[0].mxu0 %v468
        %v847 = vpop.f32.mrb[0].mxu0
        %v848 = vadd.f32 %v618, %v847
        %v849 = vpop.f32.mrb[0].mxu0
        %v850 = vadd.f32 %v622, %v849
        %851 = vmatprep.mubr.f32.mxu0 %v685
        %852 = vmatmul.mubr.f32.gmra.mrb[0].mxu0 %v470
        %v853 = vpop.f32.mrb[0].mxu0
        %v854 = vadd.f32 %v618, %v853
        %v855 = vpop.f32.mrb[0].mxu0
        %v856 = vadd.f32 %v622, %v855
        %857 = vmatprep.mubr.f32.mxu0 %v688
        %858 = vmatmul.mubr.f32.gmra.mrb[0].mxu0 %v472
        %v859 = vpop.f32.mrb[0].mxu0
        %v860 = vadd.f32 %v618, %v859
        %v861 = vpop.f32.mrb[0].mxu0
        %v862 = vadd.f32 %v622, %v861
        %863 = vmatprep.mubr.f32.mxu0 %v691
        %864 = vmatmul.mubr.f32.gmra.mrb[0].mxu0 %v474
        %v865 = vpop.f32.mrb[0].mxu0
        %v866 = vadd.f32 %v618, %v865
        %v867 = vpop.f32.mrb[0].mxu0
        %v868 = vadd.f32 %v622, %v867
        %869 = vmatprep.mubr.f32.mxu0 %v694
        %870 = vmatmul.mubr.f32.gmra.mrb[0].mxu0 %v476
        %v871 = vpop.f32.mrb[0].mxu0
        %v872 = vadd.f32 %v618, %v871
        %v873 = vpop.f32.mrb[0].mxu0
        %v874 = vadd.f32 %v622, %v873
        %875 = vmatprep.mubr.f32.mxu0 %v697
        %876 = vmatmul.mubr.f32.gmra.mrb[0].mxu0 %v478
        %v877 = vpop.f32.mrb[0].mxu0
        %v878 = vadd.f32 %v618, %v877
        %v879 = vpop.f32.mrb[0].mxu0
        %v880 = vadd.f32 %v622, %v879
        %881 = vdwg.mxu0
        %882 = vmatprep.subr.mxu0 %v483
        %883 = vmatpush1.msra.mxu0 %v482
        %884 = vmatprep.subr.mxu0 %v490
        %885 = vmatpush1.msra.mxu0 %v489
        %886 = vmatprep.subr.mxu0 %v497
        %887 = vmatpush1.msra.mxu0 %v496
        %888 = vmatprep.subr.mxu0 %v504
        %889 = vmatpush1.msra.mxu0 %v503
        %890 = vmatprep.subr.mxu0 %v511
        %891 = vmatpush1.msra.mxu0 %v510
        %892 = vmatprep.subr.mxu0 %v518
        %893 = vmatpush1.msra.mxu0 %v517
        %894 = vmatprep.subr.mxu0 %v525
        %895 = vmatpush1.msra.mxu0 %v524
        %896 = vmatprep.subr.mxu0 %v532
        %897 = vmatpush1.msra.mxu0 %v531
        %898 = vmatprep.subr.mxu0 %v539
        %899 = vmatpush1.msra.mxu0 %v538
        %900 = vmatprep.subr.mxu0 %v546
        %901 = vmatpush1.msra.mxu0 %v545
        %902 = vmatprep.subr.mxu0 %v553
        %903 = vmatpush1.msra.mxu0 %v552
        %904 = vmatprep.subr.mxu0 %v560
        %905 = vmatpush1.msra.mxu0 %v559
        %906 = vmatprep.subr.mxu0 %v567
        %907 = vmatpush1.msra.mxu0 %v566
        %908 = vmatprep.subr.mxu0 %v574
        %909 = vmatpush1.msra.mxu0 %v573
        %910 = vmatprep.subr.mxu0 %v581
        %911 = vmatpush1.msra.mxu0 %v580
        %912 = vmatprep.subr.mxu0 %v588
        %913 = vmatpush1.msra.mxu0 %v587
        %914 = vmatprep.subr.mxu0 %v595
        %915 = vmatpush1.msra.mxu0 %v594
        %916 = vmatprep.subr.mxu0 %v602
        %917 = vmatpush1.msra.mxu0 %v601
        %918 = vmatprep.subr.mxu0 %v710
        %919 = vmatpush1.msra.mxu0 %v707
        %920 = vmatprep.subr.mxu0 0.0
        %921 = vmatpush1.msra.mxu0 0.0
        %922 = vmatprep.subr.mxu0 0.0
        %923 = vmatpush1.msra.mxu0 0.0
        %924 = vmatprep.subr.mxu0 0.0
        %925 = vmatpush1.msra.mxu0 0.0
        %926 = vmatprep.subr.mxu0 0.0
        %927 = vmatpush1.msra.mxu0 0.0
        %928 = vmatprep.subr.mxu0 0.0
        %929 = vmatpush1.msra.mxu0 0.0
        %930 = vmatprep.subr.mxu0 0.0
        %931 = vmatpush1.msra.mxu0 0.0
        %932 = vmatprep.subr.mxu0 0.0
        %933 = vmatpush1.msra.mxu0 0.0
        %934 = vmatprep.subr.mxu0 0.0
        %935 = vmatpush1.msra.mxu0 0.0
        %936 = vmatprep.subr.mxu0 0.0
        %937 = vmatpush1.msra.mxu0 0.0
        %938 = vmatprep.subr.mxu0 0.0
        %939 = vmatpush1.msra.mxu0 0.0
        %940 = vmatprep.subr.mxu0 0.0
        %941 = vmatpush1.msra.mxu0 0.0
        %942 = vmatprep.subr.mxu0 0.0
        %943 = vmatpush1.msra.mxu0 0.0
        %944 = vmatprep.subr.mxu0 0.0
        %945 = vmatpush1.msra.mxu0 0.0
        %946 = vmatprep.mubr.f32.mxu0 %v652
        %947 = vmatmul.mubr.f32.gmra.mrb[0].mxu0 %v448
        %v948 = vpop.f32.mrb[0].mxu0
        %v949 = vadd.f32 %v626, %v948
        %v950 = vpop.f32.mrb[0].mxu0
        %v951 = vadd.f32 %v630, %v950
        %952 = vmatprep.mubr.f32.mxu0 %v655
        %953 = vmatmul.mubr.f32.gmra.mrb[0].mxu0 %v450
        %v954 = vpop.f32.mrb[0].mxu0
        %v955 = vadd.f32 %v626, %v954
        %v956 = vpop.f32.mrb[0].mxu0
        %v957 = vadd.f32 %v630, %v956
        %958 = vmatprep.mubr.f32.mxu0 %v658
        %959 = vmatmul.mubr.f32.gmra.mrb[0].mxu0 %v452
        %v960 = vpop.f32.mrb[0].mxu0
        %v961 = vadd.f32 %v626, %v960
        %v962 = vpop.f32.mrb[0].mxu0
        %v963 = vadd.f32 %v630, %v962
        %964 = vmatprep.mubr.f32.mxu0 %v661
        %965 = vmatmul.mubr.f32.gmra.mrb[0].mxu0 %v454
        %v966 = vpop.f32.mrb[0].mxu0
        %v967 = vadd.f32 %v626, %v966
        %v968 = vpop.f32.mrb[0].mxu0
        %v969 = vadd.f32 %v630, %v968
        %970 = vmatprep.mubr.f32.mxu0 %v664
        %971 = vmatmul.mubr.f32.gmra.mrb[0].mxu0 %v456
        %v972 = vpop.f32.mrb[0].mxu0
        %v973 = vadd.f32 %v626, %v972
        %v974 = vpop.f32.mrb[0].mxu0
        %v975 = vadd.f32 %v630, %v974
        %976 = vmatprep.mubr.f32.mxu0 %v667
        %977 = vmatmul.mubr.f32.gmra.mrb[0].mxu0 %v458
        %v978 = vpop.f32.mrb[0].mxu0
        %v979 = vadd.f32 %v626, %v978
        %v980 = vpop.f32.mrb[0].mxu0
        %v981 = vadd.f32 %v630, %v980
        %982 = vmatprep.mubr.f32.mxu0 %v670
        %983 = vmatmul.mubr.f32.gmra.mrb[0].mxu0 %v460
        %v984 = vpop.f32.mrb[0].mxu0
        %v985 = vadd.f32 %v626, %v984
        %v986 = vpop.f32.mrb[0].mxu0
        %v987 = vadd.f32 %v630, %v986
        %988 = vmatprep.mubr.f32.mxu0 %v673
        %989 = vmatmul.mubr.f32.gmra.mrb[0].mxu0 %v462
        %v990 = vpop.f32.mrb[0].mxu0
        %v991 = vadd.f32 %v626, %v990
        %v992 = vpop.f32.mrb[0].mxu0
        %v993 = vadd.f32 %v630, %v992
        %994 = vmatprep.mubr.f32.mxu0 %v676
        %995 = vmatmul.mubr.f32.gmra.mrb[0].mxu0 %v464
        %v996 = vpop.f32.mrb[0].mxu0
        %v997 = vadd.f32 %v626, %v996
        %v998 = vpop.f32.mrb[0].mxu0
        %v999 = vadd.f32 %v630, %v998
        %1000 = vmatprep.mubr.f32.mxu0 %v679
        %1001 = vmatmul.mubr.f32.gmra.mrb[0].mxu0 %v466
        %v1002 = vpop.f32.mrb[0].mxu0
        %v1003 = vadd.f32 %v626, %v1002
        %v1004 = vpop.f32.mrb[0].mxu0
        %v1005 = vadd.f32 %v630, %v1004
        %1006 = vmatprep.mubr.f32.mxu0 %v682
        %1007 = vmatmul.mubr.f32.gmra.mrb[0].mxu0 %v468
        %v1008 = vpop.f32.mrb[0].mxu0
        %v1009 = vadd.f32 %v626, %v1008
        %v1010 = vpop.f32.mrb[0].mxu0
        %v1011 = vadd.f32 %v630, %v1010
        %1012 = vmatprep.mubr.f32.mxu0 %v685
        %1013 = vmatmul.mubr.f32.gmra.mrb[0].mxu0 %v470
        %v1014 = vpop.f32.mrb[0].mxu0
        %v1015 = vadd.f32 %v626, %v1014
        %v1016 = vpop.f32.mrb[0].mxu0
        %v1017 = vadd.f32 %v630, %v1016
        %1018 = vmatprep.mubr.f32.mxu0 %v688
        %1019 = vmatmul.mubr.f32.gmra.mrb[0].mxu0 %v472
        %v1020 = vpop.f32.mrb[0].mxu0
        %v1021 = vadd.f32 %v626, %v1020
        %v1022 = vpop.f32.mrb[0].mxu0
        %v1023 = vadd.f32 %v630, %v1022
        %1024 = vmatprep.mubr.f32.mxu0 %v691
        %1025 = vmatmul.mubr.f32.gmra.mrb[0].mxu0 %v474
        %v1026 = vpop.f32.mrb[0].mxu0
        %v1027 = vadd.f32 %v626, %v1026
        %v1028 = vpop.f32.mrb[0].mxu0
        %v1029 = vadd.f32 %v630, %v1028
        %1030 = vmatprep.mubr.f32.mxu0 %v694
        %1031 = vmatmul.mubr.f32.gmra.mrb[0].mxu0 %v476
        %v1032 = vpop.f32.mrb[0].mxu0
        %v1033 = vadd.f32 %v626, %v1032
        %v1034 = vpop.f32.mrb[0].mxu0
        %v1035 = vadd.f32 %v630, %v1034
        %1036 = vmatprep.mubr.f32.mxu0 %v697
        %1037 = vmatmul.mubr.f32.gmra.mrb[0].mxu0 %v478
        %v1038 = vpop.f32.mrb[0].mxu0
        %v1039 = vadd.f32 %v626, %v1038
        %v1040 = vpop.f32.mrb[0].mxu0
        %v1041 = vadd.f32 %v630, %v1040
        %1042 = vdwg.mxu0
        %1043 = vmatprep.subr.mxu0 %v485
        %1044 = vmatpush1.msra.mxu0 %v484
        %1045 = vmatprep.subr.mxu0 %v492
        %1046 = vmatpush1.msra.mxu0 %v491
        %1047 = vmatprep.subr.mxu0 %v499
        %1048 = vmatpush1.msra.mxu0 %v498
        %1049 = vmatprep.subr.mxu0 %v506
        %1050 = vmatpush1.msra.mxu0 %v505
        %1051 = vmatprep.subr.mxu0 %v513
        %1052 = vmatpush1.msra.mxu0 %v512
        %1053 = vmatprep.subr.mxu0 %v520
        %1054 = vmatpush1.msra.mxu0 %v519
        %1055 = vmatprep.subr.mxu0 %v527
        %1056 = vmatpush1.msra.mxu0 %v526
        %1057 = vmatprep.subr.mxu0 %v534
        %1058 = vmatpush1.msra.mxu0 %v533
        %1059 = vmatprep.subr.mxu0 %v541
        %1060 = vmatpush1.msra.mxu0 %v540
        %1061 = vmatprep.subr.mxu0 %v548
        %1062 = vmatpush1.msra.mxu0 %v547
        %1063 = vmatprep.subr.mxu0 %v555
        %1064 = vmatpush1.msra.mxu0 %v554
        %1065 = vmatprep.subr.mxu0 %v562
        %1066 = vmatpush1.msra.mxu0 %v561
        %1067 = vmatprep.subr.mxu0 %v569
        %1068 = vmatpush1.msra.mxu0 %v568
        %1069 = vmatprep.subr.mxu0 %v576
        %1070 = vmatpush1.msra.mxu0 %v575
        %1071 = vmatprep.subr.mxu0 %v583
        %1072 = vmatpush1.msra.mxu0 %v582
        %1073 = vmatprep.subr.mxu0 %v590
        %1074 = vmatpush1.msra.mxu0 %v589
        %1075 = vmatprep.subr.mxu0 %v597
        %1076 = vmatpush1.msra.mxu0 %v596
        %1077 = vmatprep.subr.mxu0 %v604
        %1078 = vmatpush1.msra.mxu0 %v603
        %1079 = vmatprep.subr.mxu0 %v716
        %1080 = vmatpush1.msra.mxu0 %v713
        %1081 = vmatprep.subr.mxu0 0.0
        %1082 = vmatpush1.msra.mxu0 0.0
        %1083 = vmatprep.subr.mxu0 0.0
        %1084 = vmatpush1.msra.mxu0 0.0
        %1085 = vmatprep.subr.mxu0 0.0
        %1086 = vmatpush1.msra.mxu0 0.0
        %1087 = vmatprep.subr.mxu0 0.0
        %1088 = vmatpush1.msra.mxu0 0.0
        %1089 = vmatprep.subr.mxu0 0.0
        %1090 = vmatpush1.msra.mxu0 0.0
        %1091 = vmatprep.subr.mxu0 0.0
        %1092 = vmatpush1.msra.mxu0 0.0
        %1093 = vmatprep.subr.mxu0 0.0
        %1094 = vmatpush1.msra.mxu0 0.0
        %1095 = vmatprep.subr.mxu0 0.0
        %1096 = vmatpush1.msra.mxu0 0.0
        %1097 = vmatprep.subr.mxu0 0.0
        %1098 = vmatpush1.msra.mxu0 0.0
        %1099 = vmatprep.subr.mxu0 0.0
        %1100 = vmatpush1.msra.mxu0 0.0
        %1101 = vmatprep.subr.mxu0 0.0
        %1102 = vmatpush1.msra.mxu0 0.0
        %1103 = vmatprep.subr.mxu0 0.0
        %1104 = vmatpush1.msra.mxu0 0.0
        %1105 = vmatprep.subr.mxu0 0.0
        %1106 = vmatpush1.msra.mxu0 0.0
        %1107 = vmatprep.mubr.f32.mxu0 %v652
        %1108 = vmatmul.mubr.f32.gmra.mrb[0].mxu0 %v448
        %v1109 = vpop.f32.mrb[0].mxu0
        %v1110 = vadd.f32 %v634, %v1109
        %v1111 = vpop.f32.mrb[0].mxu0
        %v1112 = vadd.f32 %v638, %v1111
        %1113 = vmatprep.mubr.f32.mxu0 %v655
        %1114 = vmatmul.mubr.f32.gmra.mrb[0].mxu0 %v450
        %v1115 = vpop.f32.mrb[0].mxu0
        %v1116 = vadd.f32 %v634, %v1115
        %v1117 = vpop.f32.mrb[0].mxu0
        %v1118 = vadd.f32 %v638, %v1117
        %1119 = vmatprep.mubr.f32.mxu0 %v658
        %1120 = vmatmul.mubr.f32.gmra.mrb[0].mxu0 %v452
        %v1121 = vpop.f32.mrb[0].mxu0
        %v1122 = vadd.f32 %v634, %v1121
        %v1123 = vpop.f32.mrb[0].mxu0
        %v1124 = vadd.f32 %v638, %v1123
        %1125 = vmatprep.mubr.f32.mxu0 %v661
        %1126 = vmatmul.mubr.f32.gmra.mrb[0].mxu0 %v454
        %v1127 = vpop.f32.mrb[0].mxu0
        %v1128 = vadd.f32 %v634, %v1127
        %v1129 = vpop.f32.mrb[0].mxu0
        %v1130 = vadd.f32 %v638, %v1129
        %1131 = vmatprep.mubr.f32.mxu0 %v664
        %1132 = vmatmul.mubr.f32.gmra.mrb[0].mxu0 %v456
        %v1133 = vpop.f32.mrb[0].mxu0
        %v1134 = vadd.f32 %v634, %v1133
        %v1135 = vpop.f32.mrb[0].mxu0
        %v1136 = vadd.f32 %v638, %v1135
        %1137 = vmatprep.mubr.f32.mxu0 %v667
        %1138 = vmatmul.mubr.f32.gmra.mrb[0].mxu0 %v458
        %v1139 = vpop.f32.mrb[0].mxu0
        %v1140 = vadd.f32 %v634, %v1139
        %v1141 = vpop.f32.mrb[0].mxu0
        %v1142 = vadd.f32 %v638, %v1141
        %1143 = vmatprep.mubr.f32.mxu0 %v670
        %1144 = vmatmul.mubr.f32.gmra.mrb[0].mxu0 %v460
        %v1145 = vpop.f32.mrb[0].mxu0
        %v1146 = vadd.f32 %v634, %v1145
        %v1147 = vpop.f32.mrb[0].mxu0
        %v1148 = vadd.f32 %v638, %v1147
        %1149 = vmatprep.mubr.f32.mxu0 %v673
        %1150 = vmatmul.mubr.f32.gmra.mrb[0].mxu0 %v462
        %v1151 = vpop.f32.mrb[0].mxu0
        %v1152 = vadd.f32 %v634, %v1151
        %v1153 = vpop.f32.mrb[0].mxu0
        %v1154 = vadd.f32 %v638, %v1153
        %1155 = vmatprep.mubr.f32.mxu0 %v676
        %1156 = vmatmul.mubr.f32.gmra.mrb[0].mxu0 %v464
        %v1157 = vpop.f32.mrb[0].mxu0
        %v1158 = vadd.f32 %v634, %v1157
        %v1159 = vpop.f32.mrb[0].mxu0
        %v1160 = vadd.f32 %v638, %v1159
        %1161 = vmatprep.mubr.f32.mxu0 %v679
        %1162 = vmatmul.mubr.f32.gmra.mrb[0].mxu0 %v466
        %v1163 = vpop.f32.mrb[0].mxu0
        %v1164 = vadd.f32 %v634, %v1163
        %v1165 = vpop.f32.mrb[0].mxu0
        %v1166 = vadd.f32 %v638, %v1165
        %1167 = vmatprep.mubr.f32.mxu0 %v682
        %1168 = vmatmul.mubr.f32.gmra.mrb[0].mxu0 %v468
        %v1169 = vpop.f32.mrb[0].mxu0
        %v1170 = vadd.f32 %v634, %v1169
        %v1171 = vpop.f32.mrb[0].mxu0
        %v1172 = vadd.f32 %v638, %v1171
        %1173 = vmatprep.mubr.f32.mxu0 %v685
        %1174 = vmatmul.mubr.f32.gmra.mrb[0].mxu0 %v470
        %v1175 = vpop.f32.mrb[0].mxu0
        %v1176 = vadd.f32 %v634, %v1175
        %v1177 = vpop.f32.mrb[0].mxu0
        %v1178 = vadd.f32 %v638, %v1177
        %1179 = vmatprep.mubr.f32.mxu0 %v688
        %1180 = vmatmul.mubr.f32.gmra.mrb[0].mxu0 %v472
        %v1181 = vpop.f32.mrb[0].mxu0
        %v1182 = vadd.f32 %v634, %v1181
        %v1183 = vpop.f32.mrb[0].mxu0
        %v1184 = vadd.f32 %v638, %v1183
        %1185 = vmatprep.mubr.f32.mxu0 %v691
        %1186 = vmatmul.mubr.f32.gmra.mrb[0].mxu0 %v474
        %v1187 = vpop.f32.mrb[0].mxu0
        %v1188 = vadd.f32 %v634, %v1187
        %v1189 = vpop.f32.mrb[0].mxu0
        %v1190 = vadd.f32 %v638, %v1189
        %1191 = vmatprep.mubr.f32.mxu0 %v694
        %1192 = vmatmul.mubr.f32.gmra.mrb[0].mxu0 %v476
        %v1193 = vpop.f32.mrb[0].mxu0
        %v1194 = vadd.f32 %v634, %v1193
        %v1195 = vpop.f32.mrb[0].mxu0
        %v1196 = vadd.f32 %v638, %v1195
        %1197 = vmatprep.mubr.f32.mxu0 %v697
        %1198 = vmatmul.mubr.f32.gmra.mrb[0].mxu0 %v478
        %v1199 = vpop.f32.mrb[0].mxu0
        %v1200 = vadd.f32 %v634, %v1199
        %v1201 = vpop.f32.mrb[0].mxu0
        %v1202 = vadd.f32 %v638, %v1201
        %1203 = vdwg.mxu0
        %1204 = vmatprep.subr.mxu0 0.0
        %1205 = vmatpush1.msra.mxu0 %v486
        %1206 = vmatprep.subr.mxu0 0.0
        %1207 = vmatpush1.msra.mxu0 %v493
        %1208 = vmatprep.subr.mxu0 0.0
        %1209 = vmatpush1.msra.mxu0 %v500
        %1210 = vmatprep.subr.mxu0 0.0
        %1211 = vmatpush1.msra.mxu0 %v507
        %1212 = vmatprep.subr.mxu0 0.0
        %1213 = vmatpush1.msra.mxu0 %v514
        %1214 = vmatprep.subr.mxu0 0.0
        %1215 = vmatpush1.msra.mxu0 %v521
        %1216 = vmatprep.subr.mxu0 0.0
        %1217 = vmatpush1.msra.mxu0 %v528
        %1218 = vmatprep.subr.mxu0 0.0
        %1219 = vmatpush1.msra.mxu0 %v535
        %1220 = vmatprep.subr.mxu0 0.0
        %1221 = vmatpush1.msra.mxu0 %v542
        %1222 = vmatprep.subr.mxu0 0.0
        %1223 = vmatpush1.msra.mxu0 %v549
        %1224 = vmatprep.subr.mxu0 0.0
        %1225 = vmatpush1.msra.mxu0 %v556
        %1226 = vmatprep.subr.mxu0 0.0
        %1227 = vmatpush1.msra.mxu0 %v563
        %1228 = vmatprep.subr.mxu0 0.0
        %1229 = vmatpush1.msra.mxu0 %v570
        %1230 = vmatprep.subr.mxu0 0.0
        %1231 = vmatpush1.msra.mxu0 %v577
        %1232 = vmatprep.subr.mxu0 0.0
        %1233 = vmatpush1.msra.mxu0 %v584
        %1234 = vmatprep.subr.mxu0 0.0
        %1235 = vmatpush1.msra.mxu0 %v591
        %1236 = vmatprep.subr.mxu0 0.0
        %1237 = vmatpush1.msra.mxu0 %v598
        %1238 = vmatprep.subr.mxu0 0.0
        %1239 = vmatpush1.msra.mxu0 %v605
        %1240 = vmatprep.subr.mxu0 0.0
        %1241 = vmatpush1.msra.mxu0 %v719
        %1242 = vmatprep.subr.mxu0 0.0
        %1243 = vmatpush1.msra.mxu0 0.0
        %1244 = vmatprep.subr.mxu0 0.0
        %1245 = vmatpush1.msra.mxu0 0.0
        %1246 = vmatprep.subr.mxu0 0.0
        %1247 = vmatpush1.msra.mxu0 0.0
        %1248 = vmatprep.subr.mxu0 0.0
        %1249 = vmatpush1.msra.mxu0 0.0
        %1250 = vmatprep.subr.mxu0 0.0
        %1251 = vmatpush1.msra.mxu0 0.0
        %1252 = vmatprep.subr.mxu0 0.0
        %1253 = vmatpush1.msra.mxu0 0.0
        %1254 = vmatprep.subr.mxu0 0.0
        %1255 = vmatpush1.msra.mxu0 0.0
        %1256 = vmatprep.subr.mxu0 0.0
        %1257 = vmatpush1.msra.mxu0 0.0
        %1258 = vmatprep.subr.mxu0 0.0
        %1259 = vmatpush1.msra.mxu0 0.0
        %1260 = vmatprep.subr.mxu0 0.0
        %1261 = vmatpush1.msra.mxu0 0.0
        %1262 = vmatprep.subr.mxu0 0.0
        %1263 = vmatpush1.msra.mxu0 0.0
        %1264 = vmatprep.subr.mxu0 0.0
        %1265 = vmatpush1.msra.mxu0 0.0
        %1266 = vmatprep.subr.mxu0 0.0
        %1267 = vmatpush1.msra.mxu0 0.0
        %1268 = vmatprep.mubr.f32.mxu0 %v652
        %1269 = vmatmul.mubr.f32.gmra.mrb[0].mxu0 %v448
        %v1270 = vpop.f32.mrb[0].mxu0
        %v1271 = vadd.f32 %v642, %v1270
        %v1272 = vpop.f32.mrb[0].mxu0
        %1273 = vmatprep.mubr.f32.mxu0 %v655
        %1274 = vmatmul.mubr.f32.gmra.mrb[0].mxu0 %v450
        %v1275 = vpop.f32.mrb[0].mxu0
        %v1276 = vadd.f32 %v642, %v1275
        %v1277 = vpop.f32.mrb[0].mxu0
        %1278 = vmatprep.mubr.f32.mxu0 %v658
        %1279 = vmatmul.mubr.f32.gmra.mrb[0].mxu0 %v452
        %v1280 = vpop.f32.mrb[0].mxu0
        %v1281 = vadd.f32 %v642, %v1280
        %v1282 = vpop.f32.mrb[0].mxu0
        %1283 = vmatprep.mubr.f32.mxu0 %v661
        %1284 = vmatmul.mubr.f32.gmra.mrb[0].mxu0 %v454
        %v1285 = vpop.f32.mrb[0].mxu0
        %v1286 = vadd.f32 %v642, %v1285
        %v1287 = vpop.f32.mrb[0].mxu0
        %1288 = vmatprep.mubr.f32.mxu0 %v664
        %1289 = vmatmul.mubr.f32.gmra.mrb[0].mxu0 %v456
        %v1290 = vpop.f32.mrb[0].mxu0
        %v1291 = vadd.f32 %v642, %v1290
        %v1292 = vpop.f32.mrb[0].mxu0
        %1293 = vmatprep.mubr.f32.mxu0 %v667
        %1294 = vmatmul.mubr.f32.gmra.mrb[0].mxu0 %v458
        %v1295 = vpop.f32.mrb[0].mxu0
        %v1296 = vadd.f32 %v642, %v1295
        %v1297 = vpop.f32.mrb[0].mxu0
        %1298 = vmatprep.mubr.f32.mxu0 %v670
        %1299 = vmatmul.mubr.f32.gmra.mrb[0].mxu0 %v460
        %v1300 = vpop.f32.mrb[0].mxu0
        %v1301 = vadd.f32 %v642, %v1300
        %v1302 = vpop.f32.mrb[0].mxu0
        %1303 = vmatprep.mubr.f32.mxu0 %v673
        %1304 = vmatmul.mubr.f32.gmra.mrb[0].mxu0 %v462
        %v1305 = vpop.f32.mrb[0].mxu0
        %v1306 = vadd.f32 %v642, %v1305
        %v1307 = vpop.f32.mrb[0].mxu0
        %1308 = vmatprep.mubr.f32.mxu0 %v676
        %1309 = vmatmul.mubr.f32.gmra.mrb[0].mxu0 %v464
        %v1310 = vpop.f32.mrb[0].mxu0
        %v1311 = vadd.f32 %v642, %v1310
        %v1312 = vpop.f32.mrb[0].mxu0
        %1313 = vmatprep.mubr.f32.mxu0 %v679
        %1314 = vmatmul.mubr.f32.gmra.mrb[0].mxu0 %v466
        %v1315 = vpop.f32.mrb[0].mxu0
        %v1316 = vadd.f32 %v642, %v1315
        %v1317 = vpop.f32.mrb[0].mxu0
        %1318 = vmatprep.mubr.f32.mxu0 %v682
        %1319 = vmatmul.mubr.f32.gmra.mrb[0].mxu0 %v468
        %v1320 = vpop.f32.mrb[0].mxu0
        %v1321 = vadd.f32 %v642, %v1320
        %v1322 = vpop.f32.mrb[0].mxu0
        %1323 = vmatprep.mubr.f32.mxu0 %v685
        %1324 = vmatmul.mubr.f32.gmra.mrb[0].mxu0 %v470
        %v1325 = vpop.f32.mrb[0].mxu0
        %v1326 = vadd.f32 %v642, %v1325
        %v1327 = vpop.f32.mrb[0].mxu0
        %1328 = vmatprep.mubr.f32.mxu0 %v688
        %1329 = vmatmul.mubr.f32.gmra.mrb[0].mxu0 %v472
        %v1330 = vpop.f32.mrb[0].mxu0
        %v1331 = vadd.f32 %v642, %v1330
        %v1332 = vpop.f32.mrb[0].mxu0
        %1333 = vmatprep.mubr.f32.mxu0 %v691
        %1334 = vmatmul.mubr.f32.gmra.mrb[0].mxu0 %v474
        %v1335 = vpop.f32.mrb[0].mxu0
        %v1336 = vadd.f32 %v642, %v1335
        %v1337 = vpop.f32.mrb[0].mxu0
        %1338 = vmatprep.mubr.f32.mxu0 %v694
        %1339 = vmatmul.mubr.f32.gmra.mrb[0].mxu0 %v476
        %v1340 = vpop.f32.mrb[0].mxu0
        %v1341 = vadd.f32 %v642, %v1340
        %v1342 = vpop.f32.mrb[0].mxu0
        %1343 = vmatprep.mubr.f32.mxu0 %v697
        %1344 = vmatmul.mubr.f32.gmra.mrb[0].mxu0 %v478
        %v1345 = vpop.f32.mrb[0].mxu0
        %v1346 = vadd.f32 %v642, %v1345
        %v1347 = vpop.f32.mrb[0].mxu0
        %1348 = vdwg.mxu0
        %v1349 = vmax.f32 %v788, 0.0
        %v1350 = vmax.f32 %v790, 0.0
        %v1351 = vmax.f32 %v949, 0.0
        %v1352 = vmax.f32 %v951, 0.0
        %v1353 = vmax.f32 %v1110, 0.0
        %v1354 = vmax.f32 %v1112, 0.0
        %v1355 = vmax.f32 %v1271, 0.0
        %v1356 = vmax.f32 %v794, 0.0
        %v1357 = vmax.f32 %v796, 0.0
        %v1358 = vmax.f32 %v955, 0.0
        %v1359 = vmax.f32 %v957, 0.0
        %v1360 = vmax.f32 %v1116, 0.0
        %v1361 = vmax.f32 %v1118, 0.0
        %v1362 = vmax.f32 %v1276, 0.0
        %v1363 = vmax.f32 %v800, 0.0
        %v1364 = vmax.f32 %v802, 0.0
        %v1365 = vmax.f32 %v961, 0.0
        %v1366 = vmax.f32 %v963, 0.0
        %v1367 = vmax.f32 %v1122, 0.0
        %v1368 = vmax.f32 %v1124, 0.0
        %v1369 = vmax.f32 %v1281, 0.0
        %v1370 = vmax.f32 %v806, 0.0
        %v1371 = vmax.f32 %v808, 0.0
        %v1372 = vmax.f32 %v967, 0.0
        %v1373 = vmax.f32 %v969, 0.0
        %v1374 = vmax.f32 %v1128, 0.0
        %v1375 = vmax.f32 %v1130, 0.0
        %v1376 = vmax.f32 %v1286, 0.0
        %v1377 = vmax.f32 %v812, 0.0
        %v1378 = vmax.f32 %v814, 0.0
        %v1379 = vmax.f32 %v973, 0.0
        %v1380 = vmax.f32 %v975, 0.0
        %v1381 = vmax.f32 %v1134, 0.0
        %v1382 = vmax.f32 %v1136, 0.0
        %v1383 = vmax.f32 %v1291, 0.0
        %v1384 = vmax.f32 %v818, 0.0
        %v1385 = vmax.f32 %v820, 0.0
        %v1386 = vmax.f32 %v979, 0.0
        %v1387 = vmax.f32 %v981, 0.0
        %v1388 = vmax.f32 %v1140, 0.0
        %v1389 = vmax.f32 %v1142, 0.0
        %v1390 = vmax.f32 %v1296, 0.0
        %v1391 = vmax.f32 %v824, 0.0
        %v1392 = vmax.f32 %v826, 0.0
        %v1393 = vmax.f32 %v985, 0.0
        %v1394 = vmax.f32 %v987, 0.0
        %v1395 = vmax.f32 %v1146, 0.0
        %v1396 = vmax.f32 %v1148, 0.0
        %v1397 = vmax.f32 %v1301, 0.0
        %v1398 = vmax.f32 %v830, 0.0
        %v1399 = vmax.f32 %v832, 0.0
        %v1400 = vmax.f32 %v991, 0.0
        %v1401 = vmax.f32 %v993, 0.0
        %v1402 = vmax.f32 %v1152, 0.0
        %v1403 = vmax.f32 %v1154, 0.0
        %v1404 = vmax.f32 %v1306, 0.0
        %v1405 = vmax.f32 %v836, 0.0
        %v1406 = vmax.f32 %v838, 0.0
        %v1407 = vmax.f32 %v997, 0.0
        %v1408 = vmax.f32 %v999, 0.0
        %v1409 = vmax.f32 %v1158, 0.0
        %v1410 = vmax.f32 %v1160, 0.0
        %v1411 = vmax.f32 %v1311, 0.0
        %v1412 = vmax.f32 %v842, 0.0
        %v1413 = vmax.f32 %v844, 0.0
        %v1414 = vmax.f32 %v1003, 0.0
        %v1415 = vmax.f32 %v1005, 0.0
        %v1416 = vmax.f32 %v1164, 0.0
        %v1417 = vmax.f32 %v1166, 0.0
        %v1418 = vmax.f32 %v1316, 0.0
        %v1419 = vmax.f32 %v848, 0.0
        %v1420 = vmax.f32 %v850, 0.0
        %v1421 = vmax.f32 %v1009, 0.0
        %v1422 = vmax.f32 %v1011, 0.0
        %v1423 = vmax.f32 %v1170, 0.0
        %v1424 = vmax.f32 %v1172, 0.0
        %v1425 = vmax.f32 %v1321, 0.0
        %v1426 = vmax.f32 %v854, 0.0
        %v1427 = vmax.f32 %v856, 0.0
        %v1428 = vmax.f32 %v1015, 0.0
        %v1429 = vmax.f32 %v1017, 0.0
        %v1430 = vmax.f32 %v1176, 0.0
        %v1431 = vmax.f32 %v1178, 0.0
        %v1432 = vmax.f32 %v1326, 0.0
        %v1433 = vmax.f32 %v860, 0.0
        %v1434 = vmax.f32 %v862, 0.0
        %v1435 = vmax.f32 %v1021, 0.0
        %v1436 = vmax.f32 %v1023, 0.0
        %v1437 = vmax.f32 %v1182, 0.0
        %v1438 = vmax.f32 %v1184, 0.0
        %v1439 = vmax.f32 %v1331, 0.0
        %v1440 = vmax.f32 %v866, 0.0
        %v1441 = vmax.f32 %v868, 0.0
        %v1442 = vmax.f32 %v1027, 0.0
        %v1443 = vmax.f32 %v1029, 0.0
        %v1444 = vmax.f32 %v1188, 0.0
        %v1445 = vmax.f32 %v1190, 0.0
        %v1446 = vmax.f32 %v1336, 0.0
        %v1447 = vmax.f32 %v872, 0.0
        %v1448 = vmax.f32 %v874, 0.0
        %v1449 = vmax.f32 %v1033, 0.0
        %v1450 = vmax.f32 %v1035, 0.0
        %v1451 = vmax.f32 %v1194, 0.0
        %v1452 = vmax.f32 %v1196, 0.0
        %v1453 = vmax.f32 %v1341, 0.0
        %v1454 = vmax.f32 %v878, 0.0
        %v1455 = vmax.f32 %v880, 0.0
        %v1456 = vmax.f32 %v1039, 0.0
        %v1457 = vmax.f32 %v1041, 0.0
        %v1458 = vmax.f32 %v1200, 0.0
        %v1459 = vmax.f32 %v1202, 0.0
        %v1460 = vmax.f32 %v1346, 0.0
        %v1461 = vld [vmem:[#allocation6] sm:$0xff]
        %v1462 = vld [vmem:[#allocation6 + $0x8] sm:$0xff]
        %v1463 = vld [vmem:[#allocation6 + $0x10] sm:$0xff]
        %v1464 = vld [vmem:[#allocation6 + $0x18] sm:$0xff]
        %v1465 = vld [vmem:[#allocation6 + $0x20] sm:$0xff]
        %v1466 = vld [vmem:[#allocation6 + $0x28] sm:$0xff]
        %v1467 = vld [vmem:[#allocation6 + $0x30] sm:$0xff]
        %v1468 = vld [vmem:[#allocation6 + $0x38] sm:$0xff]
        %v1469 = vld [vmem:[#allocation6 + $0x40] sm:$0xff]
        %v1470 = vld [vmem:[#allocation6 + $0x48] sm:$0xff]
        %v1471 = vld [vmem:[#allocation6 + $0x50] sm:$0xff]
        %v1472 = vld [vmem:[#allocation6 + $0x58] sm:$0xff]
        %v1473 = vld [vmem:[#allocation6 + $0x60] sm:$0xff]
        %v1474 = vld [vmem:[#allocation6 + $0x68] sm:$0xff]
        %v1475 = vld [vmem:[#allocation6 + $0x70] sm:$0xff]
        %v1476 = vld [vmem:[#allocation6 + $0x78] sm:$0xff]
        %v1477 = vld [vmem:[#allocation6 + $0x80] sm:$0xff]
        %v1478 = vld [vmem:[#allocation6 + $0x88] sm:$0xff]
        %v1479 = vld [vmem:[#allocation6 + $0x90] sm:$0xff]
        %v1480 = vld [vmem:[#allocation6 + $0x98] sm:$0xff]
        %v1481 = vld [vmem:[#allocation6 + $0xa0] sm:$0xff]
        %v1482 = vld [vmem:[#allocation6 + $0xa8] sm:$0xff]
        %v1483 = vld [vmem:[#allocation6 + $0xb0] sm:$0xff]
        %v1484 = vld [vmem:[#allocation6 + $0xb8] sm:$0xff]
        %v1485 = vld [vmem:[#allocation6 + $0xc0] sm:$0xff]
        %v1486 = vld [vmem:[#allocation6 + $0xc8] sm:$0xff]
        %v1487 = vld [vmem:[#allocation6 + $0xd0] sm:$0xff]
        %v1488 = vld [vmem:[#allocation6 + $0xd8] sm:$0xff]
        %v1489 = vld [vmem:[#allocation6 + $0xe0] sm:$0xff]
        %v1490 = vld [vmem:[#allocation6 + $0xe8] sm:$0xff]
        %v1491 = vld [vmem:[#allocation6 + $0xf0] sm:$0xff]
        %v1492 = vld [vmem:[#allocation6 + $0xf8] sm:$0xff]
        %v1493 = vld [vmem:[#allocation6 + $0x100] sm:$0xff]
        %v1494 = vld [vmem:[#allocation6 + $0x108] sm:$0xff]
        %v1495 = vld [vmem:[#allocation6 + $0x110] sm:$0xff]
        %v1496 = vld [vmem:[#allocation6 + $0x118] sm:$0xff]
        %v1497 = vld [vmem:[#allocation6 + $0x120] sm:$0xff]
        %v1498 = vld [vmem:[#allocation6 + $0x128] sm:$0xff]
        %v1499 = vld [vmem:[#allocation6 + $0x130] sm:$0xff]
        %v1500 = vld [vmem:[#allocation6 + $0x138] sm:$0xff]
        %v1501 = vld [vmem:[#allocation6 + $0x140] sm:$0xff]
        %v1502 = vld [vmem:[#allocation6 + $0x148] sm:$0xff]
        %v1503 = vld [vmem:[#allocation6 + $0x150] sm:$0xff]
        %v1504 = vld [vmem:[#allocation6 + $0x158] sm:$0xff]
        %v1505 = vld [vmem:[#allocation6 + $0x160] sm:$0xff]
        %v1506 = vld [vmem:[#allocation6 + $0x168] sm:$0xff]
        %v1507 = vld [vmem:[#allocation6 + $0x170] sm:$0xff]
        %v1508 = vld [vmem:[#allocation6 + $0x178] sm:$0xff]
        %v1509 = vld [vmem:[#allocation6 + $0x180] sm:$0xff]
        %v1510 = vld [vmem:[#allocation6 + $0x188] sm:$0xff]
        %v1511 = vld [vmem:[#allocation6 + $0x190] sm:$0xff]
        %v1512 = vld [vmem:[#allocation6 + $0x198] sm:$0xff]
        %v1513 = vld [vmem:[#allocation6 + $0x1a0] sm:$0xff]
        %v1514 = vld [vmem:[#allocation6 + $0x1a8] sm:$0xff]
        %v1515 = vld [vmem:[#allocation6 + $0x1b0] sm:$0xff]
        %v1516 = vld [vmem:[#allocation6 + $0x1b8] sm:$0xff]
        %v1517 = vld [vmem:[#allocation6 + $0x1c0] sm:$0xff]
        %v1518 = vld [vmem:[#allocation6 + $0x1c8] sm:$0xff]
        %v1519 = vld [vmem:[#allocation6 + $0x1d0] sm:$0xff]
        %v1520 = vld [vmem:[#allocation6 + $0x1d8] sm:$0xff]
        %v1521 = vld [vmem:[#allocation6 + $0x1e0] sm:$0xff]
        %v1522 = vld [vmem:[#allocation6 + $0x1e8] sm:$0xff]
        %v1523 = vld [vmem:[#allocation6 + $0x1f0] sm:$0xff]
        %v1524 = vld [vmem:[#allocation6 + $0x1f8] sm:$0xff]
        %v1525 = vld [vmem:[#allocation6 + $0x200] sm:$0xff]
        %v1526 = vld [vmem:[#allocation6 + $0x208] sm:$0xff]
        %v1527 = vld [vmem:[#allocation6 + $0x210] sm:$0xff]
        %v1528 = vld [vmem:[#allocation6 + $0x218] sm:$0xff]
        %v1529 = vld [vmem:[#allocation6 + $0x220] sm:$0xff]
        %v1530 = vld [vmem:[#allocation6 + $0x228] sm:$0xff]
        %v1531 = vld [vmem:[#allocation6 + $0x230] sm:$0xff]
        %v1532 = vld [vmem:[#allocation6 + $0x238] sm:$0xff]
        %v1533 = vld [vmem:[#allocation6 + $0x240] sm:$0xff]
        %v1534 = vld [vmem:[#allocation6 + $0x248] sm:$0xff]
        %v1535 = vld [vmem:[#allocation6 + $0x250] sm:$0xff]
        %v1536 = vld [vmem:[#allocation6 + $0x258] sm:$0xff]
        %v1537 = vld [vmem:[#allocation6 + $0x260] sm:$0xff]
        %v1538 = vld [vmem:[#allocation6 + $0x268] sm:$0xff]
        %v1539 = vld [vmem:[#allocation6 + $0x270] sm:$0xff]
        %v1540 = vld [vmem:[#allocation6 + $0x278] sm:$0xff]
        %v1541 = vld [vmem:[#allocation6 + $0x280] sm:$0xff]
        %v1542 = vld [vmem:[#allocation6 + $0x288] sm:$0xff]
        %v1543 = vld [vmem:[#allocation6 + $0x290] sm:$0xff]
        %v1544 = vld [vmem:[#allocation6 + $0x298] sm:$0xff]
        %v1545 = vld [vmem:[#allocation6 + $0x2a0] sm:$0xff]
        %v1546 = vld [vmem:[#allocation6 + $0x2a8] sm:$0xff]
        %v1547 = vld [vmem:[#allocation6 + $0x2b0] sm:$0xff]
        %v1548 = vld [vmem:[#allocation6 + $0x2b8] sm:$0xff]
        %v1549 = vld [vmem:[#allocation6 + $0x2c0] sm:$0xff]
        %v1550 = vld [vmem:[#allocation6 + $0x2c8] sm:$0xff]
        %v1551 = vld [vmem:[#allocation6 + $0x2d0] sm:$0xff]
        %v1552 = vld [vmem:[#allocation6 + $0x2d8] sm:$0xff]
        %v1553 = vld [vmem:[#allocation6 + $0x2e0] sm:$0xff]
        %v1554 = vld [vmem:[#allocation6 + $0x2e8] sm:$0xff]
        %v1555 = vld [vmem:[#allocation6 + $0x2f0] sm:$0xff]
        %v1556 = vld [vmem:[#allocation6 + $0x2f8] sm:$0xff]
        %v1557 = vld [vmem:[#allocation6 + $0x300] sm:$0xff]
        %v1558 = vld [vmem:[#allocation6 + $0x308] sm:$0xff]
        %v1559 = vld [vmem:[#allocation6 + $0x310] sm:$0xff]
        %v1560 = vld [vmem:[#allocation6 + $0x318] sm:$0xff]
        %v1561 = vld [vmem:[#allocation6 + $0x320] sm:$0xff]
        %v1562 = vld [vmem:[#allocation6 + $0x328] sm:$0xff]
        %v1563 = vld [vmem:[#allocation6 + $0x330] sm:$0xff]
        %v1564 = vld [vmem:[#allocation6 + $0x338] sm:$0xff]
        %v1565 = vld [vmem:[#allocation6 + $0x340] sm:$0xff]
        %v1566 = vld [vmem:[#allocation6 + $0x348] sm:$0xff]
        %v1567 = vld [vmem:[#allocation6 + $0x350] sm:$0xff]
        %v1568 = vld [vmem:[#allocation6 + $0x358] sm:$0xff]
        %v1569 = vld [vmem:[#allocation6 + $0x360] sm:$0xff]
        %v1570 = vld [vmem:[#allocation6 + $0x368] sm:$0xff]
        %v1571 = vld [vmem:[#allocation6 + $0x370] sm:$0xff]
        %v1572 = vld [vmem:[#allocation6 + $0x378] sm:$0xff]
        %v1573 = vld [vmem:[#allocation6 + $0x380] sm:$0xff]
        %v1574 = vld [vmem:[#allocation6 + $0x388] sm:$0xff]
        %v1575 = vld [vmem:[#allocation6 + $0x390] sm:$0xff]
        %v1576 = vld [vmem:[#allocation6 + $0x398] sm:$0xff]
        %v1577 = vld [vmem:[#allocation6 + $0x3a0] sm:$0xff]
        %v1578 = vld [vmem:[#allocation6 + $0x3a8] sm:$0xff]
        %v1579 = vld [vmem:[#allocation6 + $0x3b0] sm:$0xff]
        %v1580 = vld [vmem:[#allocation6 + $0x3b8] sm:$0xff]
        %v1581 = vld [vmem:[#allocation6 + $0x3c0] sm:$0xff]
        %v1582 = vld [vmem:[#allocation6 + $0x3c8] sm:$0xff]
        %v1583 = vld [vmem:[#allocation6 + $0x3d0] sm:$0xff]
        %v1584 = vld [vmem:[#allocation6 + $0x3d8] sm:$0xff]
        %v1585 = vld [vmem:[#allocation6 + $0x3e0] sm:$0xff]
        %v1586 = vld [vmem:[#allocation6 + $0x3e8] sm:$0xff]
        %v1587 = vld [vmem:[#allocation6 + $0x3f0] sm:$0xff]
        %v1588 = vld [vmem:[#allocation6 + $0x3f8] sm:$0xff]
        %v1589 = vld [vmem:[#allocation6 + $0x400] sm:$0xff]
        %v1590 = vld [vmem:[#allocation6 + $0x408] sm:$0xff]
        %v1591 = vld [vmem:[#allocation6 + $0x410] sm:$0xff]
        %v1592 = vld [vmem:[#allocation6 + $0x418] sm:$0xff]
        %v1593 = vld [vmem:[#allocation6 + $0x420] sm:$0xff]
        %v1594 = vld [vmem:[#allocation6 + $0x428] sm:$0xff]
        %v1595 = vld [vmem:[#allocation6 + $0x430] sm:$0xff]
        %v1596 = vld [vmem:[#allocation6 + $0x438] sm:$0xff]
        %v1597 = vld [vmem:[#allocation6 + $0x440] sm:$0xff]
        %v1598 = vld [vmem:[#allocation6 + $0x448] sm:$0xff]
        %v1599 = vld [vmem:[#allocation6 + $0x450] sm:$0xff]
        %v1600 = vld [vmem:[#allocation6 + $0x458] sm:$0xff]
        %v1601 = vld [vmem:[#allocation6 + $0x460] sm:$0xff]
        %v1602 = vld [vmem:[#allocation6 + $0x468] sm:$0xff]
        %v1603 = vld [vmem:[#allocation6 + $0x470] sm:$0xff]
        %v1604 = vld [vmem:[#allocation6 + $0x478] sm:$0xff]
        %v1605 = vld [vmem:[#allocation6 + $0x480] sm:$0xff]
        %v1606 = vld [vmem:[#allocation6 + $0x488] sm:$0xff]
        %v1607 = vld [vmem:[#allocation6 + $0x490] sm:$0xff]
        %v1608 = vld [vmem:[#allocation6 + $0x498] sm:$0xff]
        %v1609 = vld [vmem:[#allocation6 + $0x4a0] sm:$0xff]
        %v1610 = vld [vmem:[#allocation6 + $0x4a8] sm:$0xff]
        %v1611 = vld [vmem:[#allocation6 + $0x4b0] sm:$0xff]
        %v1612 = vld [vmem:[#allocation6 + $0x4b8] sm:$0xff]
        %v1613 = vld [vmem:[#allocation6 + $0x4c0] sm:$0xff]
        %v1614 = vld [vmem:[#allocation6 + $0x4c8] sm:$0xff]
        %v1615 = vld [vmem:[#allocation6 + $0x4d0] sm:$0xff]
        %v1616 = vld [vmem:[#allocation6 + $0x4d8] sm:$0xff]
        %v1617 = vld [vmem:[#allocation6 + $0x4e0] sm:$0xff]
        %v1618 = vld [vmem:[#allocation6 + $0x4e8] sm:$0xff]
        %v1619 = vld [vmem:[#allocation6 + $0x4f0] sm:$0xff]
        %v1620 = vld [vmem:[#allocation6 + $0x4f8] sm:$0xff]
        %v1621 = vld [vmem:[#allocation6 + $0x500] sm:$0xff]
        %v1622 = vld [vmem:[#allocation6 + $0x508] sm:$0xff]
        %v1623 = vld [vmem:[#allocation6 + $0x510] sm:$0xff]
        %v1624 = vld [vmem:[#allocation6 + $0x518] sm:$0xff]
        %v1625 = vld [vmem:[#allocation6 + $0x520] sm:$0xff]
        %v1626 = vld [vmem:[#allocation6 + $0x528] sm:$0xff]
        %v1627 = vld [vmem:[#allocation6 + $0x530] sm:$0xff]
        %v1628 = vld [vmem:[#allocation6 + $0x538] sm:$0xff]
        %v1629 = vld [vmem:[#allocation6 + $0x540] sm:$0xff]
        %v1630 = vld [vmem:[#allocation6 + $0x548] sm:$0xff]
        %v1631 = vld [vmem:[#allocation6 + $0x550] sm:$0xff]
        %v1632 = vld [vmem:[#allocation6 + $0x558] sm:$0xff]
        %v1633 = vld [vmem:[#allocation6 + $0x560] sm:$0xff]
        %v1634 = vld [vmem:[#allocation6 + $0x568] sm:$0xff]
        %v1635 = vld [vmem:[#allocation6 + $0x570] sm:$0xff]
        %v1636 = vld [vmem:[#allocation6 + $0x578] sm:$0xff]
        %v1637 = vld [vmem:[#allocation6 + $0x580] sm:$0xff]
        %v1638 = vld [vmem:[#allocation6 + $0x588] sm:$0xff]
        %v1639 = vld [vmem:[#allocation6 + $0x590] sm:$0xff]
        %v1640 = vld [vmem:[#allocation6 + $0x598] sm:$0xff]
        %v1641 = vld [vmem:[#allocation6 + $0x5a0] sm:$0xff]
        %v1642 = vld [vmem:[#allocation6 + $0x5a8] sm:$0xff]
        %v1643 = vld [vmem:[#allocation6 + $0x5b0] sm:$0xff]
        %v1644 = vld [vmem:[#allocation6 + $0x5b8] sm:$0xff]
        %v1645 = vld [vmem:[#allocation6 + $0x5c0] sm:$0xff]
        %v1646 = vld [vmem:[#allocation6 + $0x5c8] sm:$0xff]
        %v1647 = vld [vmem:[#allocation6 + $0x5d0] sm:$0xff]
        %v1648 = vld [vmem:[#allocation6 + $0x5d8] sm:$0xff]
        %v1649 = vld [vmem:[#allocation6 + $0x5e0] sm:$0xff]
        %v1650 = vld [vmem:[#allocation6 + $0x5e8] sm:$0xff]
        %v1651 = vld [vmem:[#allocation6 + $0x5f0] sm:$0xff]
        %v1652 = vld [vmem:[#allocation6 + $0x5f8] sm:$0xff]
        %v1653 = vld [vmem:[#allocation6 + $0x600] sm:$0xff]
        %v1654 = vld [vmem:[#allocation6 + $0x608] sm:$0xff]
        %v1655 = vld [vmem:[#allocation6 + $0x610] sm:$0xff]
        %v1656 = vld [vmem:[#allocation6 + $0x618] sm:$0xff]
        %v1657 = vld [vmem:[#allocation6 + $0x620] sm:$0xff]
        %v1658 = vld [vmem:[#allocation6 + $0x628] sm:$0xff]
        %v1659 = vld [vmem:[#allocation6 + $0x630] sm:$0xff]
        %v1660 = vld [vmem:[#allocation6 + $0x638] sm:$0xff]
        %v1661 = vld [vmem:[#allocation6 + $0x640] sm:$0xff]
        %v1662 = vld [vmem:[#allocation6 + $0x648] sm:$0xff]
        %v1663 = vld [vmem:[#allocation6 + $0x650] sm:$0xff]
        %v1664 = vld [vmem:[#allocation6 + $0x658] sm:$0xff]
        %v1665 = vld [vmem:[#allocation6 + $0x660] sm:$0xff]
        %v1666 = vld [vmem:[#allocation6 + $0x668] sm:$0xff]
        %v1667 = vld [vmem:[#allocation6 + $0x670] sm:$0xff]
        %v1668 = vld [vmem:[#allocation6 + $0x678] sm:$0xff]
        %v1669 = vld [vmem:[#allocation6 + $0x680] sm:$0xff]
        %v1670 = vld [vmem:[#allocation6 + $0x688] sm:$0xff]
        %v1671 = vld [vmem:[#allocation6 + $0x690] sm:$0xff]
        %v1672 = vld [vmem:[#allocation6 + $0x698] sm:$0xff]
        %v1673 = vld [vmem:[#allocation6 + $0x6a0] sm:$0xff]
        %v1674 = vld [vmem:[#allocation6 + $0x6a8] sm:$0xff]
        %v1675 = vld [vmem:[#allocation6 + $0x6b0] sm:$0xff]
        %v1676 = vld [vmem:[#allocation6 + $0x6b8] sm:$0xff]
        %v1677 = vld [vmem:[#allocation6 + $0x6c0] sm:$0xff]
        %v1678 = vld [vmem:[#allocation6 + $0x6c8] sm:$0xff]
        %v1679 = vld [vmem:[#allocation6 + $0x6d0] sm:$0xff]
        %v1680 = vld [vmem:[#allocation6 + $0x6d8] sm:$0xff]
        %v1681 = vld [vmem:[#allocation6 + $0x6e0] sm:$0xff]
        %v1682 = vld [vmem:[#allocation6 + $0x6e8] sm:$0xff]
        %v1683 = vld [vmem:[#allocation6 + $0x6f0] sm:$0xff]
        %v1684 = vld [vmem:[#allocation6 + $0x6f8] sm:$0xff]
        %v1685 = vld [vmem:[#allocation6 + $0x700] sm:$0xff]
        %v1686 = vld [vmem:[#allocation6 + $0x708] sm:$0xff]
        %v1687 = vld [vmem:[#allocation6 + $0x710] sm:$0xff]
        %v1688 = vld [vmem:[#allocation6 + $0x718] sm:$0xff]
        %v1689 = vld [vmem:[#allocation6 + $0x720] sm:$0xff]
        %v1690 = vld [vmem:[#allocation6 + $0x728] sm:$0xff]
        %v1691 = vld [vmem:[#allocation6 + $0x730] sm:$0xff]
        %v1692 = vld [vmem:[#allocation6 + $0x738] sm:$0xff]
        %v1693 = vld [vmem:[#allocation6 + $0x740] sm:$0xff]
        %v1694 = vld [vmem:[#allocation6 + $0x748] sm:$0xff]
        %v1695 = vld [vmem:[#allocation6 + $0x750] sm:$0xff]
        %v1696 = vld [vmem:[#allocation6 + $0x758] sm:$0xff]
        %v1697 = vld [vmem:[#allocation6 + $0x760] sm:$0xff]
        %v1698 = vld [vmem:[#allocation6 + $0x768] sm:$0xff]
        %v1699 = vld [vmem:[#allocation6 + $0x770] sm:$0xff]
        %v1700 = vld [vmem:[#allocation6 + $0x778] sm:$0xff]
        %v1701 = vld [vmem:[#allocation6 + $0x780] sm:$0xff]
        %v1702 = vld [vmem:[#allocation6 + $0x788] sm:$0xff]
        %v1703 = vld [vmem:[#allocation6 + $0x790] sm:$0xff]
        %v1704 = vld [vmem:[#allocation6 + $0x798] sm:$0xff]
        %v1705 = vld [vmem:[#allocation6 + $0x7a0] sm:$0xff]
        %v1706 = vld [vmem:[#allocation6 + $0x7a8] sm:$0xff]
        %v1707 = vld [vmem:[#allocation6 + $0x7b0] sm:$0xff]
        %v1708 = vld [vmem:[#allocation6 + $0x7b8] sm:$0xff]
        %v1709 = vld [vmem:[#allocation6 + $0x7c0] sm:$0xff]
        %v1710 = vld [vmem:[#allocation6 + $0x7c8] sm:$0xff]
        %v1711 = vld [vmem:[#allocation6 + $0x7d0] sm:$0xff]
        %v1712 = vld [vmem:[#allocation6 + $0x7d8] sm:$0xff]
        %v1713 = vld [vmem:[#allocation6 + $0x7e0] sm:$0xff]
        %v1714 = vld [vmem:[#allocation6 + $0x7e8] sm:$0xff]
        %v1715 = vld [vmem:[#allocation6 + $0x7f0] sm:$0xff]
        %v1716 = vld [vmem:[#allocation6 + $0x7f8] sm:$0xff]
        %v1717 = vld [vmem:[#allocation6 + $0x800] sm:$0xff]
        %v1718 = vld [vmem:[#allocation6 + $0x808] sm:$0xff]
        %v1719 = vld [vmem:[#allocation6 + $0x810] sm:$0xff]
        %v1720 = vld [vmem:[#allocation6 + $0x818] sm:$0xff]
        %v1721 = vld [vmem:[#allocation6 + $0x820] sm:$0xff]
        %v1722 = vld [vmem:[#allocation6 + $0x828] sm:$0xff]
        %v1723 = vld [vmem:[#allocation6 + $0x830] sm:$0xff]
        %v1724 = vld [vmem:[#allocation6 + $0x838] sm:$0xff]
        %v1725 = vld [vmem:[#allocation6 + $0x840] sm:$0xff]
        %v1726 = vld [vmem:[#allocation6 + $0x848] sm:$0xff]
        %v1727 = vld [vmem:[#allocation6 + $0x850] sm:$0xff]
        %v1728 = vld [vmem:[#allocation6 + $0x858] sm:$0xff]
        %v1729 = vld [vmem:[#allocation6 + $0x860] sm:$0xff]
        %v1730 = vld [vmem:[#allocation6 + $0x868] sm:$0xff]
        %v1731 = vld [vmem:[#allocation6 + $0x870] sm:$0xff]
        %v1732 = vld [vmem:[#allocation6 + $0x878] sm:$0xff]
        %v1733 = vld [vmem:[#allocation6 + $0x880] sm:$0xff]
        %v1734 = vld [vmem:[#allocation6 + $0x888] sm:$0xff]
        %v1735 = vld [vmem:[#allocation6 + $0x890] sm:$0xff]
        %v1736 = vld [vmem:[#allocation6 + $0x898] sm:$0xff]
        %v1737 = vld [vmem:[#allocation6 + $0x8a0] sm:$0xff]
        %v1738 = vld [vmem:[#allocation6 + $0x8a8] sm:$0xff]
        %v1739 = vld [vmem:[#allocation6 + $0x8b0] sm:$0xff]
        %v1740 = vld [vmem:[#allocation6 + $0x8b8] sm:$0xff]
        %v1741 = vld [vmem:[#allocation6 + $0x8c0] sm:$0xff]
        %v1742 = vld [vmem:[#allocation6 + $0x8c8] sm:$0xff]
        %v1743 = vld [vmem:[#allocation6 + $0x8d0] sm:$0xff]
        %v1744 = vld [vmem:[#allocation6 + $0x8d8] sm:$0xff]
        %v1745 = vld [vmem:[#allocation6 + $0x8e0] sm:$0xff]
        %v1746 = vld [vmem:[#allocation6 + $0x8e8] sm:$0xff]
        %v1747 = vld [vmem:[#allocation6 + $0x8f0] sm:$0xff]
        %v1748 = vld [vmem:[#allocation6 + $0x8f8] sm:$0xff]
        %v1749 = vld [vmem:[#allocation6 + $0x900] sm:$0xff]
        %v1750 = vld [vmem:[#allocation6 + $0x908] sm:$0xff]
        %v1751 = vld [vmem:[#allocation6 + $0x910] sm:$0xff]
        %v1752 = vld [vmem:[#allocation6 + $0x918] sm:$0xff]
        %v1753 = vld [vmem:[#allocation6 + $0x920] sm:$0xff]
        %v1754 = vld [vmem:[#allocation6 + $0x928] sm:$0xff]
        %v1755 = vld [vmem:[#allocation6 + $0x930] sm:$0xff]
        %v1756 = vld [vmem:[#allocation6 + $0x938] sm:$0xff]
        %v1757 = vld [vmem:[#allocation6 + $0x940] sm:$0xff]
        %v1758 = vld [vmem:[#allocation6 + $0x948] sm:$0xff]
        %v1759 = vld [vmem:[#allocation6 + $0x950] sm:$0xff]
        %v1760 = vld [vmem:[#allocation6 + $0x958] sm:$0xff]
        %v1761 = vld [vmem:[#allocation6 + $0x960] sm:$0xff]
        %v1762 = vld [vmem:[#allocation6 + $0x968] sm:$0xff]
        %v1763 = vld [vmem:[#allocation6 + $0x970] sm:$0xff]
        %v1764 = vld [vmem:[#allocation6 + $0x978] sm:$0xff]
        %v1765 = vld [vmem:[#allocation6 + $0x980] sm:$0xff]
        %v1766 = vld [vmem:[#allocation6 + $0x988] sm:$0xff]
        %v1767 = vld [vmem:[#allocation6 + $0x990] sm:$0xff]
        %v1768 = vld [vmem:[#allocation6 + $0x998] sm:$0xff]
        %v1769 = vld [vmem:[#allocation6 + $0x9a0] sm:$0xff]
        %v1770 = vld [vmem:[#allocation6 + $0x9a8] sm:$0xff]
        %v1771 = vld [vmem:[#allocation6 + $0x9b0] sm:$0xff]
        %v1772 = vld [vmem:[#allocation6 + $0x9b8] sm:$0xff]
        %v1773 = vld [vmem:[#allocation6 + $0x9c0] sm:$0xff]
        %v1774 = vld [vmem:[#allocation6 + $0x9c8] sm:$0xff]
        %v1775 = vld [vmem:[#allocation6 + $0x9d0] sm:$0xff]
        %v1776 = vld [vmem:[#allocation6 + $0x9d8] sm:$0xff]
        %v1777 = vld [vmem:[#allocation6 + $0x9e0] sm:$0xff]
        %v1778 = vld [vmem:[#allocation6 + $0x9e8] sm:$0xff]
        %v1779 = vld [vmem:[#allocation6 + $0x9f0] sm:$0xff]
        %v1780 = vld [vmem:[#allocation6 + $0x9f8] sm:$0xff]
        %v1781 = vld [vmem:[#allocation6 + $0xa00] sm:$0xff]
        %v1782 = vld [vmem:[#allocation6 + $0xa08] sm:$0xff]
        %v1783 = vld [vmem:[#allocation6 + $0xa10] sm:$0xff]
        %v1784 = vld [vmem:[#allocation6 + $0xa18] sm:$0xff]
        %v1785 = vld [vmem:[#allocation6 + $0xa20] sm:$0xff]
        %v1786 = vld [vmem:[#allocation6 + $0xa28] sm:$0xff]
        %v1787 = vld [vmem:[#allocation6 + $0xa30] sm:$0xff]
        %v1788 = vld [vmem:[#allocation6 + $0xa38] sm:$0xff]
        %v1789 = vld [vmem:[#allocation6 + $0xa40] sm:$0xff]
        %v1790 = vld [vmem:[#allocation6 + $0xa48] sm:$0xff]
        %v1791 = vld [vmem:[#allocation6 + $0xa50] sm:$0xff]
        %v1792 = vld [vmem:[#allocation6 + $0xa58] sm:$0xff]
        %v1793 = vld [vmem:[#allocation6 + $0xa60] sm:$0xff]
        %v1794 = vld [vmem:[#allocation6 + $0xa68] sm:$0xff]
        %v1795 = vld [vmem:[#allocation6 + $0xa70] sm:$0xff]
        %v1796 = vld [vmem:[#allocation6 + $0xa78] sm:$0xff]
        %v1797 = vld [vmem:[#allocation6 + $0xa80] sm:$0xff]
        %v1798 = vld [vmem:[#allocation6 + $0xa88] sm:$0xff]
        %v1799 = vld [vmem:[#allocation6 + $0xa90] sm:$0xff]
        %v1800 = vld [vmem:[#allocation6 + $0xa98] sm:$0xff]
        %v1801 = vld [vmem:[#allocation6 + $0xaa0] sm:$0xff]
        %v1802 = vld [vmem:[#allocation6 + $0xaa8] sm:$0xff]
        %v1803 = vld [vmem:[#allocation6 + $0xab0] sm:$0xff]
        %v1804 = vld [vmem:[#allocation6 + $0xab8] sm:$0xff]
        %v1805 = vld [vmem:[#allocation6 + $0xac0] sm:$0xff]
        %v1806 = vld [vmem:[#allocation6 + $0xac8] sm:$0xff]
        %v1807 = vld [vmem:[#allocation6 + $0xad0] sm:$0xff]
        %v1808 = vld [vmem:[#allocation6 + $0xad8] sm:$0xff]
        %v1809 = vld [vmem:[#allocation6 + $0xae0] sm:$0xff]
        %v1810 = vld [vmem:[#allocation6 + $0xae8] sm:$0xff]
        %v1811 = vld [vmem:[#allocation6 + $0xaf0] sm:$0xff]
        %v1812 = vld [vmem:[#allocation6 + $0xaf8] sm:$0xff]
        %v1813 = vld [vmem:[#allocation6 + $0xb00] sm:$0xff]
        %v1814 = vld [vmem:[#allocation6 + $0xb08] sm:$0xff]
        %v1815 = vld [vmem:[#allocation6 + $0xb10] sm:$0xff]
        %v1816 = vld [vmem:[#allocation6 + $0xb18] sm:$0xff]
        %v1817 = vld [vmem:[#allocation6 + $0xb20] sm:$0xff]
        %v1818 = vld [vmem:[#allocation6 + $0xb28] sm:$0xff]
        %v1819 = vld [vmem:[#allocation6 + $0xb30] sm:$0xff]
        %v1820 = vld [vmem:[#allocation6 + $0xb38] sm:$0xff]
        %v1821 = vld [vmem:[#allocation6 + $0xb40] sm:$0xff]
        %v1822 = vld [vmem:[#allocation6 + $0xb48] sm:$0xff]
        %v1823 = vld [vmem:[#allocation6 + $0xb50] sm:$0xff]
        %v1824 = vld [vmem:[#allocation6 + $0xb58] sm:$0xff]
        %v1825 = vld [vmem:[#allocation6 + $0xb60] sm:$0xff]
        %v1826 = vld [vmem:[#allocation6 + $0xb68] sm:$0xff]
        %v1827 = vld [vmem:[#allocation6 + $0xb70] sm:$0xff]
        %v1828 = vld [vmem:[#allocation6 + $0xb78] sm:$0xff]
        %v1829 = vld [vmem:[#allocation6 + $0xb80] sm:$0xff]
        %v1830 = vld [vmem:[#allocation6 + $0xb88] sm:$0xff]
        %v1831 = vld [vmem:[#allocation6 + $0xb90] sm:$0xff]
        %v1832 = vld [vmem:[#allocation6 + $0xb98] sm:$0xff]
        %v1833 = vld [vmem:[#allocation6 + $0xba0] sm:$0xff]
        %v1834 = vld [vmem:[#allocation6 + $0xba8] sm:$0xff]
        %v1835 = vld [vmem:[#allocation6 + $0xbb0] sm:$0xff]
        %v1836 = vld [vmem:[#allocation6 + $0xbb8] sm:$0xff]
        %v1837 = vld [vmem:[#allocation6 + $0xbc0] sm:$0xff]
        %v1838 = vld [vmem:[#allocation6 + $0xbc8] sm:$0xff]
        %v1839 = vld [vmem:[#allocation6 + $0xbd0] sm:$0xff]
        %v1840 = vld [vmem:[#allocation6 + $0xbd8] sm:$0xff]
        %v1841 = vld [vmem:[#allocation6 + $0xbe0] sm:$0xff]
        %v1842 = vld [vmem:[#allocation6 + $0xbe8] sm:$0xff]
        %v1843 = vld [vmem:[#allocation6 + $0xbf0] sm:$0xff]
        %v1844 = vld [vmem:[#allocation6 + $0xbf8] sm:$0xff]
        %v1845 = vld [vmem:[#allocation6 + $0xc00] sm:$0xff]
        %v1846 = vld [vmem:[#allocation6 + $0xc08] sm:$0xff]
        %v1847 = vld [vmem:[#allocation6 + $0xc10] sm:$0xff]
        %v1848 = vld [vmem:[#allocation6 + $0xc18] sm:$0xff]
        %v1849 = vld [vmem:[#allocation6 + $0xc20] sm:$0xff]
        %v1850 = vld [vmem:[#allocation6 + $0xc28] sm:$0xff]
        %v1851 = vld [vmem:[#allocation6 + $0xc30] sm:$0xff]
        %v1852 = vld [vmem:[#allocation6 + $0xc38] sm:$0xff]
        %v1853 = vld [vmem:[#allocation6 + $0xc40] sm:$0xff]
        %v1854 = vld [vmem:[#allocation6 + $0xc48] sm:$0xff]
        %v1855 = vld [vmem:[#allocation6 + $0xc50] sm:$0xff]
        %v1856 = vld [vmem:[#allocation6 + $0xc58] sm:$0xff]
        %v1857 = vld [vmem:[#allocation6 + $0xc60] sm:$0xff]
        %v1858 = vld [vmem:[#allocation6 + $0xc68] sm:$0xff]
        %v1859 = vld [vmem:[#allocation6 + $0xc70] sm:$0xff]
        %v1860 = vld [vmem:[#allocation6 + $0xc78] sm:$0xff]
        %v1861 = vld [vmem:[#allocation6 + $0xc80] sm:$0xff]
        %v1862 = vld [vmem:[#allocation6 + $0xc88] sm:$0xff]
        %v1863 = vld [vmem:[#allocation6 + $0xc90] sm:$0xff]
        %v1864 = vld [vmem:[#allocation6 + $0xc98] sm:$0xff]
        %v1865 = vld [vmem:[#allocation6 + $0xca0] sm:$0xff]
        %v1866 = vld [vmem:[#allocation6 + $0xca8] sm:$0xff]
        %v1867 = vld [vmem:[#allocation6 + $0xcb0] sm:$0xff]
        %v1868 = vld [vmem:[#allocation6 + $0xcb8] sm:$0xff]
        %v1869 = vld [vmem:[#allocation6 + $0xcc0] sm:$0xff]
        %v1870 = vld [vmem:[#allocation6 + $0xcc8] sm:$0xff]
        %v1871 = vld [vmem:[#allocation6 + $0xcd0] sm:$0xff]
        %v1872 = vld [vmem:[#allocation6 + $0xcd8] sm:$0xff]
        %v1873 = vld [vmem:[#allocation6 + $0xce0] sm:$0xff]
        %v1874 = vld [vmem:[#allocation6 + $0xce8] sm:$0xff]
        %v1875 = vld [vmem:[#allocation6 + $0xcf0] sm:$0xff]
        %v1876 = vld [vmem:[#allocation6 + $0xcf8] sm:$0xff]
        %v1877 = vld [vmem:[#allocation6 + $0xd00] sm:$0xff]
        %v1878 = vld [vmem:[#allocation6 + $0xd08] sm:$0xff]
        %v1879 = vld [vmem:[#allocation6 + $0xd10] sm:$0xff]
        %v1880 = vld [vmem:[#allocation6 + $0xd18] sm:$0xff]
        %v1881 = vld [vmem:[#allocation6 + $0xd20] sm:$0xff]
        %v1882 = vld [vmem:[#allocation6 + $0xd28] sm:$0xff]
        %v1883 = vld [vmem:[#allocation6 + $0xd30] sm:$0xff]
        %v1884 = vld [vmem:[#allocation6 + $0xd38] sm:$0xff]
        %v1885 = vld [vmem:[#allocation6 + $0xd40] sm:$0xff]
        %v1886 = vld [vmem:[#allocation6 + $0xd48] sm:$0xff]
        %v1887 = vld [vmem:[#allocation6 + $0xd50] sm:$0xff]
        %v1888 = vld [vmem:[#allocation6 + $0xd58] sm:$0xff]
        %v1889 = vld [vmem:[#allocation6 + $0xd60] sm:$0xff]
        %v1890 = vld [vmem:[#allocation6 + $0xd68] sm:$0xff]
        %v1891 = vld [vmem:[#allocation6 + $0xd70] sm:$0xff]
        %v1892 = vld [vmem:[#allocation6 + $0xd78] sm:$0xff]
        %v1893 = vld [vmem:[#allocation6 + $0xd80] sm:$0xff]
        %v1894 = vld [vmem:[#allocation6 + $0xd88] sm:$0xff]
        %v1895 = vld [vmem:[#allocation6 + $0xd90] sm:$0xff]
        %v1896 = vld [vmem:[#allocation6 + $0xd98] sm:$0xff]
        %v1897 = vld [vmem:[#allocation6 + $0xda0] sm:$0xff]
        %v1898 = vld [vmem:[#allocation6 + $0xda8] sm:$0xff]
        %v1899 = vld [vmem:[#allocation6 + $0xdb0] sm:$0xff]
        %v1900 = vld [vmem:[#allocation6 + $0xdb8] sm:$0xff]
        %v1901 = vld [vmem:[#allocation6 + $0xdc0] sm:$0xff]
        %v1902 = vld [vmem:[#allocation6 + $0xdc8] sm:$0xff]
        %v1903 = vld [vmem:[#allocation6 + $0xdd0] sm:$0xff]
        %v1904 = vld [vmem:[#allocation6 + $0xdd8] sm:$0xff]
        %v1905 = vld [vmem:[#allocation6 + $0xde0] sm:$0xff]
        %v1906 = vld [vmem:[#allocation6 + $0xde8] sm:$0xff]
        %v1907 = vld [vmem:[#allocation6 + $0xdf0] sm:$0xff]
        %v1908 = vld [vmem:[#allocation6 + $0xdf8] sm:$0xff]
        %v1909 = vld [vmem:[#allocation6 + $0xe00] sm:$0xff]
        %v1910 = vld [vmem:[#allocation6 + $0xe08] sm:$0xff]
        %v1911 = vld [vmem:[#allocation6 + $0xe10] sm:$0xff]
        %v1912 = vld [vmem:[#allocation6 + $0xe18] sm:$0xff]
        %v1913 = vld [vmem:[#allocation6 + $0xe20] sm:$0xff]
        %v1914 = vld [vmem:[#allocation6 + $0xe28] sm:$0xff]
        %v1915 = vld [vmem:[#allocation6 + $0xe30] sm:$0xff]
        %v1916 = vld [vmem:[#allocation6 + $0xe38] sm:$0xff]
        %v1917 = vld [vmem:[#allocation6 + $0xe40] sm:$0xff]
        %v1918 = vld [vmem:[#allocation6 + $0xe48] sm:$0xff]
        %v1919 = vld [vmem:[#allocation6 + $0xe50] sm:$0xff]
        %v1920 = vld [vmem:[#allocation6 + $0xe58] sm:$0xff]
        %v1921 = vld [vmem:[#allocation6 + $0xe60] sm:$0xff]
        %v1922 = vld [vmem:[#allocation6 + $0xe68] sm:$0xff]
        %v1923 = vld [vmem:[#allocation6 + $0xe70] sm:$0xff]
        %v1924 = vld [vmem:[#allocation6 + $0xe78] sm:$0xff]
        %v1925 = vld [vmem:[#allocation6 + $0xe80] sm:$0xff]
        %v1926 = vld [vmem:[#allocation6 + $0xe88] sm:$0xff]
        %v1927 = vld [vmem:[#allocation6 + $0xe90] sm:$0xff]
        %v1928 = vld [vmem:[#allocation6 + $0xe98] sm:$0xff]
        %v1929 = vld [vmem:[#allocation6 + $0xea0] sm:$0xff]
        %v1930 = vld [vmem:[#allocation6 + $0xea8] sm:$0xff]
        %v1931 = vld [vmem:[#allocation6 + $0xeb0] sm:$0xff]
        %v1932 = vld [vmem:[#allocation6 + $0xeb8] sm:$0xff]
        %v1933 = vld [vmem:[#allocation6 + $0xec0] sm:$0xff]
        %v1934 = vld [vmem:[#allocation6 + $0xec8] sm:$0xff]
        %v1935 = vld [vmem:[#allocation6 + $0xed0] sm:$0xff]
        %v1936 = vld [vmem:[#allocation6 + $0xed8] sm:$0xff]
        %v1937 = vld [vmem:[#allocation6 + $0xee0] sm:$0xff]
        %v1938 = vld [vmem:[#allocation6 + $0xee8] sm:$0xff]
        %v1939 = vld [vmem:[#allocation6 + $0xef0] sm:$0xff]
        %v1940 = vld [vmem:[#allocation6 + $0xef8] sm:$0xff]
        %v1941 = vld [vmem:[#allocation6 + $0xf00] sm:$0xff]
        %v1942 = vld [vmem:[#allocation6 + $0xf08] sm:$0xff]
        %v1943 = vld [vmem:[#allocation6 + $0xf10] sm:$0xff]
        %v1944 = vld [vmem:[#allocation6 + $0xf18] sm:$0xff]
        %v1945 = vld [vmem:[#allocation6 + $0xf20] sm:$0xff]
        %v1946 = vld [vmem:[#allocation6 + $0xf28] sm:$0xff]
        %v1947 = vld [vmem:[#allocation6 + $0xf30] sm:$0xff]
        %v1948 = vld [vmem:[#allocation6 + $0xf38] sm:$0xff]
        %v1949 = vld [vmem:[#allocation6 + $0xf40] sm:$0xff]
        %v1950 = vld [vmem:[#allocation6 + $0xf48] sm:$0xff]
        %v1951 = vld [vmem:[#allocation6 + $0xf50] sm:$0xff]
        %v1952 = vld [vmem:[#allocation6 + $0xf58] sm:$0xff]
        %v1953 = vld [vmem:[#allocation6 + $0xf60] sm:$0xff]
        %v1954 = vld [vmem:[#allocation6 + $0xf68] sm:$0xff]
        %v1955 = vld [vmem:[#allocation6 + $0xf70] sm:$0xff]
        %v1956 = vld [vmem:[#allocation6 + $0xf78] sm:$0xff]
        %v1957 = vld [vmem:[#allocation6 + $0xf80] sm:$0xff]
        %v1958 = vld [vmem:[#allocation6 + $0xf88] sm:$0xff]
        %v1959 = vld [vmem:[#allocation6 + $0xf90] sm:$0xff]
        %v1960 = vld [vmem:[#allocation6 + $0xf98] sm:$0xff]
        %v1961 = vld [vmem:[#allocation6 + $0xfa0] sm:$0xff]
        %v1962 = vld [vmem:[#allocation6 + $0xfa8] sm:$0xff]
        %v1963 = vld [vmem:[#allocation6 + $0xfb0] sm:$0xff]
        %v1964 = vld [vmem:[#allocation6 + $0xfb8] sm:$0xff]
        %v1965 = vld [vmem:[#allocation6 + $0xfc0] sm:$0xff]
        %v1966 = vld [vmem:[#allocation6 + $0xfc8] sm:$0xff]
        %v1967 = vld [vmem:[#allocation6 + $0xfd0] sm:$0xff]
        %v1968 = vld [vmem:[#allocation6 + $0xfd8] sm:$0xff]
        %v1969 = vld [vmem:[#allocation6 + $0xfe0] sm:$0xff]
        %v1970 = vld [vmem:[#allocation6 + $0xfe8] sm:$0xff]
        %v1971 = vld [vmem:[#allocation6 + $0xff0] sm:$0xff]
        %v1972 = vld [vmem:[#allocation6 + $0xff8] sm:$0xff]
        %v1973 = vld [vmem:[#allocation6 + $0x1000] sm:$0xff]
        %v1974 = vld [vmem:[#allocation6 + $0x1008] sm:$0xff]
        %v1975 = vld [vmem:[#allocation6 + $0x1010] sm:$0xff]
        %v1976 = vld [vmem:[#allocation6 + $0x1018] sm:$0xff]
        %v1977 = vld [vmem:[#allocation6 + $0x1020] sm:$0xff]
        %v1978 = vld [vmem:[#allocation6 + $0x1028] sm:$0xff]
        %v1979 = vld [vmem:[#allocation6 + $0x1030] sm:$0xff]
        %v1980 = vld [vmem:[#allocation6 + $0x1038] sm:$0xff]
        %v1981 = vld [vmem:[#allocation6 + $0x1040] sm:$0xff]
        %v1982 = vld [vmem:[#allocation6 + $0x1048] sm:$0xff]
        %v1983 = vld [vmem:[#allocation6 + $0x1050] sm:$0xff]
        %v1984 = vld [vmem:[#allocation6 + $0x1058] sm:$0xff]
        %v1985 = vld [vmem:[#allocation6 + $0x1060] sm:$0xff]
        %v1986 = vld [vmem:[#allocation6 + $0x1068] sm:$0xff]
        %v1987 = vld [vmem:[#allocation6 + $0x1070] sm:$0xff]
        %v1988 = vld [vmem:[#allocation6 + $0x1078] sm:$0xff]
        %v1989 = vld [vmem:[#allocation6 + $0x1080] sm:$0xff]
        %v1990 = vld [vmem:[#allocation6 + $0x1088] sm:$0xff]
        %v1991 = vld [vmem:[#allocation6 + $0x1090] sm:$0xff]
        %v1992 = vld [vmem:[#allocation6 + $0x1098] sm:$0xff]
        %v1993 = vld [vmem:[#allocation6 + $0x10a0] sm:$0xff]
        %v1994 = vld [vmem:[#allocation6 + $0x10a8] sm:$0xff]
        %v1995 = vld [vmem:[#allocation6 + $0x10b0] sm:$0xff]
        %v1996 = vld [vmem:[#allocation6 + $0x10b8] sm:$0xff]
        %v1997 = vld [vmem:[#allocation6 + $0x10c0] sm:$0xff]
        %v1998 = vld [vmem:[#allocation6 + $0x10c8] sm:$0xff]
        %v1999 = vld [vmem:[#allocation6 + $0x10d0] sm:$0xff]
        %v2000 = vld [vmem:[#allocation6 + $0x10d8] sm:$0xff]
        %v2001 = vld [vmem:[#allocation6 + $0x10e0] sm:$0xff]
        %v2002 = vld [vmem:[#allocation6 + $0x10e8] sm:$0xff]
        %v2003 = vld [vmem:[#allocation6 + $0x10f0] sm:$0xff]
        %v2004 = vld [vmem:[#allocation6 + $0x10f8] sm:$0xff]
        %v2005 = vld [vmem:[#allocation6 + $0x1100] sm:$0xff]
        %v2006 = vld [vmem:[#allocation6 + $0x1108] sm:$0xff]
        %v2007 = vld [vmem:[#allocation6 + $0x1110] sm:$0xff]
        %v2008 = vld [vmem:[#allocation6 + $0x1118] sm:$0xff]
        %v2009 = vld [vmem:[#allocation6 + $0x1120] sm:$0xff]
        %v2010 = vld [vmem:[#allocation6 + $0x1128] sm:$0xff]
        %v2011 = vld [vmem:[#allocation6 + $0x1130] sm:$0xff]
        %v2012 = vld [vmem:[#allocation6 + $0x1138] sm:$0xff]
        %v2013 = vld [vmem:[#allocation6 + $0x1140] sm:$0xff]
        %v2014 = vld [vmem:[#allocation6 + $0x1148] sm:$0xff]
        %v2015 = vld [vmem:[#allocation6 + $0x1150] sm:$0xff]
        %v2016 = vld [vmem:[#allocation6 + $0x1158] sm:$0xff]
        %v2017 = vld [vmem:[#allocation6 + $0x1160] sm:$0xff]
        %v2018 = vld [vmem:[#allocation6 + $0x1168] sm:$0xff]
        %v2019 = vld [vmem:[#allocation6 + $0x1170] sm:$0xff]
        %v2020 = vld [vmem:[#allocation6 + $0x1178] sm:$0xff]
        %v2021 = vld [vmem:[#allocation6 + $0x1180] sm:$0xff]
        %v2022 = vld [vmem:[#allocation6 + $0x1188] sm:$0xff]
        %v2023 = vld [vmem:[#allocation6 + $0x1190] sm:$0xff]
        %v2024 = vld [vmem:[#allocation6 + $0x1198] sm:$0xff]
        %v2025 = vld [vmem:[#allocation6 + $0x11a0] sm:$0xff]
        %v2026 = vld [vmem:[#allocation6 + $0x11a8] sm:$0xff]
        %v2027 = vld [vmem:[#allocation6 + $0x11b0] sm:$0xff]
        %v2028 = vld [vmem:[#allocation6 + $0x11b8] sm:$0xff]
        %v2029 = vld [vmem:[#allocation6 + $0x11c0] sm:$0xff]
        %v2030 = vld [vmem:[#allocation6 + $0x11c8] sm:$0xff]
        %v2031 = vld [vmem:[#allocation6 + $0x11d0] sm:$0xff]
        %v2032 = vld [vmem:[#allocation6 + $0x11d8] sm:$0xff]
        %v2033 = vld [vmem:[#allocation6 + $0x11e0] sm:$0xff]
        %v2034 = vld [vmem:[#allocation6 + $0x11e8] sm:$0xff]
        %v2035 = vld [vmem:[#allocation6 + $0x11f0] sm:$0xff]
        %v2036 = vld [vmem:[#allocation6 + $0x11f8] sm:$0xff]
        %v2037 = vld [vmem:[#allocation6 + $0x1200] sm:$0xff]
        %v2038 = vld [vmem:[#allocation6 + $0x1208] sm:$0xff]
        %v2039 = vld [vmem:[#allocation6 + $0x1210] sm:$0xff]
        %v2040 = vld [vmem:[#allocation6 + $0x1218] sm:$0xff]
        %v2041 = vld [vmem:[#allocation6 + $0x1220] sm:$0xff]
        %v2042 = vld [vmem:[#allocation6 + $0x1228] sm:$0xff]
        %v2043 = vld [vmem:[#allocation6 + $0x1230] sm:$0xff]
        %v2044 = vld [vmem:[#allocation6 + $0x1238] sm:$0xff]
        %v2045 = vld [vmem:[#allocation6 + $0x1240] sm:$0xff]
        %v2046 = vld [vmem:[#allocation6 + $0x1248] sm:$0xff]
        %v2047 = vld [vmem:[#allocation6 + $0x1250] sm:$0xff]
        %v2048 = vld [vmem:[#allocation6 + $0x1258] sm:$0xff]
        %v2049 = vld [vmem:[#allocation6 + $0x1260] sm:$0xff]
        %v2050 = vld [vmem:[#allocation6 + $0x1268] sm:$0xff]
        %v2051 = vld [vmem:[#allocation6 + $0x1270] sm:$0xff]
        %v2052 = vld [vmem:[#allocation6 + $0x1278] sm:$0xff]
        %v2053 = vld [vmem:[#allocation6 + $0x1280] sm:$0xff]
        %v2054 = vld [vmem:[#allocation6 + $0x1288] sm:$0xff]
        %v2055 = vld [vmem:[#allocation6 + $0x1290] sm:$0xff]
        %v2056 = vld [vmem:[#allocation6 + $0x1298] sm:$0xff]
        %v2057 = vld [vmem:[#allocation6 + $0x12a0] sm:$0xff]
        %v2058 = vld [vmem:[#allocation6 + $0x12a8] sm:$0xff]
        %v2059 = vld [vmem:[#allocation6 + $0x12b0] sm:$0xff]
        %v2060 = vld [vmem:[#allocation6 + $0x12b8] sm:$0xff]
        %v2061 = vld [vmem:[#allocation6 + $0x12c0] sm:$0xff]
        %v2062 = vld [vmem:[#allocation6 + $0x12c8] sm:$0xff]
        %v2063 = vld [vmem:[#allocation6 + $0x12d0] sm:$0xff]
        %v2064 = vld [vmem:[#allocation6 + $0x12d8] sm:$0xff]
        %v2065 = vld [vmem:[#allocation6 + $0x12e0] sm:$0xff]
        %v2066 = vld [vmem:[#allocation6 + $0x12e8] sm:$0xff]
        %v2067 = vld [vmem:[#allocation6 + $0x12f0] sm:$0xff]
        %v2068 = vld [vmem:[#allocation6 + $0x12f8] sm:$0xff]
        %v2069 = vld [vmem:[#allocation6 + $0x1300] sm:$0xff]
        %v2070 = vld [vmem:[#allocation6 + $0x1308] sm:$0xff]
        %v2071 = vld [vmem:[#allocation6 + $0x1310] sm:$0xff]
        %v2072 = vld [vmem:[#allocation6 + $0x1318] sm:$0xff]
        %v2073 = vld [vmem:[#allocation6 + $0x1320] sm:$0xff]
        %v2074 = vld [vmem:[#allocation6 + $0x1328] sm:$0xff]
        %v2075 = vld [vmem:[#allocation6 + $0x1330] sm:$0xff]
        %v2076 = vld [vmem:[#allocation6 + $0x1338] sm:$0xff]
        %v2077 = vld [vmem:[#allocation6 + $0x1340] sm:$0xff]
        %v2078 = vld [vmem:[#allocation6 + $0x1348] sm:$0xff]
        %v2079 = vld [vmem:[#allocation6 + $0x1350] sm:$0xff]
        %v2080 = vld [vmem:[#allocation6 + $0x1358] sm:$0xff]
        %v2081 = vld [vmem:[#allocation6 + $0x1360] sm:$0xff]
        %v2082 = vld [vmem:[#allocation6 + $0x1368] sm:$0xff]
        %v2083 = vld [vmem:[#allocation6 + $0x1370] sm:$0xff]
        %v2084 = vld [vmem:[#allocation6 + $0x1378] sm:$0xff]
        %v2085 = vld [vmem:[#allocation6 + $0x1380] sm:$0xff]
        %v2086 = vld [vmem:[#allocation6 + $0x1388] sm:$0xff]
        %v2087 = vld [vmem:[#allocation6 + $0x1390] sm:$0xff]
        %v2088 = vld [vmem:[#allocation6 + $0x1398] sm:$0xff]
        %v2089 = vld [vmem:[#allocation6 + $0x13a0] sm:$0xff]
        %v2090 = vld [vmem:[#allocation6 + $0x13a8] sm:$0xff]
        %v2091 = vld [vmem:[#allocation6 + $0x13b0] sm:$0xff]
        %v2092 = vld [vmem:[#allocation6 + $0x13b8] sm:$0xff]
        %v2093 = vld [vmem:[#allocation6 + $0x13c0] sm:$0xff]
        %v2094 = vld [vmem:[#allocation6 + $0x13c8] sm:$0xff]
        %v2095 = vld [vmem:[#allocation6 + $0x13d0] sm:$0xff]
        %v2096 = vld [vmem:[#allocation6 + $0x13d8] sm:$0xff]
        %v2097 = vld [vmem:[#allocation6 + $0x13e0] sm:$0xff]
        %v2098 = vld [vmem:[#allocation6 + $0x13e8] sm:$0xff]
        %v2099 = vld [vmem:[#allocation6 + $0x13f0] sm:$0xff]
        %v2100 = vld [vmem:[#allocation6 + $0x13f8] sm:$0xff]
        %v2101 = vld [vmem:[#allocation6 + $0x1400] sm:$0xff]
        %v2102 = vld [vmem:[#allocation6 + $0x1408] sm:$0xff]
        %v2103 = vld [vmem:[#allocation6 + $0x1410] sm:$0xff]
        %v2104 = vld [vmem:[#allocation6 + $0x1418] sm:$0xff]
        %v2105 = vld [vmem:[#allocation6 + $0x1420] sm:$0xff]
        %v2106 = vld [vmem:[#allocation6 + $0x1428] sm:$0xff]
        %v2107 = vld [vmem:[#allocation6 + $0x1430] sm:$0xff]
        %v2108 = vld [vmem:[#allocation6 + $0x1438] sm:$0xff]
        %v2109 = vld [vmem:[#allocation6 + $0x1440] sm:$0xff]
        %v2110 = vld [vmem:[#allocation6 + $0x1448] sm:$0xff]
        %v2111 = vld [vmem:[#allocation6 + $0x1450] sm:$0xff]
        %v2112 = vld [vmem:[#allocation6 + $0x1458] sm:$0xff]
        %v2113 = vld [vmem:[#allocation6 + $0x1460] sm:$0xff]
        %v2114 = vld [vmem:[#allocation6 + $0x1468] sm:$0xff]
        %v2115 = vld [vmem:[#allocation6 + $0x1470] sm:$0xff]
        %v2116 = vld [vmem:[#allocation6 + $0x1478] sm:$0xff]
        %v2117 = vld [vmem:[#allocation6 + $0x1480] sm:$0xff]
        %v2118 = vld [vmem:[#allocation6 + $0x1488] sm:$0xff]
        %v2119 = vld [vmem:[#allocation6 + $0x1490] sm:$0xff]
        %v2120 = vld [vmem:[#allocation6 + $0x1498] sm:$0xff]
        %v2121 = vld [vmem:[#allocation6 + $0x14a0] sm:$0xff]
        %v2122 = vld [vmem:[#allocation6 + $0x14a8] sm:$0xff]
        %v2123 = vld [vmem:[#allocation6 + $0x14b0] sm:$0xff]
        %v2124 = vld [vmem:[#allocation6 + $0x14b8] sm:$0xff]
        %v2125 = vld [vmem:[#allocation6 + $0x14c0] sm:$0xff]
        %v2126 = vld [vmem:[#allocation6 + $0x14c8] sm:$0xff]
        %v2127 = vld [vmem:[#allocation6 + $0x14d0] sm:$0xff]
        %v2128 = vld [vmem:[#allocation6 + $0x14d8] sm:$0xff]
        %v2129 = vld [vmem:[#allocation6 + $0x14e0] sm:$0xff]
        %v2130 = vld [vmem:[#allocation6 + $0x14e8] sm:$0xff]
        %v2131 = vld [vmem:[#allocation6 + $0x14f0] sm:$0xff]
        %v2132 = vld [vmem:[#allocation6 + $0x14f8] sm:$0xff]
        %v2133 = vld [vmem:[#allocation6 + $0x1500] sm:$0xff]
        %v2134 = vld [vmem:[#allocation6 + $0x1508] sm:$0xff]
        %v2135 = vld [vmem:[#allocation6 + $0x1510] sm:$0xff]
        %v2136 = vld [vmem:[#allocation6 + $0x1518] sm:$0xff]
        %v2137 = vld [vmem:[#allocation6 + $0x1520] sm:$0xff]
        %v2138 = vld [vmem:[#allocation6 + $0x1528] sm:$0xff]
        %v2139 = vld [vmem:[#allocation6 + $0x1530] sm:$0xff]
        %v2140 = vld [vmem:[#allocation6 + $0x1538] sm:$0xff]
        %v2141 = vld [vmem:[#allocation6 + $0x1540] sm:$0xff]
        %v2142 = vld [vmem:[#allocation6 + $0x1548] sm:$0xff]
        %v2143 = vld [vmem:[#allocation6 + $0x1550] sm:$0xff]
        %v2144 = vld [vmem:[#allocation6 + $0x1558] sm:$0xff]
        %v2145 = vld [vmem:[#allocation6 + $0x1560] sm:$0xff]
        %v2146 = vld [vmem:[#allocation6 + $0x1568] sm:$0xff]
        %v2147 = vld [vmem:[#allocation6 + $0x1570] sm:$0xff]
        %v2148 = vld [vmem:[#allocation6 + $0x1578] sm:$0xff]
        %v2149 = vld [vmem:[#allocation6 + $0x1580] sm:$0xff]
        %v2150 = vld [vmem:[#allocation6 + $0x1588] sm:$0xff]
        %v2151 = vld [vmem:[#allocation6 + $0x1590] sm:$0xff]
        %v2152 = vld [vmem:[#allocation6 + $0x1598] sm:$0xff]
        %v2153 = vld [vmem:[#allocation6 + $0x15a0] sm:$0xff]
        %v2154 = vld [vmem:[#allocation6 + $0x15a8] sm:$0xff]
        %v2155 = vld [vmem:[#allocation6 + $0x15b0] sm:$0xff]
        %v2156 = vld [vmem:[#allocation6 + $0x15b8] sm:$0xff]
        %v2157 = vld [vmem:[#allocation6 + $0x15c0] sm:$0xff]
        %v2158 = vld [vmem:[#allocation6 + $0x15c8] sm:$0xff]
        %v2159 = vld [vmem:[#allocation6 + $0x15d0] sm:$0xff]
        %v2160 = vld [vmem:[#allocation6 + $0x15d8] sm:$0xff]
        %v2161 = vld [vmem:[#allocation6 + $0x15e0] sm:$0xff]
        %v2162 = vld [vmem:[#allocation6 + $0x15e8] sm:$0xff]
        %v2163 = vld [vmem:[#allocation6 + $0x15f0] sm:$0xff]
        %v2164 = vld [vmem:[#allocation6 + $0x15f8] sm:$0xff]
        %v2165 = vld [vmem:[#allocation6 + $0x1600] sm:$0xff]
        %v2166 = vld [vmem:[#allocation6 + $0x1608] sm:$0xff]
        %v2167 = vld [vmem:[#allocation6 + $0x1610] sm:$0xff]
        %v2168 = vld [vmem:[#allocation6 + $0x1618] sm:$0xff]
        %v2169 = vld [vmem:[#allocation6 + $0x1620] sm:$0xff]
        %v2170 = vld [vmem:[#allocation6 + $0x1628] sm:$0xff]
        %v2171 = vld [vmem:[#allocation6 + $0x1630] sm:$0xff]
        %v2172 = vld [vmem:[#allocation6 + $0x1638] sm:$0xff]
        %v2173 = vld [vmem:[#allocation6 + $0x1640] sm:$0xff]
        %v2174 = vld [vmem:[#allocation6 + $0x1648] sm:$0xff]
        %v2175 = vld [vmem:[#allocation6 + $0x1650] sm:$0xff]
        %v2176 = vld [vmem:[#allocation6 + $0x1658] sm:$0xff]
        %v2177 = vld [vmem:[#allocation6 + $0x1660] sm:$0xff]
        %v2178 = vld [vmem:[#allocation6 + $0x1668] sm:$0xff]
        %v2179 = vld [vmem:[#allocation6 + $0x1670] sm:$0xff]
        %v2180 = vld [vmem:[#allocation6 + $0x1678] sm:$0xff]
        %v2181 = vld [vmem:[#allocation6 + $0x1680] sm:$0xff]
        %v2182 = vld [vmem:[#allocation6 + $0x1688] sm:$0xff]
        %v2183 = vld [vmem:[#allocation6 + $0x1690] sm:$0xff]
        %v2184 = vld [vmem:[#allocation6 + $0x1698] sm:$0xff]
        %v2185 = vld [vmem:[#allocation6 + $0x16a0] sm:$0xff]
        %v2186 = vld [vmem:[#allocation6 + $0x16a8] sm:$0xff]
        %v2187 = vld [vmem:[#allocation6 + $0x16b0] sm:$0xff]
        %v2188 = vld [vmem:[#allocation6 + $0x16b8] sm:$0xff]
        %v2189 = vld [vmem:[#allocation6 + $0x16c0] sm:$0xff]
        %v2190 = vld [vmem:[#allocation6 + $0x16c8] sm:$0xff]
        %v2191 = vld [vmem:[#allocation6 + $0x16d0] sm:$0xff]
        %v2192 = vld [vmem:[#allocation6 + $0x16d8] sm:$0xff]
        %v2193 = vld [vmem:[#allocation6 + $0x16e0] sm:$0xff]
        %v2194 = vld [vmem:[#allocation6 + $0x16e8] sm:$0xff]
        %v2195 = vld [vmem:[#allocation6 + $0x16f0] sm:$0xff]
        %v2196 = vld [vmem:[#allocation6 + $0x16f8] sm:$0xff]
        %v2197 = vld [vmem:[#allocation6 + $0x1700] sm:$0xff]
        %v2198 = vld [vmem:[#allocation6 + $0x1708] sm:$0xff]
        %v2199 = vld [vmem:[#allocation6 + $0x1710] sm:$0xff]
        %v2200 = vld [vmem:[#allocation6 + $0x1718] sm:$0xff]
        %v2201 = vld [vmem:[#allocation6 + $0x1720] sm:$0xff]
        %v2202 = vld [vmem:[#allocation6 + $0x1728] sm:$0xff]
        %v2203 = vld [vmem:[#allocation6 + $0x1730] sm:$0xff]
        %v2204 = vld [vmem:[#allocation6 + $0x1738] sm:$0xff]
        %v2205 = vld [vmem:[#allocation6 + $0x1740] sm:$0xff]
        %v2206 = vld [vmem:[#allocation6 + $0x1748] sm:$0xff]
        %v2207 = vld [vmem:[#allocation6 + $0x1750] sm:$0xff]
        %v2208 = vld [vmem:[#allocation6 + $0x1758] sm:$0xff]
        %v2209 = vld [vmem:[#allocation6 + $0x1760] sm:$0xff]
        %v2210 = vld [vmem:[#allocation6 + $0x1768] sm:$0xff]
        %v2211 = vld [vmem:[#allocation6 + $0x1770] sm:$0xff]
        %v2212 = vld [vmem:[#allocation6 + $0x1778] sm:$0xff]
        %v2213 = vld [vmem:[#allocation6 + $0x1780] sm:$0xff]
        %v2214 = vld [vmem:[#allocation6 + $0x1788] sm:$0xff]
        %v2215 = vld [vmem:[#allocation6 + $0x1790] sm:$0xff]
        %v2216 = vld [vmem:[#allocation6 + $0x1798] sm:$0xff]
        %v2217 = vld [vmem:[#allocation6 + $0x17a0] sm:$0xff]
        %v2218 = vld [vmem:[#allocation6 + $0x17a8] sm:$0xff]
        %v2219 = vld [vmem:[#allocation6 + $0x17b0] sm:$0xff]
        %v2220 = vld [vmem:[#allocation6 + $0x17b8] sm:$0xff]
        %v2221 = vld [vmem:[#allocation6 + $0x17c0] sm:$0xff]
        %v2222 = vld [vmem:[#allocation6 + $0x17c8] sm:$0xff]
        %v2223 = vld [vmem:[#allocation6 + $0x17d0] sm:$0xff]
        %v2224 = vld [vmem:[#allocation6 + $0x17d8] sm:$0xff]
        %v2225 = vld [vmem:[#allocation6 + $0x17e0] sm:$0xff]
        %v2226 = vld [vmem:[#allocation6 + $0x17e8] sm:$0xff]
        %v2227 = vld [vmem:[#allocation6 + $0x17f0] sm:$0xff]
        %v2228 = vld [vmem:[#allocation6 + $0x17f8] sm:$0xff]
        %v2229 = vld [vmem:[#allocation6 + $0x1800] sm:$0xff]
        %v2230 = vld [vmem:[#allocation6 + $0x1808] sm:$0xff]
        %v2231 = vld [vmem:[#allocation6 + $0x1810] sm:$0xff]
        %v2232 = vld [vmem:[#allocation6 + $0x1818] sm:$0xff]
        %v2233 = vld [vmem:[#allocation6 + $0x1820] sm:$0xff]
        %v2234 = vld [vmem:[#allocation6 + $0x1828] sm:$0xff]
        %v2235 = vld [vmem:[#allocation6 + $0x1830] sm:$0xff]
        %v2236 = vld [vmem:[#allocation6 + $0x1838] sm:$0xff]
        %v2237 = vld [vmem:[#allocation6 + $0x1840] sm:$0xff]
        %v2238 = vld [vmem:[#allocation6 + $0x1848] sm:$0xff]
        %v2239 = vld [vmem:[#allocation6 + $0x1850] sm:$0xff]
        %v2240 = vld [vmem:[#allocation6 + $0x1858] sm:$0xff]
        %v2241 = vld [vmem:[#allocation6 + $0x1860] sm:$0xff]
        %v2242 = vld [vmem:[#allocation6 + $0x1868] sm:$0xff]
        %v2243 = vld [vmem:[#allocation6 + $0x1870] sm:$0xff]
        %v2244 = vld [vmem:[#allocation6 + $0x1878] sm:$0xff]
        %v2245 = vld [vmem:[#allocation6 + $0x1880] sm:$0xff]
        %v2246 = vld [vmem:[#allocation6 + $0x1888] sm:$0xff]
        %v2247 = vld [vmem:[#allocation6 + $0x1890] sm:$0xff]
        %v2248 = vld [vmem:[#allocation6 + $0x1898] sm:$0xff]
        %v2249 = vld [vmem:[#allocation6 + $0x18a0] sm:$0xff]
        %v2250 = vld [vmem:[#allocation6 + $0x18a8] sm:$0xff]
        %v2251 = vld [vmem:[#allocation6 + $0x18b0] sm:$0xff]
        %v2252 = vld [vmem:[#allocation6 + $0x18b8] sm:$0xff]
        %v2253 = vld [vmem:[#allocation6 + $0x18c0] sm:$0xff]
        %v2254 = vld [vmem:[#allocation6 + $0x18c8] sm:$0xff]
        %v2255 = vld [vmem:[#allocation6 + $0x18d0] sm:$0xff]
        %v2256 = vld [vmem:[#allocation6 + $0x18d8] sm:$0xff]
        %v2257 = vld [vmem:[#allocation6 + $0x18e0] sm:$0xff]
        %v2258 = vld [vmem:[#allocation6 + $0x18e8] sm:$0xff]
        %v2259 = vld [vmem:[#allocation6 + $0x18f0] sm:$0xff]
        %v2260 = vld [vmem:[#allocation6 + $0x18f8] sm:$0xff]
        %v2261 = vld [vmem:[#allocation6 + $0x1900] sm:$0xff]
        %v2262 = vld [vmem:[#allocation6 + $0x1908] sm:$0xff]
        %v2263 = vld [vmem:[#allocation6 + $0x1910] sm:$0xff]
        %v2264 = vld [vmem:[#allocation6 + $0x1918] sm:$0xff]
        %v2265 = vld [vmem:[#allocation6 + $0x1920] sm:$0xff]
        %v2266 = vld [vmem:[#allocation6 + $0x1928] sm:$0xff]
        %v2267 = vld [vmem:[#allocation6 + $0x1930] sm:$0xff]
        %v2268 = vld [vmem:[#allocation6 + $0x1938] sm:$0xff]
        %v2269 = vld [vmem:[#allocation6 + $0x1940] sm:$0xff]
        %v2270 = vld [vmem:[#allocation6 + $0x1948] sm:$0xff]
        %v2271 = vld [vmem:[#allocation6 + $0x1950] sm:$0xff]
        %v2272 = vld [vmem:[#allocation6 + $0x1958] sm:$0xff]
        %v2273 = vld [vmem:[#allocation6 + $0x1960] sm:$0xff]
        %v2274 = vld [vmem:[#allocation6 + $0x1968] sm:$0xff]
        %v2275 = vld [vmem:[#allocation6 + $0x1970] sm:$0xff]
        %v2276 = vld [vmem:[#allocation6 + $0x1978] sm:$0xff]
        %v2277 = vld [vmem:[#allocation6 + $0x1980] sm:$0xff]
        %v2278 = vld [vmem:[#allocation6 + $0x1988] sm:$0xff]
        %v2279 = vld [vmem:[#allocation6 + $0x1990] sm:$0xff]
        %v2280 = vld [vmem:[#allocation6 + $0x1998] sm:$0xff]
        %v2281 = vld [vmem:[#allocation6 + $0x19a0] sm:$0xff]
        %v2282 = vld [vmem:[#allocation6 + $0x19a8] sm:$0xff]
        %v2283 = vld [vmem:[#allocation6 + $0x19b0] sm:$0xff]
        %v2284 = vld [vmem:[#allocation6 + $0x19b8] sm:$0xff]
        %v2285 = vld [vmem:[#allocation6 + $0x19c0] sm:$0xff]
        %v2286 = vld [vmem:[#allocation6 + $0x19c8] sm:$0xff]
        %v2287 = vld [vmem:[#allocation6 + $0x19d0] sm:$0xff]
        %v2288 = vld [vmem:[#allocation6 + $0x19d8] sm:$0xff]
        %v2289 = vld [vmem:[#allocation6 + $0x19e0] sm:$0xff]
        %v2290 = vld [vmem:[#allocation6 + $0x19e8] sm:$0xff]
        %v2291 = vld [vmem:[#allocation6 + $0x19f0] sm:$0xff]
        %v2292 = vld [vmem:[#allocation6 + $0x19f8] sm:$0xff]
        %v2293 = vld [vmem:[#allocation6 + $0x1a00] sm:$0xff]
        %v2294 = vld [vmem:[#allocation6 + $0x1a08] sm:$0xff]
        %v2295 = vld [vmem:[#allocation6 + $0x1a10] sm:$0xff]
        %v2296 = vld [vmem:[#allocation6 + $0x1a18] sm:$0xff]
        %v2297 = vld [vmem:[#allocation6 + $0x1a20] sm:$0xff]
        %v2298 = vld [vmem:[#allocation6 + $0x1a28] sm:$0xff]
        %v2299 = vld [vmem:[#allocation6 + $0x1a30] sm:$0xff]
        %v2300 = vld [vmem:[#allocation6 + $0x1a38] sm:$0xff]
        %v2301 = vld [vmem:[#allocation6 + $0x1a40] sm:$0xff]
        %v2302 = vld [vmem:[#allocation6 + $0x1a48] sm:$0xff]
        %v2303 = vld [vmem:[#allocation6 + $0x1a50] sm:$0xff]
        %v2304 = vld [vmem:[#allocation6 + $0x1a58] sm:$0xff]
        %v2305 = vld [vmem:[#allocation6 + $0x1a60] sm:$0xff]
        %v2306 = vld [vmem:[#allocation6 + $0x1a68] sm:$0xff]
        %v2307 = vld [vmem:[#allocation6 + $0x1a70] sm:$0xff]
        %v2308 = vld [vmem:[#allocation6 + $0x1a78] sm:$0xff]
        %v2309 = vld [vmem:[#allocation6 + $0x1a80] sm:$0xff]
        %v2310 = vld [vmem:[#allocation6 + $0x1a88] sm:$0xff]
        %v2311 = vld [vmem:[#allocation6 + $0x1a90] sm:$0xff]
        %v2312 = vld [vmem:[#allocation6 + $0x1a98] sm:$0xff]
        %v2313 = vld [vmem:[#allocation6 + $0x1aa0] sm:$0xff]
        %v2314 = vld [vmem:[#allocation6 + $0x1aa8] sm:$0xff]
        %v2315 = vld [vmem:[#allocation6 + $0x1ab0] sm:$0xff]
        %v2316 = vld [vmem:[#allocation6 + $0x1ab8] sm:$0xff]
        %v2317 = vld [vmem:[#allocation6 + $0x1ac0] sm:$0xff]
        %v2318 = vld [vmem:[#allocation6 + $0x1ac8] sm:$0xff]
        %v2319 = vld [vmem:[#allocation6 + $0x1ad0] sm:$0xff]
        %v2320 = vld [vmem:[#allocation6 + $0x1ad8] sm:$0xff]
        %v2321 = vld [vmem:[#allocation6 + $0x1ae0] sm:$0xff]
        %v2322 = vld [vmem:[#allocation6 + $0x1ae8] sm:$0xff]
        %v2323 = vld [vmem:[#allocation6 + $0x1af0] sm:$0xff]
        %v2324 = vld [vmem:[#allocation6 + $0x1af8] sm:$0xff]
        %v2325 = vld [vmem:[#allocation6 + $0x1b00] sm:$0xff]
        %v2326 = vld [vmem:[#allocation6 + $0x1b08] sm:$0xff]
        %v2327 = vld [vmem:[#allocation6 + $0x1b10] sm:$0xff]
        %v2328 = vld [vmem:[#allocation6 + $0x1b18] sm:$0xff]
        %v2329 = vld [vmem:[#allocation6 + $0x1b20] sm:$0xff]
        %v2330 = vld [vmem:[#allocation6 + $0x1b28] sm:$0xff]
        %v2331 = vld [vmem:[#allocation6 + $0x1b30] sm:$0xff]
        %v2332 = vld [vmem:[#allocation6 + $0x1b38] sm:$0xff]
        %v2333 = vld [vmem:[#allocation6 + $0x1b40] sm:$0xff]
        %v2334 = vld [vmem:[#allocation6 + $0x1b48] sm:$0xff]
        %v2335 = vld [vmem:[#allocation6 + $0x1b50] sm:$0xff]
        %v2336 = vld [vmem:[#allocation6 + $0x1b58] sm:$0xff]
        %v2337 = vld [vmem:[#allocation6 + $0x1b60] sm:$0xff]
        %v2338 = vld [vmem:[#allocation6 + $0x1b68] sm:$0xff]
        %v2339 = vld [vmem:[#allocation6 + $0x1b70] sm:$0xff]
        %v2340 = vld [vmem:[#allocation6 + $0x1b78] sm:$0xff]
        %v2341 = vld [vmem:[#allocation6 + $0x1b80] sm:$0xff]
        %v2342 = vld [vmem:[#allocation6 + $0x1b88] sm:$0xff]
        %v2343 = vld [vmem:[#allocation6 + $0x1b90] sm:$0xff]
        %v2344 = vld [vmem:[#allocation6 + $0x1b98] sm:$0xff]
        %v2345 = vld [vmem:[#allocation6 + $0x1ba0] sm:$0xff]
        %v2346 = vld [vmem:[#allocation6 + $0x1ba8] sm:$0xff]
        %v2347 = vld [vmem:[#allocation6 + $0x1bb0] sm:$0xff]
        %v2348 = vld [vmem:[#allocation6 + $0x1bb8] sm:$0xff]
        %v2349 = vld [vmem:[#allocation6 + $0x1bc0] sm:$0xff]
        %v2350 = vld [vmem:[#allocation6 + $0x1bc8] sm:$0xff]
        %v2351 = vld [vmem:[#allocation6 + $0x1bd0] sm:$0xff]
        %v2352 = vld [vmem:[#allocation6 + $0x1bd8] sm:$0xff]
        %v2353 = vld [vmem:[#allocation6 + $0x1be0] sm:$0xff]
        %v2354 = vld [vmem:[#allocation6 + $0x1be8] sm:$0xff]
        %v2355 = vld [vmem:[#allocation6 + $0x1bf0] sm:$0xff]
        %v2356 = vld [vmem:[#allocation6 + $0x1bf8] sm:$0xff]
        %v2357 = vld [vmem:[#allocation6 + $0x1c00] sm:$0xff]
        %v2358 = vld [vmem:[#allocation6 + $0x1c08] sm:$0xff]
        %v2359 = vld [vmem:[#allocation6 + $0x1c10] sm:$0xff]
        %v2360 = vld [vmem:[#allocation6 + $0x1c18] sm:$0xff]
        %v2361 = vld [vmem:[#allocation6 + $0x1c20] sm:$0xff]
        %v2362 = vld [vmem:[#allocation6 + $0x1c28] sm:$0xff]
        %v2363 = vld [vmem:[#allocation6 + $0x1c30] sm:$0xff]
        %v2364 = vld [vmem:[#allocation6 + $0x1c38] sm:$0xff]
        %v2365 = vld [vmem:[#allocation6 + $0x1c40] sm:$0xff]
        %v2366 = vld [vmem:[#allocation6 + $0x1c48] sm:$0xff]
        %v2367 = vld [vmem:[#allocation6 + $0x1c50] sm:$0xff]
        %v2368 = vld [vmem:[#allocation6 + $0x1c58] sm:$0xff]
        %v2369 = vld [vmem:[#allocation6 + $0x1c60] sm:$0xff]
        %v2370 = vld [vmem:[#allocation6 + $0x1c68] sm:$0xff]
        %v2371 = vld [vmem:[#allocation6 + $0x1c70] sm:$0xff]
        %v2372 = vld [vmem:[#allocation6 + $0x1c78] sm:$0xff]
        %v2373 = vld [vmem:[#allocation6 + $0x1c80] sm:$0xff]
        %v2374 = vld [vmem:[#allocation6 + $0x1c88] sm:$0xff]
        %v2375 = vld [vmem:[#allocation6 + $0x1c90] sm:$0xff]
        %v2376 = vld [vmem:[#allocation6 + $0x1c98] sm:$0xff]
        %v2377 = vld [vmem:[#allocation6 + $0x1ca0] sm:$0xff]
        %v2378 = vld [vmem:[#allocation6 + $0x1ca8] sm:$0xff]
        %v2379 = vld [vmem:[#allocation6 + $0x1cb0] sm:$0xff]
        %v2380 = vld [vmem:[#allocation6 + $0x1cb8] sm:$0xff]
        %v2381 = vld [vmem:[#allocation6 + $0x1cc0] sm:$0xff]
        %v2382 = vld [vmem:[#allocation6 + $0x1cc8] sm:$0xff]
        %v2383 = vld [vmem:[#allocation6 + $0x1cd0] sm:$0xff]
        %v2384 = vld [vmem:[#allocation6 + $0x1cd8] sm:$0xff]
        %v2385 = vld [vmem:[#allocation6 + $0x1ce0] sm:$0xff]
        %v2386 = vld [vmem:[#allocation6 + $0x1ce8] sm:$0xff]
        %v2387 = vld [vmem:[#allocation6 + $0x1cf0] sm:$0xff]
        %v2388 = vld [vmem:[#allocation6 + $0x1cf8] sm:$0xff]
        %v2389 = vld [vmem:[#allocation6 + $0x1d00] sm:$0xff]
        %v2390 = vld [vmem:[#allocation6 + $0x1d08] sm:$0xff]
        %v2391 = vld [vmem:[#allocation6 + $0x1d10] sm:$0xff]
        %v2392 = vld [vmem:[#allocation6 + $0x1d18] sm:$0xff]
        %v2393 = vld [vmem:[#allocation6 + $0x1d20] sm:$0xff]
        %v2394 = vld [vmem:[#allocation6 + $0x1d28] sm:$0xff]
        %v2395 = vld [vmem:[#allocation6 + $0x1d30] sm:$0xff]
        %v2396 = vld [vmem:[#allocation6 + $0x1d38] sm:$0xff]
        %v2397 = vld [vmem:[#allocation6 + $0x1d40] sm:$0xff]
        %v2398 = vld [vmem:[#allocation6 + $0x1d48] sm:$0xff]
        %v2399 = vld [vmem:[#allocation6 + $0x1d50] sm:$0xff]
        %v2400 = vld [vmem:[#allocation6 + $0x1d58] sm:$0xff]
        %v2401 = vld [vmem:[#allocation6 + $0x1d60] sm:$0xff]
        %v2402 = vld [vmem:[#allocation6 + $0x1d68] sm:$0xff]
        %v2403 = vld [vmem:[#allocation6 + $0x1d70] sm:$0xff]
        %v2404 = vld [vmem:[#allocation6 + $0x1d78] sm:$0xff]
        %v2405 = vld [vmem:[#allocation6 + $0x1d80] sm:$0xff]
        %v2406 = vld [vmem:[#allocation6 + $0x1d88] sm:$0xff]
        %v2407 = vld [vmem:[#allocation6 + $0x1d90] sm:$0xff]
        %v2408 = vld [vmem:[#allocation6 + $0x1d98] sm:$0xff]
        %v2409 = vld [vmem:[#allocation6 + $0x1da0] sm:$0xff]
        %v2410 = vld [vmem:[#allocation6 + $0x1da8] sm:$0xff]
        %v2411 = vld [vmem:[#allocation6 + $0x1db0] sm:$0xff]
        %v2412 = vld [vmem:[#allocation6 + $0x1db8] sm:$0xff]
        %v2413 = vld [vmem:[#allocation6 + $0x1dc0] sm:$0xff]
        %v2414 = vld [vmem:[#allocation6 + $0x1dc8] sm:$0xff]
        %v2415 = vld [vmem:[#allocation6 + $0x1dd0] sm:$0xff]
        %v2416 = vld [vmem:[#allocation6 + $0x1dd8] sm:$0xff]
        %v2417 = vld [vmem:[#allocation6 + $0x1de0] sm:$0xff]
        %v2418 = vld [vmem:[#allocation6 + $0x1de8] sm:$0xff]
        %v2419 = vld [vmem:[#allocation6 + $0x1df0] sm:$0xff]
        %v2420 = vld [vmem:[#allocation6 + $0x1df8] sm:$0xff]
        %v2421 = vld [vmem:[#allocation6 + $0x1e00] sm:$0xff]
        %v2422 = vld [vmem:[#allocation6 + $0x1e08] sm:$0xff]
        %v2423 = vld [vmem:[#allocation6 + $0x1e10] sm:$0xff]
        %v2424 = vld [vmem:[#allocation6 + $0x1e18] sm:$0xff]
        %v2425 = vld [vmem:[#allocation6 + $0x1e20] sm:$0xff]
        %v2426 = vld [vmem:[#allocation6 + $0x1e28] sm:$0xff]
        %v2427 = vld [vmem:[#allocation6 + $0x1e30] sm:$0xff]
        %v2428 = vld [vmem:[#allocation6 + $0x1e38] sm:$0xff]
        %v2429 = vld [vmem:[#allocation6 + $0x1e40] sm:$0xff]
        %v2430 = vld [vmem:[#allocation6 + $0x1e48] sm:$0xff]
        %v2431 = vld [vmem:[#allocation6 + $0x1e50] sm:$0xff]
        %v2432 = vld [vmem:[#allocation6 + $0x1e58] sm:$0xff]
        %v2433 = vld [vmem:[#allocation6 + $0x1e60] sm:$0xff]
        %v2434 = vld [vmem:[#allocation6 + $0x1e68] sm:$0xff]
        %v2435 = vld [vmem:[#allocation6 + $0x1e70] sm:$0xff]
        %v2436 = vld [vmem:[#allocation6 + $0x1e78] sm:$0xff]
        %v2437 = vld [vmem:[#allocation6 + $0x1e80] sm:$0xff]
        %v2438 = vld [vmem:[#allocation6 + $0x1e88] sm:$0xff]
        %v2439 = vld [vmem:[#allocation6 + $0x1e90] sm:$0xff]
        %v2440 = vld [vmem:[#allocation6 + $0x1e98] sm:$0xff]
        %v2441 = vld [vmem:[#allocation6 + $0x1ea0] sm:$0xff]
        %v2442 = vld [vmem:[#allocation6 + $0x1ea8] sm:$0xff]
        %v2443 = vld [vmem:[#allocation6 + $0x1eb0] sm:$0xff]
        %v2444 = vld [vmem:[#allocation6 + $0x1eb8] sm:$0xff]
        %v2445 = vld [vmem:[#allocation6 + $0x1ec0] sm:$0xff]
        %v2446 = vld [vmem:[#allocation6 + $0x1ec8] sm:$0xff]
        %v2447 = vld [vmem:[#allocation6 + $0x1ed0] sm:$0xff]
        %v2448 = vld [vmem:[#allocation6 + $0x1ed8] sm:$0xff]
        %v2449 = vld [vmem:[#allocation6 + $0x1ee0] sm:$0xff]
        %v2450 = vld [vmem:[#allocation6 + $0x1ee8] sm:$0xff]
        %v2451 = vld [vmem:[#allocation6 + $0x1ef0] sm:$0xff]
        %v2452 = vld [vmem:[#allocation6 + $0x1ef8] sm:$0xff]
        %v2453 = vld [vmem:[#allocation6 + $0x1f00] sm:$0xff]
        %v2454 = vld [vmem:[#allocation6 + $0x1f08] sm:$0xff]
        %v2455 = vld [vmem:[#allocation6 + $0x1f10] sm:$0xff]
        %v2456 = vld [vmem:[#allocation6 + $0x1f18] sm:$0xff]
        %v2457 = vld [vmem:[#allocation6 + $0x1f20] sm:$0xff]
        %v2458 = vld [vmem:[#allocation6 + $0x1f28] sm:$0xff]
        %v2459 = vld [vmem:[#allocation6 + $0x1f30] sm:$0xff]
        %v2460 = vld [vmem:[#allocation6 + $0x1f38] sm:$0xff]
        %v2461 = vld [vmem:[#allocation6 + $0x1f40] sm:$0xff]
        %v2462 = vld [vmem:[#allocation6 + $0x1f48] sm:$0xff]
        %v2463 = vld [vmem:[#allocation6 + $0x1f50] sm:$0xff]
        %v2464 = vld [vmem:[#allocation6 + $0x1f58] sm:$0xff]
        %v2465 = vld [vmem:[#allocation6 + $0x1f60] sm:$0xff]
        %v2466 = vld [vmem:[#allocation6 + $0x1f68] sm:$0xff]
        %v2467 = vld [vmem:[#allocation6 + $0x1f70] sm:$0xff]
        %v2468 = vld [vmem:[#allocation6 + $0x1f78] sm:$0xff]
        %v2469 = vld [vmem:[#allocation6 + $0x1f80] sm:$0xff]
        %v2470 = vld [vmem:[#allocation6 + $0x1f88] sm:$0xff]
        %v2471 = vld [vmem:[#allocation6 + $0x1f90] sm:$0xff]
        %v2472 = vld [vmem:[#allocation6 + $0x1f98] sm:$0xff]
        %v2473 = vld [vmem:[#allocation6 + $0x1fa0] sm:$0xff]
        %v2474 = vld [vmem:[#allocation6 + $0x1fa8] sm:$0xff]
        %v2475 = vld [vmem:[#allocation6 + $0x1fb0] sm:$0xff]
        %v2476 = vld [vmem:[#allocation6 + $0x1fb8] sm:$0xff]
        %v2477 = vld [vmem:[#allocation6 + $0x1fc0] sm:$0xff]
        %v2478 = vld [vmem:[#allocation6 + $0x1fc8] sm:$0xff]
        %v2479 = vld [vmem:[#allocation6 + $0x1fd0] sm:$0xff]
        %v2480 = vld [vmem:[#allocation6 + $0x1fd8] sm:$0xff]
        %v2481 = vld [vmem:[#allocation6 + $0x1fe0] sm:$0xff]
        %v2482 = vld [vmem:[#allocation6 + $0x1fe8] sm:$0xff]
        %v2483 = vld [vmem:[#allocation6 + $0x1ff0] sm:$0xff]
        %v2484 = vld [vmem:[#allocation6 + $0x1ff8] sm:$0xff]
        %v2485 = vld [vmem:[#allocation6 + $0x2000] sm:$0xff]
        %v2486 = vld [vmem:[#allocation6 + $0x2008] sm:$0xff]
        %v2487 = vld [vmem:[#allocation6 + $0x2010] sm:$0xff]
        %v2488 = vld [vmem:[#allocation6 + $0x2018] sm:$0xff]
        %v2489 = vld [vmem:[#allocation6 + $0x2020] sm:$0xff]
        %v2490 = vld [vmem:[#allocation6 + $0x2028] sm:$0xff]
        %v2491 = vld [vmem:[#allocation6 + $0x2030] sm:$0xff]
        %v2492 = vld [vmem:[#allocation6 + $0x2038] sm:$0xff]
        %v2493 = vld [vmem:[#allocation6 + $0x2040] sm:$0xff]
        %v2494 = vld [vmem:[#allocation6 + $0x2048] sm:$0xff]
        %v2495 = vld [vmem:[#allocation6 + $0x2050] sm:$0xff]
        %v2496 = vld [vmem:[#allocation6 + $0x2058] sm:$0xff]
        %v2497 = vld [vmem:[#allocation6 + $0x2060] sm:$0xff]
        %v2498 = vld [vmem:[#allocation6 + $0x2068] sm:$0xff]
        %v2499 = vld [vmem:[#allocation6 + $0x2070] sm:$0xff]
        %v2500 = vld [vmem:[#allocation6 + $0x2078] sm:$0xff]
        %v2501 = vld [vmem:[#allocation6 + $0x2080] sm:$0xff]
        %v2502 = vld [vmem:[#allocation6 + $0x2088] sm:$0xff]
        %v2503 = vld [vmem:[#allocation6 + $0x2090] sm:$0xff]
        %v2504 = vld [vmem:[#allocation6 + $0x2098] sm:$0xff]
        %v2505 = vld [vmem:[#allocation6 + $0x20a0] sm:$0xff]
        %v2506 = vld [vmem:[#allocation6 + $0x20a8] sm:$0xff]
        %v2507 = vld [vmem:[#allocation6 + $0x20b0] sm:$0xff]
        %v2508 = vld [vmem:[#allocation6 + $0x20b8] sm:$0xff]
        %v2509 = vld [vmem:[#allocation6 + $0x20c0] sm:$0xff]
        %v2510 = vld [vmem:[#allocation6 + $0x20c8] sm:$0xff]
        %v2511 = vld [vmem:[#allocation6 + $0x20d0] sm:$0xff]
        %v2512 = vld [vmem:[#allocation6 + $0x20d8] sm:$0xff]
        %v2513 = vld [vmem:[#allocation6 + $0x20e0] sm:$0xff]
        %v2514 = vld [vmem:[#allocation6 + $0x20e8] sm:$0xff]
        %v2515 = vld [vmem:[#allocation6 + $0x20f0] sm:$0xff]
        %v2516 = vld [vmem:[#allocation6 + $0x20f8] sm:$0xff]
        %v2517 = vld [vmem:[#allocation6 + $0x2100] sm:$0xff]
        %v2518 = vld [vmem:[#allocation6 + $0x2108] sm:$0xff]
        %v2519 = vld [vmem:[#allocation6 + $0x2110] sm:$0xff]
        %v2520 = vld [vmem:[#allocation6 + $0x2118] sm:$0xff]
        %v2521 = vld [vmem:[#allocation6 + $0x2120] sm:$0xff]
        %v2522 = vld [vmem:[#allocation6 + $0x2128] sm:$0xff]
        %v2523 = vld [vmem:[#allocation6 + $0x2130] sm:$0xff]
        %v2524 = vld [vmem:[#allocation6 + $0x2138] sm:$0xff]
        %v2525 = vld [vmem:[#allocation6 + $0x2140] sm:$0xff]
        %v2526 = vld [vmem:[#allocation6 + $0x2148] sm:$0xff]
        %v2527 = vld [vmem:[#allocation6 + $0x2150] sm:$0xff]
        %v2528 = vld [vmem:[#allocation6 + $0x2158] sm:$0xff]
        %v2529 = vld [vmem:[#allocation6 + $0x2160] sm:$0xff]
        %v2530 = vld [vmem:[#allocation6 + $0x2168] sm:$0xff]
        %v2531 = vld [vmem:[#allocation6 + $0x2170] sm:$0xff]
        %v2532 = vld [vmem:[#allocation6 + $0x2178] sm:$0xff]
        %v2533 = vld [vmem:[#allocation6 + $0x2180] sm:$0xff]
        %v2534 = vld [vmem:[#allocation6 + $0x2188] sm:$0xff]
        %v2535 = vld [vmem:[#allocation6 + $0x2190] sm:$0xff]
        %v2536 = vld [vmem:[#allocation6 + $0x2198] sm:$0xff]
        %v2537 = vld [vmem:[#allocation6 + $0x21a0] sm:$0xff]
        %v2538 = vld [vmem:[#allocation6 + $0x21a8] sm:$0xff]
        %v2539 = vld [vmem:[#allocation6 + $0x21b0] sm:$0xff]
        %v2540 = vld [vmem:[#allocation6 + $0x21b8] sm:$0xff]
        %v2541 = vld [vmem:[#allocation6 + $0x21c0] sm:$0xff]
        %v2542 = vld [vmem:[#allocation6 + $0x21c8] sm:$0xff]
        %v2543 = vld [vmem:[#allocation6 + $0x21d0] sm:$0xff]
        %v2544 = vld [vmem:[#allocation6 + $0x21d8] sm:$0xff]
        %v2545 = vld [vmem:[#allocation6 + $0x21e0] sm:$0xff]
        %v2546 = vld [vmem:[#allocation6 + $0x21e8] sm:$0xff]
        %v2547 = vld [vmem:[#allocation6 + $0x21f0] sm:$0xff]
        %v2548 = vld [vmem:[#allocation6 + $0x21f8] sm:$0xff]
        %v2549 = vld [vmem:[#allocation6 + $0x2200] sm:$0xff]
        %v2550 = vld [vmem:[#allocation6 + $0x2208] sm:$0xff]
        %v2551 = vld [vmem:[#allocation6 + $0x2210] sm:$0xff]
        %v2552 = vld [vmem:[#allocation6 + $0x2218] sm:$0xff]
        %v2553 = vld [vmem:[#allocation6 + $0x2220] sm:$0xff]
        %v2554 = vld [vmem:[#allocation6 + $0x2228] sm:$0xff]
        %v2555 = vld [vmem:[#allocation6 + $0x2230] sm:$0xff]
        %v2556 = vld [vmem:[#allocation6 + $0x2238] sm:$0xff]
        %v2557 = vld [vmem:[#allocation6 + $0x2240] sm:$0xff]
        %v2558 = vld [vmem:[#allocation6 + $0x2248] sm:$0xff]
        %v2559 = vld [vmem:[#allocation6 + $0x2250] sm:$0xff]
        %v2560 = vld [vmem:[#allocation6 + $0x2258] sm:$0xff]
        %v2561 = vld [vmem:[#allocation6 + $0x2260] sm:$0xff]
        %v2562 = vld [vmem:[#allocation6 + $0x2268] sm:$0xff]
        %v2563 = vld [vmem:[#allocation6 + $0x2270] sm:$0xff]
        %v2564 = vld [vmem:[#allocation6 + $0x2278] sm:$0xff]
        %v2565 = vld [vmem:[#allocation6 + $0x2280] sm:$0xff]
        %v2566 = vld [vmem:[#allocation6 + $0x2288] sm:$0xff]
        %v2567 = vld [vmem:[#allocation6 + $0x2290] sm:$0xff]
        %v2568 = vld [vmem:[#allocation6 + $0x2298] sm:$0xff]
        %v2569 = vld [vmem:[#allocation6 + $0x22a0] sm:$0xff]
        %v2570 = vld [vmem:[#allocation6 + $0x22a8] sm:$0xff]
        %v2571 = vld [vmem:[#allocation6 + $0x22b0] sm:$0xff]
        %v2572 = vld [vmem:[#allocation6 + $0x22b8] sm:$0xff]
        %v2573 = vld [vmem:[#allocation6 + $0x22c0] sm:$0xff]
        %v2574 = vld [vmem:[#allocation6 + $0x22c8] sm:$0xff]
        %v2575 = vld [vmem:[#allocation6 + $0x22d0] sm:$0xff]
        %v2576 = vld [vmem:[#allocation6 + $0x22d8] sm:$0xff]
        %v2577 = vld [vmem:[#allocation6 + $0x22e0] sm:$0xff]
        %v2578 = vld [vmem:[#allocation6 + $0x22e8] sm:$0xff]
        %v2579 = vld [vmem:[#allocation6 + $0x22f0] sm:$0xff]
        %v2580 = vld [vmem:[#allocation6 + $0x22f8] sm:$0xff]
        %v2581 = vld [vmem:[#allocation6 + $0x2300] sm:$0xff]
        %v2582 = vld [vmem:[#allocation6 + $0x2308] sm:$0xff]
        %v2583 = vld [vmem:[#allocation6 + $0x2310] sm:$0xff]
        %v2584 = vld [vmem:[#allocation6 + $0x2318] sm:$0xff]
        %v2585 = vld [vmem:[#allocation6 + $0x2320] sm:$0xff]
        %v2586 = vld [vmem:[#allocation6 + $0x2328] sm:$0xff]
        %v2587 = vld [vmem:[#allocation6 + $0x2330] sm:$0xff]
        %v2588 = vld [vmem:[#allocation6 + $0x2338] sm:$0xff]
        %v2589 = vld [vmem:[#allocation6 + $0x2340] sm:$0xff]
        %v2590 = vld [vmem:[#allocation6 + $0x2348] sm:$0xff]
        %v2591 = vld [vmem:[#allocation6 + $0x2350] sm:$0xff]
        %v2592 = vld [vmem:[#allocation6 + $0x2358] sm:$0xff]
        %v2593 = vld [vmem:[#allocation6 + $0x2360] sm:$0xff]
        %v2594 = vld [vmem:[#allocation6 + $0x2368] sm:$0xff]
        %v2595 = vld [vmem:[#allocation6 + $0x2370] sm:$0xff]
        %v2596 = vld [vmem:[#allocation6 + $0x2378] sm:$0xff]
        %v2597 = vld [vmem:[#allocation6 + $0x2380] sm:$0xff]
        %v2598 = vld [vmem:[#allocation6 + $0x2388] sm:$0xff]
        %v2599 = vld [vmem:[#allocation6 + $0x2390] sm:$0xff]
        %v2600 = vld [vmem:[#allocation6 + $0x2398] sm:$0xff]
        %v2601 = vld [vmem:[#allocation6 + $0x23a0] sm:$0xff]
        %v2602 = vld [vmem:[#allocation6 + $0x23a8] sm:$0xff]
        %v2603 = vld [vmem:[#allocation6 + $0x23b0] sm:$0xff]
        %v2604 = vld [vmem:[#allocation6 + $0x23b8] sm:$0xff]
        %v2605 = vld [vmem:[#allocation6 + $0x23c0] sm:$0xff]
        %v2606 = vld [vmem:[#allocation6 + $0x23c8] sm:$0xff]
        %v2607 = vld [vmem:[#allocation6 + $0x23d0] sm:$0xff]
        %v2608 = vld [vmem:[#allocation6 + $0x23d8] sm:$0xff]
        %v2609 = vld [vmem:[#allocation6 + $0x23e0] sm:$0xff]
        %v2610 = vld [vmem:[#allocation6 + $0x23e8] sm:$0xff]
        %v2611 = vld [vmem:[#allocation6 + $0x23f0] sm:$0xff]
        %v2612 = vld [vmem:[#allocation6 + $0x23f8] sm:$0xff]
        %v2613 = vld [vmem:[#allocation6 + $0x2400] sm:$0xff]
        %v2614 = vld [vmem:[#allocation6 + $0x2408] sm:$0xff]
        %v2615 = vld [vmem:[#allocation6 + $0x2410] sm:$0xff]
        %v2616 = vld [vmem:[#allocation6 + $0x2418] sm:$0xff]
        %v2617 = vld [vmem:[#allocation6 + $0x2420] sm:$0xff]
        %v2618 = vld [vmem:[#allocation6 + $0x2428] sm:$0xff]
        %v2619 = vld [vmem:[#allocation6 + $0x2430] sm:$0xff]
        %v2620 = vld [vmem:[#allocation6 + $0x2438] sm:$0xff]
        %v2621 = vld [vmem:[#allocation6 + $0x2440] sm:$0xff]
        %v2622 = vld [vmem:[#allocation6 + $0x2448] sm:$0xff]
        %v2623 = vld [vmem:[#allocation6 + $0x2450] sm:$0xff]
        %v2624 = vld [vmem:[#allocation6 + $0x2458] sm:$0xff]
        %v2625 = vld [vmem:[#allocation6 + $0x2460] sm:$0xff]
        %v2626 = vld [vmem:[#allocation6 + $0x2468] sm:$0xff]
        %v2627 = vld [vmem:[#allocation6 + $0x2470] sm:$0xff]
        %v2628 = vld [vmem:[#allocation6 + $0x2478] sm:$0xff]
        %v2629 = vld [vmem:[#allocation6 + $0x2480] sm:$0xff]
        %v2630 = vld [vmem:[#allocation6 + $0x2488] sm:$0xff]
        %v2631 = vld [vmem:[#allocation6 + $0x2490] sm:$0xff]
        %v2632 = vld [vmem:[#allocation6 + $0x2498] sm:$0xff]
        %v2633 = vld [vmem:[#allocation6 + $0x24a0] sm:$0xff]
        %v2634 = vld [vmem:[#allocation6 + $0x24a8] sm:$0xff]
        %v2635 = vld [vmem:[#allocation6 + $0x24b0] sm:$0xff]
        %v2636 = vld [vmem:[#allocation6 + $0x24b8] sm:$0xff]
        %v2637 = vld [vmem:[#allocation6 + $0x24c0] sm:$0xff]
        %v2638 = vld [vmem:[#allocation6 + $0x24c8] sm:$0xff]
        %v2639 = vld [vmem:[#allocation6 + $0x24d0] sm:$0xff]
        %v2640 = vld [vmem:[#allocation6 + $0x24d8] sm:$0xff]
        %v2641 = vld [vmem:[#allocation6 + $0x24e0] sm:$0xff]
        %v2642 = vld [vmem:[#allocation6 + $0x24e8] sm:$0xff]
        %v2643 = vld [vmem:[#allocation6 + $0x24f0] sm:$0xff]
        %v2644 = vld [vmem:[#allocation6 + $0x24f8] sm:$0xff]
        %v2645 = vld [vmem:[#allocation6 + $0x2500] sm:$0xff]
        %v2646 = vld [vmem:[#allocation6 + $0x2508] sm:$0xff]
        %v2647 = vld [vmem:[#allocation6 + $0x2510] sm:$0xff]
        %v2648 = vld [vmem:[#allocation6 + $0x2518] sm:$0xff]
        %v2649 = vld [vmem:[#allocation6 + $0x2520] sm:$0xff]
        %v2650 = vld [vmem:[#allocation6 + $0x2528] sm:$0xff]
        %v2651 = vld [vmem:[#allocation6 + $0x2530] sm:$0xff]
        %v2652 = vld [vmem:[#allocation6 + $0x2538] sm:$0xff]
        %v2653 = vld [vmem:[#allocation6 + $0x2540] sm:$0xff]
        %v2654 = vld [vmem:[#allocation6 + $0x2548] sm:$0xff]
        %v2655 = vld [vmem:[#allocation6 + $0x2550] sm:$0xff]
        %v2656 = vld [vmem:[#allocation6 + $0x2558] sm:$0xff]
        %v2657 = vld [vmem:[#allocation6 + $0x2560] sm:$0xff]
        %v2658 = vld [vmem:[#allocation6 + $0x2568] sm:$0xff]
        %v2659 = vld [vmem:[#allocation6 + $0x2570] sm:$0xff]
        %v2660 = vld [vmem:[#allocation6 + $0x2578] sm:$0xff]
        %v2661 = vld [vmem:[#allocation6 + $0x2580] sm:$0xff]
        %v2662 = vld [vmem:[#allocation6 + $0x2588] sm:$0xff]
        %v2663 = vld [vmem:[#allocation6 + $0x2590] sm:$0xff]
        %v2664 = vld [vmem:[#allocation6 + $0x2598] sm:$0xff]
        %v2665 = vld [vmem:[#allocation6 + $0x25a0] sm:$0xff]
        %v2666 = vld [vmem:[#allocation6 + $0x25a8] sm:$0xff]
        %v2667 = vld [vmem:[#allocation6 + $0x25b0] sm:$0xff]
        %v2668 = vld [vmem:[#allocation6 + $0x25b8] sm:$0xff]
        %v2669 = vld [vmem:[#allocation6 + $0x25c0] sm:$0xff]
        %v2670 = vld [vmem:[#allocation6 + $0x25c8] sm:$0xff]
        %v2671 = vld [vmem:[#allocation6 + $0x25d0] sm:$0xff]
        %v2672 = vld [vmem:[#allocation6 + $0x25d8] sm:$0xff]
        %v2673 = vld [vmem:[#allocation6 + $0x25e0] sm:$0xff]
        %v2674 = vld [vmem:[#allocation6 + $0x25e8] sm:$0xff]
        %v2675 = vld [vmem:[#allocation6 + $0x25f0] sm:$0xff]
        %v2676 = vld [vmem:[#allocation6 + $0x25f8] sm:$0xff]
        %v2677 = vld [vmem:[#allocation6 + $0x2600] sm:$0xff]
        %v2678 = vld [vmem:[#allocation6 + $0x2608] sm:$0xff]
        %v2679 = vld [vmem:[#allocation6 + $0x2610] sm:$0xff]
        %v2680 = vld [vmem:[#allocation6 + $0x2618] sm:$0xff]
        %v2681 = vld [vmem:[#allocation6 + $0x2620] sm:$0xff]
        %v2682 = vld [vmem:[#allocation6 + $0x2628] sm:$0xff]
        %v2683 = vld [vmem:[#allocation6 + $0x2630] sm:$0xff]
        %v2684 = vld [vmem:[#allocation6 + $0x2638] sm:$0xff]
        %v2685 = vld [vmem:[#allocation6 + $0x2640] sm:$0xff]
        %v2686 = vld [vmem:[#allocation6 + $0x2648] sm:$0xff]
        %v2687 = vld [vmem:[#allocation6 + $0x2650] sm:$0xff]
        %v2688 = vld [vmem:[#allocation6 + $0x2658] sm:$0xff]
        %v2689 = vld [vmem:[#allocation6 + $0x2660] sm:$0xff]
        %v2690 = vld [vmem:[#allocation6 + $0x2668] sm:$0xff]
        %v2691 = vld [vmem:[#allocation6 + $0x2670] sm:$0xff]
        %v2692 = vld [vmem:[#allocation6 + $0x2678] sm:$0xff]
        %v2693 = vld [vmem:[#allocation6 + $0x2680] sm:$0xff]
        %v2694 = vld [vmem:[#allocation6 + $0x2688] sm:$0xff]
        %v2695 = vld [vmem:[#allocation6 + $0x2690] sm:$0xff]
        %v2696 = vld [vmem:[#allocation6 + $0x2698] sm:$0xff]
        %v2697 = vld [vmem:[#allocation6 + $0x26a0] sm:$0xff]
        %v2698 = vld [vmem:[#allocation6 + $0x26a8] sm:$0xff]
        %v2699 = vld [vmem:[#allocation6 + $0x26b0] sm:$0xff]
        %v2700 = vld [vmem:[#allocation6 + $0x26b8] sm:$0xff]
        %v2701 = vld [vmem:[#allocation6 + $0x26c0] sm:$0xff]
        %v2702 = vld [vmem:[#allocation6 + $0x26c8] sm:$0xff]
        %v2703 = vld [vmem:[#allocation6 + $0x26d0] sm:$0xff]
        %v2704 = vld [vmem:[#allocation6 + $0x26d8] sm:$0xff]
        %v2705 = vld [vmem:[#allocation6 + $0x26e0] sm:$0xff]
        %v2706 = vld [vmem:[#allocation6 + $0x26e8] sm:$0xff]
        %v2707 = vld [vmem:[#allocation6 + $0x26f0] sm:$0xff]
        %v2708 = vld [vmem:[#allocation6 + $0x26f8] sm:$0xff]
        %v2709 = vld [vmem:[#allocation6 + $0x2700] sm:$0xff]
        %v2710 = vld [vmem:[#allocation6 + $0x2708] sm:$0xff]
        %v2711 = vld [vmem:[#allocation6 + $0x2710] sm:$0xff]
        %v2712 = vld [vmem:[#allocation6 + $0x2718] sm:$0xff]
        %v2713 = vld [vmem:[#allocation6 + $0x2720] sm:$0xff]
        %v2714 = vld [vmem:[#allocation6 + $0x2728] sm:$0xff]
        %v2715 = vld [vmem:[#allocation6 + $0x2730] sm:$0xff]
        %v2716 = vld [vmem:[#allocation6 + $0x2738] sm:$0xff]
        %v2717 = vld [vmem:[#allocation6 + $0x2740] sm:$0xff]
        %v2718 = vld [vmem:[#allocation6 + $0x2748] sm:$0xff]
        %v2719 = vld [vmem:[#allocation6 + $0x2750] sm:$0xff]
        %v2720 = vld [vmem:[#allocation6 + $0x2758] sm:$0xff]
        %v2721 = vld [vmem:[#allocation6 + $0x2760] sm:$0xff]
        %v2722 = vld [vmem:[#allocation6 + $0x2768] sm:$0xff]
        %v2723 = vld [vmem:[#allocation6 + $0x2770] sm:$0xff]
        %v2724 = vld [vmem:[#allocation6 + $0x2778] sm:$0xff]
        %v2725 = vld [vmem:[#allocation6 + $0x2780] sm:$0xff]
        %v2726 = vld [vmem:[#allocation6 + $0x2788] sm:$0xff]
        %v2727 = vld [vmem:[#allocation6 + $0x2790] sm:$0xff]
        %v2728 = vld [vmem:[#allocation6 + $0x2798] sm:$0xff]
        %v2729 = vld [vmem:[#allocation6 + $0x27a0] sm:$0xff]
        %v2730 = vld [vmem:[#allocation6 + $0x27a8] sm:$0xff]
        %v2731 = vld [vmem:[#allocation6 + $0x27b0] sm:$0xff]
        %v2732 = vld [vmem:[#allocation6 + $0x27b8] sm:$0xff]
        %v2733 = vld [vmem:[#allocation6 + $0x27c0] sm:$0xff]
        %v2734 = vld [vmem:[#allocation6 + $0x27c8] sm:$0xff]
        %v2735 = vld [vmem:[#allocation7] sm:$0xff]
        %v2736 = vld [vmem:[#allocation7 + $0x8] sm:$0x1f]
        %v2739 = vlaneseq
        %v2740 = vshrl.u32 %v2739, 7
        %v2741 = vsub.s32 0, %v2740
        %v2742 = vrot.slane %v2735, %v2741
        %v2743 = vlaneseq
        %v2744 = vshrl.u32 %v2743, 7
        %v2745 = vsub.s32 1, %v2744
        %v2746 = vrot.slane %v2735, %v2745
        %v2747 = vlaneseq
        %v2748 = vshrl.u32 %v2747, 7
        %v2749 = vsub.s32 2, %v2748
        %v2750 = vrot.slane %v2735, %v2749
        %v2751 = vlaneseq
        %v2752 = vshrl.u32 %v2751, 7
        %v2753 = vsub.s32 3, %v2752
        %v2754 = vrot.slane %v2735, %v2753
        %v2755 = vlaneseq
        %v2756 = vshrl.u32 %v2755, 7
        %v2757 = vsub.s32 4, %v2756
        %v2758 = vrot.slane %v2735, %v2757
        %v2759 = vlaneseq
        %v2760 = vshrl.u32 %v2759, 7
        %v2761 = vsub.s32 5, %v2760
        %v2762 = vrot.slane %v2735, %v2761
        %v2763 = vlaneseq
        %v2764 = vshrl.u32 %v2763, 7
        %v2765 = vsub.s32 6, %v2764
        %v2766 = vrot.slane %v2735, %v2765
        %v2767 = vlaneseq
        %v2768 = vshrl.u32 %v2767, 7
        %v2769 = vsub.s32 7, %v2768
        %v2770 = vrot.slane %v2735, %v2769
        %v2771 = vlaneseq
        %v2772 = vshrl.u32 %v2771, 7
        %v2773 = vsub.s32 0, %v2772
        %v2774 = vrot.slane %v2736, %v2773
        %v2775 = vlaneseq
        %v2776 = vshrl.u32 %v2775, 7
        %v2777 = vsub.s32 1, %v2776
        %v2778 = vrot.slane %v2736, %v2777
        %v2779 = vlaneseq
        %v2780 = vshrl.u32 %v2779, 7
        %v2781 = vsub.s32 2, %v2780
        %v2782 = vrot.slane %v2736, %v2781
        %v2783 = vlaneseq
        %v2784 = vshrl.u32 %v2783, 7
        %v2785 = vsub.s32 3, %v2784
        %v2786 = vrot.slane %v2736, %v2785
        %v2787 = vlaneseq
        %v2788 = vshrl.u32 %v2787, 7
        %v2789 = vsub.s32 4, %v2788
        %v2790 = vrot.slane %v2736, %v2789
        %vm2804 = vcmask 130048
        %v2806 = vsel %vm2804, %v1355, 0
        %v2809 = vsel %vm2804, %v1362, 0
        %v2812 = vsel %vm2804, %v1369, 0
        %v2815 = vsel %vm2804, %v1376, 0
        %v2818 = vsel %vm2804, %v1383, 0
        %v2821 = vsel %vm2804, %v1390, 0
        %v2824 = vsel %vm2804, %v1397, 0
        %v2827 = vsel %vm2804, %v1404, 0
        %v2830 = vsel %vm2804, %v1411, 0
        %v2833 = vsel %vm2804, %v1418, 0
        %v2836 = vsel %vm2804, %v1425, 0
        %v2839 = vsel %vm2804, %v1432, 0
        %v2842 = vsel %vm2804, %v1439, 0
        %v2845 = vsel %vm2804, %v1446, 0
        %v2848 = vsel %vm2804, %v1453, 0
        %v2851 = vsel %vm2804, %v1460, 0
        %2853 = vmatprep.subr.mxu0 %v1462
        %2854 = vmatpush1.msra.mxu0 %v1461
        %2855 = vmatprep.subr.mxu0 %v1475
        %2856 = vmatpush1.msra.mxu0 %v1474
        %2857 = vmatprep.subr.mxu0 %v1488
        %2858 = vmatpush1.msra.mxu0 %v1487
        %2859 = vmatprep.subr.mxu0 %v1501
        %2860 = vmatpush1.msra.mxu0 %v1500
        %2861 = vmatprep.subr.mxu0 %v1514
        %2862 = vmatpush1.msra.mxu0 %v1513
        %2863 = vmatprep.subr.mxu0 %v1527
        %2864 = vmatpush1.msra.mxu0 %v1526
        %2865 = vmatprep.subr.mxu0 %v1540
        %2866 = vmatpush1.msra.mxu0 %v1539
        %2867 = vmatprep.subr.mxu0 %v1553
        %2868 = vmatpush1.msra.mxu0 %v1552
        %2869 = vmatprep.subr.mxu0 %v1566
        %2870 = vmatpush1.msra.mxu0 %v1565
        %2871 = vmatprep.subr.mxu0 %v1579
        %2872 = vmatpush1.msra.mxu0 %v1578
        %2873 = vmatprep.subr.mxu0 %v1592
        %2874 = vmatpush1.msra.mxu0 %v1591
        %2875 = vmatprep.subr.mxu0 %v1605
        %2876 = vmatpush1.msra.mxu0 %v1604
        %2877 = vmatprep.subr.mxu0 %v1618
        %2878 = vmatpush1.msra.mxu0 %v1617
        %2879 = vmatprep.subr.mxu0 %v1631
        %2880 = vmatpush1.msra.mxu0 %v1630
        %2881 = vmatprep.subr.mxu0 %v1644
        %2882 = vmatpush1.msra.mxu0 %v1643
        %2883 = vmatprep.subr.mxu0 %v1657
        %2884 = vmatpush1.msra.mxu0 %v1656
        %2885 = vmatprep.subr.mxu0 %v1670
        %2886 = vmatpush1.msra.mxu0 %v1669
        %2887 = vmatprep.subr.mxu0 %v1683
        %2888 = vmatpush1.msra.mxu0 %v1682
        %2889 = vmatprep.subr.mxu0 %v1696
        %2890 = vmatpush1.msra.mxu0 %v1695
        %2891 = vmatprep.subr.mxu0 %v1709
        %2892 = vmatpush1.msra.mxu0 %v1708
        %2893 = vmatprep.subr.mxu0 %v1722
        %2894 = vmatpush1.msra.mxu0 %v1721
        %2895 = vmatprep.subr.mxu0 %v1735
        %2896 = vmatpush1.msra.mxu0 %v1734
        %2897 = vmatprep.subr.mxu0 %v1748
        %2898 = vmatpush1.msra.mxu0 %v1747
        %2899 = vmatprep.subr.mxu0 %v1761
        %2900 = vmatpush1.msra.mxu0 %v1760
        %2901 = vmatprep.subr.mxu0 %v1774
        %2902 = vmatpush1.msra.mxu0 %v1773
        %2903 = vmatprep.subr.mxu0 %v1787
        %2904 = vmatpush1.msra.mxu0 %v1786
        %2905 = vmatprep.subr.mxu0 %v1800
        %2906 = vmatpush1.msra.mxu0 %v1799
        %2907 = vmatprep.subr.mxu0 %v1813
        %2908 = vmatpush1.msra.mxu0 %v1812
        %2909 = vmatprep.subr.mxu0 %v1826
        %2910 = vmatpush1.msra.mxu0 %v1825
        %2911 = vmatprep.subr.mxu0 %v1839
        %2912 = vmatpush1.msra.mxu0 %v1838
        %2913 = vmatprep.subr.mxu0 %v1852
        %2914 = vmatpush1.msra.mxu0 %v1851
        %2915 = vmatprep.subr.mxu0 %v1865
        %2916 = vmatpush1.msra.mxu0 %v1864
        %2917 = vmatprep.mubr.f32.mxu0 %v1350
        %2918 = vmatmul.mubr.f32.gmra.mrb[0].mxu0 %v1349
        %v2919 = vpop.f32.mrb[0].mxu0
        %v2920 = vadd.f32 %v2742, %v2919
        %v2921 = vpop.f32.mrb[0].mxu0
        %v2922 = vadd.f32 %v2746, %v2921
        %2923 = vmatprep.mubr.f32.mxu0 %v1357
        %2924 = vmatmul.mubr.f32.gmra.mrb[0].mxu0 %v1356
        %v2925 = vpop.f32.mrb[0].mxu0
        %v2926 = vadd.f32 %v2742, %v2925
        %v2927 = vpop.f32.mrb[0].mxu0
        %v2928 = vadd.f32 %v2746, %v2927
        %2929 = vmatprep.mubr.f32.mxu0 %v1364
        %2930 = vmatmul.mubr.f32.gmra.mrb[0].mxu0 %v1363
        %v2931 = vpop.f32.mrb[0].mxu0
        %v2932 = vadd.f32 %v2742, %v2931
        %v2933 = vpop.f32.mrb[0].mxu0
        %v2934 = vadd.f32 %v2746, %v2933
        %2935 = vmatprep.mubr.f32.mxu0 %v1371
        %2936 = vmatmul.mubr.f32.gmra.mrb[0].mxu0 %v1370
        %v2937 = vpop.f32.mrb[0].mxu0
        %v2938 = vadd.f32 %v2742, %v2937
        %v2939 = vpop.f32.mrb[0].mxu0
        %v2940 = vadd.f32 %v2746, %v2939
        %2941 = vmatprep.mubr.f32.mxu0 %v1378
        %2942 = vmatmul.mubr.f32.gmra.mrb[0].mxu0 %v1377
        %v2943 = vpop.f32.mrb[0].mxu0
        %v2944 = vadd.f32 %v2742, %v2943
        %v2945 = vpop.f32.mrb[0].mxu0
        %v2946 = vadd.f32 %v2746, %v2945
        %2947 = vmatprep.mubr.f32.mxu0 %v1385
        %2948 = vmatmul.mubr.f32.gmra.mrb[0].mxu0 %v1384
        %v2949 = vpop.f32.mrb[0].mxu0
        %v2950 = vadd.f32 %v2742, %v2949
        %v2951 = vpop.f32.mrb[0].mxu0
        %v2952 = vadd.f32 %v2746, %v2951
        %2953 = vmatprep.mubr.f32.mxu0 %v1392
        %2954 = vmatmul.mubr.f32.gmra.mrb[0].mxu0 %v1391
        %v2955 = vpop.f32.mrb[0].mxu0
        %v2956 = vadd.f32 %v2742, %v2955
        %v2957 = vpop.f32.mrb[0].mxu0
        %v2958 = vadd.f32 %v2746, %v2957
        %2959 = vmatprep.mubr.f32.mxu0 %v1399
        %2960 = vmatmul.mubr.f32.gmra.mrb[0].mxu0 %v1398
        %v2961 = vpop.f32.mrb[0].mxu0
        %v2962 = vadd.f32 %v2742, %v2961
        %v2963 = vpop.f32.mrb[0].mxu0
        %v2964 = vadd.f32 %v2746, %v2963
        %2965 = vmatprep.mubr.f32.mxu0 %v1406
        %2966 = vmatmul.mubr.f32.gmra.mrb[0].mxu0 %v1405
        %v2967 = vpop.f32.mrb[0].mxu0
        %v2968 = vadd.f32 %v2742, %v2967
        %v2969 = vpop.f32.mrb[0].mxu0
        %v2970 = vadd.f32 %v2746, %v2969
        %2971 = vmatprep.mubr.f32.mxu0 %v1413
        %2972 = vmatmul.mubr.f32.gmra.mrb[0].mxu0 %v1412
        %v2973 = vpop.f32.mrb[0].mxu0
        %v2974 = vadd.f32 %v2742, %v2973
        %v2975 = vpop.f32.mrb[0].mxu0
        %v2976 = vadd.f32 %v2746, %v2975
        %2977 = vmatprep.mubr.f32.mxu0 %v1420
        %2978 = vmatmul.mubr.f32.gmra.mrb[0].mxu0 %v1419
        %v2979 = vpop.f32.mrb[0].mxu0
        %v2980 = vadd.f32 %v2742, %v2979
        %v2981 = vpop.f32.mrb[0].mxu0
        %v2982 = vadd.f32 %v2746, %v2981
        %2983 = vmatprep.mubr.f32.mxu0 %v1427
        %2984 = vmatmul.mubr.f32.gmra.mrb[0].mxu0 %v1426
        %v2985 = vpop.f32.mrb[0].mxu0
        %v2986 = vadd.f32 %v2742, %v2985
        %v2987 = vpop.f32.mrb[0].mxu0
        %v2988 = vadd.f32 %v2746, %v2987
        %2989 = vmatprep.mubr.f32.mxu0 %v1434
        %2990 = vmatmul.mubr.f32.gmra.mrb[0].mxu0 %v1433
        %v2991 = vpop.f32.mrb[0].mxu0
        %v2992 = vadd.f32 %v2742, %v2991
        %v2993 = vpop.f32.mrb[0].mxu0
        %v2994 = vadd.f32 %v2746, %v2993
        %2995 = vmatprep.mubr.f32.mxu0 %v1441
        %2996 = vmatmul.mubr.f32.gmra.mrb[0].mxu0 %v1440
        %v2997 = vpop.f32.mrb[0].mxu0
        %v2998 = vadd.f32 %v2742, %v2997
        %v2999 = vpop.f32.mrb[0].mxu0
        %v3000 = vadd.f32 %v2746, %v2999
        %3001 = vmatprep.mubr.f32.mxu0 %v1448
        %3002 = vmatmul.mubr.f32.gmra.mrb[0].mxu0 %v1447
        %v3003 = vpop.f32.mrb[0].mxu0
        %v3004 = vadd.f32 %v2742, %v3003
        %v3005 = vpop.f32.mrb[0].mxu0
        %v3006 = vadd.f32 %v2746, %v3005
        %3007 = vmatprep.mubr.f32.mxu0 %v1455
        %3008 = vmatmul.mubr.f32.gmra.mrb[0].mxu0 %v1454
        %v3009 = vpop.f32.mrb[0].mxu0
        %v3010 = vadd.f32 %v2742, %v3009
        %v3011 = vpop.f32.mrb[0].mxu0
        %v3012 = vadd.f32 %v2746, %v3011
        %3013 = vdwg.mxu0
        %3014 = vmatprep.subr.mxu0 %v1878
        %3015 = vmatpush1.msra.mxu0 %v1877
        %3016 = vmatprep.subr.mxu0 %v1891
        %3017 = vmatpush1.msra.mxu0 %v1890
        %3018 = vmatprep.subr.mxu0 %v1904
        %3019 = vmatpush1.msra.mxu0 %v1903
        %3020 = vmatprep.subr.mxu0 %v1917
        %3021 = vmatpush1.msra.mxu0 %v1916
        %3022 = vmatprep.subr.mxu0 %v1930
        %3023 = vmatpush1.msra.mxu0 %v1929
        %3024 = vmatprep.subr.mxu0 %v1943
        %3025 = vmatpush1.msra.mxu0 %v1942
        %3026 = vmatprep.subr.mxu0 %v1956
        %3027 = vmatpush1.msra.mxu0 %v1955
        %3028 = vmatprep.subr.mxu0 %v1969
        %3029 = vmatpush1.msra.mxu0 %v1968
        %3030 = vmatprep.subr.mxu0 %v1982
        %3031 = vmatpush1.msra.mxu0 %v1981
        %3032 = vmatprep.subr.mxu0 %v1995
        %3033 = vmatpush1.msra.mxu0 %v1994
        %3034 = vmatprep.subr.mxu0 %v2008
        %3035 = vmatpush1.msra.mxu0 %v2007
        %3036 = vmatprep.subr.mxu0 %v2021
        %3037 = vmatpush1.msra.mxu0 %v2020
        %3038 = vmatprep.subr.mxu0 %v2034
        %3039 = vmatpush1.msra.mxu0 %v2033
        %3040 = vmatprep.subr.mxu0 %v2047
        %3041 = vmatpush1.msra.mxu0 %v2046
        %3042 = vmatprep.subr.mxu0 %v2060
        %3043 = vmatpush1.msra.mxu0 %v2059
        %3044 = vmatprep.subr.mxu0 %v2073
        %3045 = vmatpush1.msra.mxu0 %v2072
        %3046 = vmatprep.subr.mxu0 %v2086
        %3047 = vmatpush1.msra.mxu0 %v2085
        %3048 = vmatprep.subr.mxu0 %v2099
        %3049 = vmatpush1.msra.mxu0 %v2098
        %3050 = vmatprep.subr.mxu0 %v2112
        %3051 = vmatpush1.msra.mxu0 %v2111
        %3052 = vmatprep.subr.mxu0 %v2125
        %3053 = vmatpush1.msra.mxu0 %v2124
        %3054 = vmatprep.subr.mxu0 %v2138
        %3055 = vmatpush1.msra.mxu0 %v2137
        %3056 = vmatprep.subr.mxu0 %v2151
        %3057 = vmatpush1.msra.mxu0 %v2150
        %3058 = vmatprep.subr.mxu0 %v2164
        %3059 = vmatpush1.msra.mxu0 %v2163
        %3060 = vmatprep.subr.mxu0 %v2177
        %3061 = vmatpush1.msra.mxu0 %v2176
        %3062 = vmatprep.subr.mxu0 %v2190
        %3063 = vmatpush1.msra.mxu0 %v2189
        %3064 = vmatprep.subr.mxu0 %v2203
        %3065 = vmatpush1.msra.mxu0 %v2202
        %3066 = vmatprep.subr.mxu0 %v2216
        %3067 = vmatpush1.msra.mxu0 %v2215
        %3068 = vmatprep.subr.mxu0 %v2229
        %3069 = vmatpush1.msra.mxu0 %v2228
        %3070 = vmatprep.subr.mxu0 %v2242
        %3071 = vmatpush1.msra.mxu0 %v2241
        %3072 = vmatprep.subr.mxu0 %v2255
        %3073 = vmatpush1.msra.mxu0 %v2254
        %3074 = vmatprep.subr.mxu0 %v2268
        %3075 = vmatpush1.msra.mxu0 %v2267
        %3076 = vmatprep.subr.mxu0 %v2281
        %3077 = vmatpush1.msra.mxu0 %v2280
        %3078 = vmatprep.mubr.f32.mxu0 %v1352
        %3079 = vmatmul.mubr.f32.gmra.mrb[0].mxu0 %v1351
        %v3080 = vpop.f32.mrb[0].mxu0
        %v3081 = vadd.f32 %v2920, %v3080
        %v3082 = vpop.f32.mrb[0].mxu0
        %v3083 = vadd.f32 %v2922, %v3082
        %3084 = vmatprep.mubr.f32.mxu0 %v1359
        %3085 = vmatmul.mubr.f32.gmra.mrb[0].mxu0 %v1358
        %v3086 = vpop.f32.mrb[0].mxu0
        %v3087 = vadd.f32 %v2926, %v3086
        %v3088 = vpop.f32.mrb[0].mxu0
        %v3089 = vadd.f32 %v2928, %v3088
        %3090 = vmatprep.mubr.f32.mxu0 %v1366
        %3091 = vmatmul.mubr.f32.gmra.mrb[0].mxu0 %v1365
        %v3092 = vpop.f32.mrb[0].mxu0
        %v3093 = vadd.f32 %v2932, %v3092
        %v3094 = vpop.f32.mrb[0].mxu0
        %v3095 = vadd.f32 %v2934, %v3094
        %3096 = vmatprep.mubr.f32.mxu0 %v1373
        %3097 = vmatmul.mubr.f32.gmra.mrb[0].mxu0 %v1372
        %v3098 = vpop.f32.mrb[0].mxu0
        %v3099 = vadd.f32 %v2938, %v3098
        %v3100 = vpop.f32.mrb[0].mxu0
        %v3101 = vadd.f32 %v2940, %v3100
        %3102 = vmatprep.mubr.f32.mxu0 %v1380
        %3103 = vmatmul.mubr.f32.gmra.mrb[0].mxu0 %v1379
        %v3104 = vpop.f32.mrb[0].mxu0
        %v3105 = vadd.f32 %v2944, %v3104
        %v3106 = vpop.f32.mrb[0].mxu0
        %v3107 = vadd.f32 %v2946, %v3106
        %3108 = vmatprep.mubr.f32.mxu0 %v1387
        %3109 = vmatmul.mubr.f32.gmra.mrb[0].mxu0 %v1386
        %v3110 = vpop.f32.mrb[0].mxu0
        %v3111 = vadd.f32 %v2950, %v3110
        %v3112 = vpop.f32.mrb[0].mxu0
        %v3113 = vadd.f32 %v2952, %v3112
        %3114 = vmatprep.mubr.f32.mxu0 %v1394
        %3115 = vmatmul.mubr.f32.gmra.mrb[0].mxu0 %v1393
        %v3116 = vpop.f32.mrb[0].mxu0
        %v3117 = vadd.f32 %v2956, %v3116
        %v3118 = vpop.f32.mrb[0].mxu0
        %v3119 = vadd.f32 %v2958, %v3118
        %3120 = vmatprep.mubr.f32.mxu0 %v1401
        %3121 = vmatmul.mubr.f32.gmra.mrb[0].mxu0 %v1400
        %v3122 = vpop.f32.mrb[0].mxu0
        %v3123 = vadd.f32 %v2962, %v3122
        %v3124 = vpop.f32.mrb[0].mxu0
        %v3125 = vadd.f32 %v2964, %v3124
        %3126 = vmatprep.mubr.f32.mxu0 %v1408
        %3127 = vmatmul.mubr.f32.gmra.mrb[0].mxu0 %v1407
        %v3128 = vpop.f32.mrb[0].mxu0
        %v3129 = vadd.f32 %v2968, %v3128
        %v3130 = vpop.f32.mrb[0].mxu0
        %v3131 = vadd.f32 %v2970, %v3130
        %3132 = vmatprep.mubr.f32.mxu0 %v1415
        %3133 = vmatmul.mubr.f32.gmra.mrb[0].mxu0 %v1414
        %v3134 = vpop.f32.mrb[0].mxu0
        %v3135 = vadd.f32 %v2974, %v3134
        %v3136 = vpop.f32.mrb[0].mxu0
        %v3137 = vadd.f32 %v2976, %v3136
        %3138 = vmatprep.mubr.f32.mxu0 %v1422
        %3139 = vmatmul.mubr.f32.gmra.mrb[0].mxu0 %v1421
        %v3140 = vpop.f32.mrb[0].mxu0
        %v3141 = vadd.f32 %v2980, %v3140
        %v3142 = vpop.f32.mrb[0].mxu0
        %v3143 = vadd.f32 %v2982, %v3142
        %3144 = vmatprep.mubr.f32.mxu0 %v1429
        %3145 = vmatmul.mubr.f32.gmra.mrb[0].mxu0 %v1428
        %v3146 = vpop.f32.mrb[0].mxu0
        %v3147 = vadd.f32 %v2986, %v3146
        %v3148 = vpop.f32.mrb[0].mxu0
        %v3149 = vadd.f32 %v2988, %v3148
        %3150 = vmatprep.mubr.f32.mxu0 %v1436
        %3151 = vmatmul.mubr.f32.gmra.mrb[0].mxu0 %v1435
        %v3152 = vpop.f32.mrb[0].mxu0
        %v3153 = vadd.f32 %v2992, %v3152
        %v3154 = vpop.f32.mrb[0].mxu0
        %v3155 = vadd.f32 %v2994, %v3154
        %3156 = vmatprep.mubr.f32.mxu0 %v1443
        %3157 = vmatmul.mubr.f32.gmra.mrb[0].mxu0 %v1442
        %v3158 = vpop.f32.mrb[0].mxu0
        %v3159 = vadd.f32 %v2998, %v3158
        %v3160 = vpop.f32.mrb[0].mxu0
        %v3161 = vadd.f32 %v3000, %v3160
        %3162 = vmatprep.mubr.f32.mxu0 %v1450
        %3163 = vmatmul.mubr.f32.gmra.mrb[0].mxu0 %v1449
        %v3164 = vpop.f32.mrb[0].mxu0
        %v3165 = vadd.f32 %v3004, %v3164
        %v3166 = vpop.f32.mrb[0].mxu0
        %v3167 = vadd.f32 %v3006, %v3166
        %3168 = vmatprep.mubr.f32.mxu0 %v1457
        %3169 = vmatmul.mubr.f32.gmra.mrb[0].mxu0 %v1456
        %v3170 = vpop.f32.mrb[0].mxu0
        %v3171 = vadd.f32 %v3010, %v3170
        %v3172 = vpop.f32.mrb[0].mxu0
        %v3173 = vadd.f32 %v3012, %v3172
        %3174 = vdwg.mxu0
        %3175 = vmatprep.subr.mxu0 %v2294
        %3176 = vmatpush1.msra.mxu0 %v2293
        %3177 = vmatprep.subr.mxu0 %v2307
        %3178 = vmatpush1.msra.mxu0 %v2306
        %3179 = vmatprep.subr.mxu0 %v2320
        %3180 = vmatpush1.msra.mxu0 %v2319
        %3181 = vmatprep.subr.mxu0 %v2333
        %3182 = vmatpush1.msra.mxu0 %v2332
        %3183 = vmatprep.subr.mxu0 %v2346
        %3184 = vmatpush1.msra.mxu0 %v2345
        %3185 = vmatprep.subr.mxu0 %v2359
        %3186 = vmatpush1.msra.mxu0 %v2358
        %3187 = vmatprep.subr.mxu0 %v2372
        %3188 = vmatpush1.msra.mxu0 %v2371
        %3189 = vmatprep.subr.mxu0 %v2385
        %3190 = vmatpush1.msra.mxu0 %v2384
        %3191 = vmatprep.subr.mxu0 %v2398
        %3192 = vmatpush1.msra.mxu0 %v2397
        %3193 = vmatprep.subr.mxu0 %v2411
        %3194 = vmatpush1.msra.mxu0 %v2410
        %3195 = vmatprep.subr.mxu0 %v2424
        %3196 = vmatpush1.msra.mxu0 %v2423
        %3197 = vmatprep.subr.mxu0 %v2437
        %3198 = vmatpush1.msra.mxu0 %v2436
        %3199 = vmatprep.subr.mxu0 %v2450
        %3200 = vmatpush1.msra.mxu0 %v2449
        %3201 = vmatprep.subr.mxu0 %v2463
        %3202 = vmatpush1.msra.mxu0 %v2462
        %3203 = vmatprep.subr.mxu0 %v2476
        %3204 = vmatpush1.msra.mxu0 %v2475
        %3205 = vmatprep.subr.mxu0 %v2489
        %3206 = vmatpush1.msra.mxu0 %v2488
        %3207 = vmatprep.subr.mxu0 %v2502
        %3208 = vmatpush1.msra.mxu0 %v2501
        %3209 = vmatprep.subr.mxu0 %v2515
        %3210 = vmatpush1.msra.mxu0 %v2514
        %3211 = vmatprep.subr.mxu0 %v2528
        %3212 = vmatpush1.msra.mxu0 %v2527
        %3213 = vmatprep.subr.mxu0 %v2541
        %3214 = vmatpush1.msra.mxu0 %v2540
        %3215 = vmatprep.subr.mxu0 %v2554
        %3216 = vmatpush1.msra.mxu0 %v2553
        %3217 = vmatprep.subr.mxu0 %v2567
        %3218 = vmatpush1.msra.mxu0 %v2566
        %3219 = vmatprep.subr.mxu0 %v2580
        %3220 = vmatpush1.msra.mxu0 %v2579
        %3221 = vmatprep.subr.mxu0 %v2593
        %3222 = vmatpush1.msra.mxu0 %v2592
        %3223 = vmatprep.subr.mxu0 %v2606
        %3224 = vmatpush1.msra.mxu0 %v2605
        %3225 = vmatprep.subr.mxu0 %v2619
        %3226 = vmatpush1.msra.mxu0 %v2618
        %3227 = vmatprep.subr.mxu0 %v2632
        %3228 = vmatpush1.msra.mxu0 %v2631
        %3229 = vmatprep.subr.mxu0 %v2645
        %3230 = vmatpush1.msra.mxu0 %v2644
        %3231 = vmatprep.subr.mxu0 %v2658
        %3232 = vmatpush1.msra.mxu0 %v2657
        %3233 = vmatprep.subr.mxu0 %v2671
        %3234 = vmatpush1.msra.mxu0 %v2670
        %3235 = vmatprep.subr.mxu0 %v2684
        %3236 = vmatpush1.msra.mxu0 %v2683
        %3237 = vmatprep.subr.mxu0 %v2697
        %3238 = vmatpush1.msra.mxu0 %v2696
        %3239 = vmatprep.mubr.f32.mxu0 %v1354
        %3240 = vmatmul.mubr.f32.gmra.mrb[0].mxu0 %v1353
        %v3241 = vpop.f32.mrb[0].mxu0
        %v3242 = vadd.f32 %v3081, %v3241
        %v3243 = vpop.f32.mrb[0].mxu0
        %v3244 = vadd.f32 %v3083, %v3243
        %3245 = vmatprep.mubr.f32.mxu0 %v1361
        %3246 = vmatmul.mubr.f32.gmra.mrb[0].mxu0 %v1360
        %v3247 = vpop.f32.mrb[0].mxu0
        %v3248 = vadd.f32 %v3087, %v3247
        %v3249 = vpop.f32.mrb[0].mxu0
        %v3250 = vadd.f32 %v3089, %v3249
        %3251 = vmatprep.mubr.f32.mxu0 %v1368
        %3252 = vmatmul.mubr.f32.gmra.mrb[0].mxu0 %v1367
        %v3253 = vpop.f32.mrb[0].mxu0
        %v3254 = vadd.f32 %v3093, %v3253
        %v3255 = vpop.f32.mrb[0].mxu0
        %v3256 = vadd.f32 %v3095, %v3255
        %3257 = vmatprep.mubr.f32.mxu0 %v1375
        %3258 = vmatmul.mubr.f32.gmra.mrb[0].mxu0 %v1374
        %v3259 = vpop.f32.mrb[0].mxu0
        %v3260 = vadd.f32 %v3099, %v3259
        %v3261 = vpop.f32.mrb[0].mxu0
        %v3262 = vadd.f32 %v3101, %v3261
        %3263 = vmatprep.mubr.f32.mxu0 %v1382
        %3264 = vmatmul.mubr.f32.gmra.mrb[0].mxu0 %v1381
        %v3265 = vpop.f32.mrb[0].mxu0
        %v3266 = vadd.f32 %v3105, %v3265
        %v3267 = vpop.f32.mrb[0].mxu0
        %v3268 = vadd.f32 %v3107, %v3267
        %3269 = vmatprep.mubr.f32.mxu0 %v1389
        %3270 = vmatmul.mubr.f32.gmra.mrb[0].mxu0 %v1388
        %v3271 = vpop.f32.mrb[0].mxu0
        %v3272 = vadd.f32 %v3111, %v3271
        %v3273 = vpop.f32.mrb[0].mxu0
        %v3274 = vadd.f32 %v3113, %v3273
        %3275 = vmatprep.mubr.f32.mxu0 %v1396
        %3276 = vmatmul.mubr.f32.gmra.mrb[0].mxu0 %v1395
        %v3277 = vpop.f32.mrb[0].mxu0
        %v3278 = vadd.f32 %v3117, %v3277
        %v3279 = vpop.f32.mrb[0].mxu0
        %v3280 = vadd.f32 %v3119, %v3279
        %3281 = vmatprep.mubr.f32.mxu0 %v1403
        %3282 = vmatmul.mubr.f32.gmra.mrb[0].mxu0 %v1402
        %v3283 = vpop.f32.mrb[0].mxu0
        %v3284 = vadd.f32 %v3123, %v3283
        %v3285 = vpop.f32.mrb[0].mxu0
        %v3286 = vadd.f32 %v3125, %v3285
        %3287 = vmatprep.mubr.f32.mxu0 %v1410
        %3288 = vmatmul.mubr.f32.gmra.mrb[0].mxu0 %v1409
        %v3289 = vpop.f32.mrb[0].mxu0
        %v3290 = vadd.f32 %v3129, %v3289
        %v3291 = vpop.f32.mrb[0].mxu0
        %v3292 = vadd.f32 %v3131, %v3291
        %3293 = vmatprep.mubr.f32.mxu0 %v1417
        %3294 = vmatmul.mubr.f32.gmra.mrb[0].mxu0 %v1416
        %v3295 = vpop.f32.mrb[0].mxu0
        %v3296 = vadd.f32 %v3135, %v3295
        %v3297 = vpop.f32.mrb[0].mxu0
        %v3298 = vadd.f32 %v3137, %v3297
        %3299 = vmatprep.mubr.f32.mxu0 %v1424
        %3300 = vmatmul.mubr.f32.gmra.mrb[0].mxu0 %v1423
        %v3301 = vpop.f32.mrb[0].mxu0
        %v3302 = vadd.f32 %v3141, %v3301
        %v3303 = vpop.f32.mrb[0].mxu0
        %v3304 = vadd.f32 %v3143, %v3303
        %3305 = vmatprep.mubr.f32.mxu0 %v1431
        %3306 = vmatmul.mubr.f32.gmra.mrb[0].mxu0 %v1430
        %v3307 = vpop.f32.mrb[0].mxu0
        %v3308 = vadd.f32 %v3147, %v3307
        %v3309 = vpop.f32.mrb[0].mxu0
        %v3310 = vadd.f32 %v3149, %v3309
        %3311 = vmatprep.mubr.f32.mxu0 %v1438
        %3312 = vmatmul.mubr.f32.gmra.mrb[0].mxu0 %v1437
        %v3313 = vpop.f32.mrb[0].mxu0
        %v3314 = vadd.f32 %v3153, %v3313
        %v3315 = vpop.f32.mrb[0].mxu0
        %v3316 = vadd.f32 %v3155, %v3315
        %3317 = vmatprep.mubr.f32.mxu0 %v1445
        %3318 = vmatmul.mubr.f32.gmra.mrb[0].mxu0 %v1444
        %v3319 = vpop.f32.mrb[0].mxu0
        %v3320 = vadd.f32 %v3159, %v3319
        %v3321 = vpop.f32.mrb[0].mxu0
        %v3322 = vadd.f32 %v3161, %v3321
        %3323 = vmatprep.mubr.f32.mxu0 %v1452
        %3324 = vmatmul.mubr.f32.gmra.mrb[0].mxu0 %v1451
        %v3325 = vpop.f32.mrb[0].mxu0
        %v3326 = vadd.f32 %v3165, %v3325
        %v3327 = vpop.f32.mrb[0].mxu0
        %v3328 = vadd.f32 %v3167, %v3327
        %3329 = vmatprep.mubr.f32.mxu0 %v1459
        %3330 = vmatmul.mubr.f32.gmra.mrb[0].mxu0 %v1458
        %v3331 = vpop.f32.mrb[0].mxu0
        %v3332 = vadd.f32 %v3171, %v3331
        %v3333 = vpop.f32.mrb[0].mxu0
        %v3334 = vadd.f32 %v3173, %v3333
        %3335 = vdwg.mxu0
        %3336 = vmatprep.subr.mxu0 %v2710
        %3337 = vmatpush1.msra.mxu0 %v2709
        %3338 = vmatprep.subr.mxu0 %v2723
        %3339 = vmatpush1.msra.mxu0 %v2722
        %3340 = vmatprep.subr.mxu0 0.0
        %3341 = vmatpush1.msra.mxu0 0.0
        %3342 = vmatprep.subr.mxu0 0.0
        %3343 = vmatpush1.msra.mxu0 0.0
        %3344 = vmatprep.subr.mxu0 0.0
        %3345 = vmatpush1.msra.mxu0 0.0
        %3346 = vmatprep.subr.mxu0 0.0
        %3347 = vmatpush1.msra.mxu0 0.0
        %3348 = vmatprep.subr.mxu0 0.0
        %3349 = vmatpush1.msra.mxu0 0.0
        %3350 = vmatprep.subr.mxu0 0.0
        %3351 = vmatpush1.msra.mxu0 0.0
        %3352 = vmatprep.subr.mxu0 0.0
        %3353 = vmatpush1.msra.mxu0 0.0
        %3354 = vmatprep.subr.mxu0 0.0
        %3355 = vmatpush1.msra.mxu0 0.0
        %3356 = vmatprep.subr.mxu0 0.0
        %3357 = vmatpush1.msra.mxu0 0.0
        %3358 = vmatprep.subr.mxu0 0.0
        %3359 = vmatpush1.msra.mxu0 0.0
        %3360 = vmatprep.subr.mxu0 0.0
        %3361 = vmatpush1.msra.mxu0 0.0
        %3362 = vmatprep.subr.mxu0 0.0
        %3363 = vmatpush1.msra.mxu0 0.0
        %3364 = vmatprep.subr.mxu0 0.0
        %3365 = vmatpush1.msra.mxu0 0.0
        %3366 = vmatprep.subr.mxu0 0.0
        %3367 = vmatpush1.msra.mxu0 0.0
        %3368 = vmatprep.subr.mxu0 0.0
        %3369 = vmatpush1.msra.mxu0 0.0
        %3370 = vmatprep.subr.mxu0 0.0
        %3371 = vmatpush1.msra.mxu0 0.0
        %3372 = vmatprep.subr.mxu0 0.0
        %3373 = vmatpush1.msra.mxu0 0.0
        %3374 = vmatprep.subr.mxu0 0.0
        %3375 = vmatpush1.msra.mxu0 0.0
        %3376 = vmatprep.subr.mxu0 0.0
        %3377 = vmatpush1.msra.mxu0 0.0
        %3378 = vmatprep.subr.mxu0 0.0
        %3379 = vmatpush1.msra.mxu0 0.0
        %3380 = vmatprep.subr.mxu0 0.0
        %3381 = vmatpush1.msra.mxu0 0.0
        %3382 = vmatprep.subr.mxu0 0.0
        %3383 = vmatpush1.msra.mxu0 0.0
        %3384 = vmatprep.subr.mxu0 0.0
        %3385 = vmatpush1.msra.mxu0 0.0
        %3386 = vmatprep.subr.mxu0 0.0
        %3387 = vmatpush1.msra.mxu0 0.0
        %3388 = vmatprep.subr.mxu0 0.0
        %3389 = vmatpush1.msra.mxu0 0.0
        %3390 = vmatprep.subr.mxu0 0.0
        %3391 = vmatpush1.msra.mxu0 0.0
        %3392 = vmatprep.subr.mxu0 0.0
        %3393 = vmatpush1.msra.mxu0 0.0
        %3394 = vmatprep.subr.mxu0 0.0
        %3395 = vmatpush1.msra.mxu0 0.0
        %3396 = vmatprep.subr.mxu0 0.0
        %3397 = vmatpush1.msra.mxu0 0.0
        %3398 = vmatprep.subr.mxu0 0.0
        %3399 = vmatpush1.msra.mxu0 0.0
        %3400 = vmatprep.mubr.f32.mxu0 0.0
        %3401 = vmatmul.mubr.f32.gmra.mrb[0].mxu0 %v2806
        %v3402 = vpop.f32.mrb[0].mxu0
        %v3403 = vadd.f32 %v3242, %v3402
        %v3404 = vpop.f32.mrb[0].mxu0
        %v3405 = vadd.f32 %v3244, %v3404
        %3406 = vmatprep.mubr.f32.mxu0 0.0
        %3407 = vmatmul.mubr.f32.gmra.mrb[0].mxu0 %v2809
        %v3408 = vpop.f32.mrb[0].mxu0
        %v3409 = vadd.f32 %v3248, %v3408
        %v3410 = vpop.f32.mrb[0].mxu0
        %v3411 = vadd.f32 %v3250, %v3410
        %3412 = vmatprep.mubr.f32.mxu0 0.0
        %3413 = vmatmul.mubr.f32.gmra.mrb[0].mxu0 %v2812
        %v3414 = vpop.f32.mrb[0].mxu0
        %v3415 = vadd.f32 %v3254, %v3414
        %v3416 = vpop.f32.mrb[0].mxu0
        %v3417 = vadd.f32 %v3256, %v3416
        %3418 = vmatprep.mubr.f32.mxu0 0.0
        %3419 = vmatmul.mubr.f32.gmra.mrb[0].mxu0 %v2815
        %v3420 = vpop.f32.mrb[0].mxu0
        %v3421 = vadd.f32 %v3260, %v3420
        %v3422 = vpop.f32.mrb[0].mxu0
        %v3423 = vadd.f32 %v3262, %v3422
        %3424 = vmatprep.mubr.f32.mxu0 0.0
        %3425 = vmatmul.mubr.f32.gmra.mrb[0].mxu0 %v2818
        %v3426 = vpop.f32.mrb[0].mxu0
        %v3427 = vadd.f32 %v3266, %v3426
        %v3428 = vpop.f32.mrb[0].mxu0
        %v3429 = vadd.f32 %v3268, %v3428
        %3430 = vmatprep.mubr.f32.mxu0 0.0
        %3431 = vmatmul.mubr.f32.gmra.mrb[0].mxu0 %v2821
        %v3432 = vpop.f32.mrb[0].mxu0
        %v3433 = vadd.f32 %v3272, %v3432
        %v3434 = vpop.f32.mrb[0].mxu0
        %v3435 = vadd.f32 %v3274, %v3434
        %3436 = vmatprep.mubr.f32.mxu0 0.0
        %3437 = vmatmul.mubr.f32.gmra.mrb[0].mxu0 %v2824
        %v3438 = vpop.f32.mrb[0].mxu0
        %v3439 = vadd.f32 %v3278, %v3438
        %v3440 = vpop.f32.mrb[0].mxu0
        %v3441 = vadd.f32 %v3280, %v3440
        %3442 = vmatprep.mubr.f32.mxu0 0.0
        %3443 = vmatmul.mubr.f32.gmra.mrb[0].mxu0 %v2827
        %v3444 = vpop.f32.mrb[0].mxu0
        %v3445 = vadd.f32 %v3284, %v3444
        %v3446 = vpop.f32.mrb[0].mxu0
        %v3447 = vadd.f32 %v3286, %v3446
        %3448 = vmatprep.mubr.f32.mxu0 0.0
        %3449 = vmatmul.mubr.f32.gmra.mrb[0].mxu0 %v2830
        %v3450 = vpop.f32.mrb[0].mxu0
        %v3451 = vadd.f32 %v3290, %v3450
        %v3452 = vpop.f32.mrb[0].mxu0
        %v3453 = vadd.f32 %v3292, %v3452
        %3454 = vmatprep.mubr.f32.mxu0 0.0
        %3455 = vmatmul.mubr.f32.gmra.mrb[0].mxu0 %v2833
        %v3456 = vpop.f32.mrb[0].mxu0
        %v3457 = vadd.f32 %v3296, %v3456
        %v3458 = vpop.f32.mrb[0].mxu0
        %v3459 = vadd.f32 %v3298, %v3458
        %3460 = vmatprep.mubr.f32.mxu0 0.0
        %3461 = vmatmul.mubr.f32.gmra.mrb[0].mxu0 %v2836
        %v3462 = vpop.f32.mrb[0].mxu0
        %v3463 = vadd.f32 %v3302, %v3462
        %v3464 = vpop.f32.mrb[0].mxu0
        %v3465 = vadd.f32 %v3304, %v3464
        %3466 = vmatprep.mubr.f32.mxu0 0.0
        %3467 = vmatmul.mubr.f32.gmra.mrb[0].mxu0 %v2839
        %v3468 = vpop.f32.mrb[0].mxu0
        %v3469 = vadd.f32 %v3308, %v3468
        %v3470 = vpop.f32.mrb[0].mxu0
        %v3471 = vadd.f32 %v3310, %v3470
        %3472 = vmatprep.mubr.f32.mxu0 0.0
        %3473 = vmatmul.mubr.f32.gmra.mrb[0].mxu0 %v2842
        %v3474 = vpop.f32.mrb[0].mxu0
        %v3475 = vadd.f32 %v3314, %v3474
        %v3476 = vpop.f32.mrb[0].mxu0
        %v3477 = vadd.f32 %v3316, %v3476
        %3478 = vmatprep.mubr.f32.mxu0 0.0
        %3479 = vmatmul.mubr.f32.gmra.mrb[0].mxu0 %v2845
        %v3480 = vpop.f32.mrb[0].mxu0
        %v3481 = vadd.f32 %v3320, %v3480
        %v3482 = vpop.f32.mrb[0].mxu0
        %v3483 = vadd.f32 %v3322, %v3482
        %3484 = vmatprep.mubr.f32.mxu0 0.0
        %3485 = vmatmul.mubr.f32.gmra.mrb[0].mxu0 %v2848
        %v3486 = vpop.f32.mrb[0].mxu0
        %v3487 = vadd.f32 %v3326, %v3486
        %v3488 = vpop.f32.mrb[0].mxu0
        %v3489 = vadd.f32 %v3328, %v3488
        %3490 = vmatprep.mubr.f32.mxu0 0.0
        %3491 = vmatmul.mubr.f32.gmra.mrb[0].mxu0 %v2851
        %v3492 = vpop.f32.mrb[0].mxu0
        %v3493 = vadd.f32 %v3332, %v3492
        %v3494 = vpop.f32.mrb[0].mxu0
        %v3495 = vadd.f32 %v3334, %v3494
        %3496 = vdwg.mxu0
        %3497 = vmatprep.subr.mxu0 %v1464
        %3498 = vmatpush1.msra.mxu0 %v1463
        %3499 = vmatprep.subr.mxu0 %v1477
        %3500 = vmatpush1.msra.mxu0 %v1476
        %3501 = vmatprep.subr.mxu0 %v1490
        %3502 = vmatpush1.msra.mxu0 %v1489
        %3503 = vmatprep.subr.mxu0 %v1503
        %3504 = vmatpush1.msra.mxu0 %v1502
        %3505 = vmatprep.subr.mxu0 %v1516
        %3506 = vmatpush1.msra.mxu0 %v1515
        %3507 = vmatprep.subr.mxu0 %v1529
        %3508 = vmatpush1.msra.mxu0 %v1528
        %3509 = vmatprep.subr.mxu0 %v1542
        %3510 = vmatpush1.msra.mxu0 %v1541
        %3511 = vmatprep.subr.mxu0 %v1555
        %3512 = vmatpush1.msra.mxu0 %v1554
        %3513 = vmatprep.subr.mxu0 %v1568
        %3514 = vmatpush1.msra.mxu0 %v1567
        %3515 = vmatprep.subr.mxu0 %v1581
        %3516 = vmatpush1.msra.mxu0 %v1580
        %3517 = vmatprep.subr.mxu0 %v1594
        %3518 = vmatpush1.msra.mxu0 %v1593
        %3519 = vmatprep.subr.mxu0 %v1607
        %3520 = vmatpush1.msra.mxu0 %v1606
        %3521 = vmatprep.subr.mxu0 %v1620
        %3522 = vmatpush1.msra.mxu0 %v1619
        %3523 = vmatprep.subr.mxu0 %v1633
        %3524 = vmatpush1.msra.mxu0 %v1632
        %3525 = vmatprep.subr.mxu0 %v1646
        %3526 = vmatpush1.msra.mxu0 %v1645
        %3527 = vmatprep.subr.mxu0 %v1659
        %3528 = vmatpush1.msra.mxu0 %v1658
        %3529 = vmatprep.subr.mxu0 %v1672
        %3530 = vmatpush1.msra.mxu0 %v1671
        %3531 = vmatprep.subr.mxu0 %v1685
        %3532 = vmatpush1.msra.mxu0 %v1684
        %3533 = vmatprep.subr.mxu0 %v1698
        %3534 = vmatpush1.msra.mxu0 %v1697
        %3535 = vmatprep.subr.mxu0 %v1711
        %3536 = vmatpush1.msra.mxu0 %v1710
        %3537 = vmatprep.subr.mxu0 %v1724
        %3538 = vmatpush1.msra.mxu0 %v1723
        %3539 = vmatprep.subr.mxu0 %v1737
        %3540 = vmatpush1.msra.mxu0 %v1736
        %3541 = vmatprep.subr.mxu0 %v1750
        %3542 = vmatpush1.msra.mxu0 %v1749
        %3543 = vmatprep.subr.mxu0 %v1763
        %3544 = vmatpush1.msra.mxu0 %v1762
        %3545 = vmatprep.subr.mxu0 %v1776
        %3546 = vmatpush1.msra.mxu0 %v1775
        %3547 = vmatprep.subr.mxu0 %v1789
        %3548 = vmatpush1.msra.mxu0 %v1788
        %3549 = vmatprep.subr.mxu0 %v1802
        %3550 = vmatpush1.msra.mxu0 %v1801
        %3551 = vmatprep.subr.mxu0 %v1815
        %3552 = vmatpush1.msra.mxu0 %v1814
        %3553 = vmatprep.subr.mxu0 %v1828
        %3554 = vmatpush1.msra.mxu0 %v1827
        %3555 = vmatprep.subr.mxu0 %v1841
        %3556 = vmatpush1.msra.mxu0 %v1840
        %3557 = vmatprep.subr.mxu0 %v1854
        %3558 = vmatpush1.msra.mxu0 %v1853
        %3559 = vmatprep.subr.mxu0 %v1867
        %3560 = vmatpush1.msra.mxu0 %v1866
        %3561 = vmatprep.mubr.f32.mxu0 %v1350
        %3562 = vmatmul.mubr.f32.gmra.mrb[0].mxu0 %v1349
        %v3563 = vpop.f32.mrb[0].mxu0
        %v3564 = vadd.f32 %v2750, %v3563
        %v3565 = vpop.f32.mrb[0].mxu0
        %v3566 = vadd.f32 %v2754, %v3565
        %3567 = vmatprep.mubr.f32.mxu0 %v1357
        %3568 = vmatmul.mubr.f32.gmra.mrb[0].mxu0 %v1356
        %v3569 = vpop.f32.mrb[0].mxu0
        %v3570 = vadd.f32 %v2750, %v3569
        %v3571 = vpop.f32.mrb[0].mxu0
        %v3572 = vadd.f32 %v2754, %v3571
        %3573 = vmatprep.mubr.f32.mxu0 %v1364
        %3574 = vmatmul.mubr.f32.gmra.mrb[0].mxu0 %v1363
        %v3575 = vpop.f32.mrb[0].mxu0
        %v3576 = vadd.f32 %v2750, %v3575
        %v3577 = vpop.f32.mrb[0].mxu0
        %v3578 = vadd.f32 %v2754, %v3577
        %3579 = vmatprep.mubr.f32.mxu0 %v1371
        %3580 = vmatmul.mubr.f32.gmra.mrb[0].mxu0 %v1370
        %v3581 = vpop.f32.mrb[0].mxu0
        %v3582 = vadd.f32 %v2750, %v3581
        %v3583 = vpop.f32.mrb[0].mxu0
        %v3584 = vadd.f32 %v2754, %v3583
        %3585 = vmatprep.mubr.f32.mxu0 %v1378
        %3586 = vmatmul.mubr.f32.gmra.mrb[0].mxu0 %v1377
        %v3587 = vpop.f32.mrb[0].mxu0
        %v3588 = vadd.f32 %v2750, %v3587
        %v3589 = vpop.f32.mrb[0].mxu0
        %v3590 = vadd.f32 %v2754, %v3589
        %3591 = vmatprep.mubr.f32.mxu0 %v1385
        %3592 = vmatmul.mubr.f32.gmra.mrb[0].mxu0 %v1384
        %v3593 = vpop.f32.mrb[0].mxu0
        %v3594 = vadd.f32 %v2750, %v3593
        %v3595 = vpop.f32.mrb[0].mxu0
        %v3596 = vadd.f32 %v2754, %v3595
        %3597 = vmatprep.mubr.f32.mxu0 %v1392
        %3598 = vmatmul.mubr.f32.gmra.mrb[0].mxu0 %v1391
        %v3599 = vpop.f32.mrb[0].mxu0
        %v3600 = vadd.f32 %v2750, %v3599
        %v3601 = vpop.f32.mrb[0].mxu0
        %v3602 = vadd.f32 %v2754, %v3601
        %3603 = vmatprep.mubr.f32.mxu0 %v1399
        %3604 = vmatmul.mubr.f32.gmra.mrb[0].mxu0 %v1398
        %v3605 = vpop.f32.mrb[0].mxu0
        %v3606 = vadd.f32 %v2750, %v3605
        %v3607 = vpop.f32.mrb[0].mxu0
        %v3608 = vadd.f32 %v2754, %v3607
        %3609 = vmatprep.mubr.f32.mxu0 %v1406
        %3610 = vmatmul.mubr.f32.gmra.mrb[0].mxu0 %v1405
        %v3611 = vpop.f32.mrb[0].mxu0
        %v3612 = vadd.f32 %v2750, %v3611
        %v3613 = vpop.f32.mrb[0].mxu0
        %v3614 = vadd.f32 %v2754, %v3613
        %3615 = vmatprep.mubr.f32.mxu0 %v1413
        %3616 = vmatmul.mubr.f32.gmra.mrb[0].mxu0 %v1412
        %v3617 = vpop.f32.mrb[0].mxu0
        %v3618 = vadd.f32 %v2750, %v3617
        %v3619 = vpop.f32.mrb[0].mxu0
        %v3620 = vadd.f32 %v2754, %v3619
        %3621 = vmatprep.mubr.f32.mxu0 %v1420
        %3622 = vmatmul.mubr.f32.gmra.mrb[0].mxu0 %v1419
        %v3623 = vpop.f32.mrb[0].mxu0
        %v3624 = vadd.f32 %v2750, %v3623
        %v3625 = vpop.f32.mrb[0].mxu0
        %v3626 = vadd.f32 %v2754, %v3625
        %3627 = vmatprep.mubr.f32.mxu0 %v1427
        %3628 = vmatmul.mubr.f32.gmra.mrb[0].mxu0 %v1426
        %v3629 = vpop.f32.mrb[0].mxu0
        %v3630 = vadd.f32 %v2750, %v3629
        %v3631 = vpop.f32.mrb[0].mxu0
        %v3632 = vadd.f32 %v2754, %v3631
        %3633 = vmatprep.mubr.f32.mxu0 %v1434
        %3634 = vmatmul.mubr.f32.gmra.mrb[0].mxu0 %v1433
        %v3635 = vpop.f32.mrb[0].mxu0
        %v3636 = vadd.f32 %v2750, %v3635
        %v3637 = vpop.f32.mrb[0].mxu0
        %v3638 = vadd.f32 %v2754, %v3637
        %3639 = vmatprep.mubr.f32.mxu0 %v1441
        %3640 = vmatmul.mubr.f32.gmra.mrb[0].mxu0 %v1440
        %v3641 = vpop.f32.mrb[0].mxu0
        %v3642 = vadd.f32 %v2750, %v3641
        %v3643 = vpop.f32.mrb[0].mxu0
        %v3644 = vadd.f32 %v2754, %v3643
        %3645 = vmatprep.mubr.f32.mxu0 %v1448
        %3646 = vmatmul.mubr.f32.gmra.mrb[0].mxu0 %v1447
        %v3647 = vpop.f32.mrb[0].mxu0
        %v3648 = vadd.f32 %v2750, %v3647
        %v3649 = vpop.f32.mrb[0].mxu0
        %v3650 = vadd.f32 %v2754, %v3649
        %3651 = vmatprep.mubr.f32.mxu0 %v1455
        %3652 = vmatmul.mubr.f32.gmra.mrb[0].mxu0 %v1454
        %v3653 = vpop.f32.mrb[0].mxu0
        %v3654 = vadd.f32 %v2750, %v3653
        %v3655 = vpop.f32.mrb[0].mxu0
        %v3656 = vadd.f32 %v2754, %v3655
        %3657 = vdwg.mxu0
        %3658 = vmatprep.subr.mxu0 %v1880
        %3659 = vmatpush1.msra.mxu0 %v1879
        %3660 = vmatprep.subr.mxu0 %v1893
        %3661 = vmatpush1.msra.mxu0 %v1892
        %3662 = vmatprep.subr.mxu0 %v1906
        %3663 = vmatpush1.msra.mxu0 %v1905
        %3664 = vmatprep.subr.mxu0 %v1919
        %3665 = vmatpush1.msra.mxu0 %v1918
        %3666 = vmatprep.subr.mxu0 %v1932
        %3667 = vmatpush1.msra.mxu0 %v1931
        %3668 = vmatprep.subr.mxu0 %v1945
        %3669 = vmatpush1.msra.mxu0 %v1944
        %3670 = vmatprep.subr.mxu0 %v1958
        %3671 = vmatpush1.msra.mxu0 %v1957
        %3672 = vmatprep.subr.mxu0 %v1971
        %3673 = vmatpush1.msra.mxu0 %v1970
        %3674 = vmatprep.subr.mxu0 %v1984
        %3675 = vmatpush1.msra.mxu0 %v1983
        %3676 = vmatprep.subr.mxu0 %v1997
        %3677 = vmatpush1.msra.mxu0 %v1996
        %3678 = vmatprep.subr.mxu0 %v2010
        %3679 = vmatpush1.msra.mxu0 %v2009
        %3680 = vmatprep.subr.mxu0 %v2023
        %3681 = vmatpush1.msra.mxu0 %v2022
        %3682 = vmatprep.subr.mxu0 %v2036
        %3683 = vmatpush1.msra.mxu0 %v2035
        %3684 = vmatprep.subr.mxu0 %v2049
        %3685 = vmatpush1.msra.mxu0 %v2048
        %3686 = vmatprep.subr.mxu0 %v2062
        %3687 = vmatpush1.msra.mxu0 %v2061
        %3688 = vmatprep.subr.mxu0 %v2075
        %3689 = vmatpush1.msra.mxu0 %v2074
        %3690 = vmatprep.subr.mxu0 %v2088
        %3691 = vmatpush1.msra.mxu0 %v2087
        %3692 = vmatprep.subr.mxu0 %v2101
        %3693 = vmatpush1.msra.mxu0 %v2100
        %3694 = vmatprep.subr.mxu0 %v2114
        %3695 = vmatpush1.msra.mxu0 %v2113
        %3696 = vmatprep.subr.mxu0 %v2127
        %3697 = vmatpush1.msra.mxu0 %v2126
        %3698 = vmatprep.subr.mxu0 %v2140
        %3699 = vmatpush1.msra.mxu0 %v2139
        %3700 = vmatprep.subr.mxu0 %v2153
        %3701 = vmatpush1.msra.mxu0 %v2152
        %3702 = vmatprep.subr.mxu0 %v2166
        %3703 = vmatpush1.msra.mxu0 %v2165
        %3704 = vmatprep.subr.mxu0 %v2179
        %3705 = vmatpush1.msra.mxu0 %v2178
        %3706 = vmatprep.subr.mxu0 %v2192
        %3707 = vmatpush1.msra.mxu0 %v2191
        %3708 = vmatprep.subr.mxu0 %v2205
        %3709 = vmatpush1.msra.mxu0 %v2204
        %3710 = vmatprep.subr.mxu0 %v2218
        %3711 = vmatpush1.msra.mxu0 %v2217
        %3712 = vmatprep.subr.mxu0 %v2231
        %3713 = vmatpush1.msra.mxu0 %v2230
        %3714 = vmatprep.subr.mxu0 %v2244
        %3715 = vmatpush1.msra.mxu0 %v2243
        %3716 = vmatprep.subr.mxu0 %v2257
        %3717 = vmatpush1.msra.mxu0 %v2256
        %3718 = vmatprep.subr.mxu0 %v2270
        %3719 = vmatpush1.msra.mxu0 %v2269
        %3720 = vmatprep.subr.mxu0 %v2283
        %3721 = vmatpush1.msra.mxu0 %v2282
        %3722 = vmatprep.mubr.f32.mxu0 %v1352
        %3723 = vmatmul.mubr.f32.gmra.mrb[0].mxu0 %v1351
        %v3724 = vpop.f32.mrb[0].mxu0
        %v3725 = vadd.f32 %v3564, %v3724
        %v3726 = vpop.f32.mrb[0].mxu0
        %v3727 = vadd.f32 %v3566, %v3726
        %3728 = vmatprep.mubr.f32.mxu0 %v1359
        %3729 = vmatmul.mubr.f32.gmra.mrb[0].mxu0 %v1358
        %v3730 = vpop.f32.mrb[0].mxu0
        %v3731 = vadd.f32 %v3570, %v3730
        %v3732 = vpop.f32.mrb[0].mxu0
        %v3733 = vadd.f32 %v3572, %v3732
        %3734 = vmatprep.mubr.f32.mxu0 %v1366
        %3735 = vmatmul.mubr.f32.gmra.mrb[0].mxu0 %v1365
        %v3736 = vpop.f32.mrb[0].mxu0
        %v3737 = vadd.f32 %v3576, %v3736
        %v3738 = vpop.f32.mrb[0].mxu0
        %v3739 = vadd.f32 %v3578, %v3738
        %3740 = vmatprep.mubr.f32.mxu0 %v1373
        %3741 = vmatmul.mubr.f32.gmra.mrb[0].mxu0 %v1372
        %v3742 = vpop.f32.mrb[0].mxu0
        %v3743 = vadd.f32 %v3582, %v3742
        %v3744 = vpop.f32.mrb[0].mxu0
        %v3745 = vadd.f32 %v3584, %v3744
        %3746 = vmatprep.mubr.f32.mxu0 %v1380
        %3747 = vmatmul.mubr.f32.gmra.mrb[0].mxu0 %v1379
        %v3748 = vpop.f32.mrb[0].mxu0
        %v3749 = vadd.f32 %v3588, %v3748
        %v3750 = vpop.f32.mrb[0].mxu0
        %v3751 = vadd.f32 %v3590, %v3750
        %3752 = vmatprep.mubr.f32.mxu0 %v1387
        %3753 = vmatmul.mubr.f32.gmra.mrb[0].mxu0 %v1386
        %v3754 = vpop.f32.mrb[0].mxu0
        %v3755 = vadd.f32 %v3594, %v3754
        %v3756 = vpop.f32.mrb[0].mxu0
        %v3757 = vadd.f32 %v3596, %v3756
        %3758 = vmatprep.mubr.f32.mxu0 %v1394
        %3759 = vmatmul.mubr.f32.gmra.mrb[0].mxu0 %v1393
        %v3760 = vpop.f32.mrb[0].mxu0
        %v3761 = vadd.f32 %v3600, %v3760
        %v3762 = vpop.f32.mrb[0].mxu0
        %v3763 = vadd.f32 %v3602, %v3762
        %3764 = vmatprep.mubr.f32.mxu0 %v1401
        %3765 = vmatmul.mubr.f32.gmra.mrb[0].mxu0 %v1400
        %v3766 = vpop.f32.mrb[0].mxu0
        %v3767 = vadd.f32 %v3606, %v3766
        %v3768 = vpop.f32.mrb[0].mxu0
        %v3769 = vadd.f32 %v3608, %v3768
        %3770 = vmatprep.mubr.f32.mxu0 %v1408
        %3771 = vmatmul.mubr.f32.gmra.mrb[0].mxu0 %v1407
        %v3772 = vpop.f32.mrb[0].mxu0
        %v3773 = vadd.f32 %v3612, %v3772
        %v3774 = vpop.f32.mrb[0].mxu0
        %v3775 = vadd.f32 %v3614, %v3774
        %3776 = vmatprep.mubr.f32.mxu0 %v1415
        %3777 = vmatmul.mubr.f32.gmra.mrb[0].mxu0 %v1414
        %v3778 = vpop.f32.mrb[0].mxu0
        %v3779 = vadd.f32 %v3618, %v3778
        %v3780 = vpop.f32.mrb[0].mxu0
        %v3781 = vadd.f32 %v3620, %v3780
        %3782 = vmatprep.mubr.f32.mxu0 %v1422
        %3783 = vmatmul.mubr.f32.gmra.mrb[0].mxu0 %v1421
        %v3784 = vpop.f32.mrb[0].mxu0
        %v3785 = vadd.f32 %v3624, %v3784
        %v3786 = vpop.f32.mrb[0].mxu0
        %v3787 = vadd.f32 %v3626, %v3786
        %3788 = vmatprep.mubr.f32.mxu0 %v1429
        %3789 = vmatmul.mubr.f32.gmra.mrb[0].mxu0 %v1428
        %v3790 = vpop.f32.mrb[0].mxu0
        %v3791 = vadd.f32 %v3630, %v3790
        %v3792 = vpop.f32.mrb[0].mxu0
        %v3793 = vadd.f32 %v3632, %v3792
        %3794 = vmatprep.mubr.f32.mxu0 %v1436
        %3795 = vmatmul.mubr.f32.gmra.mrb[0].mxu0 %v1435
        %v3796 = vpop.f32.mrb[0].mxu0
        %v3797 = vadd.f32 %v3636, %v3796
        %v3798 = vpop.f32.mrb[0].mxu0
        %v3799 = vadd.f32 %v3638, %v3798
        %3800 = vmatprep.mubr.f32.mxu0 %v1443
        %3801 = vmatmul.mubr.f32.gmra.mrb[0].mxu0 %v1442
        %v3802 = vpop.f32.mrb[0].mxu0
        %v3803 = vadd.f32 %v3642, %v3802
        %v3804 = vpop.f32.mrb[0].mxu0
        %v3805 = vadd.f32 %v3644, %v3804
        %3806 = vmatprep.mubr.f32.mxu0 %v1450
        %3807 = vmatmul.mubr.f32.gmra.mrb[0].mxu0 %v1449
        %v3808 = vpop.f32.mrb[0].mxu0
        %v3809 = vadd.f32 %v3648, %v3808
        %v3810 = vpop.f32.mrb[0].mxu0
        %v3811 = vadd.f32 %v3650, %v3810
        %3812 = vmatprep.mubr.f32.mxu0 %v1457
        %3813 = vmatmul.mubr.f32.gmra.mrb[0].mxu0 %v1456
        %v3814 = vpop.f32.mrb[0].mxu0
        %v3815 = vadd.f32 %v3654, %v3814
        %v3816 = vpop.f32.mrb[0].mxu0
        %v3817 = vadd.f32 %v3656, %v3816
        %3818 = vdwg.mxu0
        %3819 = vmatprep.subr.mxu0 %v2296
        %3820 = vmatpush1.msra.mxu0 %v2295
        %3821 = vmatprep.subr.mxu0 %v2309
        %3822 = vmatpush1.msra.mxu0 %v2308
        %3823 = vmatprep.subr.mxu0 %v2322
        %3824 = vmatpush1.msra.mxu0 %v2321
        %3825 = vmatprep.subr.mxu0 %v2335
        %3826 = vmatpush1.msra.mxu0 %v2334
        %3827 = vmatprep.subr.mxu0 %v2348
        %3828 = vmatpush1.msra.mxu0 %v2347
        %3829 = vmatprep.subr.mxu0 %v2361
        %3830 = vmatpush1.msra.mxu0 %v2360
        %3831 = vmatprep.subr.mxu0 %v2374
        %3832 = vmatpush1.msra.mxu0 %v2373
        %3833 = vmatprep.subr.mxu0 %v2387
        %3834 = vmatpush1.msra.mxu0 %v2386
        %3835 = vmatprep.subr.mxu0 %v2400
        %3836 = vmatpush1.msra.mxu0 %v2399
        %3837 = vmatprep.subr.mxu0 %v2413
        %3838 = vmatpush1.msra.mxu0 %v2412
        %3839 = vmatprep.subr.mxu0 %v2426
        %3840 = vmatpush1.msra.mxu0 %v2425
        %3841 = vmatprep.subr.mxu0 %v2439
        %3842 = vmatpush1.msra.mxu0 %v2438
        %3843 = vmatprep.subr.mxu0 %v2452
        %3844 = vmatpush1.msra.mxu0 %v2451
        %3845 = vmatprep.subr.mxu0 %v2465
        %3846 = vmatpush1.msra.mxu0 %v2464
        %3847 = vmatprep.subr.mxu0 %v2478
        %3848 = vmatpush1.msra.mxu0 %v2477
        %3849 = vmatprep.subr.mxu0 %v2491
        %3850 = vmatpush1.msra.mxu0 %v2490
        %3851 = vmatprep.subr.mxu0 %v2504
        %3852 = vmatpush1.msra.mxu0 %v2503
        %3853 = vmatprep.subr.mxu0 %v2517
        %3854 = vmatpush1.msra.mxu0 %v2516
        %3855 = vmatprep.subr.mxu0 %v2530
        %3856 = vmatpush1.msra.mxu0 %v2529
        %3857 = vmatprep.subr.mxu0 %v2543
        %3858 = vmatpush1.msra.mxu0 %v2542
        %3859 = vmatprep.subr.mxu0 %v2556
        %3860 = vmatpush1.msra.mxu0 %v2555
        %3861 = vmatprep.subr.mxu0 %v2569
        %3862 = vmatpush1.msra.mxu0 %v2568
        %3863 = vmatprep.subr.mxu0 %v2582
        %3864 = vmatpush1.msra.mxu0 %v2581
        %3865 = vmatprep.subr.mxu0 %v2595
        %3866 = vmatpush1.msra.mxu0 %v2594
        %3867 = vmatprep.subr.mxu0 %v2608
        %3868 = vmatpush1.msra.mxu0 %v2607
        %3869 = vmatprep.subr.mxu0 %v2621
        %3870 = vmatpush1.msra.mxu0 %v2620
        %3871 = vmatprep.subr.mxu0 %v2634
        %3872 = vmatpush1.msra.mxu0 %v2633
        %3873 = vmatprep.subr.mxu0 %v2647
        %3874 = vmatpush1.msra.mxu0 %v2646
        %3875 = vmatprep.subr.mxu0 %v2660
        %3876 = vmatpush1.msra.mxu0 %v2659
        %3877 = vmatprep.subr.mxu0 %v2673
        %3878 = vmatpush1.msra.mxu0 %v2672
        %3879 = vmatprep.subr.mxu0 %v2686
        %3880 = vmatpush1.msra.mxu0 %v2685
        %3881 = vmatprep.subr.mxu0 %v2699
        %3882 = vmatpush1.msra.mxu0 %v2698
        %3883 = vmatprep.mubr.f32.mxu0 %v1354
        %3884 = vmatmul.mubr.f32.gmra.mrb[0].mxu0 %v1353
        %v3885 = vpop.f32.mrb[0].mxu0
        %v3886 = vadd.f32 %v3725, %v3885
        %v3887 = vpop.f32.mrb[0].mxu0
        %v3888 = vadd.f32 %v3727, %v3887
        %3889 = vmatprep.mubr.f32.mxu0 %v1361
        %3890 = vmatmul.mubr.f32.gmra.mrb[0].mxu0 %v1360
        %v3891 = vpop.f32.mrb[0].mxu0
        %v3892 = vadd.f32 %v3731, %v3891
        %v3893 = vpop.f32.mrb[0].mxu0
        %v3894 = vadd.f32 %v3733, %v3893
        %3895 = vmatprep.mubr.f32.mxu0 %v1368
        %3896 = vmatmul.mubr.f32.gmra.mrb[0].mxu0 %v1367
        %v3897 = vpop.f32.mrb[0].mxu0
        %v3898 = vadd.f32 %v3737, %v3897
        %v3899 = vpop.f32.mrb[0].mxu0
        %v3900 = vadd.f32 %v3739, %v3899
        %3901 = vmatprep.mubr.f32.mxu0 %v1375
        %3902 = vmatmul.mubr.f32.gmra.mrb[0].mxu0 %v1374
        %v3903 = vpop.f32.mrb[0].mxu0
        %v3904 = vadd.f32 %v3743, %v3903
        %v3905 = vpop.f32.mrb[0].mxu0
        %v3906 = vadd.f32 %v3745, %v3905
        %3907 = vmatprep.mubr.f32.mxu0 %v1382
        %3908 = vmatmul.mubr.f32.gmra.mrb[0].mxu0 %v1381
        %v3909 = vpop.f32.mrb[0].mxu0
        %v3910 = vadd.f32 %v3749, %v3909
        %v3911 = vpop.f32.mrb[0].mxu0
        %v3912 = vadd.f32 %v3751, %v3911
        %3913 = vmatprep.mubr.f32.mxu0 %v1389
        %3914 = vmatmul.mubr.f32.gmra.mrb[0].mxu0 %v1388
        %v3915 = vpop.f32.mrb[0].mxu0
        %v3916 = vadd.f32 %v3755, %v3915
        %v3917 = vpop.f32.mrb[0].mxu0
        %v3918 = vadd.f32 %v3757, %v3917
        %3919 = vmatprep.mubr.f32.mxu0 %v1396
        %3920 = vmatmul.mubr.f32.gmra.mrb[0].mxu0 %v1395
        %v3921 = vpop.f32.mrb[0].mxu0
        %v3922 = vadd.f32 %v3761, %v3921
        %v3923 = vpop.f32.mrb[0].mxu0
        %v3924 = vadd.f32 %v3763, %v3923
        %3925 = vmatprep.mubr.f32.mxu0 %v1403
        %3926 = vmatmul.mubr.f32.gmra.mrb[0].mxu0 %v1402
        %v3927 = vpop.f32.mrb[0].mxu0
        %v3928 = vadd.f32 %v3767, %v3927
        %v3929 = vpop.f32.mrb[0].mxu0
        %v3930 = vadd.f32 %v3769, %v3929
        %3931 = vmatprep.mubr.f32.mxu0 %v1410
        %3932 = vmatmul.mubr.f32.gmra.mrb[0].mxu0 %v1409
        %v3933 = vpop.f32.mrb[0].mxu0
        %v3934 = vadd.f32 %v3773, %v3933
        %v3935 = vpop.f32.mrb[0].mxu0
        %v3936 = vadd.f32 %v3775, %v3935
        %3937 = vmatprep.mubr.f32.mxu0 %v1417
        %3938 = vmatmul.mubr.f32.gmra.mrb[0].mxu0 %v1416
        %v3939 = vpop.f32.mrb[0].mxu0
        %v3940 = vadd.f32 %v3779, %v3939
        %v3941 = vpop.f32.mrb[0].mxu0
        %v3942 = vadd.f32 %v3781, %v3941
        %3943 = vmatprep.mubr.f32.mxu0 %v1424
        %3944 = vmatmul.mubr.f32.gmra.mrb[0].mxu0 %v1423
        %v3945 = vpop.f32.mrb[0].mxu0
        %v3946 = vadd.f32 %v3785, %v3945
        %v3947 = vpop.f32.mrb[0].mxu0
        %v3948 = vadd.f32 %v3787, %v3947
        %3949 = vmatprep.mubr.f32.mxu0 %v1431
        %3950 = vmatmul.mubr.f32.gmra.mrb[0].mxu0 %v1430
        %v3951 = vpop.f32.mrb[0].mxu0
        %v3952 = vadd.f32 %v3791, %v3951
        %v3953 = vpop.f32.mrb[0].mxu0
        %v3954 = vadd.f32 %v3793, %v3953
        %3955 = vmatprep.mubr.f32.mxu0 %v1438
        %3956 = vmatmul.mubr.f32.gmra.mrb[0].mxu0 %v1437
        %v3957 = vpop.f32.mrb[0].mxu0
        %v3958 = vadd.f32 %v3797, %v3957
        %v3959 = vpop.f32.mrb[0].mxu0
        %v3960 = vadd.f32 %v3799, %v3959
        %3961 = vmatprep.mubr.f32.mxu0 %v1445
        %3962 = vmatmul.mubr.f32.gmra.mrb[0].mxu0 %v1444
        %v3963 = vpop.f32.mrb[0].mxu0
        %v3964 = vadd.f32 %v3803, %v3963
        %v3965 = vpop.f32.mrb[0].mxu0
        %v3966 = vadd.f32 %v3805, %v3965
        %3967 = vmatprep.mubr.f32.mxu0 %v1452
        %3968 = vmatmul.mubr.f32.gmra.mrb[0].mxu0 %v1451
        %v3969 = vpop.f32.mrb[0].mxu0
        %v3970 = vadd.f32 %v3809, %v3969
        %v3971 = vpop.f32.mrb[0].mxu0
        %v3972 = vadd.f32 %v3811, %v3971
        %3973 = vmatprep.mubr.f32.mxu0 %v1459
        %3974 = vmatmul.mubr.f32.gmra.mrb[0].mxu0 %v1458
        %v3975 = vpop.f32.mrb[0].mxu0
        %v3976 = vadd.f32 %v3815, %v3975
        %v3977 = vpop.f32.mrb[0].mxu0
        %v3978 = vadd.f32 %v3817, %v3977
        %3979 = vdwg.mxu0
        %3980 = vmatprep.subr.mxu0 %v2712
        %3981 = vmatpush1.msra.mxu0 %v2711
        %3982 = vmatprep.subr.mxu0 %v2725
        %3983 = vmatpush1.msra.mxu0 %v2724
        %3984 = vmatprep.subr.mxu0 0.0
        %3985 = vmatpush1.msra.mxu0 0.0
        %3986 = vmatprep.subr.mxu0 0.0
        %3987 = vmatpush1.msra.mxu0 0.0
        %3988 = vmatprep.subr.mxu0 0.0
        %3989 = vmatpush1.msra.mxu0 0.0
        %3990 = vmatprep.subr.mxu0 0.0
        %3991 = vmatpush1.msra.mxu0 0.0
        %3992 = vmatprep.subr.mxu0 0.0
        %3993 = vmatpush1.msra.mxu0 0.0
        %3994 = vmatprep.subr.mxu0 0.0
        %3995 = vmatpush1.msra.mxu0 0.0
        %3996 = vmatprep.subr.mxu0 0.0
        %3997 = vmatpush1.msra.mxu0 0.0
        %3998 = vmatprep.subr.mxu0 0.0
        %3999 = vmatpush1.msra.mxu0 0.0
        %4000 = vmatprep.subr.mxu0 0.0
        %4001 = vmatpush1.msra.mxu0 0.0
        %4002 = vmatprep.subr.mxu0 0.0
        %4003 = vmatpush1.msra.mxu0 0.0
        %4004 = vmatprep.subr.mxu0 0.0
        %4005 = vmatpush1.msra.mxu0 0.0
        %4006 = vmatprep.subr.mxu0 0.0
        %4007 = vmatpush1.msra.mxu0 0.0
        %4008 = vmatprep.subr.mxu0 0.0
        %4009 = vmatpush1.msra.mxu0 0.0
        %4010 = vmatprep.subr.mxu0 0.0
        %4011 = vmatpush1.msra.mxu0 0.0
        %4012 = vmatprep.subr.mxu0 0.0
        %4013 = vmatpush1.msra.mxu0 0.0
        %4014 = vmatprep.subr.mxu0 0.0
        %4015 = vmatpush1.msra.mxu0 0.0
        %4016 = vmatprep.subr.mxu0 0.0
        %4017 = vmatpush1.msra.mxu0 0.0
        %4018 = vmatprep.subr.mxu0 0.0
        %4019 = vmatpush1.msra.mxu0 0.0
        %4020 = vmatprep.subr.mxu0 0.0
        %4021 = vmatpush1.msra.mxu0 0.0
        %4022 = vmatprep.subr.mxu0 0.0
        %4023 = vmatpush1.msra.mxu0 0.0
        %4024 = vmatprep.subr.mxu0 0.0
        %4025 = vmatpush1.msra.mxu0 0.0
        %4026 = vmatprep.subr.mxu0 0.0
        %4027 = vmatpush1.msra.mxu0 0.0
        %4028 = vmatprep.subr.mxu0 0.0
        %4029 = vmatpush1.msra.mxu0 0.0
        %4030 = vmatprep.subr.mxu0 0.0
        %4031 = vmatpush1.msra.mxu0 0.0
        %4032 = vmatprep.subr.mxu0 0.0
        %4033 = vmatpush1.msra.mxu0 0.0
        %4034 = vmatprep.subr.mxu0 0.0
        %4035 = vmatpush1.msra.mxu0 0.0
        %4036 = vmatprep.subr.mxu0 0.0
        %4037 = vmatpush1.msra.mxu0 0.0
        %4038 = vmatprep.subr.mxu0 0.0
        %4039 = vmatpush1.msra.mxu0 0.0
        %4040 = vmatprep.subr.mxu0 0.0
        %4041 = vmatpush1.msra.mxu0 0.0
        %4042 = vmatprep.subr.mxu0 0.0
        %4043 = vmatpush1.msra.mxu0 0.0
        %4044 = vmatprep.mubr.f32.mxu0 0.0
        %4045 = vmatmul.mubr.f32.gmra.mrb[0].mxu0 %v2806
        %v4046 = vpop.f32.mrb[0].mxu0
        %v4047 = vadd.f32 %v3886, %v4046
        %v4048 = vpop.f32.mrb[0].mxu0
        %v4049 = vadd.f32 %v3888, %v4048
        %4050 = vmatprep.mubr.f32.mxu0 0.0
        %4051 = vmatmul.mubr.f32.gmra.mrb[0].mxu0 %v2809
        %v4052 = vpop.f32.mrb[0].mxu0
        %v4053 = vadd.f32 %v3892, %v4052
        %v4054 = vpop.f32.mrb[0].mxu0
        %v4055 = vadd.f32 %v3894, %v4054
        %4056 = vmatprep.mubr.f32.mxu0 0.0
        %4057 = vmatmul.mubr.f32.gmra.mrb[0].mxu0 %v2812
        %v4058 = vpop.f32.mrb[0].mxu0
        %v4059 = vadd.f32 %v3898, %v4058
        %v4060 = vpop.f32.mrb[0].mxu0
        %v4061 = vadd.f32 %v3900, %v4060
        %4062 = vmatprep.mubr.f32.mxu0 0.0
        %4063 = vmatmul.mubr.f32.gmra.mrb[0].mxu0 %v2815
        %v4064 = vpop.f32.mrb[0].mxu0
        %v4065 = vadd.f32 %v3904, %v4064
        %v4066 = vpop.f32.mrb[0].mxu0
        %v4067 = vadd.f32 %v3906, %v4066
        %4068 = vmatprep.mubr.f32.mxu0 0.0
        %4069 = vmatmul.mubr.f32.gmra.mrb[0].mxu0 %v2818
        %v4070 = vpop.f32.mrb[0].mxu0
        %v4071 = vadd.f32 %v3910, %v4070
        %v4072 = vpop.f32.mrb[0].mxu0
        %v4073 = vadd.f32 %v3912, %v4072
        %4074 = vmatprep.mubr.f32.mxu0 0.0
        %4075 = vmatmul.mubr.f32.gmra.mrb[0].mxu0 %v2821
        %v4076 = vpop.f32.mrb[0].mxu0
        %v4077 = vadd.f32 %v3916, %v4076
        %v4078 = vpop.f32.mrb[0].mxu0
        %v4079 = vadd.f32 %v3918, %v4078
        %4080 = vmatprep.mubr.f32.mxu0 0.0
        %4081 = vmatmul.mubr.f32.gmra.mrb[0].mxu0 %v2824
        %v4082 = vpop.f32.mrb[0].mxu0
        %v4083 = vadd.f32 %v3922, %v4082
        %v4084 = vpop.f32.mrb[0].mxu0
        %v4085 = vadd.f32 %v3924, %v4084
        %4086 = vmatprep.mubr.f32.mxu0 0.0
        %4087 = vmatmul.mubr.f32.gmra.mrb[0].mxu0 %v2827
        %v4088 = vpop.f32.mrb[0].mxu0
        %v4089 = vadd.f32 %v3928, %v4088
        %v4090 = vpop.f32.mrb[0].mxu0
        %v4091 = vadd.f32 %v3930, %v4090
        %4092 = vmatprep.mubr.f32.mxu0 0.0
        %4093 = vmatmul.mubr.f32.gmra.mrb[0].mxu0 %v2830
        %v4094 = vpop.f32.mrb[0].mxu0
        %v4095 = vadd.f32 %v3934, %v4094
        %v4096 = vpop.f32.mrb[0].mxu0
        %v4097 = vadd.f32 %v3936, %v4096
        %4098 = vmatprep.mubr.f32.mxu0 0.0
        %4099 = vmatmul.mubr.f32.gmra.mrb[0].mxu0 %v2833
        %v4100 = vpop.f32.mrb[0].mxu0
        %v4101 = vadd.f32 %v3940, %v4100
        %v4102 = vpop.f32.mrb[0].mxu0
        %v4103 = vadd.f32 %v3942, %v4102
        %4104 = vmatprep.mubr.f32.mxu0 0.0
        %4105 = vmatmul.mubr.f32.gmra.mrb[0].mxu0 %v2836
        %v4106 = vpop.f32.mrb[0].mxu0
        %v4107 = vadd.f32 %v3946, %v4106
        %v4108 = vpop.f32.mrb[0].mxu0
        %v4109 = vadd.f32 %v3948, %v4108
        %4110 = vmatprep.mubr.f32.mxu0 0.0
        %4111 = vmatmul.mubr.f32.gmra.mrb[0].mxu0 %v2839
        %v4112 = vpop.f32.mrb[0].mxu0
        %v4113 = vadd.f32 %v3952, %v4112
        %v4114 = vpop.f32.mrb[0].mxu0
        %v4115 = vadd.f32 %v3954, %v4114
        %4116 = vmatprep.mubr.f32.mxu0 0.0
        %4117 = vmatmul.mubr.f32.gmra.mrb[0].mxu0 %v2842
        %v4118 = vpop.f32.mrb[0].mxu0
        %v4119 = vadd.f32 %v3958, %v4118
        %v4120 = vpop.f32.mrb[0].mxu0
        %v4121 = vadd.f32 %v3960, %v4120
        %4122 = vmatprep.mubr.f32.mxu0 0.0
        %4123 = vmatmul.mubr.f32.gmra.mrb[0].mxu0 %v2845
        %v4124 = vpop.f32.mrb[0].mxu0
        %v4125 = vadd.f32 %v3964, %v4124
        %v4126 = vpop.f32.mrb[0].mxu0
        %v4127 = vadd.f32 %v3966, %v4126
        %4128 = vmatprep.mubr.f32.mxu0 0.0
        %4129 = vmatmul.mubr.f32.gmra.mrb[0].mxu0 %v2848
        %v4130 = vpop.f32.mrb[0].mxu0
        %v4131 = vadd.f32 %v3970, %v4130
        %v4132 = vpop.f32.mrb[0].mxu0
        %v4133 = vadd.f32 %v3972, %v4132
        %4134 = vmatprep.mubr.f32.mxu0 0.0
        %4135 = vmatmul.mubr.f32.gmra.mrb[0].mxu0 %v2851
        %v4136 = vpop.f32.mrb[0].mxu0
        %v4137 = vadd.f32 %v3976, %v4136
        %v4138 = vpop.f32.mrb[0].mxu0
        %v4139 = vadd.f32 %v3978, %v4138
        %4140 = vdwg.mxu0
        %4141 = vmatprep.subr.mxu0 %v1466
        %4142 = vmatpush1.msra.mxu0 %v1465
        %4143 = vmatprep.subr.mxu0 %v1479
        %4144 = vmatpush1.msra.mxu0 %v1478
        %4145 = vmatprep.subr.mxu0 %v1492
        %4146 = vmatpush1.msra.mxu0 %v1491
        %4147 = vmatprep.subr.mxu0 %v1505
        %4148 = vmatpush1.msra.mxu0 %v1504
        %4149 = vmatprep.subr.mxu0 %v1518
        %4150 = vmatpush1.msra.mxu0 %v1517
        %4151 = vmatprep.subr.mxu0 %v1531
        %4152 = vmatpush1.msra.mxu0 %v1530
        %4153 = vmatprep.subr.mxu0 %v1544
        %4154 = vmatpush1.msra.mxu0 %v1543
        %4155 = vmatprep.subr.mxu0 %v1557
        %4156 = vmatpush1.msra.mxu0 %v1556
        %4157 = vmatprep.subr.mxu0 %v1570
        %4158 = vmatpush1.msra.mxu0 %v1569
        %4159 = vmatprep.subr.mxu0 %v1583
        %4160 = vmatpush1.msra.mxu0 %v1582
        %4161 = vmatprep.subr.mxu0 %v1596
        %4162 = vmatpush1.msra.mxu0 %v1595
        %4163 = vmatprep.subr.mxu0 %v1609
        %4164 = vmatpush1.msra.mxu0 %v1608
        %4165 = vmatprep.subr.mxu0 %v1622
        %4166 = vmatpush1.msra.mxu0 %v1621
        %4167 = vmatprep.subr.mxu0 %v1635
        %4168 = vmatpush1.msra.mxu0 %v1634
        %4169 = vmatprep.subr.mxu0 %v1648
        %4170 = vmatpush1.msra.mxu0 %v1647
        %4171 = vmatprep.subr.mxu0 %v1661
        %4172 = vmatpush1.msra.mxu0 %v1660
        %4173 = vmatprep.subr.mxu0 %v1674
        %4174 = vmatpush1.msra.mxu0 %v1673
        %4175 = vmatprep.subr.mxu0 %v1687
        %4176 = vmatpush1.msra.mxu0 %v1686
        %4177 = vmatprep.subr.mxu0 %v1700
        %4178 = vmatpush1.msra.mxu0 %v1699
        %4179 = vmatprep.subr.mxu0 %v1713
        %4180 = vmatpush1.msra.mxu0 %v1712
        %4181 = vmatprep.subr.mxu0 %v1726
        %4182 = vmatpush1.msra.mxu0 %v1725
        %4183 = vmatprep.subr.mxu0 %v1739
        %4184 = vmatpush1.msra.mxu0 %v1738
        %4185 = vmatprep.subr.mxu0 %v1752
        %4186 = vmatpush1.msra.mxu0 %v1751
        %4187 = vmatprep.subr.mxu0 %v1765
        %4188 = vmatpush1.msra.mxu0 %v1764
        %4189 = vmatprep.subr.mxu0 %v1778
        %4190 = vmatpush1.msra.mxu0 %v1777
        %4191 = vmatprep.subr.mxu0 %v1791
        %4192 = vmatpush1.msra.mxu0 %v1790
        %4193 = vmatprep.subr.mxu0 %v1804
        %4194 = vmatpush1.msra.mxu0 %v1803
        %4195 = vmatprep.subr.mxu0 %v1817
        %4196 = vmatpush1.msra.mxu0 %v1816
        %4197 = vmatprep.subr.mxu0 %v1830
        %4198 = vmatpush1.msra.mxu0 %v1829
        %4199 = vmatprep.subr.mxu0 %v1843
        %4200 = vmatpush1.msra.mxu0 %v1842
        %4201 = vmatprep.subr.mxu0 %v1856
        %4202 = vmatpush1.msra.mxu0 %v1855
        %4203 = vmatprep.subr.mxu0 %v1869
        %4204 = vmatpush1.msra.mxu0 %v1868
        %4205 = vmatprep.mubr.f32.mxu0 %v1350
        %4206 = vmatmul.mubr.f32.gmra.mrb[0].mxu0 %v1349
        %v4207 = vpop.f32.mrb[0].mxu0
        %v4208 = vadd.f32 %v2758, %v4207
        %v4209 = vpop.f32.mrb[0].mxu0
        %v4210 = vadd.f32 %v2762, %v4209
        %4211 = vmatprep.mubr.f32.mxu0 %v1357
        %4212 = vmatmul.mubr.f32.gmra.mrb[0].mxu0 %v1356
        %v4213 = vpop.f32.mrb[0].mxu0
        %v4214 = vadd.f32 %v2758, %v4213
        %v4215 = vpop.f32.mrb[0].mxu0
        %v4216 = vadd.f32 %v2762, %v4215
        %4217 = vmatprep.mubr.f32.mxu0 %v1364
        %4218 = vmatmul.mubr.f32.gmra.mrb[0].mxu0 %v1363
        %v4219 = vpop.f32.mrb[0].mxu0
        %v4220 = vadd.f32 %v2758, %v4219
        %v4221 = vpop.f32.mrb[0].mxu0
        %v4222 = vadd.f32 %v2762, %v4221
        %4223 = vmatprep.mubr.f32.mxu0 %v1371
        %4224 = vmatmul.mubr.f32.gmra.mrb[0].mxu0 %v1370
        %v4225 = vpop.f32.mrb[0].mxu0
        %v4226 = vadd.f32 %v2758, %v4225
        %v4227 = vpop.f32.mrb[0].mxu0
        %v4228 = vadd.f32 %v2762, %v4227
        %4229 = vmatprep.mubr.f32.mxu0 %v1378
        %4230 = vmatmul.mubr.f32.gmra.mrb[0].mxu0 %v1377
        %v4231 = vpop.f32.mrb[0].mxu0
        %v4232 = vadd.f32 %v2758, %v4231
        %v4233 = vpop.f32.mrb[0].mxu0
        %v4234 = vadd.f32 %v2762, %v4233
        %4235 = vmatprep.mubr.f32.mxu0 %v1385
        %4236 = vmatmul.mubr.f32.gmra.mrb[0].mxu0 %v1384
        %v4237 = vpop.f32.mrb[0].mxu0
        %v4238 = vadd.f32 %v2758, %v4237
        %v4239 = vpop.f32.mrb[0].mxu0
        %v4240 = vadd.f32 %v2762, %v4239
        %4241 = vmatprep.mubr.f32.mxu0 %v1392
        %4242 = vmatmul.mubr.f32.gmra.mrb[0].mxu0 %v1391
        %v4243 = vpop.f32.mrb[0].mxu0
        %v4244 = vadd.f32 %v2758, %v4243
        %v4245 = vpop.f32.mrb[0].mxu0
        %v4246 = vadd.f32 %v2762, %v4245
        %4247 = vmatprep.mubr.f32.mxu0 %v1399
        %4248 = vmatmul.mubr.f32.gmra.mrb[0].mxu0 %v1398
        %v4249 = vpop.f32.mrb[0].mxu0
        %v4250 = vadd.f32 %v2758, %v4249
        %v4251 = vpop.f32.mrb[0].mxu0
        %v4252 = vadd.f32 %v2762, %v4251
        %4253 = vmatprep.mubr.f32.mxu0 %v1406
        %4254 = vmatmul.mubr.f32.gmra.mrb[0].mxu0 %v1405
        %v4255 = vpop.f32.mrb[0].mxu0
        %v4256 = vadd.f32 %v2758, %v4255
        %v4257 = vpop.f32.mrb[0].mxu0
        %v4258 = vadd.f32 %v2762, %v4257
        %4259 = vmatprep.mubr.f32.mxu0 %v1413
        %4260 = vmatmul.mubr.f32.gmra.mrb[0].mxu0 %v1412
        %v4261 = vpop.f32.mrb[0].mxu0
        %v4262 = vadd.f32 %v2758, %v4261
        %v4263 = vpop.f32.mrb[0].mxu0
        %v4264 = vadd.f32 %v2762, %v4263
        %4265 = vmatprep.mubr.f32.mxu0 %v1420
        %4266 = vmatmul.mubr.f32.gmra.mrb[0].mxu0 %v1419
        %v4267 = vpop.f32.mrb[0].mxu0
        %v4268 = vadd.f32 %v2758, %v4267
        %v4269 = vpop.f32.mrb[0].mxu0
        %v4270 = vadd.f32 %v2762, %v4269
        %4271 = vmatprep.mubr.f32.mxu0 %v1427
        %4272 = vmatmul.mubr.f32.gmra.mrb[0].mxu0 %v1426
        %v4273 = vpop.f32.mrb[0].mxu0
        %v4274 = vadd.f32 %v2758, %v4273
        %v4275 = vpop.f32.mrb[0].mxu0
        %v4276 = vadd.f32 %v2762, %v4275
        %4277 = vmatprep.mubr.f32.mxu0 %v1434
        %4278 = vmatmul.mubr.f32.gmra.mrb[0].mxu0 %v1433
        %v4279 = vpop.f32.mrb[0].mxu0
        %v4280 = vadd.f32 %v2758, %v4279
        %v4281 = vpop.f32.mrb[0].mxu0
        %v4282 = vadd.f32 %v2762, %v4281
        %4283 = vmatprep.mubr.f32.mxu0 %v1441
        %4284 = vmatmul.mubr.f32.gmra.mrb[0].mxu0 %v1440
        %v4285 = vpop.f32.mrb[0].mxu0
        %v4286 = vadd.f32 %v2758, %v4285
        %v4287 = vpop.f32.mrb[0].mxu0
        %v4288 = vadd.f32 %v2762, %v4287
        %4289 = vmatprep.mubr.f32.mxu0 %v1448
        %4290 = vmatmul.mubr.f32.gmra.mrb[0].mxu0 %v1447
        %v4291 = vpop.f32.mrb[0].mxu0
        %v4292 = vadd.f32 %v2758, %v4291
        %v4293 = vpop.f32.mrb[0].mxu0
        %v4294 = vadd.f32 %v2762, %v4293
        %4295 = vmatprep.mubr.f32.mxu0 %v1455
        %4296 = vmatmul.mubr.f32.gmra.mrb[0].mxu0 %v1454
        %v4297 = vpop.f32.mrb[0].mxu0
        %v4298 = vadd.f32 %v2758, %v4297
        %v4299 = vpop.f32.mrb[0].mxu0
        %v4300 = vadd.f32 %v2762, %v4299
        %4301 = vdwg.mxu0
        %4302 = vmatprep.subr.mxu0 %v1882
        %4303 = vmatpush1.msra.mxu0 %v1881
        %4304 = vmatprep.subr.mxu0 %v1895
        %4305 = vmatpush1.msra.mxu0 %v1894
        %4306 = vmatprep.subr.mxu0 %v1908
        %4307 = vmatpush1.msra.mxu0 %v1907
        %4308 = vmatprep.subr.mxu0 %v1921
        %4309 = vmatpush1.msra.mxu0 %v1920
        %4310 = vmatprep.subr.mxu0 %v1934
        %4311 = vmatpush1.msra.mxu0 %v1933
        %4312 = vmatprep.subr.mxu0 %v1947
        %4313 = vmatpush1.msra.mxu0 %v1946
        %4314 = vmatprep.subr.mxu0 %v1960
        %4315 = vmatpush1.msra.mxu0 %v1959
        %4316 = vmatprep.subr.mxu0 %v1973
        %4317 = vmatpush1.msra.mxu0 %v1972
        %4318 = vmatprep.subr.mxu0 %v1986
        %4319 = vmatpush1.msra.mxu0 %v1985
        %4320 = vmatprep.subr.mxu0 %v1999
        %4321 = vmatpush1.msra.mxu0 %v1998
        %4322 = vmatprep.subr.mxu0 %v2012
        %4323 = vmatpush1.msra.mxu0 %v2011
        %4324 = vmatprep.subr.mxu0 %v2025
        %4325 = vmatpush1.msra.mxu0 %v2024
        %4326 = vmatprep.subr.mxu0 %v2038
        %4327 = vmatpush1.msra.mxu0 %v2037
        %4328 = vmatprep.subr.mxu0 %v2051
        %4329 = vmatpush1.msra.mxu0 %v2050
        %4330 = vmatprep.subr.mxu0 %v2064
        %4331 = vmatpush1.msra.mxu0 %v2063
        %4332 = vmatprep.subr.mxu0 %v2077
        %4333 = vmatpush1.msra.mxu0 %v2076
        %4334 = vmatprep.subr.mxu0 %v2090
        %4335 = vmatpush1.msra.mxu0 %v2089
        %4336 = vmatprep.subr.mxu0 %v2103
        %4337 = vmatpush1.msra.mxu0 %v2102
        %4338 = vmatprep.subr.mxu0 %v2116
        %4339 = vmatpush1.msra.mxu0 %v2115
        %4340 = vmatprep.subr.mxu0 %v2129
        %4341 = vmatpush1.msra.mxu0 %v2128
        %4342 = vmatprep.subr.mxu0 %v2142
        %4343 = vmatpush1.msra.mxu0 %v2141
        %4344 = vmatprep.subr.mxu0 %v2155
        %4345 = vmatpush1.msra.mxu0 %v2154
        %4346 = vmatprep.subr.mxu0 %v2168
        %4347 = vmatpush1.msra.mxu0 %v2167
        %4348 = vmatprep.subr.mxu0 %v2181
        %4349 = vmatpush1.msra.mxu0 %v2180
        %4350 = vmatprep.subr.mxu0 %v2194
        %4351 = vmatpush1.msra.mxu0 %v2193
        %4352 = vmatprep.subr.mxu0 %v2207
        %4353 = vmatpush1.msra.mxu0 %v2206
        %4354 = vmatprep.subr.mxu0 %v2220
        %4355 = vmatpush1.msra.mxu0 %v2219
        %4356 = vmatprep.subr.mxu0 %v2233
        %4357 = vmatpush1.msra.mxu0 %v2232
        %4358 = vmatprep.subr.mxu0 %v2246
        %4359 = vmatpush1.msra.mxu0 %v2245
        %4360 = vmatprep.subr.mxu0 %v2259
        %4361 = vmatpush1.msra.mxu0 %v2258
        %4362 = vmatprep.subr.mxu0 %v2272
        %4363 = vmatpush1.msra.mxu0 %v2271
        %4364 = vmatprep.subr.mxu0 %v2285
        %4365 = vmatpush1.msra.mxu0 %v2284
        %4366 = vmatprep.mubr.f32.mxu0 %v1352
        %4367 = vmatmul.mubr.f32.gmra.mrb[0].mxu0 %v1351
        %v4368 = vpop.f32.mrb[0].mxu0
        %v4369 = vadd.f32 %v4208, %v4368
        %v4370 = vpop.f32.mrb[0].mxu0
        %v4371 = vadd.f32 %v4210, %v4370
        %4372 = vmatprep.mubr.f32.mxu0 %v1359
        %4373 = vmatmul.mubr.f32.gmra.mrb[0].mxu0 %v1358
        %v4374 = vpop.f32.mrb[0].mxu0
        %v4375 = vadd.f32 %v4214, %v4374
        %v4376 = vpop.f32.mrb[0].mxu0
        %v4377 = vadd.f32 %v4216, %v4376
        %4378 = vmatprep.mubr.f32.mxu0 %v1366
        %4379 = vmatmul.mubr.f32.gmra.mrb[0].mxu0 %v1365
        %v4380 = vpop.f32.mrb[0].mxu0
        %v4381 = vadd.f32 %v4220, %v4380
        %v4382 = vpop.f32.mrb[0].mxu0
        %v4383 = vadd.f32 %v4222, %v4382
        %4384 = vmatprep.mubr.f32.mxu0 %v1373
        %4385 = vmatmul.mubr.f32.gmra.mrb[0].mxu0 %v1372
        %v4386 = vpop.f32.mrb[0].mxu0
        %v4387 = vadd.f32 %v4226, %v4386
        %v4388 = vpop.f32.mrb[0].mxu0
        %v4389 = vadd.f32 %v4228, %v4388
        %4390 = vmatprep.mubr.f32.mxu0 %v1380
        %4391 = vmatmul.mubr.f32.gmra.mrb[0].mxu0 %v1379
        %v4392 = vpop.f32.mrb[0].mxu0
        %v4393 = vadd.f32 %v4232, %v4392
        %v4394 = vpop.f32.mrb[0].mxu0
        %v4395 = vadd.f32 %v4234, %v4394
        %4396 = vmatprep.mubr.f32.mxu0 %v1387
        %4397 = vmatmul.mubr.f32.gmra.mrb[0].mxu0 %v1386
        %v4398 = vpop.f32.mrb[0].mxu0
        %v4399 = vadd.f32 %v4238, %v4398
        %v4400 = vpop.f32.mrb[0].mxu0
        %v4401 = vadd.f32 %v4240, %v4400
        %4402 = vmatprep.mubr.f32.mxu0 %v1394
        %4403 = vmatmul.mubr.f32.gmra.mrb[0].mxu0 %v1393
        %v4404 = vpop.f32.mrb[0].mxu0
        %v4405 = vadd.f32 %v4244, %v4404
        %v4406 = vpop.f32.mrb[0].mxu0
        %v4407 = vadd.f32 %v4246, %v4406
        %4408 = vmatprep.mubr.f32.mxu0 %v1401
        %4409 = vmatmul.mubr.f32.gmra.mrb[0].mxu0 %v1400
        %v4410 = vpop.f32.mrb[0].mxu0
        %v4411 = vadd.f32 %v4250, %v4410
        %v4412 = vpop.f32.mrb[0].mxu0
        %v4413 = vadd.f32 %v4252, %v4412
        %4414 = vmatprep.mubr.f32.mxu0 %v1408
        %4415 = vmatmul.mubr.f32.gmra.mrb[0].mxu0 %v1407
        %v4416 = vpop.f32.mrb[0].mxu0
        %v4417 = vadd.f32 %v4256, %v4416
        %v4418 = vpop.f32.mrb[0].mxu0
        %v4419 = vadd.f32 %v4258, %v4418
        %4420 = vmatprep.mubr.f32.mxu0 %v1415
        %4421 = vmatmul.mubr.f32.gmra.mrb[0].mxu0 %v1414
        %v4422 = vpop.f32.mrb[0].mxu0
        %v4423 = vadd.f32 %v4262, %v4422
        %v4424 = vpop.f32.mrb[0].mxu0
        %v4425 = vadd.f32 %v4264, %v4424
        %4426 = vmatprep.mubr.f32.mxu0 %v1422
        %4427 = vmatmul.mubr.f32.gmra.mrb[0].mxu0 %v1421
        %v4428 = vpop.f32.mrb[0].mxu0
        %v4429 = vadd.f32 %v4268, %v4428
        %v4430 = vpop.f32.mrb[0].mxu0
        %v4431 = vadd.f32 %v4270, %v4430
        %4432 = vmatprep.mubr.f32.mxu0 %v1429
        %4433 = vmatmul.mubr.f32.gmra.mrb[0].mxu0 %v1428
        %v4434 = vpop.f32.mrb[0].mxu0
        %v4435 = vadd.f32 %v4274, %v4434
        %v4436 = vpop.f32.mrb[0].mxu0
        %v4437 = vadd.f32 %v4276, %v4436
        %4438 = vmatprep.mubr.f32.mxu0 %v1436
        %4439 = vmatmul.mubr.f32.gmra.mrb[0].mxu0 %v1435
        %v4440 = vpop.f32.mrb[0].mxu0
        %v4441 = vadd.f32 %v4280, %v4440
        %v4442 = vpop.f32.mrb[0].mxu0
        %v4443 = vadd.f32 %v4282, %v4442
        %4444 = vmatprep.mubr.f32.mxu0 %v1443
        %4445 = vmatmul.mubr.f32.gmra.mrb[0].mxu0 %v1442
        %v4446 = vpop.f32.mrb[0].mxu0
        %v4447 = vadd.f32 %v4286, %v4446
        %v4448 = vpop.f32.mrb[0].mxu0
        %v4449 = vadd.f32 %v4288, %v4448
        %4450 = vmatprep.mubr.f32.mxu0 %v1450
        %4451 = vmatmul.mubr.f32.gmra.mrb[0].mxu0 %v1449
        %v4452 = vpop.f32.mrb[0].mxu0
        %v4453 = vadd.f32 %v4292, %v4452
        %v4454 = vpop.f32.mrb[0].mxu0
        %v4455 = vadd.f32 %v4294, %v4454
        %4456 = vmatprep.mubr.f32.mxu0 %v1457
        %4457 = vmatmul.mubr.f32.gmra.mrb[0].mxu0 %v1456
        %v4458 = vpop.f32.mrb[0].mxu0
        %v4459 = vadd.f32 %v4298, %v4458
        %v4460 = vpop.f32.mrb[0].mxu0
        %v4461 = vadd.f32 %v4300, %v4460
        %4462 = vdwg.mxu0
        %4463 = vmatprep.subr.mxu0 %v2298
        %4464 = vmatpush1.msra.mxu0 %v2297
        %4465 = vmatprep.subr.mxu0 %v2311
        %4466 = vmatpush1.msra.mxu0 %v2310
        %4467 = vmatprep.subr.mxu0 %v2324
        %4468 = vmatpush1.msra.mxu0 %v2323
        %4469 = vmatprep.subr.mxu0 %v2337
        %4470 = vmatpush1.msra.mxu0 %v2336
        %4471 = vmatprep.subr.mxu0 %v2350
        %4472 = vmatpush1.msra.mxu0 %v2349
        %4473 = vmatprep.subr.mxu0 %v2363
        %4474 = vmatpush1.msra.mxu0 %v2362
        %4475 = vmatprep.subr.mxu0 %v2376
        %4476 = vmatpush1.msra.mxu0 %v2375
        %4477 = vmatprep.subr.mxu0 %v2389
        %4478 = vmatpush1.msra.mxu0 %v2388
        %4479 = vmatprep.subr.mxu0 %v2402
        %4480 = vmatpush1.msra.mxu0 %v2401
        %4481 = vmatprep.subr.mxu0 %v2415
        %4482 = vmatpush1.msra.mxu0 %v2414
        %4483 = vmatprep.subr.mxu0 %v2428
        %4484 = vmatpush1.msra.mxu0 %v2427
        %4485 = vmatprep.subr.mxu0 %v2441
        %4486 = vmatpush1.msra.mxu0 %v2440
        %4487 = vmatprep.subr.mxu0 %v2454
        %4488 = vmatpush1.msra.mxu0 %v2453
        %4489 = vmatprep.subr.mxu0 %v2467
        %4490 = vmatpush1.msra.mxu0 %v2466
        %4491 = vmatprep.subr.mxu0 %v2480
        %4492 = vmatpush1.msra.mxu0 %v2479
        %4493 = vmatprep.subr.mxu0 %v2493
        %4494 = vmatpush1.msra.mxu0 %v2492
        %4495 = vmatprep.subr.mxu0 %v2506
        %4496 = vmatpush1.msra.mxu0 %v2505
        %4497 = vmatprep.subr.mxu0 %v2519
        %4498 = vmatpush1.msra.mxu0 %v2518
        %4499 = vmatprep.subr.mxu0 %v2532
        %4500 = vmatpush1.msra.mxu0 %v2531
        %4501 = vmatprep.subr.mxu0 %v2545
        %4502 = vmatpush1.msra.mxu0 %v2544
        %4503 = vmatprep.subr.mxu0 %v2558
        %4504 = vmatpush1.msra.mxu0 %v2557
        %4505 = vmatprep.subr.mxu0 %v2571
        %4506 = vmatpush1.msra.mxu0 %v2570
        %4507 = vmatprep.subr.mxu0 %v2584
        %4508 = vmatpush1.msra.mxu0 %v2583
        %4509 = vmatprep.subr.mxu0 %v2597
        %4510 = vmatpush1.msra.mxu0 %v2596
        %4511 = vmatprep.subr.mxu0 %v2610
        %4512 = vmatpush1.msra.mxu0 %v2609
        %4513 = vmatprep.subr.mxu0 %v2623
        %4514 = vmatpush1.msra.mxu0 %v2622
        %4515 = vmatprep.subr.mxu0 %v2636
        %4516 = vmatpush1.msra.mxu0 %v2635
        %4517 = vmatprep.subr.mxu0 %v2649
        %4518 = vmatpush1.msra.mxu0 %v2648
        %4519 = vmatprep.subr.mxu0 %v2662
        %4520 = vmatpush1.msra.mxu0 %v2661
        %4521 = vmatprep.subr.mxu0 %v2675
        %4522 = vmatpush1.msra.mxu0 %v2674
        %4523 = vmatprep.subr.mxu0 %v2688
        %4524 = vmatpush1.msra.mxu0 %v2687
        %4525 = vmatprep.subr.mxu0 %v2701
        %4526 = vmatpush1.msra.mxu0 %v2700
        %4527 = vmatprep.mubr.f32.mxu0 %v1354
        %4528 = vmatmul.mubr.f32.gmra.mrb[0].mxu0 %v1353
        %v4529 = vpop.f32.mrb[0].mxu0
        %v4530 = vadd.f32 %v4369, %v4529
        %v4531 = vpop.f32.mrb[0].mxu0
        %v4532 = vadd.f32 %v4371, %v4531
        %4533 = vmatprep.mubr.f32.mxu0 %v1361
        %4534 = vmatmul.mubr.f32.gmra.mrb[0].mxu0 %v1360
        %v4535 = vpop.f32.mrb[0].mxu0
        %v4536 = vadd.f32 %v4375, %v4535
        %v4537 = vpop.f32.mrb[0].mxu0
        %v4538 = vadd.f32 %v4377, %v4537
        %4539 = vmatprep.mubr.f32.mxu0 %v1368
        %4540 = vmatmul.mubr.f32.gmra.mrb[0].mxu0 %v1367
        %v4541 = vpop.f32.mrb[0].mxu0
        %v4542 = vadd.f32 %v4381, %v4541
        %v4543 = vpop.f32.mrb[0].mxu0
        %v4544 = vadd.f32 %v4383, %v4543
        %4545 = vmatprep.mubr.f32.mxu0 %v1375
        %4546 = vmatmul.mubr.f32.gmra.mrb[0].mxu0 %v1374
        %v4547 = vpop.f32.mrb[0].mxu0
        %v4548 = vadd.f32 %v4387, %v4547
        %v4549 = vpop.f32.mrb[0].mxu0
        %v4550 = vadd.f32 %v4389, %v4549
        %4551 = vmatprep.mubr.f32.mxu0 %v1382
        %4552 = vmatmul.mubr.f32.gmra.mrb[0].mxu0 %v1381
        %v4553 = vpop.f32.mrb[0].mxu0
        %v4554 = vadd.f32 %v4393, %v4553
        %v4555 = vpop.f32.mrb[0].mxu0
        %v4556 = vadd.f32 %v4395, %v4555
        %4557 = vmatprep.mubr.f32.mxu0 %v1389
        %4558 = vmatmul.mubr.f32.gmra.mrb[0].mxu0 %v1388
        %v4559 = vpop.f32.mrb[0].mxu0
        %v4560 = vadd.f32 %v4399, %v4559
        %v4561 = vpop.f32.mrb[0].mxu0
        %v4562 = vadd.f32 %v4401, %v4561
        %4563 = vmatprep.mubr.f32.mxu0 %v1396
        %4564 = vmatmul.mubr.f32.gmra.mrb[0].mxu0 %v1395
        %v4565 = vpop.f32.mrb[0].mxu0
        %v4566 = vadd.f32 %v4405, %v4565
        %v4567 = vpop.f32.mrb[0].mxu0
        %v4568 = vadd.f32 %v4407, %v4567
        %4569 = vmatprep.mubr.f32.mxu0 %v1403
        %4570 = vmatmul.mubr.f32.gmra.mrb[0].mxu0 %v1402
        %v4571 = vpop.f32.mrb[0].mxu0
        %v4572 = vadd.f32 %v4411, %v4571
        %v4573 = vpop.f32.mrb[0].mxu0
        %v4574 = vadd.f32 %v4413, %v4573
        %4575 = vmatprep.mubr.f32.mxu0 %v1410
        %4576 = vmatmul.mubr.f32.gmra.mrb[0].mxu0 %v1409
        %v4577 = vpop.f32.mrb[0].mxu0
        %v4578 = vadd.f32 %v4417, %v4577
        %v4579 = vpop.f32.mrb[0].mxu0
        %v4580 = vadd.f32 %v4419, %v4579
        %4581 = vmatprep.mubr.f32.mxu0 %v1417
        %4582 = vmatmul.mubr.f32.gmra.mrb[0].mxu0 %v1416
        %v4583 = vpop.f32.mrb[0].mxu0
        %v4584 = vadd.f32 %v4423, %v4583
        %v4585 = vpop.f32.mrb[0].mxu0
        %v4586 = vadd.f32 %v4425, %v4585
        %4587 = vmatprep.mubr.f32.mxu0 %v1424
        %4588 = vmatmul.mubr.f32.gmra.mrb[0].mxu0 %v1423
        %v4589 = vpop.f32.mrb[0].mxu0
        %v4590 = vadd.f32 %v4429, %v4589
        %v4591 = vpop.f32.mrb[0].mxu0
        %v4592 = vadd.f32 %v4431, %v4591
        %4593 = vmatprep.mubr.f32.mxu0 %v1431
        %4594 = vmatmul.mubr.f32.gmra.mrb[0].mxu0 %v1430
        %v4595 = vpop.f32.mrb[0].mxu0
        %v4596 = vadd.f32 %v4435, %v4595
        %v4597 = vpop.f32.mrb[0].mxu0
        %v4598 = vadd.f32 %v4437, %v4597
        %4599 = vmatprep.mubr.f32.mxu0 %v1438
        %4600 = vmatmul.mubr.f32.gmra.mrb[0].mxu0 %v1437
        %v4601 = vpop.f32.mrb[0].mxu0
        %v4602 = vadd.f32 %v4441, %v4601
        %v4603 = vpop.f32.mrb[0].mxu0
        %v4604 = vadd.f32 %v4443, %v4603
        %4605 = vmatprep.mubr.f32.mxu0 %v1445
        %4606 = vmatmul.mubr.f32.gmra.mrb[0].mxu0 %v1444
        %v4607 = vpop.f32.mrb[0].mxu0
        %v4608 = vadd.f32 %v4447, %v4607
        %v4609 = vpop.f32.mrb[0].mxu0
        %v4610 = vadd.f32 %v4449, %v4609
        %4611 = vmatprep.mubr.f32.mxu0 %v1452
        %4612 = vmatmul.mubr.f32.gmra.mrb[0].mxu0 %v1451
        %v4613 = vpop.f32.mrb[0].mxu0
        %v4614 = vadd.f32 %v4453, %v4613
        %v4615 = vpop.f32.mrb[0].mxu0
        %v4616 = vadd.f32 %v4455, %v4615
        %4617 = vmatprep.mubr.f32.mxu0 %v1459
        %4618 = vmatmul.mubr.f32.gmra.mrb[0].mxu0 %v1458
        %v4619 = vpop.f32.mrb[0].mxu0
        %v4620 = vadd.f32 %v4459, %v4619
        %v4621 = vpop.f32.mrb[0].mxu0
        %v4622 = vadd.f32 %v4461, %v4621
        %4623 = vdwg.mxu0
        %4624 = vmatprep.subr.mxu0 %v2714
        %4625 = vmatpush1.msra.mxu0 %v2713
        %4626 = vmatprep.subr.mxu0 %v2727
        %4627 = vmatpush1.msra.mxu0 %v2726
        %4628 = vmatprep.subr.mxu0 0.0
        %4629 = vmatpush1.msra.mxu0 0.0
        %4630 = vmatprep.subr.mxu0 0.0
        %4631 = vmatpush1.msra.mxu0 0.0
        %4632 = vmatprep.subr.mxu0 0.0
        %4633 = vmatpush1.msra.mxu0 0.0
        %4634 = vmatprep.subr.mxu0 0.0
        %4635 = vmatpush1.msra.mxu0 0.0
        %4636 = vmatprep.subr.mxu0 0.0
        %4637 = vmatpush1.msra.mxu0 0.0
        %4638 = vmatprep.subr.mxu0 0.0
        %4639 = vmatpush1.msra.mxu0 0.0
        %4640 = vmatprep.subr.mxu0 0.0
        %4641 = vmatpush1.msra.mxu0 0.0
        %4642 = vmatprep.subr.mxu0 0.0
        %4643 = vmatpush1.msra.mxu0 0.0
        %4644 = vmatprep.subr.mxu0 0.0
        %4645 = vmatpush1.msra.mxu0 0.0
        %4646 = vmatprep.subr.mxu0 0.0
        %4647 = vmatpush1.msra.mxu0 0.0
        %4648 = vmatprep.subr.mxu0 0.0
        %4649 = vmatpush1.msra.mxu0 0.0
        %4650 = vmatprep.subr.mxu0 0.0
        %4651 = vmatpush1.msra.mxu0 0.0
        %4652 = vmatprep.subr.mxu0 0.0
        %4653 = vmatpush1.msra.mxu0 0.0
        %4654 = vmatprep.subr.mxu0 0.0
        %4655 = vmatpush1.msra.mxu0 0.0
        %4656 = vmatprep.subr.mxu0 0.0
        %4657 = vmatpush1.msra.mxu0 0.0
        %4658 = vmatprep.subr.mxu0 0.0
        %4659 = vmatpush1.msra.mxu0 0.0
        %4660 = vmatprep.subr.mxu0 0.0
        %4661 = vmatpush1.msra.mxu0 0.0
        %4662 = vmatprep.subr.mxu0 0.0
        %4663 = vmatpush1.msra.mxu0 0.0
        %4664 = vmatprep.subr.mxu0 0.0
        %4665 = vmatpush1.msra.mxu0 0.0
        %4666 = vmatprep.subr.mxu0 0.0
        %4667 = vmatpush1.msra.mxu0 0.0
        %4668 = vmatprep.subr.mxu0 0.0
        %4669 = vmatpush1.msra.mxu0 0.0
        %4670 = vmatprep.subr.mxu0 0.0
        %4671 = vmatpush1.msra.mxu0 0.0
        %4672 = vmatprep.subr.mxu0 0.0
        %4673 = vmatpush1.msra.mxu0 0.0
        %4674 = vmatprep.subr.mxu0 0.0
        %4675 = vmatpush1.msra.mxu0 0.0
        %4676 = vmatprep.subr.mxu0 0.0
        %4677 = vmatpush1.msra.mxu0 0.0
        %4678 = vmatprep.subr.mxu0 0.0
        %4679 = vmatpush1.msra.mxu0 0.0
        %4680 = vmatprep.subr.mxu0 0.0
        %4681 = vmatpush1.msra.mxu0 0.0
        %4682 = vmatprep.subr.mxu0 0.0
        %4683 = vmatpush1.msra.mxu0 0.0
        %4684 = vmatprep.subr.mxu0 0.0
        %4685 = vmatpush1.msra.mxu0 0.0
        %4686 = vmatprep.subr.mxu0 0.0
        %4687 = vmatpush1.msra.mxu0 0.0
        %4688 = vmatprep.mubr.f32.mxu0 0.0
        %4689 = vmatmul.mubr.f32.gmra.mrb[0].mxu0 %v2806
        %v4690 = vpop.f32.mrb[0].mxu0
        %v4691 = vadd.f32 %v4530, %v4690
        %v4692 = vpop.f32.mrb[0].mxu0
        %v4693 = vadd.f32 %v4532, %v4692
        %4694 = vmatprep.mubr.f32.mxu0 0.0
        %4695 = vmatmul.mubr.f32.gmra.mrb[0].mxu0 %v2809
        %v4696 = vpop.f32.mrb[0].mxu0
        %v4697 = vadd.f32 %v4536, %v4696
        %v4698 = vpop.f32.mrb[0].mxu0
        %v4699 = vadd.f32 %v4538, %v4698
        %4700 = vmatprep.mubr.f32.mxu0 0.0
        %4701 = vmatmul.mubr.f32.gmra.mrb[0].mxu0 %v2812
        %v4702 = vpop.f32.mrb[0].mxu0
        %v4703 = vadd.f32 %v4542, %v4702
        %v4704 = vpop.f32.mrb[0].mxu0
        %v4705 = vadd.f32 %v4544, %v4704
        %4706 = vmatprep.mubr.f32.mxu0 0.0
        %4707 = vmatmul.mubr.f32.gmra.mrb[0].mxu0 %v2815
        %v4708 = vpop.f32.mrb[0].mxu0
        %v4709 = vadd.f32 %v4548, %v4708
        %v4710 = vpop.f32.mrb[0].mxu0
        %v4711 = vadd.f32 %v4550, %v4710
        %4712 = vmatprep.mubr.f32.mxu0 0.0
        %4713 = vmatmul.mubr.f32.gmra.mrb[0].mxu0 %v2818
        %v4714 = vpop.f32.mrb[0].mxu0
        %v4715 = vadd.f32 %v4554, %v4714
        %v4716 = vpop.f32.mrb[0].mxu0
        %v4717 = vadd.f32 %v4556, %v4716
        %4718 = vmatprep.mubr.f32.mxu0 0.0
        %4719 = vmatmul.mubr.f32.gmra.mrb[0].mxu0 %v2821
        %v4720 = vpop.f32.mrb[0].mxu0
        %v4721 = vadd.f32 %v4560, %v4720
        %v4722 = vpop.f32.mrb[0].mxu0
        %v4723 = vadd.f32 %v4562, %v4722
        %4724 = vmatprep.mubr.f32.mxu0 0.0
        %4725 = vmatmul.mubr.f32.gmra.mrb[0].mxu0 %v2824
        %v4726 = vpop.f32.mrb[0].mxu0
        %v4727 = vadd.f32 %v4566, %v4726
        %v4728 = vpop.f32.mrb[0].mxu0
        %v4729 = vadd.f32 %v4568, %v4728
        %4730 = vmatprep.mubr.f32.mxu0 0.0
        %4731 = vmatmul.mubr.f32.gmra.mrb[0].mxu0 %v2827
        %v4732 = vpop.f32.mrb[0].mxu0
        %v4733 = vadd.f32 %v4572, %v4732
        %v4734 = vpop.f32.mrb[0].mxu0
        %v4735 = vadd.f32 %v4574, %v4734
        %4736 = vmatprep.mubr.f32.mxu0 0.0
        %4737 = vmatmul.mubr.f32.gmra.mrb[0].mxu0 %v2830
        %v4738 = vpop.f32.mrb[0].mxu0
        %v4739 = vadd.f32 %v4578, %v4738
        %v4740 = vpop.f32.mrb[0].mxu0
        %v4741 = vadd.f32 %v4580, %v4740
        %4742 = vmatprep.mubr.f32.mxu0 0.0
        %4743 = vmatmul.mubr.f32.gmra.mrb[0].mxu0 %v2833
        %v4744 = vpop.f32.mrb[0].mxu0
        %v4745 = vadd.f32 %v4584, %v4744
        %v4746 = vpop.f32.mrb[0].mxu0
        %v4747 = vadd.f32 %v4586, %v4746
        %4748 = vmatprep.mubr.f32.mxu0 0.0
        %4749 = vmatmul.mubr.f32.gmra.mrb[0].mxu0 %v2836
        %v4750 = vpop.f32.mrb[0].mxu0
        %v4751 = vadd.f32 %v4590, %v4750
        %v4752 = vpop.f32.mrb[0].mxu0
        %v4753 = vadd.f32 %v4592, %v4752
        %4754 = vmatprep.mubr.f32.mxu0 0.0
        %4755 = vmatmul.mubr.f32.gmra.mrb[0].mxu0 %v2839
        %v4756 = vpop.f32.mrb[0].mxu0
        %v4757 = vadd.f32 %v4596, %v4756
        %v4758 = vpop.f32.mrb[0].mxu0
        %v4759 = vadd.f32 %v4598, %v4758
        %4760 = vmatprep.mubr.f32.mxu0 0.0
        %4761 = vmatmul.mubr.f32.gmra.mrb[0].mxu0 %v2842
        %v4762 = vpop.f32.mrb[0].mxu0
        %v4763 = vadd.f32 %v4602, %v4762
        %v4764 = vpop.f32.mrb[0].mxu0
        %v4765 = vadd.f32 %v4604, %v4764
        %4766 = vmatprep.mubr.f32.mxu0 0.0
        %4767 = vmatmul.mubr.f32.gmra.mrb[0].mxu0 %v2845
        %v4768 = vpop.f32.mrb[0].mxu0
        %v4769 = vadd.f32 %v4608, %v4768
        %v4770 = vpop.f32.mrb[0].mxu0
        %v4771 = vadd.f32 %v4610, %v4770
        %4772 = vmatprep.mubr.f32.mxu0 0.0
        %4773 = vmatmul.mubr.f32.gmra.mrb[0].mxu0 %v2848
        %v4774 = vpop.f32.mrb[0].mxu0
        %v4775 = vadd.f32 %v4614, %v4774
        %v4776 = vpop.f32.mrb[0].mxu0
        %v4777 = vadd.f32 %v4616, %v4776
        %4778 = vmatprep.mubr.f32.mxu0 0.0
        %4779 = vmatmul.mubr.f32.gmra.mrb[0].mxu0 %v2851
        %v4780 = vpop.f32.mrb[0].mxu0
        %v4781 = vadd.f32 %v4620, %v4780
        %v4782 = vpop.f32.mrb[0].mxu0
        %v4783 = vadd.f32 %v4622, %v4782
        %4784 = vdwg.mxu0
        %4785 = vmatprep.subr.mxu0 %v1468
        %4786 = vmatpush1.msra.mxu0 %v1467
        %4787 = vmatprep.subr.mxu0 %v1481
        %4788 = vmatpush1.msra.mxu0 %v1480
        %4789 = vmatprep.subr.mxu0 %v1494
        %4790 = vmatpush1.msra.mxu0 %v1493
        %4791 = vmatprep.subr.mxu0 %v1507
        %4792 = vmatpush1.msra.mxu0 %v1506
        %4793 = vmatprep.subr.mxu0 %v1520
        %4794 = vmatpush1.msra.mxu0 %v1519
        %4795 = vmatprep.subr.mxu0 %v1533
        %4796 = vmatpush1.msra.mxu0 %v1532
        %4797 = vmatprep.subr.mxu0 %v1546
        %4798 = vmatpush1.msra.mxu0 %v1545
        %4799 = vmatprep.subr.mxu0 %v1559
        %4800 = vmatpush1.msra.mxu0 %v1558
        %4801 = vmatprep.subr.mxu0 %v1572
        %4802 = vmatpush1.msra.mxu0 %v1571
        %4803 = vmatprep.subr.mxu0 %v1585
        %4804 = vmatpush1.msra.mxu0 %v1584
        %4805 = vmatprep.subr.mxu0 %v1598
        %4806 = vmatpush1.msra.mxu0 %v1597
        %4807 = vmatprep.subr.mxu0 %v1611
        %4808 = vmatpush1.msra.mxu0 %v1610
        %4809 = vmatprep.subr.mxu0 %v1624
        %4810 = vmatpush1.msra.mxu0 %v1623
        %4811 = vmatprep.subr.mxu0 %v1637
        %4812 = vmatpush1.msra.mxu0 %v1636
        %4813 = vmatprep.subr.mxu0 %v1650
        %4814 = vmatpush1.msra.mxu0 %v1649
        %4815 = vmatprep.subr.mxu0 %v1663
        %4816 = vmatpush1.msra.mxu0 %v1662
        %4817 = vmatprep.subr.mxu0 %v1676
        %4818 = vmatpush1.msra.mxu0 %v1675
        %4819 = vmatprep.subr.mxu0 %v1689
        %4820 = vmatpush1.msra.mxu0 %v1688
        %4821 = vmatprep.subr.mxu0 %v1702
        %4822 = vmatpush1.msra.mxu0 %v1701
        %4823 = vmatprep.subr.mxu0 %v1715
        %4824 = vmatpush1.msra.mxu0 %v1714
        %4825 = vmatprep.subr.mxu0 %v1728
        %4826 = vmatpush1.msra.mxu0 %v1727
        %4827 = vmatprep.subr.mxu0 %v1741
        %4828 = vmatpush1.msra.mxu0 %v1740
        %4829 = vmatprep.subr.mxu0 %v1754
        %4830 = vmatpush1.msra.mxu0 %v1753
        %4831 = vmatprep.subr.mxu0 %v1767
        %4832 = vmatpush1.msra.mxu0 %v1766
        %4833 = vmatprep.subr.mxu0 %v1780
        %4834 = vmatpush1.msra.mxu0 %v1779
        %4835 = vmatprep.subr.mxu0 %v1793
        %4836 = vmatpush1.msra.mxu0 %v1792
        %4837 = vmatprep.subr.mxu0 %v1806
        %4838 = vmatpush1.msra.mxu0 %v1805
        %4839 = vmatprep.subr.mxu0 %v1819
        %4840 = vmatpush1.msra.mxu0 %v1818
        %4841 = vmatprep.subr.mxu0 %v1832
        %4842 = vmatpush1.msra.mxu0 %v1831
        %4843 = vmatprep.subr.mxu0 %v1845
        %4844 = vmatpush1.msra.mxu0 %v1844
        %4845 = vmatprep.subr.mxu0 %v1858
        %4846 = vmatpush1.msra.mxu0 %v1857
        %4847 = vmatprep.subr.mxu0 %v1871
        %4848 = vmatpush1.msra.mxu0 %v1870
        %4849 = vmatprep.mubr.f32.mxu0 %v1350
        %4850 = vmatmul.mubr.f32.gmra.mrb[0].mxu0 %v1349
        %v4851 = vpop.f32.mrb[0].mxu0
        %v4852 = vadd.f32 %v2766, %v4851
        %v4853 = vpop.f32.mrb[0].mxu0
        %v4854 = vadd.f32 %v2770, %v4853
        %4855 = vmatprep.mubr.f32.mxu0 %v1357
        %4856 = vmatmul.mubr.f32.gmra.mrb[0].mxu0 %v1356
        %v4857 = vpop.f32.mrb[0].mxu0
        %v4858 = vadd.f32 %v2766, %v4857
        %v4859 = vpop.f32.mrb[0].mxu0
        %v4860 = vadd.f32 %v2770, %v4859
        %4861 = vmatprep.mubr.f32.mxu0 %v1364
        %4862 = vmatmul.mubr.f32.gmra.mrb[0].mxu0 %v1363
        %v4863 = vpop.f32.mrb[0].mxu0
        %v4864 = vadd.f32 %v2766, %v4863
        %v4865 = vpop.f32.mrb[0].mxu0
        %v4866 = vadd.f32 %v2770, %v4865
        %4867 = vmatprep.mubr.f32.mxu0 %v1371
        %4868 = vmatmul.mubr.f32.gmra.mrb[0].mxu0 %v1370
        %v4869 = vpop.f32.mrb[0].mxu0
        %v4870 = vadd.f32 %v2766, %v4869
        %v4871 = vpop.f32.mrb[0].mxu0
        %v4872 = vadd.f32 %v2770, %v4871
        %4873 = vmatprep.mubr.f32.mxu0 %v1378
        %4874 = vmatmul.mubr.f32.gmra.mrb[0].mxu0 %v1377
        %v4875 = vpop.f32.mrb[0].mxu0
        %v4876 = vadd.f32 %v2766, %v4875
        %v4877 = vpop.f32.mrb[0].mxu0
        %v4878 = vadd.f32 %v2770, %v4877
        %4879 = vmatprep.mubr.f32.mxu0 %v1385
        %4880 = vmatmul.mubr.f32.gmra.mrb[0].mxu0 %v1384
        %v4881 = vpop.f32.mrb[0].mxu0
        %v4882 = vadd.f32 %v2766, %v4881
        %v4883 = vpop.f32.mrb[0].mxu0
        %v4884 = vadd.f32 %v2770, %v4883
        %4885 = vmatprep.mubr.f32.mxu0 %v1392
        %4886 = vmatmul.mubr.f32.gmra.mrb[0].mxu0 %v1391
        %v4887 = vpop.f32.mrb[0].mxu0
        %v4888 = vadd.f32 %v2766, %v4887
        %v4889 = vpop.f32.mrb[0].mxu0
        %v4890 = vadd.f32 %v2770, %v4889
        %4891 = vmatprep.mubr.f32.mxu0 %v1399
        %4892 = vmatmul.mubr.f32.gmra.mrb[0].mxu0 %v1398
        %v4893 = vpop.f32.mrb[0].mxu0
        %v4894 = vadd.f32 %v2766, %v4893
        %v4895 = vpop.f32.mrb[0].mxu0
        %v4896 = vadd.f32 %v2770, %v4895
        %4897 = vmatprep.mubr.f32.mxu0 %v1406
        %4898 = vmatmul.mubr.f32.gmra.mrb[0].mxu0 %v1405
        %v4899 = vpop.f32.mrb[0].mxu0
        %v4900 = vadd.f32 %v2766, %v4899
        %v4901 = vpop.f32.mrb[0].mxu0
        %v4902 = vadd.f32 %v2770, %v4901
        %4903 = vmatprep.mubr.f32.mxu0 %v1413
        %4904 = vmatmul.mubr.f32.gmra.mrb[0].mxu0 %v1412
        %v4905 = vpop.f32.mrb[0].mxu0
        %v4906 = vadd.f32 %v2766, %v4905
        %v4907 = vpop.f32.mrb[0].mxu0
        %v4908 = vadd.f32 %v2770, %v4907
        %4909 = vmatprep.mubr.f32.mxu0 %v1420
        %4910 = vmatmul.mubr.f32.gmra.mrb[0].mxu0 %v1419
        %v4911 = vpop.f32.mrb[0].mxu0
        %v4912 = vadd.f32 %v2766, %v4911
        %v4913 = vpop.f32.mrb[0].mxu0
        %v4914 = vadd.f32 %v2770, %v4913
        %4915 = vmatprep.mubr.f32.mxu0 %v1427
        %4916 = vmatmul.mubr.f32.gmra.mrb[0].mxu0 %v1426
        %v4917 = vpop.f32.mrb[0].mxu0
        %v4918 = vadd.f32 %v2766, %v4917
        %v4919 = vpop.f32.mrb[0].mxu0
        %v4920 = vadd.f32 %v2770, %v4919
        %4921 = vmatprep.mubr.f32.mxu0 %v1434
        %4922 = vmatmul.mubr.f32.gmra.mrb[0].mxu0 %v1433
        %v4923 = vpop.f32.mrb[0].mxu0
        %v4924 = vadd.f32 %v2766, %v4923
        %v4925 = vpop.f32.mrb[0].mxu0
        %v4926 = vadd.f32 %v2770, %v4925
        %4927 = vmatprep.mubr.f32.mxu0 %v1441
        %4928 = vmatmul.mubr.f32.gmra.mrb[0].mxu0 %v1440
        %v4929 = vpop.f32.mrb[0].mxu0
        %v4930 = vadd.f32 %v2766, %v4929
        %v4931 = vpop.f32.mrb[0].mxu0
        %v4932 = vadd.f32 %v2770, %v4931
        %4933 = vmatprep.mubr.f32.mxu0 %v1448
        %4934 = vmatmul.mubr.f32.gmra.mrb[0].mxu0 %v1447
        %v4935 = vpop.f32.mrb[0].mxu0
        %v4936 = vadd.f32 %v2766, %v4935
        %v4937 = vpop.f32.mrb[0].mxu0
        %v4938 = vadd.f32 %v2770, %v4937
        %4939 = vmatprep.mubr.f32.mxu0 %v1455
        %4940 = vmatmul.mubr.f32.gmra.mrb[0].mxu0 %v1454
        %v4941 = vpop.f32.mrb[0].mxu0
        %v4942 = vadd.f32 %v2766, %v4941
        %v4943 = vpop.f32.mrb[0].mxu0
        %v4944 = vadd.f32 %v2770, %v4943
        %4945 = vdwg.mxu0
        %4946 = vmatprep.subr.mxu0 %v1884
        %4947 = vmatpush1.msra.mxu0 %v1883
        %4948 = vmatprep.subr.mxu0 %v1897
        %4949 = vmatpush1.msra.mxu0 %v1896
        %4950 = vmatprep.subr.mxu0 %v1910
        %4951 = vmatpush1.msra.mxu0 %v1909
        %4952 = vmatprep.subr.mxu0 %v1923
        %4953 = vmatpush1.msra.mxu0 %v1922
        %4954 = vmatprep.subr.mxu0 %v1936
        %4955 = vmatpush1.msra.mxu0 %v1935
        %4956 = vmatprep.subr.mxu0 %v1949
        %4957 = vmatpush1.msra.mxu0 %v1948
        %4958 = vmatprep.subr.mxu0 %v1962
        %4959 = vmatpush1.msra.mxu0 %v1961
        %4960 = vmatprep.subr.mxu0 %v1975
        %4961 = vmatpush1.msra.mxu0 %v1974
        %4962 = vmatprep.subr.mxu0 %v1988
        %4963 = vmatpush1.msra.mxu0 %v1987
        %4964 = vmatprep.subr.mxu0 %v2001
        %4965 = vmatpush1.msra.mxu0 %v2000
        %4966 = vmatprep.subr.mxu0 %v2014
        %4967 = vmatpush1.msra.mxu0 %v2013
        %4968 = vmatprep.subr.mxu0 %v2027
        %4969 = vmatpush1.msra.mxu0 %v2026
        %4970 = vmatprep.subr.mxu0 %v2040
        %4971 = vmatpush1.msra.mxu0 %v2039
        %4972 = vmatprep.subr.mxu0 %v2053
        %4973 = vmatpush1.msra.mxu0 %v2052
        %4974 = vmatprep.subr.mxu0 %v2066
        %4975 = vmatpush1.msra.mxu0 %v2065
        %4976 = vmatprep.subr.mxu0 %v2079
        %4977 = vmatpush1.msra.mxu0 %v2078
        %4978 = vmatprep.subr.mxu0 %v2092
        %4979 = vmatpush1.msra.mxu0 %v2091
        %4980 = vmatprep.subr.mxu0 %v2105
        %4981 = vmatpush1.msra.mxu0 %v2104
        %4982 = vmatprep.subr.mxu0 %v2118
        %4983 = vmatpush1.msra.mxu0 %v2117
        %4984 = vmatprep.subr.mxu0 %v2131
        %4985 = vmatpush1.msra.mxu0 %v2130
        %4986 = vmatprep.subr.mxu0 %v2144
        %4987 = vmatpush1.msra.mxu0 %v2143
        %4988 = vmatprep.subr.mxu0 %v2157
        %4989 = vmatpush1.msra.mxu0 %v2156
        %4990 = vmatprep.subr.mxu0 %v2170
        %4991 = vmatpush1.msra.mxu0 %v2169
        %4992 = vmatprep.subr.mxu0 %v2183
        %4993 = vmatpush1.msra.mxu0 %v2182
        %4994 = vmatprep.subr.mxu0 %v2196
        %4995 = vmatpush1.msra.mxu0 %v2195
        %4996 = vmatprep.subr.mxu0 %v2209
        %4997 = vmatpush1.msra.mxu0 %v2208
        %4998 = vmatprep.subr.mxu0 %v2222
        %4999 = vmatpush1.msra.mxu0 %v2221
        %5000 = vmatprep.subr.mxu0 %v2235
        %5001 = vmatpush1.msra.mxu0 %v2234
        %5002 = vmatprep.subr.mxu0 %v2248
        %5003 = vmatpush1.msra.mxu0 %v2247
        %5004 = vmatprep.subr.mxu0 %v2261
        %5005 = vmatpush1.msra.mxu0 %v2260
        %5006 = vmatprep.subr.mxu0 %v2274
        %5007 = vmatpush1.msra.mxu0 %v2273
        %5008 = vmatprep.subr.mxu0 %v2287
        %5009 = vmatpush1.msra.mxu0 %v2286
        %5010 = vmatprep.mubr.f32.mxu0 %v1352
        %5011 = vmatmul.mubr.f32.gmra.mrb[0].mxu0 %v1351
        %v5012 = vpop.f32.mrb[0].mxu0
        %v5013 = vadd.f32 %v4852, %v5012
        %v5014 = vpop.f32.mrb[0].mxu0
        %v5015 = vadd.f32 %v4854, %v5014
        %5016 = vmatprep.mubr.f32.mxu0 %v1359
        %5017 = vmatmul.mubr.f32.gmra.mrb[0].mxu0 %v1358
        %v5018 = vpop.f32.mrb[0].mxu0
        %v5019 = vadd.f32 %v4858, %v5018
        %v5020 = vpop.f32.mrb[0].mxu0
        %v5021 = vadd.f32 %v4860, %v5020
        %5022 = vmatprep.mubr.f32.mxu0 %v1366
        %5023 = vmatmul.mubr.f32.gmra.mrb[0].mxu0 %v1365
        %v5024 = vpop.f32.mrb[0].mxu0
        %v5025 = vadd.f32 %v4864, %v5024
        %v5026 = vpop.f32.mrb[0].mxu0
        %v5027 = vadd.f32 %v4866, %v5026
        %5028 = vmatprep.mubr.f32.mxu0 %v1373
        %5029 = vmatmul.mubr.f32.gmra.mrb[0].mxu0 %v1372
        %v5030 = vpop.f32.mrb[0].mxu0
        %v5031 = vadd.f32 %v4870, %v5030
        %v5032 = vpop.f32.mrb[0].mxu0
        %v5033 = vadd.f32 %v4872, %v5032
        %5034 = vmatprep.mubr.f32.mxu0 %v1380
        %5035 = vmatmul.mubr.f32.gmra.mrb[0].mxu0 %v1379
        %v5036 = vpop.f32.mrb[0].mxu0
        %v5037 = vadd.f32 %v4876, %v5036
        %v5038 = vpop.f32.mrb[0].mxu0
        %v5039 = vadd.f32 %v4878, %v5038
        %5040 = vmatprep.mubr.f32.mxu0 %v1387
        %5041 = vmatmul.mubr.f32.gmra.mrb[0].mxu0 %v1386
        %v5042 = vpop.f32.mrb[0].mxu0
        %v5043 = vadd.f32 %v4882, %v5042
        %v5044 = vpop.f32.mrb[0].mxu0
        %v5045 = vadd.f32 %v4884, %v5044
        %5046 = vmatprep.mubr.f32.mxu0 %v1394
        %5047 = vmatmul.mubr.f32.gmra.mrb[0].mxu0 %v1393
        %v5048 = vpop.f32.mrb[0].mxu0
        %v5049 = vadd.f32 %v4888, %v5048
        %v5050 = vpop.f32.mrb[0].mxu0
        %v5051 = vadd.f32 %v4890, %v5050
        %5052 = vmatprep.mubr.f32.mxu0 %v1401
        %5053 = vmatmul.mubr.f32.gmra.mrb[0].mxu0 %v1400
        %v5054 = vpop.f32.mrb[0].mxu0
        %v5055 = vadd.f32 %v4894, %v5054
        %v5056 = vpop.f32.mrb[0].mxu0
        %v5057 = vadd.f32 %v4896, %v5056
        %5058 = vmatprep.mubr.f32.mxu0 %v1408
        %5059 = vmatmul.mubr.f32.gmra.mrb[0].mxu0 %v1407
        %v5060 = vpop.f32.mrb[0].mxu0
        %v5061 = vadd.f32 %v4900, %v5060
        %v5062 = vpop.f32.mrb[0].mxu0
        %v5063 = vadd.f32 %v4902, %v5062
        %5064 = vmatprep.mubr.f32.mxu0 %v1415
        %5065 = vmatmul.mubr.f32.gmra.mrb[0].mxu0 %v1414
        %v5066 = vpop.f32.mrb[0].mxu0
        %v5067 = vadd.f32 %v4906, %v5066
        %v5068 = vpop.f32.mrb[0].mxu0
        %v5069 = vadd.f32 %v4908, %v5068
        %5070 = vmatprep.mubr.f32.mxu0 %v1422
        %5071 = vmatmul.mubr.f32.gmra.mrb[0].mxu0 %v1421
        %v5072 = vpop.f32.mrb[0].mxu0
        %v5073 = vadd.f32 %v4912, %v5072
        %v5074 = vpop.f32.mrb[0].mxu0
        %v5075 = vadd.f32 %v4914, %v5074
        %5076 = vmatprep.mubr.f32.mxu0 %v1429
        %5077 = vmatmul.mubr.f32.gmra.mrb[0].mxu0 %v1428
        %v5078 = vpop.f32.mrb[0].mxu0
        %v5079 = vadd.f32 %v4918, %v5078
        %v5080 = vpop.f32.mrb[0].mxu0
        %v5081 = vadd.f32 %v4920, %v5080
        %5082 = vmatprep.mubr.f32.mxu0 %v1436
        %5083 = vmatmul.mubr.f32.gmra.mrb[0].mxu0 %v1435
        %v5084 = vpop.f32.mrb[0].mxu0
        %v5085 = vadd.f32 %v4924, %v5084
        %v5086 = vpop.f32.mrb[0].mxu0
        %v5087 = vadd.f32 %v4926, %v5086
        %5088 = vmatprep.mubr.f32.mxu0 %v1443
        %5089 = vmatmul.mubr.f32.gmra.mrb[0].mxu0 %v1442
        %v5090 = vpop.f32.mrb[0].mxu0
        %v5091 = vadd.f32 %v4930, %v5090
        %v5092 = vpop.f32.mrb[0].mxu0
        %v5093 = vadd.f32 %v4932, %v5092
        %5094 = vmatprep.mubr.f32.mxu0 %v1450
        %5095 = vmatmul.mubr.f32.gmra.mrb[0].mxu0 %v1449
        %v5096 = vpop.f32.mrb[0].mxu0
        %v5097 = vadd.f32 %v4936, %v5096
        %v5098 = vpop.f32.mrb[0].mxu0
        %v5099 = vadd.f32 %v4938, %v5098
        %5100 = vmatprep.mubr.f32.mxu0 %v1457
        %5101 = vmatmul.mubr.f32.gmra.mrb[0].mxu0 %v1456
        %v5102 = vpop.f32.mrb[0].mxu0
        %v5103 = vadd.f32 %v4942, %v5102
        %v5104 = vpop.f32.mrb[0].mxu0
        %v5105 = vadd.f32 %v4944, %v5104
        %5106 = vdwg.mxu0
        %5107 = vmatprep.subr.mxu0 %v2300
        %5108 = vmatpush1.msra.mxu0 %v2299
        %5109 = vmatprep.subr.mxu0 %v2313
        %5110 = vmatpush1.msra.mxu0 %v2312
        %5111 = vmatprep.subr.mxu0 %v2326
        %5112 = vmatpush1.msra.mxu0 %v2325
        %5113 = vmatprep.subr.mxu0 %v2339
        %5114 = vmatpush1.msra.mxu0 %v2338
        %5115 = vmatprep.subr.mxu0 %v2352
        %5116 = vmatpush1.msra.mxu0 %v2351
        %5117 = vmatprep.subr.mxu0 %v2365
        %5118 = vmatpush1.msra.mxu0 %v2364
        %5119 = vmatprep.subr.mxu0 %v2378
        %5120 = vmatpush1.msra.mxu0 %v2377
        %5121 = vmatprep.subr.mxu0 %v2391
        %5122 = vmatpush1.msra.mxu0 %v2390
        %5123 = vmatprep.subr.mxu0 %v2404
        %5124 = vmatpush1.msra.mxu0 %v2403
        %5125 = vmatprep.subr.mxu0 %v2417
        %5126 = vmatpush1.msra.mxu0 %v2416
        %5127 = vmatprep.subr.mxu0 %v2430
        %5128 = vmatpush1.msra.mxu0 %v2429
        %5129 = vmatprep.subr.mxu0 %v2443
        %5130 = vmatpush1.msra.mxu0 %v2442
        %5131 = vmatprep.subr.mxu0 %v2456
        %5132 = vmatpush1.msra.mxu0 %v2455
        %5133 = vmatprep.subr.mxu0 %v2469
        %5134 = vmatpush1.msra.mxu0 %v2468
        %5135 = vmatprep.subr.mxu0 %v2482
        %5136 = vmatpush1.msra.mxu0 %v2481
        %5137 = vmatprep.subr.mxu0 %v2495
        %5138 = vmatpush1.msra.mxu0 %v2494
        %5139 = vmatprep.subr.mxu0 %v2508
        %5140 = vmatpush1.msra.mxu0 %v2507
        %5141 = vmatprep.subr.mxu0 %v2521
        %5142 = vmatpush1.msra.mxu0 %v2520
        %5143 = vmatprep.subr.mxu0 %v2534
        %5144 = vmatpush1.msra.mxu0 %v2533
        %5145 = vmatprep.subr.mxu0 %v2547
        %5146 = vmatpush1.msra.mxu0 %v2546
        %5147 = vmatprep.subr.mxu0 %v2560
        %5148 = vmatpush1.msra.mxu0 %v2559
        %5149 = vmatprep.subr.mxu0 %v2573
        %5150 = vmatpush1.msra.mxu0 %v2572
        %5151 = vmatprep.subr.mxu0 %v2586
        %5152 = vmatpush1.msra.mxu0 %v2585
        %5153 = vmatprep.subr.mxu0 %v2599
        %5154 = vmatpush1.msra.mxu0 %v2598
        %5155 = vmatprep.subr.mxu0 %v2612
        %5156 = vmatpush1.msra.mxu0 %v2611
        %5157 = vmatprep.subr.mxu0 %v2625
        %5158 = vmatpush1.msra.mxu0 %v2624
        %5159 = vmatprep.subr.mxu0 %v2638
        %5160 = vmatpush1.msra.mxu0 %v2637
        %5161 = vmatprep.subr.mxu0 %v2651
        %5162 = vmatpush1.msra.mxu0 %v2650
        %5163 = vmatprep.subr.mxu0 %v2664
        %5164 = vmatpush1.msra.mxu0 %v2663
        %5165 = vmatprep.subr.mxu0 %v2677
        %5166 = vmatpush1.msra.mxu0 %v2676
        %5167 = vmatprep.subr.mxu0 %v2690
        %5168 = vmatpush1.msra.mxu0 %v2689
        %5169 = vmatprep.subr.mxu0 %v2703
        %5170 = vmatpush1.msra.mxu0 %v2702
        %5171 = vmatprep.mubr.f32.mxu0 %v1354
        %5172 = vmatmul.mubr.f32.gmra.mrb[0].mxu0 %v1353
        %v5173 = vpop.f32.mrb[0].mxu0
        %v5174 = vadd.f32 %v5013, %v5173
        %v5175 = vpop.f32.mrb[0].mxu0
        %v5176 = vadd.f32 %v5015, %v5175
        %5177 = vmatprep.mubr.f32.mxu0 %v1361
        %5178 = vmatmul.mubr.f32.gmra.mrb[0].mxu0 %v1360
        %v5179 = vpop.f32.mrb[0].mxu0
        %v5180 = vadd.f32 %v5019, %v5179
        %v5181 = vpop.f32.mrb[0].mxu0
        %v5182 = vadd.f32 %v5021, %v5181
        %5183 = vmatprep.mubr.f32.mxu0 %v1368
        %5184 = vmatmul.mubr.f32.gmra.mrb[0].mxu0 %v1367
        %v5185 = vpop.f32.mrb[0].mxu0
        %v5186 = vadd.f32 %v5025, %v5185
        %v5187 = vpop.f32.mrb[0].mxu0
        %v5188 = vadd.f32 %v5027, %v5187
        %5189 = vmatprep.mubr.f32.mxu0 %v1375
        %5190 = vmatmul.mubr.f32.gmra.mrb[0].mxu0 %v1374
        %v5191 = vpop.f32.mrb[0].mxu0
        %v5192 = vadd.f32 %v5031, %v5191
        %v5193 = vpop.f32.mrb[0].mxu0
        %v5194 = vadd.f32 %v5033, %v5193
        %5195 = vmatprep.mubr.f32.mxu0 %v1382
        %5196 = vmatmul.mubr.f32.gmra.mrb[0].mxu0 %v1381
        %v5197 = vpop.f32.mrb[0].mxu0
        %v5198 = vadd.f32 %v5037, %v5197
        %v5199 = vpop.f32.mrb[0].mxu0
        %v5200 = vadd.f32 %v5039, %v5199
        %5201 = vmatprep.mubr.f32.mxu0 %v1389
        %5202 = vmatmul.mubr.f32.gmra.mrb[0].mxu0 %v1388
        %v5203 = vpop.f32.mrb[0].mxu0
        %v5204 = vadd.f32 %v5043, %v5203
        %v5205 = vpop.f32.mrb[0].mxu0
        %v5206 = vadd.f32 %v5045, %v5205
        %5207 = vmatprep.mubr.f32.mxu0 %v1396
        %5208 = vmatmul.mubr.f32.gmra.mrb[0].mxu0 %v1395
        %v5209 = vpop.f32.mrb[0].mxu0
        %v5210 = vadd.f32 %v5049, %v5209
        %v5211 = vpop.f32.mrb[0].mxu0
        %v5212 = vadd.f32 %v5051, %v5211
        %5213 = vmatprep.mubr.f32.mxu0 %v1403
        %5214 = vmatmul.mubr.f32.gmra.mrb[0].mxu0 %v1402
        %v5215 = vpop.f32.mrb[0].mxu0
        %v5216 = vadd.f32 %v5055, %v5215
        %v5217 = vpop.f32.mrb[0].mxu0
        %v5218 = vadd.f32 %v5057, %v5217
        %5219 = vmatprep.mubr.f32.mxu0 %v1410
        %5220 = vmatmul.mubr.f32.gmra.mrb[0].mxu0 %v1409
        %v5221 = vpop.f32.mrb[0].mxu0
        %v5222 = vadd.f32 %v5061, %v5221
        %v5223 = vpop.f32.mrb[0].mxu0
        %v5224 = vadd.f32 %v5063, %v5223
        %5225 = vmatprep.mubr.f32.mxu0 %v1417
        %5226 = vmatmul.mubr.f32.gmra.mrb[0].mxu0 %v1416
        %v5227 = vpop.f32.mrb[0].mxu0
        %v5228 = vadd.f32 %v5067, %v5227
        %v5229 = vpop.f32.mrb[0].mxu0
        %v5230 = vadd.f32 %v5069, %v5229
        %5231 = vmatprep.mubr.f32.mxu0 %v1424
        %5232 = vmatmul.mubr.f32.gmra.mrb[0].mxu0 %v1423
        %v5233 = vpop.f32.mrb[0].mxu0
        %v5234 = vadd.f32 %v5073, %v5233
        %v5235 = vpop.f32.mrb[0].mxu0
        %v5236 = vadd.f32 %v5075, %v5235
        %5237 = vmatprep.mubr.f32.mxu0 %v1431
        %5238 = vmatmul.mubr.f32.gmra.mrb[0].mxu0 %v1430
        %v5239 = vpop.f32.mrb[0].mxu0
        %v5240 = vadd.f32 %v5079, %v5239
        %v5241 = vpop.f32.mrb[0].mxu0
        %v5242 = vadd.f32 %v5081, %v5241
        %5243 = vmatprep.mubr.f32.mxu0 %v1438
        %5244 = vmatmul.mubr.f32.gmra.mrb[0].mxu0 %v1437
        %v5245 = vpop.f32.mrb[0].mxu0
        %v5246 = vadd.f32 %v5085, %v5245
        %v5247 = vpop.f32.mrb[0].mxu0
        %v5248 = vadd.f32 %v5087, %v5247
        %5249 = vmatprep.mubr.f32.mxu0 %v1445
        %5250 = vmatmul.mubr.f32.gmra.mrb[0].mxu0 %v1444
        %v5251 = vpop.f32.mrb[0].mxu0
        %v5252 = vadd.f32 %v5091, %v5251
        %v5253 = vpop.f32.mrb[0].mxu0
        %v5254 = vadd.f32 %v5093, %v5253
        %5255 = vmatprep.mubr.f32.mxu0 %v1452
        %5256 = vmatmul.mubr.f32.gmra.mrb[0].mxu0 %v1451
        %v5257 = vpop.f32.mrb[0].mxu0
        %v5258 = vadd.f32 %v5097, %v5257
        %v5259 = vpop.f32.mrb[0].mxu0
        %v5260 = vadd.f32 %v5099, %v5259
        %5261 = vmatprep.mubr.f32.mxu0 %v1459
        %5262 = vmatmul.mubr.f32.gmra.mrb[0].mxu0 %v1458
        %v5263 = vpop.f32.mrb[0].mxu0
        %v5264 = vadd.f32 %v5103, %v5263
        %v5265 = vpop.f32.mrb[0].mxu0
        %v5266 = vadd.f32 %v5105, %v5265
        %5267 = vdwg.mxu0
        %5268 = vmatprep.subr.mxu0 %v2716
        %5269 = vmatpush1.msra.mxu0 %v2715
        %5270 = vmatprep.subr.mxu0 %v2729
        %5271 = vmatpush1.msra.mxu0 %v2728
        %5272 = vmatprep.subr.mxu0 0.0
        %5273 = vmatpush1.msra.mxu0 0.0
        %5274 = vmatprep.subr.mxu0 0.0
        %5275 = vmatpush1.msra.mxu0 0.0
        %5276 = vmatprep.subr.mxu0 0.0
        %5277 = vmatpush1.msra.mxu0 0.0
        %5278 = vmatprep.subr.mxu0 0.0
        %5279 = vmatpush1.msra.mxu0 0.0
        %5280 = vmatprep.subr.mxu0 0.0
        %5281 = vmatpush1.msra.mxu0 0.0
        %5282 = vmatprep.subr.mxu0 0.0
        %5283 = vmatpush1.msra.mxu0 0.0
        %5284 = vmatprep.subr.mxu0 0.0
        %5285 = vmatpush1.msra.mxu0 0.0
        %5286 = vmatprep.subr.mxu0 0.0
        %5287 = vmatpush1.msra.mxu0 0.0
        %5288 = vmatprep.subr.mxu0 0.0
        %5289 = vmatpush1.msra.mxu0 0.0
        %5290 = vmatprep.subr.mxu0 0.0
        %5291 = vmatpush1.msra.mxu0 0.0
        %5292 = vmatprep.subr.mxu0 0.0
        %5293 = vmatpush1.msra.mxu0 0.0
        %5294 = vmatprep.subr.mxu0 0.0
        %5295 = vmatpush1.msra.mxu0 0.0
        %5296 = vmatprep.subr.mxu0 0.0
        %5297 = vmatpush1.msra.mxu0 0.0
        %5298 = vmatprep.subr.mxu0 0.0
        %5299 = vmatpush1.msra.mxu0 0.0
        %5300 = vmatprep.subr.mxu0 0.0
        %5301 = vmatpush1.msra.mxu0 0.0
        %5302 = vmatprep.subr.mxu0 0.0
        %5303 = vmatpush1.msra.mxu0 0.0
        %5304 = vmatprep.subr.mxu0 0.0
        %5305 = vmatpush1.msra.mxu0 0.0
        %5306 = vmatprep.subr.mxu0 0.0
        %5307 = vmatpush1.msra.mxu0 0.0
        %5308 = vmatprep.subr.mxu0 0.0
        %5309 = vmatpush1.msra.mxu0 0.0
        %5310 = vmatprep.subr.mxu0 0.0
        %5311 = vmatpush1.msra.mxu0 0.0
        %5312 = vmatprep.subr.mxu0 0.0
        %5313 = vmatpush1.msra.mxu0 0.0
        %5314 = vmatprep.subr.mxu0 0.0
        %5315 = vmatpush1.msra.mxu0 0.0
        %5316 = vmatprep.subr.mxu0 0.0
        %5317 = vmatpush1.msra.mxu0 0.0
        %5318 = vmatprep.subr.mxu0 0.0
        %5319 = vmatpush1.msra.mxu0 0.0
        %5320 = vmatprep.subr.mxu0 0.0
        %5321 = vmatpush1.msra.mxu0 0.0
        %5322 = vmatprep.subr.mxu0 0.0
        %5323 = vmatpush1.msra.mxu0 0.0
        %5324 = vmatprep.subr.mxu0 0.0
        %5325 = vmatpush1.msra.mxu0 0.0
        %5326 = vmatprep.subr.mxu0 0.0
        %5327 = vmatpush1.msra.mxu0 0.0
        %5328 = vmatprep.subr.mxu0 0.0
        %5329 = vmatpush1.msra.mxu0 0.0
        %5330 = vmatprep.subr.mxu0 0.0
        %5331 = vmatpush1.msra.mxu0 0.0
        %5332 = vmatprep.mubr.f32.mxu0 0.0
        %5333 = vmatmul.mubr.f32.gmra.mrb[0].mxu0 %v2806
        %v5334 = vpop.f32.mrb[0].mxu0
        %v5335 = vadd.f32 %v5174, %v5334
        %v5336 = vpop.f32.mrb[0].mxu0
        %v5337 = vadd.f32 %v5176, %v5336
        %5338 = vmatprep.mubr.f32.mxu0 0.0
        %5339 = vmatmul.mubr.f32.gmra.mrb[0].mxu0 %v2809
        %v5340 = vpop.f32.mrb[0].mxu0
        %v5341 = vadd.f32 %v5180, %v5340
        %v5342 = vpop.f32.mrb[0].mxu0
        %v5343 = vadd.f32 %v5182, %v5342
        %5344 = vmatprep.mubr.f32.mxu0 0.0
        %5345 = vmatmul.mubr.f32.gmra.mrb[0].mxu0 %v2812
        %v5346 = vpop.f32.mrb[0].mxu0
        %v5347 = vadd.f32 %v5186, %v5346
        %v5348 = vpop.f32.mrb[0].mxu0
        %v5349 = vadd.f32 %v5188, %v5348
        %5350 = vmatprep.mubr.f32.mxu0 0.0
        %5351 = vmatmul.mubr.f32.gmra.mrb[0].mxu0 %v2815
        %v5352 = vpop.f32.mrb[0].mxu0
        %v5353 = vadd.f32 %v5192, %v5352
        %v5354 = vpop.f32.mrb[0].mxu0
        %v5355 = vadd.f32 %v5194, %v5354
        %5356 = vmatprep.mubr.f32.mxu0 0.0
        %5357 = vmatmul.mubr.f32.gmra.mrb[0].mxu0 %v2818
        %v5358 = vpop.f32.mrb[0].mxu0
        %v5359 = vadd.f32 %v5198, %v5358
        %v5360 = vpop.f32.mrb[0].mxu0
        %v5361 = vadd.f32 %v5200, %v5360
        %5362 = vmatprep.mubr.f32.mxu0 0.0
        %5363 = vmatmul.mubr.f32.gmra.mrb[0].mxu0 %v2821
        %v5364 = vpop.f32.mrb[0].mxu0
        %v5365 = vadd.f32 %v5204, %v5364
        %v5366 = vpop.f32.mrb[0].mxu0
        %v5367 = vadd.f32 %v5206, %v5366
        %5368 = vmatprep.mubr.f32.mxu0 0.0
        %5369 = vmatmul.mubr.f32.gmra.mrb[0].mxu0 %v2824
        %v5370 = vpop.f32.mrb[0].mxu0
        %v5371 = vadd.f32 %v5210, %v5370
        %v5372 = vpop.f32.mrb[0].mxu0
        %v5373 = vadd.f32 %v5212, %v5372
        %5374 = vmatprep.mubr.f32.mxu0 0.0
        %5375 = vmatmul.mubr.f32.gmra.mrb[0].mxu0 %v2827
        %v5376 = vpop.f32.mrb[0].mxu0
        %v5377 = vadd.f32 %v5216, %v5376
        %v5378 = vpop.f32.mrb[0].mxu0
        %v5379 = vadd.f32 %v5218, %v5378
        %5380 = vmatprep.mubr.f32.mxu0 0.0
        %5381 = vmatmul.mubr.f32.gmra.mrb[0].mxu0 %v2830
        %v5382 = vpop.f32.mrb[0].mxu0
        %v5383 = vadd.f32 %v5222, %v5382
        %v5384 = vpop.f32.mrb[0].mxu0
        %v5385 = vadd.f32 %v5224, %v5384
        %5386 = vmatprep.mubr.f32.mxu0 0.0
        %5387 = vmatmul.mubr.f32.gmra.mrb[0].mxu0 %v2833
        %v5388 = vpop.f32.mrb[0].mxu0
        %v5389 = vadd.f32 %v5228, %v5388
        %v5390 = vpop.f32.mrb[0].mxu0
        %v5391 = vadd.f32 %v5230, %v5390
        %5392 = vmatprep.mubr.f32.mxu0 0.0
        %5393 = vmatmul.mubr.f32.gmra.mrb[0].mxu0 %v2836
        %v5394 = vpop.f32.mrb[0].mxu0
        %v5395 = vadd.f32 %v5234, %v5394
        %v5396 = vpop.f32.mrb[0].mxu0
        %v5397 = vadd.f32 %v5236, %v5396
        %5398 = vmatprep.mubr.f32.mxu0 0.0
        %5399 = vmatmul.mubr.f32.gmra.mrb[0].mxu0 %v2839
        %v5400 = vpop.f32.mrb[0].mxu0
        %v5401 = vadd.f32 %v5240, %v5400
        %v5402 = vpop.f32.mrb[0].mxu0
        %v5403 = vadd.f32 %v5242, %v5402
        %5404 = vmatprep.mubr.f32.mxu0 0.0
        %5405 = vmatmul.mubr.f32.gmra.mrb[0].mxu0 %v2842
        %v5406 = vpop.f32.mrb[0].mxu0
        %v5407 = vadd.f32 %v5246, %v5406
        %v5408 = vpop.f32.mrb[0].mxu0
        %v5409 = vadd.f32 %v5248, %v5408
        %5410 = vmatprep.mubr.f32.mxu0 0.0
        %5411 = vmatmul.mubr.f32.gmra.mrb[0].mxu0 %v2845
        %v5412 = vpop.f32.mrb[0].mxu0
        %v5413 = vadd.f32 %v5252, %v5412
        %v5414 = vpop.f32.mrb[0].mxu0
        %v5415 = vadd.f32 %v5254, %v5414
        %5416 = vmatprep.mubr.f32.mxu0 0.0
        %5417 = vmatmul.mubr.f32.gmra.mrb[0].mxu0 %v2848
        %v5418 = vpop.f32.mrb[0].mxu0
        %v5419 = vadd.f32 %v5258, %v5418
        %v5420 = vpop.f32.mrb[0].mxu0
        %v5421 = vadd.f32 %v5260, %v5420
        %5422 = vmatprep.mubr.f32.mxu0 0.0
        %5423 = vmatmul.mubr.f32.gmra.mrb[0].mxu0 %v2851
        %v5424 = vpop.f32.mrb[0].mxu0
        %v5425 = vadd.f32 %v5264, %v5424
        %v5426 = vpop.f32.mrb[0].mxu0
        %v5427 = vadd.f32 %v5266, %v5426
        %5428 = vdwg.mxu0
        %5429 = vmatprep.subr.mxu0 %v1470
        %5430 = vmatpush1.msra.mxu0 %v1469
        %5431 = vmatprep.subr.mxu0 %v1483
        %5432 = vmatpush1.msra.mxu0 %v1482
        %5433 = vmatprep.subr.mxu0 %v1496
        %5434 = vmatpush1.msra.mxu0 %v1495
        %5435 = vmatprep.subr.mxu0 %v1509
        %5436 = vmatpush1.msra.mxu0 %v1508
        %5437 = vmatprep.subr.mxu0 %v1522
        %5438 = vmatpush1.msra.mxu0 %v1521
        %5439 = vmatprep.subr.mxu0 %v1535
        %5440 = vmatpush1.msra.mxu0 %v1534
        %5441 = vmatprep.subr.mxu0 %v1548
        %5442 = vmatpush1.msra.mxu0 %v1547
        %5443 = vmatprep.subr.mxu0 %v1561
        %5444 = vmatpush1.msra.mxu0 %v1560
        %5445 = vmatprep.subr.mxu0 %v1574
        %5446 = vmatpush1.msra.mxu0 %v1573
        %5447 = vmatprep.subr.mxu0 %v1587
        %5448 = vmatpush1.msra.mxu0 %v1586
        %5449 = vmatprep.subr.mxu0 %v1600
        %5450 = vmatpush1.msra.mxu0 %v1599
        %5451 = vmatprep.subr.mxu0 %v1613
        %5452 = vmatpush1.msra.mxu0 %v1612
        %5453 = vmatprep.subr.mxu0 %v1626
        %5454 = vmatpush1.msra.mxu0 %v1625
        %5455 = vmatprep.subr.mxu0 %v1639
        %5456 = vmatpush1.msra.mxu0 %v1638
        %5457 = vmatprep.subr.mxu0 %v1652
        %5458 = vmatpush1.msra.mxu0 %v1651
        %5459 = vmatprep.subr.mxu0 %v1665
        %5460 = vmatpush1.msra.mxu0 %v1664
        %5461 = vmatprep.subr.mxu0 %v1678
        %5462 = vmatpush1.msra.mxu0 %v1677
        %5463 = vmatprep.subr.mxu0 %v1691
        %5464 = vmatpush1.msra.mxu0 %v1690
        %5465 = vmatprep.subr.mxu0 %v1704
        %5466 = vmatpush1.msra.mxu0 %v1703
        %5467 = vmatprep.subr.mxu0 %v1717
        %5468 = vmatpush1.msra.mxu0 %v1716
        %5469 = vmatprep.subr.mxu0 %v1730
        %5470 = vmatpush1.msra.mxu0 %v1729
        %5471 = vmatprep.subr.mxu0 %v1743
        %5472 = vmatpush1.msra.mxu0 %v1742
        %5473 = vmatprep.subr.mxu0 %v1756
        %5474 = vmatpush1.msra.mxu0 %v1755
        %5475 = vmatprep.subr.mxu0 %v1769
        %5476 = vmatpush1.msra.mxu0 %v1768
        %5477 = vmatprep.subr.mxu0 %v1782
        %5478 = vmatpush1.msra.mxu0 %v1781
        %5479 = vmatprep.subr.mxu0 %v1795
        %5480 = vmatpush1.msra.mxu0 %v1794
        %5481 = vmatprep.subr.mxu0 %v1808
        %5482 = vmatpush1.msra.mxu0 %v1807
        %5483 = vmatprep.subr.mxu0 %v1821
        %5484 = vmatpush1.msra.mxu0 %v1820
        %5485 = vmatprep.subr.mxu0 %v1834
        %5486 = vmatpush1.msra.mxu0 %v1833
        %5487 = vmatprep.subr.mxu0 %v1847
        %5488 = vmatpush1.msra.mxu0 %v1846
        %5489 = vmatprep.subr.mxu0 %v1860
        %5490 = vmatpush1.msra.mxu0 %v1859
        %5491 = vmatprep.subr.mxu0 %v1873
        %5492 = vmatpush1.msra.mxu0 %v1872
        %5493 = vmatprep.mubr.f32.mxu0 %v1350
        %5494 = vmatmul.mubr.f32.gmra.mrb[0].mxu0 %v1349
        %v5495 = vpop.f32.mrb[0].mxu0
        %v5496 = vadd.f32 %v2774, %v5495
        %v5497 = vpop.f32.mrb[0].mxu0
        %v5498 = vadd.f32 %v2778, %v5497
        %5499 = vmatprep.mubr.f32.mxu0 %v1357
        %5500 = vmatmul.mubr.f32.gmra.mrb[0].mxu0 %v1356
        %v5501 = vpop.f32.mrb[0].mxu0
        %v5502 = vadd.f32 %v2774, %v5501
        %v5503 = vpop.f32.mrb[0].mxu0
        %v5504 = vadd.f32 %v2778, %v5503
        %5505 = vmatprep.mubr.f32.mxu0 %v1364
        %5506 = vmatmul.mubr.f32.gmra.mrb[0].mxu0 %v1363
        %v5507 = vpop.f32.mrb[0].mxu0
        %v5508 = vadd.f32 %v2774, %v5507
        %v5509 = vpop.f32.mrb[0].mxu0
        %v5510 = vadd.f32 %v2778, %v5509
        %5511 = vmatprep.mubr.f32.mxu0 %v1371
        %5512 = vmatmul.mubr.f32.gmra.mrb[0].mxu0 %v1370
        %v5513 = vpop.f32.mrb[0].mxu0
        %v5514 = vadd.f32 %v2774, %v5513
        %v5515 = vpop.f32.mrb[0].mxu0
        %v5516 = vadd.f32 %v2778, %v5515
        %5517 = vmatprep.mubr.f32.mxu0 %v1378
        %5518 = vmatmul.mubr.f32.gmra.mrb[0].mxu0 %v1377
        %v5519 = vpop.f32.mrb[0].mxu0
        %v5520 = vadd.f32 %v2774, %v5519
        %v5521 = vpop.f32.mrb[0].mxu0
        %v5522 = vadd.f32 %v2778, %v5521
        %5523 = vmatprep.mubr.f32.mxu0 %v1385
        %5524 = vmatmul.mubr.f32.gmra.mrb[0].mxu0 %v1384
        %v5525 = vpop.f32.mrb[0].mxu0
        %v5526 = vadd.f32 %v2774, %v5525
        %v5527 = vpop.f32.mrb[0].mxu0
        %v5528 = vadd.f32 %v2778, %v5527
        %5529 = vmatprep.mubr.f32.mxu0 %v1392
        %5530 = vmatmul.mubr.f32.gmra.mrb[0].mxu0 %v1391
        %v5531 = vpop.f32.mrb[0].mxu0
        %v5532 = vadd.f32 %v2774, %v5531
        %v5533 = vpop.f32.mrb[0].mxu0
        %v5534 = vadd.f32 %v2778, %v5533
        %5535 = vmatprep.mubr.f32.mxu0 %v1399
        %5536 = vmatmul.mubr.f32.gmra.mrb[0].mxu0 %v1398
        %v5537 = vpop.f32.mrb[0].mxu0
        %v5538 = vadd.f32 %v2774, %v5537
        %v5539 = vpop.f32.mrb[0].mxu0
        %v5540 = vadd.f32 %v2778, %v5539
        %5541 = vmatprep.mubr.f32.mxu0 %v1406
        %5542 = vmatmul.mubr.f32.gmra.mrb[0].mxu0 %v1405
        %v5543 = vpop.f32.mrb[0].mxu0
        %v5544 = vadd.f32 %v2774, %v5543
        %v5545 = vpop.f32.mrb[0].mxu0
        %v5546 = vadd.f32 %v2778, %v5545
        %5547 = vmatprep.mubr.f32.mxu0 %v1413
        %5548 = vmatmul.mubr.f32.gmra.mrb[0].mxu0 %v1412
        %v5549 = vpop.f32.mrb[0].mxu0
        %v5550 = vadd.f32 %v2774, %v5549
        %v5551 = vpop.f32.mrb[0].mxu0
        %v5552 = vadd.f32 %v2778, %v5551
        %5553 = vmatprep.mubr.f32.mxu0 %v1420
        %5554 = vmatmul.mubr.f32.gmra.mrb[0].mxu0 %v1419
        %v5555 = vpop.f32.mrb[0].mxu0
        %v5556 = vadd.f32 %v2774, %v5555
        %v5557 = vpop.f32.mrb[0].mxu0
        %v5558 = vadd.f32 %v2778, %v5557
        %5559 = vmatprep.mubr.f32.mxu0 %v1427
        %5560 = vmatmul.mubr.f32.gmra.mrb[0].mxu0 %v1426
        %v5561 = vpop.f32.mrb[0].mxu0
        %v5562 = vadd.f32 %v2774, %v5561
        %v5563 = vpop.f32.mrb[0].mxu0
        %v5564 = vadd.f32 %v2778, %v5563
        %5565 = vmatprep.mubr.f32.mxu0 %v1434
        %5566 = vmatmul.mubr.f32.gmra.mrb[0].mxu0 %v1433
        %v5567 = vpop.f32.mrb[0].mxu0
        %v5568 = vadd.f32 %v2774, %v5567
        %v5569 = vpop.f32.mrb[0].mxu0
        %v5570 = vadd.f32 %v2778, %v5569
        %5571 = vmatprep.mubr.f32.mxu0 %v1441
        %5572 = vmatmul.mubr.f32.gmra.mrb[0].mxu0 %v1440
        %v5573 = vpop.f32.mrb[0].mxu0
        %v5574 = vadd.f32 %v2774, %v5573
        %v5575 = vpop.f32.mrb[0].mxu0
        %v5576 = vadd.f32 %v2778, %v5575
        %5577 = vmatprep.mubr.f32.mxu0 %v1448
        %5578 = vmatmul.mubr.f32.gmra.mrb[0].mxu0 %v1447
        %v5579 = vpop.f32.mrb[0].mxu0
        %v5580 = vadd.f32 %v2774, %v5579
        %v5581 = vpop.f32.mrb[0].mxu0
        %v5582 = vadd.f32 %v2778, %v5581
        %5583 = vmatprep.mubr.f32.mxu0 %v1455
        %5584 = vmatmul.mubr.f32.gmra.mrb[0].mxu0 %v1454
        %v5585 = vpop.f32.mrb[0].mxu0
        %v5586 = vadd.f32 %v2774, %v5585
        %v5587 = vpop.f32.mrb[0].mxu0
        %v5588 = vadd.f32 %v2778, %v5587
        %5589 = vdwg.mxu0
        %5590 = vmatprep.subr.mxu0 %v1886
        %5591 = vmatpush1.msra.mxu0 %v1885
        %5592 = vmatprep.subr.mxu0 %v1899
        %5593 = vmatpush1.msra.mxu0 %v1898
        %5594 = vmatprep.subr.mxu0 %v1912
        %5595 = vmatpush1.msra.mxu0 %v1911
        %5596 = vmatprep.subr.mxu0 %v1925
        %5597 = vmatpush1.msra.mxu0 %v1924
        %5598 = vmatprep.subr.mxu0 %v1938
        %5599 = vmatpush1.msra.mxu0 %v1937
        %5600 = vmatprep.subr.mxu0 %v1951
        %5601 = vmatpush1.msra.mxu0 %v1950
        %5602 = vmatprep.subr.mxu0 %v1964
        %5603 = vmatpush1.msra.mxu0 %v1963
        %5604 = vmatprep.subr.mxu0 %v1977
        %5605 = vmatpush1.msra.mxu0 %v1976
        %5606 = vmatprep.subr.mxu0 %v1990
        %5607 = vmatpush1.msra.mxu0 %v1989
        %5608 = vmatprep.subr.mxu0 %v2003
        %5609 = vmatpush1.msra.mxu0 %v2002
        %5610 = vmatprep.subr.mxu0 %v2016
        %5611 = vmatpush1.msra.mxu0 %v2015
        %5612 = vmatprep.subr.mxu0 %v2029
        %5613 = vmatpush1.msra.mxu0 %v2028
        %5614 = vmatprep.subr.mxu0 %v2042
        %5615 = vmatpush1.msra.mxu0 %v2041
        %5616 = vmatprep.subr.mxu0 %v2055
        %5617 = vmatpush1.msra.mxu0 %v2054
        %5618 = vmatprep.subr.mxu0 %v2068
        %5619 = vmatpush1.msra.mxu0 %v2067
        %5620 = vmatprep.subr.mxu0 %v2081
        %5621 = vmatpush1.msra.mxu0 %v2080
        %5622 = vmatprep.subr.mxu0 %v2094
        %5623 = vmatpush1.msra.mxu0 %v2093
        %5624 = vmatprep.subr.mxu0 %v2107
        %5625 = vmatpush1.msra.mxu0 %v2106
        %5626 = vmatprep.subr.mxu0 %v2120
        %5627 = vmatpush1.msra.mxu0 %v2119
        %5628 = vmatprep.subr.mxu0 %v2133
        %5629 = vmatpush1.msra.mxu0 %v2132
        %5630 = vmatprep.subr.mxu0 %v2146
        %5631 = vmatpush1.msra.mxu0 %v2145
        %5632 = vmatprep.subr.mxu0 %v2159
        %5633 = vmatpush1.msra.mxu0 %v2158
        %5634 = vmatprep.subr.mxu0 %v2172
        %5635 = vmatpush1.msra.mxu0 %v2171
        %5636 = vmatprep.subr.mxu0 %v2185
        %5637 = vmatpush1.msra.mxu0 %v2184
        %5638 = vmatprep.subr.mxu0 %v2198
        %5639 = vmatpush1.msra.mxu0 %v2197
        %5640 = vmatprep.subr.mxu0 %v2211
        %5641 = vmatpush1.msra.mxu0 %v2210
        %5642 = vmatprep.subr.mxu0 %v2224
        %5643 = vmatpush1.msra.mxu0 %v2223
        %5644 = vmatprep.subr.mxu0 %v2237
        %5645 = vmatpush1.msra.mxu0 %v2236
        %5646 = vmatprep.subr.mxu0 %v2250
        %5647 = vmatpush1.msra.mxu0 %v2249
        %5648 = vmatprep.subr.mxu0 %v2263
        %5649 = vmatpush1.msra.mxu0 %v2262
        %5650 = vmatprep.subr.mxu0 %v2276
        %5651 = vmatpush1.msra.mxu0 %v2275
        %5652 = vmatprep.subr.mxu0 %v2289
        %5653 = vmatpush1.msra.mxu0 %v2288
        %5654 = vmatprep.mubr.f32.mxu0 %v1352
        %5655 = vmatmul.mubr.f32.gmra.mrb[0].mxu0 %v1351
        %v5656 = vpop.f32.mrb[0].mxu0
        %v5657 = vadd.f32 %v5496, %v5656
        %v5658 = vpop.f32.mrb[0].mxu0
        %v5659 = vadd.f32 %v5498, %v5658
        %5660 = vmatprep.mubr.f32.mxu0 %v1359
        %5661 = vmatmul.mubr.f32.gmra.mrb[0].mxu0 %v1358
        %v5662 = vpop.f32.mrb[0].mxu0
        %v5663 = vadd.f32 %v5502, %v5662
        %v5664 = vpop.f32.mrb[0].mxu0
        %v5665 = vadd.f32 %v5504, %v5664
        %5666 = vmatprep.mubr.f32.mxu0 %v1366
        %5667 = vmatmul.mubr.f32.gmra.mrb[0].mxu0 %v1365
        %v5668 = vpop.f32.mrb[0].mxu0
        %v5669 = vadd.f32 %v5508, %v5668
        %v5670 = vpop.f32.mrb[0].mxu0
        %v5671 = vadd.f32 %v5510, %v5670
        %5672 = vmatprep.mubr.f32.mxu0 %v1373
        %5673 = vmatmul.mubr.f32.gmra.mrb[0].mxu0 %v1372
        %v5674 = vpop.f32.mrb[0].mxu0
        %v5675 = vadd.f32 %v5514, %v5674
        %v5676 = vpop.f32.mrb[0].mxu0
        %v5677 = vadd.f32 %v5516, %v5676
        %5678 = vmatprep.mubr.f32.mxu0 %v1380
        %5679 = vmatmul.mubr.f32.gmra.mrb[0].mxu0 %v1379
        %v5680 = vpop.f32.mrb[0].mxu0
        %v5681 = vadd.f32 %v5520, %v5680
        %v5682 = vpop.f32.mrb[0].mxu0
        %v5683 = vadd.f32 %v5522, %v5682
        %5684 = vmatprep.mubr.f32.mxu0 %v1387
        %5685 = vmatmul.mubr.f32.gmra.mrb[0].mxu0 %v1386
        %v5686 = vpop.f32.mrb[0].mxu0
        %v5687 = vadd.f32 %v5526, %v5686
        %v5688 = vpop.f32.mrb[0].mxu0
        %v5689 = vadd.f32 %v5528, %v5688
        %5690 = vmatprep.mubr.f32.mxu0 %v1394
        %5691 = vmatmul.mubr.f32.gmra.mrb[0].mxu0 %v1393
        %v5692 = vpop.f32.mrb[0].mxu0
        %v5693 = vadd.f32 %v5532, %v5692
        %v5694 = vpop.f32.mrb[0].mxu0
        %v5695 = vadd.f32 %v5534, %v5694
        %5696 = vmatprep.mubr.f32.mxu0 %v1401
        %5697 = vmatmul.mubr.f32.gmra.mrb[0].mxu0 %v1400
        %v5698 = vpop.f32.mrb[0].mxu0
        %v5699 = vadd.f32 %v5538, %v5698
        %v5700 = vpop.f32.mrb[0].mxu0
        %v5701 = vadd.f32 %v5540, %v5700
        %5702 = vmatprep.mubr.f32.mxu0 %v1408
        %5703 = vmatmul.mubr.f32.gmra.mrb[0].mxu0 %v1407
        %v5704 = vpop.f32.mrb[0].mxu0
        %v5705 = vadd.f32 %v5544, %v5704
        %v5706 = vpop.f32.mrb[0].mxu0
        %v5707 = vadd.f32 %v5546, %v5706
        %5708 = vmatprep.mubr.f32.mxu0 %v1415
        %5709 = vmatmul.mubr.f32.gmra.mrb[0].mxu0 %v1414
        %v5710 = vpop.f32.mrb[0].mxu0
        %v5711 = vadd.f32 %v5550, %v5710
        %v5712 = vpop.f32.mrb[0].mxu0
        %v5713 = vadd.f32 %v5552, %v5712
        %5714 = vmatprep.mubr.f32.mxu0 %v1422
        %5715 = vmatmul.mubr.f32.gmra.mrb[0].mxu0 %v1421
        %v5716 = vpop.f32.mrb[0].mxu0
        %v5717 = vadd.f32 %v5556, %v5716
        %v5718 = vpop.f32.mrb[0].mxu0
        %v5719 = vadd.f32 %v5558, %v5718
        %5720 = vmatprep.mubr.f32.mxu0 %v1429
        %5721 = vmatmul.mubr.f32.gmra.mrb[0].mxu0 %v1428
        %v5722 = vpop.f32.mrb[0].mxu0
        %v5723 = vadd.f32 %v5562, %v5722
        %v5724 = vpop.f32.mrb[0].mxu0
        %v5725 = vadd.f32 %v5564, %v5724
        %5726 = vmatprep.mubr.f32.mxu0 %v1436
        %5727 = vmatmul.mubr.f32.gmra.mrb[0].mxu0 %v1435
        %v5728 = vpop.f32.mrb[0].mxu0
        %v5729 = vadd.f32 %v5568, %v5728
        %v5730 = vpop.f32.mrb[0].mxu0
        %v5731 = vadd.f32 %v5570, %v5730
        %5732 = vmatprep.mubr.f32.mxu0 %v1443
        %5733 = vmatmul.mubr.f32.gmra.mrb[0].mxu0 %v1442
        %v5734 = vpop.f32.mrb[0].mxu0
        %v5735 = vadd.f32 %v5574, %v5734
        %v5736 = vpop.f32.mrb[0].mxu0
        %v5737 = vadd.f32 %v5576, %v5736
        %5738 = vmatprep.mubr.f32.mxu0 %v1450
        %5739 = vmatmul.mubr.f32.gmra.mrb[0].mxu0 %v1449
        %v5740 = vpop.f32.mrb[0].mxu0
        %v5741 = vadd.f32 %v5580, %v5740
        %v5742 = vpop.f32.mrb[0].mxu0
        %v5743 = vadd.f32 %v5582, %v5742
        %5744 = vmatprep.mubr.f32.mxu0 %v1457
        %5745 = vmatmul.mubr.f32.gmra.mrb[0].mxu0 %v1456
        %v5746 = vpop.f32.mrb[0].mxu0
        %v5747 = vadd.f32 %v5586, %v5746
        %v5748 = vpop.f32.mrb[0].mxu0
        %v5749 = vadd.f32 %v5588, %v5748
        %5750 = vdwg.mxu0
        %5751 = vmatprep.subr.mxu0 %v2302
        %5752 = vmatpush1.msra.mxu0 %v2301
        %5753 = vmatprep.subr.mxu0 %v2315
        %5754 = vmatpush1.msra.mxu0 %v2314
        %5755 = vmatprep.subr.mxu0 %v2328
        %5756 = vmatpush1.msra.mxu0 %v2327
        %5757 = vmatprep.subr.mxu0 %v2341
        %5758 = vmatpush1.msra.mxu0 %v2340
        %5759 = vmatprep.subr.mxu0 %v2354
        %5760 = vmatpush1.msra.mxu0 %v2353
        %5761 = vmatprep.subr.mxu0 %v2367
        %5762 = vmatpush1.msra.mxu0 %v2366
        %5763 = vmatprep.subr.mxu0 %v2380
        %5764 = vmatpush1.msra.mxu0 %v2379
        %5765 = vmatprep.subr.mxu0 %v2393
        %5766 = vmatpush1.msra.mxu0 %v2392
        %5767 = vmatprep.subr.mxu0 %v2406
        %5768 = vmatpush1.msra.mxu0 %v2405
        %5769 = vmatprep.subr.mxu0 %v2419
        %5770 = vmatpush1.msra.mxu0 %v2418
        %5771 = vmatprep.subr.mxu0 %v2432
        %5772 = vmatpush1.msra.mxu0 %v2431
        %5773 = vmatprep.subr.mxu0 %v2445
        %5774 = vmatpush1.msra.mxu0 %v2444
        %5775 = vmatprep.subr.mxu0 %v2458
        %5776 = vmatpush1.msra.mxu0 %v2457
        %5777 = vmatprep.subr.mxu0 %v2471
        %5778 = vmatpush1.msra.mxu0 %v2470
        %5779 = vmatprep.subr.mxu0 %v2484
        %5780 = vmatpush1.msra.mxu0 %v2483
        %5781 = vmatprep.subr.mxu0 %v2497
        %5782 = vmatpush1.msra.mxu0 %v2496
        %5783 = vmatprep.subr.mxu0 %v2510
        %5784 = vmatpush1.msra.mxu0 %v2509
        %5785 = vmatprep.subr.mxu0 %v2523
        %5786 = vmatpush1.msra.mxu0 %v2522
        %5787 = vmatprep.subr.mxu0 %v2536
        %5788 = vmatpush1.msra.mxu0 %v2535
        %5789 = vmatprep.subr.mxu0 %v2549
        %5790 = vmatpush1.msra.mxu0 %v2548
        %5791 = vmatprep.subr.mxu0 %v2562
        %5792 = vmatpush1.msra.mxu0 %v2561
        %5793 = vmatprep.subr.mxu0 %v2575
        %5794 = vmatpush1.msra.mxu0 %v2574
        %5795 = vmatprep.subr.mxu0 %v2588
        %5796 = vmatpush1.msra.mxu0 %v2587
        %5797 = vmatprep.subr.mxu0 %v2601
        %5798 = vmatpush1.msra.mxu0 %v2600
        %5799 = vmatprep.subr.mxu0 %v2614
        %5800 = vmatpush1.msra.mxu0 %v2613
        %5801 = vmatprep.subr.mxu0 %v2627
        %5802 = vmatpush1.msra.mxu0 %v2626
        %5803 = vmatprep.subr.mxu0 %v2640
        %5804 = vmatpush1.msra.mxu0 %v2639
        %5805 = vmatprep.subr.mxu0 %v2653
        %5806 = vmatpush1.msra.mxu0 %v2652
        %5807 = vmatprep.subr.mxu0 %v2666
        %5808 = vmatpush1.msra.mxu0 %v2665
        %5809 = vmatprep.subr.mxu0 %v2679
        %5810 = vmatpush1.msra.mxu0 %v2678
        %5811 = vmatprep.subr.mxu0 %v2692
        %5812 = vmatpush1.msra.mxu0 %v2691
        %5813 = vmatprep.subr.mxu0 %v2705
        %5814 = vmatpush1.msra.mxu0 %v2704
        %5815 = vmatprep.mubr.f32.mxu0 %v1354
        %5816 = vmatmul.mubr.f32.gmra.mrb[0].mxu0 %v1353
        %v5817 = vpop.f32.mrb[0].mxu0
        %v5818 = vadd.f32 %v5657, %v5817
        %v5819 = vpop.f32.mrb[0].mxu0
        %v5820 = vadd.f32 %v5659, %v5819
        %5821 = vmatprep.mubr.f32.mxu0 %v1361
        %5822 = vmatmul.mubr.f32.gmra.mrb[0].mxu0 %v1360
        %v5823 = vpop.f32.mrb[0].mxu0
        %v5824 = vadd.f32 %v5663, %v5823
        %v5825 = vpop.f32.mrb[0].mxu0
        %v5826 = vadd.f32 %v5665, %v5825
        %5827 = vmatprep.mubr.f32.mxu0 %v1368
        %5828 = vmatmul.mubr.f32.gmra.mrb[0].mxu0 %v1367
        %v5829 = vpop.f32.mrb[0].mxu0
        %v5830 = vadd.f32 %v5669, %v5829
        %v5831 = vpop.f32.mrb[0].mxu0
        %v5832 = vadd.f32 %v5671, %v5831
        %5833 = vmatprep.mubr.f32.mxu0 %v1375
        %5834 = vmatmul.mubr.f32.gmra.mrb[0].mxu0 %v1374
        %v5835 = vpop.f32.mrb[0].mxu0
        %v5836 = vadd.f32 %v5675, %v5835
        %v5837 = vpop.f32.mrb[0].mxu0
        %v5838 = vadd.f32 %v5677, %v5837
        %5839 = vmatprep.mubr.f32.mxu0 %v1382
        %5840 = vmatmul.mubr.f32.gmra.mrb[0].mxu0 %v1381
        %v5841 = vpop.f32.mrb[0].mxu0
        %v5842 = vadd.f32 %v5681, %v5841
        %v5843 = vpop.f32.mrb[0].mxu0
        %v5844 = vadd.f32 %v5683, %v5843
        %5845 = vmatprep.mubr.f32.mxu0 %v1389
        %5846 = vmatmul.mubr.f32.gmra.mrb[0].mxu0 %v1388
        %v5847 = vpop.f32.mrb[0].mxu0
        %v5848 = vadd.f32 %v5687, %v5847
        %v5849 = vpop.f32.mrb[0].mxu0
        %v5850 = vadd.f32 %v5689, %v5849
        %5851 = vmatprep.mubr.f32.mxu0 %v1396
        %5852 = vmatmul.mubr.f32.gmra.mrb[0].mxu0 %v1395
        %v5853 = vpop.f32.mrb[0].mxu0
        %v5854 = vadd.f32 %v5693, %v5853
        %v5855 = vpop.f32.mrb[0].mxu0
        %v5856 = vadd.f32 %v5695, %v5855
        %5857 = vmatprep.mubr.f32.mxu0 %v1403
        %5858 = vmatmul.mubr.f32.gmra.mrb[0].mxu0 %v1402
        %v5859 = vpop.f32.mrb[0].mxu0
        %v5860 = vadd.f32 %v5699, %v5859
        %v5861 = vpop.f32.mrb[0].mxu0
        %v5862 = vadd.f32 %v5701, %v5861
        %5863 = vmatprep.mubr.f32.mxu0 %v1410
        %5864 = vmatmul.mubr.f32.gmra.mrb[0].mxu0 %v1409
        %v5865 = vpop.f32.mrb[0].mxu0
        %v5866 = vadd.f32 %v5705, %v5865
        %v5867 = vpop.f32.mrb[0].mxu0
        %v5868 = vadd.f32 %v5707, %v5867
        %5869 = vmatprep.mubr.f32.mxu0 %v1417
        %5870 = vmatmul.mubr.f32.gmra.mrb[0].mxu0 %v1416
        %v5871 = vpop.f32.mrb[0].mxu0
        %v5872 = vadd.f32 %v5711, %v5871
        %v5873 = vpop.f32.mrb[0].mxu0
        %v5874 = vadd.f32 %v5713, %v5873
        %5875 = vmatprep.mubr.f32.mxu0 %v1424
        %5876 = vmatmul.mubr.f32.gmra.mrb[0].mxu0 %v1423
        %v5877 = vpop.f32.mrb[0].mxu0
        %v5878 = vadd.f32 %v5717, %v5877
        %v5879 = vpop.f32.mrb[0].mxu0
        %v5880 = vadd.f32 %v5719, %v5879
        %5881 = vmatprep.mubr.f32.mxu0 %v1431
        %5882 = vmatmul.mubr.f32.gmra.mrb[0].mxu0 %v1430
        %v5883 = vpop.f32.mrb[0].mxu0
        %v5884 = vadd.f32 %v5723, %v5883
        %v5885 = vpop.f32.mrb[0].mxu0
        %v5886 = vadd.f32 %v5725, %v5885
        %5887 = vmatprep.mubr.f32.mxu0 %v1438
        %5888 = vmatmul.mubr.f32.gmra.mrb[0].mxu0 %v1437
        %v5889 = vpop.f32.mrb[0].mxu0
        %v5890 = vadd.f32 %v5729, %v5889
        %v5891 = vpop.f32.mrb[0].mxu0
        %v5892 = vadd.f32 %v5731, %v5891
        %5893 = vmatprep.mubr.f32.mxu0 %v1445
        %5894 = vmatmul.mubr.f32.gmra.mrb[0].mxu0 %v1444
        %v5895 = vpop.f32.mrb[0].mxu0
        %v5896 = vadd.f32 %v5735, %v5895
        %v5897 = vpop.f32.mrb[0].mxu0
        %v5898 = vadd.f32 %v5737, %v5897
        %5899 = vmatprep.mubr.f32.mxu0 %v1452
        %5900 = vmatmul.mubr.f32.gmra.mrb[0].mxu0 %v1451
        %v5901 = vpop.f32.mrb[0].mxu0
        %v5902 = vadd.f32 %v5741, %v5901
        %v5903 = vpop.f32.mrb[0].mxu0
        %v5904 = vadd.f32 %v5743, %v5903
        %5905 = vmatprep.mubr.f32.mxu0 %v1459
        %5906 = vmatmul.mubr.f32.gmra.mrb[0].mxu0 %v1458
        %v5907 = vpop.f32.mrb[0].mxu0
        %v5908 = vadd.f32 %v5747, %v5907
        %v5909 = vpop.f32.mrb[0].mxu0
        %v5910 = vadd.f32 %v5749, %v5909
        %5911 = vdwg.mxu0
        %5912 = vmatprep.subr.mxu0 %v2718
        %5913 = vmatpush1.msra.mxu0 %v2717
        %5914 = vmatprep.subr.mxu0 %v2731
        %5915 = vmatpush1.msra.mxu0 %v2730
        %5916 = vmatprep.subr.mxu0 0.0
        %5917 = vmatpush1.msra.mxu0 0.0
        %5918 = vmatprep.subr.mxu0 0.0
        %5919 = vmatpush1.msra.mxu0 0.0
        %5920 = vmatprep.subr.mxu0 0.0
        %5921 = vmatpush1.msra.mxu0 0.0
        %5922 = vmatprep.subr.mxu0 0.0
        %5923 = vmatpush1.msra.mxu0 0.0
        %5924 = vmatprep.subr.mxu0 0.0
        %5925 = vmatpush1.msra.mxu0 0.0
        %5926 = vmatprep.subr.mxu0 0.0
        %5927 = vmatpush1.msra.mxu0 0.0
        %5928 = vmatprep.subr.mxu0 0.0
        %5929 = vmatpush1.msra.mxu0 0.0
        %5930 = vmatprep.subr.mxu0 0.0
        %5931 = vmatpush1.msra.mxu0 0.0
        %5932 = vmatprep.subr.mxu0 0.0
        %5933 = vmatpush1.msra.mxu0 0.0
        %5934 = vmatprep.subr.mxu0 0.0
        %5935 = vmatpush1.msra.mxu0 0.0
        %5936 = vmatprep.subr.mxu0 0.0
        %5937 = vmatpush1.msra.mxu0 0.0
        %5938 = vmatprep.subr.mxu0 0.0
        %5939 = vmatpush1.msra.mxu0 0.0
        %5940 = vmatprep.subr.mxu0 0.0
        %5941 = vmatpush1.msra.mxu0 0.0
        %5942 = vmatprep.subr.mxu0 0.0
        %5943 = vmatpush1.msra.mxu0 0.0
        %5944 = vmatprep.subr.mxu0 0.0
        %5945 = vmatpush1.msra.mxu0 0.0
        %5946 = vmatprep.subr.mxu0 0.0
        %5947 = vmatpush1.msra.mxu0 0.0
        %5948 = vmatprep.subr.mxu0 0.0
        %5949 = vmatpush1.msra.mxu0 0.0
        %5950 = vmatprep.subr.mxu0 0.0
        %5951 = vmatpush1.msra.mxu0 0.0
        %5952 = vmatprep.subr.mxu0 0.0
        %5953 = vmatpush1.msra.mxu0 0.0
        %5954 = vmatprep.subr.mxu0 0.0
        %5955 = vmatpush1.msra.mxu0 0.0
        %5956 = vmatprep.subr.mxu0 0.0
        %5957 = vmatpush1.msra.mxu0 0.0
        %5958 = vmatprep.subr.mxu0 0.0
        %5959 = vmatpush1.msra.mxu0 0.0
        %5960 = vmatprep.subr.mxu0 0.0
        %5961 = vmatpush1.msra.mxu0 0.0
        %5962 = vmatprep.subr.mxu0 0.0
        %5963 = vmatpush1.msra.mxu0 0.0
        %5964 = vmatprep.subr.mxu0 0.0
        %5965 = vmatpush1.msra.mxu0 0.0
        %5966 = vmatprep.subr.mxu0 0.0
        %5967 = vmatpush1.msra.mxu0 0.0
        %5968 = vmatprep.subr.mxu0 0.0
        %5969 = vmatpush1.msra.mxu0 0.0
        %5970 = vmatprep.subr.mxu0 0.0
        %5971 = vmatpush1.msra.mxu0 0.0
        %5972 = vmatprep.subr.mxu0 0.0
        %5973 = vmatpush1.msra.mxu0 0.0
        %5974 = vmatprep.subr.mxu0 0.0
        %5975 = vmatpush1.msra.mxu0 0.0
        %5976 = vmatprep.mubr.f32.mxu0 0.0
        %5977 = vmatmul.mubr.f32.gmra.mrb[0].mxu0 %v2806
        %v5978 = vpop.f32.mrb[0].mxu0
        %v5979 = vadd.f32 %v5818, %v5978
        %v5980 = vpop.f32.mrb[0].mxu0
        %v5981 = vadd.f32 %v5820, %v5980
        %5982 = vmatprep.mubr.f32.mxu0 0.0
        %5983 = vmatmul.mubr.f32.gmra.mrb[0].mxu0 %v2809
        %v5984 = vpop.f32.mrb[0].mxu0
        %v5985 = vadd.f32 %v5824, %v5984
        %v5986 = vpop.f32.mrb[0].mxu0
        %v5987 = vadd.f32 %v5826, %v5986
        %5988 = vmatprep.mubr.f32.mxu0 0.0
        %5989 = vmatmul.mubr.f32.gmra.mrb[0].mxu0 %v2812
        %v5990 = vpop.f32.mrb[0].mxu0
        %v5991 = vadd.f32 %v5830, %v5990
        %v5992 = vpop.f32.mrb[0].mxu0
        %v5993 = vadd.f32 %v5832, %v5992
        %5994 = vmatprep.mubr.f32.mxu0 0.0
        %5995 = vmatmul.mubr.f32.gmra.mrb[0].mxu0 %v2815
        %v5996 = vpop.f32.mrb[0].mxu0
        %v5997 = vadd.f32 %v5836, %v5996
        %v5998 = vpop.f32.mrb[0].mxu0
        %v5999 = vadd.f32 %v5838, %v5998
        %6000 = vmatprep.mubr.f32.mxu0 0.0
        %6001 = vmatmul.mubr.f32.gmra.mrb[0].mxu0 %v2818
        %v6002 = vpop.f32.mrb[0].mxu0
        %v6003 = vadd.f32 %v5842, %v6002
        %v6004 = vpop.f32.mrb[0].mxu0
        %v6005 = vadd.f32 %v5844, %v6004
        %6006 = vmatprep.mubr.f32.mxu0 0.0
        %6007 = vmatmul.mubr.f32.gmra.mrb[0].mxu0 %v2821
        %v6008 = vpop.f32.mrb[0].mxu0
        %v6009 = vadd.f32 %v5848, %v6008
        %v6010 = vpop.f32.mrb[0].mxu0
        %v6011 = vadd.f32 %v5850, %v6010
        %6012 = vmatprep.mubr.f32.mxu0 0.0
        %6013 = vmatmul.mubr.f32.gmra.mrb[0].mxu0 %v2824
        %v6014 = vpop.f32.mrb[0].mxu0
        %v6015 = vadd.f32 %v5854, %v6014
        %v6016 = vpop.f32.mrb[0].mxu0
        %v6017 = vadd.f32 %v5856, %v6016
        %6018 = vmatprep.mubr.f32.mxu0 0.0
        %6019 = vmatmul.mubr.f32.gmra.mrb[0].mxu0 %v2827
        %v6020 = vpop.f32.mrb[0].mxu0
        %v6021 = vadd.f32 %v5860, %v6020
        %v6022 = vpop.f32.mrb[0].mxu0
        %v6023 = vadd.f32 %v5862, %v6022
        %6024 = vmatprep.mubr.f32.mxu0 0.0
        %6025 = vmatmul.mubr.f32.gmra.mrb[0].mxu0 %v2830
        %v6026 = vpop.f32.mrb[0].mxu0
        %v6027 = vadd.f32 %v5866, %v6026
        %v6028 = vpop.f32.mrb[0].mxu0
        %v6029 = vadd.f32 %v5868, %v6028
        %6030 = vmatprep.mubr.f32.mxu0 0.0
        %6031 = vmatmul.mubr.f32.gmra.mrb[0].mxu0 %v2833
        %v6032 = vpop.f32.mrb[0].mxu0
        %v6033 = vadd.f32 %v5872, %v6032
        %v6034 = vpop.f32.mrb[0].mxu0
        %v6035 = vadd.f32 %v5874, %v6034
        %6036 = vmatprep.mubr.f32.mxu0 0.0
        %6037 = vmatmul.mubr.f32.gmra.mrb[0].mxu0 %v2836
        %v6038 = vpop.f32.mrb[0].mxu0
        %v6039 = vadd.f32 %v5878, %v6038
        %v6040 = vpop.f32.mrb[0].mxu0
        %v6041 = vadd.f32 %v5880, %v6040
        %6042 = vmatprep.mubr.f32.mxu0 0.0
        %6043 = vmatmul.mubr.f32.gmra.mrb[0].mxu0 %v2839
        %v6044 = vpop.f32.mrb[0].mxu0
        %v6045 = vadd.f32 %v5884, %v6044
        %v6046 = vpop.f32.mrb[0].mxu0
        %v6047 = vadd.f32 %v5886, %v6046
        %6048 = vmatprep.mubr.f32.mxu0 0.0
        %6049 = vmatmul.mubr.f32.gmra.mrb[0].mxu0 %v2842
        %v6050 = vpop.f32.mrb[0].mxu0
        %v6051 = vadd.f32 %v5890, %v6050
        %v6052 = vpop.f32.mrb[0].mxu0
        %v6053 = vadd.f32 %v5892, %v6052
        %6054 = vmatprep.mubr.f32.mxu0 0.0
        %6055 = vmatmul.mubr.f32.gmra.mrb[0].mxu0 %v2845
        %v6056 = vpop.f32.mrb[0].mxu0
        %v6057 = vadd.f32 %v5896, %v6056
        %v6058 = vpop.f32.mrb[0].mxu0
        %v6059 = vadd.f32 %v5898, %v6058
        %6060 = vmatprep.mubr.f32.mxu0 0.0
        %6061 = vmatmul.mubr.f32.gmra.mrb[0].mxu0 %v2848
        %v6062 = vpop.f32.mrb[0].mxu0
        %v6063 = vadd.f32 %v5902, %v6062
        %v6064 = vpop.f32.mrb[0].mxu0
        %v6065 = vadd.f32 %v5904, %v6064
        %6066 = vmatprep.mubr.f32.mxu0 0.0
        %6067 = vmatmul.mubr.f32.gmra.mrb[0].mxu0 %v2851
        %v6068 = vpop.f32.mrb[0].mxu0
        %v6069 = vadd.f32 %v5908, %v6068
        %v6070 = vpop.f32.mrb[0].mxu0
        %v6071 = vadd.f32 %v5910, %v6070
        %6072 = vdwg.mxu0
        %6073 = vmatprep.subr.mxu0 %v1472
        %6074 = vmatpush1.msra.mxu0 %v1471
        %6075 = vmatprep.subr.mxu0 %v1485
        %6076 = vmatpush1.msra.mxu0 %v1484
        %6077 = vmatprep.subr.mxu0 %v1498
        %6078 = vmatpush1.msra.mxu0 %v1497
        %6079 = vmatprep.subr.mxu0 %v1511
        %6080 = vmatpush1.msra.mxu0 %v1510
        %6081 = vmatprep.subr.mxu0 %v1524
        %6082 = vmatpush1.msra.mxu0 %v1523
        %6083 = vmatprep.subr.mxu0 %v1537
        %6084 = vmatpush1.msra.mxu0 %v1536
        %6085 = vmatprep.subr.mxu0 %v1550
        %6086 = vmatpush1.msra.mxu0 %v1549
        %6087 = vmatprep.subr.mxu0 %v1563
        %6088 = vmatpush1.msra.mxu0 %v1562
        %6089 = vmatprep.subr.mxu0 %v1576
        %6090 = vmatpush1.msra.mxu0 %v1575
        %6091 = vmatprep.subr.mxu0 %v1589
        %6092 = vmatpush1.msra.mxu0 %v1588
        %6093 = vmatprep.subr.mxu0 %v1602
        %6094 = vmatpush1.msra.mxu0 %v1601
        %6095 = vmatprep.subr.mxu0 %v1615
        %6096 = vmatpush1.msra.mxu0 %v1614
        %6097 = vmatprep.subr.mxu0 %v1628
        %6098 = vmatpush1.msra.mxu0 %v1627
        %6099 = vmatprep.subr.mxu0 %v1641
        %6100 = vmatpush1.msra.mxu0 %v1640
        %6101 = vmatprep.subr.mxu0 %v1654
        %6102 = vmatpush1.msra.mxu0 %v1653
        %6103 = vmatprep.subr.mxu0 %v1667
        %6104 = vmatpush1.msra.mxu0 %v1666
        %6105 = vmatprep.subr.mxu0 %v1680
        %6106 = vmatpush1.msra.mxu0 %v1679
        %6107 = vmatprep.subr.mxu0 %v1693
        %6108 = vmatpush1.msra.mxu0 %v1692
        %6109 = vmatprep.subr.mxu0 %v1706
        %6110 = vmatpush1.msra.mxu0 %v1705
        %6111 = vmatprep.subr.mxu0 %v1719
        %6112 = vmatpush1.msra.mxu0 %v1718
        %6113 = vmatprep.subr.mxu0 %v1732
        %6114 = vmatpush1.msra.mxu0 %v1731
        %6115 = vmatprep.subr.mxu0 %v1745
        %6116 = vmatpush1.msra.mxu0 %v1744
        %6117 = vmatprep.subr.mxu0 %v1758
        %6118 = vmatpush1.msra.mxu0 %v1757
        %6119 = vmatprep.subr.mxu0 %v1771
        %6120 = vmatpush1.msra.mxu0 %v1770
        %6121 = vmatprep.subr.mxu0 %v1784
        %6122 = vmatpush1.msra.mxu0 %v1783
        %6123 = vmatprep.subr.mxu0 %v1797
        %6124 = vmatpush1.msra.mxu0 %v1796
        %6125 = vmatprep.subr.mxu0 %v1810
        %6126 = vmatpush1.msra.mxu0 %v1809
        %6127 = vmatprep.subr.mxu0 %v1823
        %6128 = vmatpush1.msra.mxu0 %v1822
        %6129 = vmatprep.subr.mxu0 %v1836
        %6130 = vmatpush1.msra.mxu0 %v1835
        %6131 = vmatprep.subr.mxu0 %v1849
        %6132 = vmatpush1.msra.mxu0 %v1848
        %6133 = vmatprep.subr.mxu0 %v1862
        %6134 = vmatpush1.msra.mxu0 %v1861
        %6135 = vmatprep.subr.mxu0 %v1875
        %6136 = vmatpush1.msra.mxu0 %v1874
        %6137 = vmatprep.mubr.f32.mxu0 %v1350
        %6138 = vmatmul.mubr.f32.gmra.mrb[0].mxu0 %v1349
        %v6139 = vpop.f32.mrb[0].mxu0
        %v6140 = vadd.f32 %v2782, %v6139
        %v6141 = vpop.f32.mrb[0].mxu0
        %v6142 = vadd.f32 %v2786, %v6141
        %6143 = vmatprep.mubr.f32.mxu0 %v1357
        %6144 = vmatmul.mubr.f32.gmra.mrb[0].mxu0 %v1356
        %v6145 = vpop.f32.mrb[0].mxu0
        %v6146 = vadd.f32 %v2782, %v6145
        %v6147 = vpop.f32.mrb[0].mxu0
        %v6148 = vadd.f32 %v2786, %v6147
        %6149 = vmatprep.mubr.f32.mxu0 %v1364
        %6150 = vmatmul.mubr.f32.gmra.mrb[0].mxu0 %v1363
        %v6151 = vpop.f32.mrb[0].mxu0
        %v6152 = vadd.f32 %v2782, %v6151
        %v6153 = vpop.f32.mrb[0].mxu0
        %v6154 = vadd.f32 %v2786, %v6153
        %6155 = vmatprep.mubr.f32.mxu0 %v1371
        %6156 = vmatmul.mubr.f32.gmra.mrb[0].mxu0 %v1370
        %v6157 = vpop.f32.mrb[0].mxu0
        %v6158 = vadd.f32 %v2782, %v6157
        %v6159 = vpop.f32.mrb[0].mxu0
        %v6160 = vadd.f32 %v2786, %v6159
        %6161 = vmatprep.mubr.f32.mxu0 %v1378
        %6162 = vmatmul.mubr.f32.gmra.mrb[0].mxu0 %v1377
        %v6163 = vpop.f32.mrb[0].mxu0
        %v6164 = vadd.f32 %v2782, %v6163
        %v6165 = vpop.f32.mrb[0].mxu0
        %v6166 = vadd.f32 %v2786, %v6165
        %6167 = vmatprep.mubr.f32.mxu0 %v1385
        %6168 = vmatmul.mubr.f32.gmra.mrb[0].mxu0 %v1384
        %v6169 = vpop.f32.mrb[0].mxu0
        %v6170 = vadd.f32 %v2782, %v6169
        %v6171 = vpop.f32.mrb[0].mxu0
        %v6172 = vadd.f32 %v2786, %v6171
        %6173 = vmatprep.mubr.f32.mxu0 %v1392
        %6174 = vmatmul.mubr.f32.gmra.mrb[0].mxu0 %v1391
        %v6175 = vpop.f32.mrb[0].mxu0
        %v6176 = vadd.f32 %v2782, %v6175
        %v6177 = vpop.f32.mrb[0].mxu0
        %v6178 = vadd.f32 %v2786, %v6177
        %6179 = vmatprep.mubr.f32.mxu0 %v1399
        %6180 = vmatmul.mubr.f32.gmra.mrb[0].mxu0 %v1398
        %v6181 = vpop.f32.mrb[0].mxu0
        %v6182 = vadd.f32 %v2782, %v6181
        %v6183 = vpop.f32.mrb[0].mxu0
        %v6184 = vadd.f32 %v2786, %v6183
        %6185 = vmatprep.mubr.f32.mxu0 %v1406
        %6186 = vmatmul.mubr.f32.gmra.mrb[0].mxu0 %v1405
        %v6187 = vpop.f32.mrb[0].mxu0
        %v6188 = vadd.f32 %v2782, %v6187
        %v6189 = vpop.f32.mrb[0].mxu0
        %v6190 = vadd.f32 %v2786, %v6189
        %6191 = vmatprep.mubr.f32.mxu0 %v1413
        %6192 = vmatmul.mubr.f32.gmra.mrb[0].mxu0 %v1412
        %v6193 = vpop.f32.mrb[0].mxu0
        %v6194 = vadd.f32 %v2782, %v6193
        %v6195 = vpop.f32.mrb[0].mxu0
        %v6196 = vadd.f32 %v2786, %v6195
        %6197 = vmatprep.mubr.f32.mxu0 %v1420
        %6198 = vmatmul.mubr.f32.gmra.mrb[0].mxu0 %v1419
        %v6199 = vpop.f32.mrb[0].mxu0
        %v6200 = vadd.f32 %v2782, %v6199
        %v6201 = vpop.f32.mrb[0].mxu0
        %v6202 = vadd.f32 %v2786, %v6201
        %6203 = vmatprep.mubr.f32.mxu0 %v1427
        %6204 = vmatmul.mubr.f32.gmra.mrb[0].mxu0 %v1426
        %v6205 = vpop.f32.mrb[0].mxu0
        %v6206 = vadd.f32 %v2782, %v6205
        %v6207 = vpop.f32.mrb[0].mxu0
        %v6208 = vadd.f32 %v2786, %v6207
        %6209 = vmatprep.mubr.f32.mxu0 %v1434
        %6210 = vmatmul.mubr.f32.gmra.mrb[0].mxu0 %v1433
        %v6211 = vpop.f32.mrb[0].mxu0
        %v6212 = vadd.f32 %v2782, %v6211
        %v6213 = vpop.f32.mrb[0].mxu0
        %v6214 = vadd.f32 %v2786, %v6213
        %6215 = vmatprep.mubr.f32.mxu0 %v1441
        %6216 = vmatmul.mubr.f32.gmra.mrb[0].mxu0 %v1440
        %v6217 = vpop.f32.mrb[0].mxu0
        %v6218 = vadd.f32 %v2782, %v6217
        %v6219 = vpop.f32.mrb[0].mxu0
        %v6220 = vadd.f32 %v2786, %v6219
        %6221 = vmatprep.mubr.f32.mxu0 %v1448
        %6222 = vmatmul.mubr.f32.gmra.mrb[0].mxu0 %v1447
        %v6223 = vpop.f32.mrb[0].mxu0
        %v6224 = vadd.f32 %v2782, %v6223
        %v6225 = vpop.f32.mrb[0].mxu0
        %v6226 = vadd.f32 %v2786, %v6225
        %6227 = vmatprep.mubr.f32.mxu0 %v1455
        %6228 = vmatmul.mubr.f32.gmra.mrb[0].mxu0 %v1454
        %v6229 = vpop.f32.mrb[0].mxu0
        %v6230 = vadd.f32 %v2782, %v6229
        %v6231 = vpop.f32.mrb[0].mxu0
        %v6232 = vadd.f32 %v2786, %v6231
        %6233 = vdwg.mxu0
        %6234 = vmatprep.subr.mxu0 %v1888
        %6235 = vmatpush1.msra.mxu0 %v1887
        %6236 = vmatprep.subr.mxu0 %v1901
        %6237 = vmatpush1.msra.mxu0 %v1900
        %6238 = vmatprep.subr.mxu0 %v1914
        %6239 = vmatpush1.msra.mxu0 %v1913
        %6240 = vmatprep.subr.mxu0 %v1927
        %6241 = vmatpush1.msra.mxu0 %v1926
        %6242 = vmatprep.subr.mxu0 %v1940
        %6243 = vmatpush1.msra.mxu0 %v1939
        %6244 = vmatprep.subr.mxu0 %v1953
        %6245 = vmatpush1.msra.mxu0 %v1952
        %6246 = vmatprep.subr.mxu0 %v1966
        %6247 = vmatpush1.msra.mxu0 %v1965
        %6248 = vmatprep.subr.mxu0 %v1979
        %6249 = vmatpush1.msra.mxu0 %v1978
        %6250 = vmatprep.subr.mxu0 %v1992
        %6251 = vmatpush1.msra.mxu0 %v1991
        %6252 = vmatprep.subr.mxu0 %v2005
        %6253 = vmatpush1.msra.mxu0 %v2004
        %6254 = vmatprep.subr.mxu0 %v2018
        %6255 = vmatpush1.msra.mxu0 %v2017
        %6256 = vmatprep.subr.mxu0 %v2031
        %6257 = vmatpush1.msra.mxu0 %v2030
        %6258 = vmatprep.subr.mxu0 %v2044
        %6259 = vmatpush1.msra.mxu0 %v2043
        %6260 = vmatprep.subr.mxu0 %v2057
        %6261 = vmatpush1.msra.mxu0 %v2056
        %6262 = vmatprep.subr.mxu0 %v2070
        %6263 = vmatpush1.msra.mxu0 %v2069
        %6264 = vmatprep.subr.mxu0 %v2083
        %6265 = vmatpush1.msra.mxu0 %v2082
        %6266 = vmatprep.subr.mxu0 %v2096
        %6267 = vmatpush1.msra.mxu0 %v2095
        %6268 = vmatprep.subr.mxu0 %v2109
        %6269 = vmatpush1.msra.mxu0 %v2108
        %6270 = vmatprep.subr.mxu0 %v2122
        %6271 = vmatpush1.msra.mxu0 %v2121
        %6272 = vmatprep.subr.mxu0 %v2135
        %6273 = vmatpush1.msra.mxu0 %v2134
        %6274 = vmatprep.subr.mxu0 %v2148
        %6275 = vmatpush1.msra.mxu0 %v2147
        %6276 = vmatprep.subr.mxu0 %v2161
        %6277 = vmatpush1.msra.mxu0 %v2160
        %6278 = vmatprep.subr.mxu0 %v2174
        %6279 = vmatpush1.msra.mxu0 %v2173
        %6280 = vmatprep.subr.mxu0 %v2187
        %6281 = vmatpush1.msra.mxu0 %v2186
        %6282 = vmatprep.subr.mxu0 %v2200
        %6283 = vmatpush1.msra.mxu0 %v2199
        %6284 = vmatprep.subr.mxu0 %v2213
        %6285 = vmatpush1.msra.mxu0 %v2212
        %6286 = vmatprep.subr.mxu0 %v2226
        %6287 = vmatpush1.msra.mxu0 %v2225
        %6288 = vmatprep.subr.mxu0 %v2239
        %6289 = vmatpush1.msra.mxu0 %v2238
        %6290 = vmatprep.subr.mxu0 %v2252
        %6291 = vmatpush1.msra.mxu0 %v2251
        %6292 = vmatprep.subr.mxu0 %v2265
        %6293 = vmatpush1.msra.mxu0 %v2264
        %6294 = vmatprep.subr.mxu0 %v2278
        %6295 = vmatpush1.msra.mxu0 %v2277
        %6296 = vmatprep.subr.mxu0 %v2291
        %6297 = vmatpush1.msra.mxu0 %v2290
        %6298 = vmatprep.mubr.f32.mxu0 %v1352
        %6299 = vmatmul.mubr.f32.gmra.mrb[0].mxu0 %v1351
        %v6300 = vpop.f32.mrb[0].mxu0
        %v6301 = vadd.f32 %v6140, %v6300
        %v6302 = vpop.f32.mrb[0].mxu0
        %v6303 = vadd.f32 %v6142, %v6302
        %6304 = vmatprep.mubr.f32.mxu0 %v1359
        %6305 = vmatmul.mubr.f32.gmra.mrb[0].mxu0 %v1358
        %v6306 = vpop.f32.mrb[0].mxu0
        %v6307 = vadd.f32 %v6146, %v6306
        %v6308 = vpop.f32.mrb[0].mxu0
        %v6309 = vadd.f32 %v6148, %v6308
        %6310 = vmatprep.mubr.f32.mxu0 %v1366
        %6311 = vmatmul.mubr.f32.gmra.mrb[0].mxu0 %v1365
        %v6312 = vpop.f32.mrb[0].mxu0
        %v6313 = vadd.f32 %v6152, %v6312
        %v6314 = vpop.f32.mrb[0].mxu0
        %v6315 = vadd.f32 %v6154, %v6314
        %6316 = vmatprep.mubr.f32.mxu0 %v1373
        %6317 = vmatmul.mubr.f32.gmra.mrb[0].mxu0 %v1372
        %v6318 = vpop.f32.mrb[0].mxu0
        %v6319 = vadd.f32 %v6158, %v6318
        %v6320 = vpop.f32.mrb[0].mxu0
        %v6321 = vadd.f32 %v6160, %v6320
        %6322 = vmatprep.mubr.f32.mxu0 %v1380
        %6323 = vmatmul.mubr.f32.gmra.mrb[0].mxu0 %v1379
        %v6324 = vpop.f32.mrb[0].mxu0
        %v6325 = vadd.f32 %v6164, %v6324
        %v6326 = vpop.f32.mrb[0].mxu0
        %v6327 = vadd.f32 %v6166, %v6326
        %6328 = vmatprep.mubr.f32.mxu0 %v1387
        %6329 = vmatmul.mubr.f32.gmra.mrb[0].mxu0 %v1386
        %v6330 = vpop.f32.mrb[0].mxu0
        %v6331 = vadd.f32 %v6170, %v6330
        %v6332 = vpop.f32.mrb[0].mxu0
        %v6333 = vadd.f32 %v6172, %v6332
        %6334 = vmatprep.mubr.f32.mxu0 %v1394
        %6335 = vmatmul.mubr.f32.gmra.mrb[0].mxu0 %v1393
        %v6336 = vpop.f32.mrb[0].mxu0
        %v6337 = vadd.f32 %v6176, %v6336
        %v6338 = vpop.f32.mrb[0].mxu0
        %v6339 = vadd.f32 %v6178, %v6338
        %6340 = vmatprep.mubr.f32.mxu0 %v1401
        %6341 = vmatmul.mubr.f32.gmra.mrb[0].mxu0 %v1400
        %v6342 = vpop.f32.mrb[0].mxu0
        %v6343 = vadd.f32 %v6182, %v6342
        %v6344 = vpop.f32.mrb[0].mxu0
        %v6345 = vadd.f32 %v6184, %v6344
        %6346 = vmatprep.mubr.f32.mxu0 %v1408
        %6347 = vmatmul.mubr.f32.gmra.mrb[0].mxu0 %v1407
        %v6348 = vpop.f32.mrb[0].mxu0
        %v6349 = vadd.f32 %v6188, %v6348
        %v6350 = vpop.f32.mrb[0].mxu0
        %v6351 = vadd.f32 %v6190, %v6350
        %6352 = vmatprep.mubr.f32.mxu0 %v1415
        %6353 = vmatmul.mubr.f32.gmra.mrb[0].mxu0 %v1414
        %v6354 = vpop.f32.mrb[0].mxu0
        %v6355 = vadd.f32 %v6194, %v6354
        %v6356 = vpop.f32.mrb[0].mxu0
        %v6357 = vadd.f32 %v6196, %v6356
        %6358 = vmatprep.mubr.f32.mxu0 %v1422
        %6359 = vmatmul.mubr.f32.gmra.mrb[0].mxu0 %v1421
        %v6360 = vpop.f32.mrb[0].mxu0
        %v6361 = vadd.f32 %v6200, %v6360
        %v6362 = vpop.f32.mrb[0].mxu0
        %v6363 = vadd.f32 %v6202, %v6362
        %6364 = vmatprep.mubr.f32.mxu0 %v1429
        %6365 = vmatmul.mubr.f32.gmra.mrb[0].mxu0 %v1428
        %v6366 = vpop.f32.mrb[0].mxu0
        %v6367 = vadd.f32 %v6206, %v6366
        %v6368 = vpop.f32.mrb[0].mxu0
        %v6369 = vadd.f32 %v6208, %v6368
        %6370 = vmatprep.mubr.f32.mxu0 %v1436
        %6371 = vmatmul.mubr.f32.gmra.mrb[0].mxu0 %v1435
        %v6372 = vpop.f32.mrb[0].mxu0
        %v6373 = vadd.f32 %v6212, %v6372
        %v6374 = vpop.f32.mrb[0].mxu0
        %v6375 = vadd.f32 %v6214, %v6374
        %6376 = vmatprep.mubr.f32.mxu0 %v1443
        %6377 = vmatmul.mubr.f32.gmra.mrb[0].mxu0 %v1442
        %v6378 = vpop.f32.mrb[0].mxu0
        %v6379 = vadd.f32 %v6218, %v6378
        %v6380 = vpop.f32.mrb[0].mxu0
        %v6381 = vadd.f32 %v6220, %v6380
        %6382 = vmatprep.mubr.f32.mxu0 %v1450
        %6383 = vmatmul.mubr.f32.gmra.mrb[0].mxu0 %v1449
        %v6384 = vpop.f32.mrb[0].mxu0
        %v6385 = vadd.f32 %v6224, %v6384
        %v6386 = vpop.f32.mrb[0].mxu0
        %v6387 = vadd.f32 %v6226, %v6386
        %6388 = vmatprep.mubr.f32.mxu0 %v1457
        %6389 = vmatmul.mubr.f32.gmra.mrb[0].mxu0 %v1456
        %v6390 = vpop.f32.mrb[0].mxu0
        %v6391 = vadd.f32 %v6230, %v6390
        %v6392 = vpop.f32.mrb[0].mxu0
        %v6393 = vadd.f32 %v6232, %v6392
        %6394 = vdwg.mxu0
        %6395 = vmatprep.subr.mxu0 %v2304
        %6396 = vmatpush1.msra.mxu0 %v2303
        %6397 = vmatprep.subr.mxu0 %v2317
        %6398 = vmatpush1.msra.mxu0 %v2316
        %6399 = vmatprep.subr.mxu0 %v2330
        %6400 = vmatpush1.msra.mxu0 %v2329
        %6401 = vmatprep.subr.mxu0 %v2343
        %6402 = vmatpush1.msra.mxu0 %v2342
        %6403 = vmatprep.subr.mxu0 %v2356
        %6404 = vmatpush1.msra.mxu0 %v2355
        %6405 = vmatprep.subr.mxu0 %v2369
        %6406 = vmatpush1.msra.mxu0 %v2368
        %6407 = vmatprep.subr.mxu0 %v2382
        %6408 = vmatpush1.msra.mxu0 %v2381
        %6409 = vmatprep.subr.mxu0 %v2395
        %6410 = vmatpush1.msra.mxu0 %v2394
        %6411 = vmatprep.subr.mxu0 %v2408
        %6412 = vmatpush1.msra.mxu0 %v2407
        %6413 = vmatprep.subr.mxu0 %v2421
        %6414 = vmatpush1.msra.mxu0 %v2420
        %6415 = vmatprep.subr.mxu0 %v2434
        %6416 = vmatpush1.msra.mxu0 %v2433
        %6417 = vmatprep.subr.mxu0 %v2447
        %6418 = vmatpush1.msra.mxu0 %v2446
        %6419 = vmatprep.subr.mxu0 %v2460
        %6420 = vmatpush1.msra.mxu0 %v2459
        %6421 = vmatprep.subr.mxu0 %v2473
        %6422 = vmatpush1.msra.mxu0 %v2472
        %6423 = vmatprep.subr.mxu0 %v2486
        %6424 = vmatpush1.msra.mxu0 %v2485
        %6425 = vmatprep.subr.mxu0 %v2499
        %6426 = vmatpush1.msra.mxu0 %v2498
        %6427 = vmatprep.subr.mxu0 %v2512
        %6428 = vmatpush1.msra.mxu0 %v2511
        %6429 = vmatprep.subr.mxu0 %v2525
        %6430 = vmatpush1.msra.mxu0 %v2524
        %6431 = vmatprep.subr.mxu0 %v2538
        %6432 = vmatpush1.msra.mxu0 %v2537
        %6433 = vmatprep.subr.mxu0 %v2551
        %6434 = vmatpush1.msra.mxu0 %v2550
        %6435 = vmatprep.subr.mxu0 %v2564
        %6436 = vmatpush1.msra.mxu0 %v2563
        %6437 = vmatprep.subr.mxu0 %v2577
        %6438 = vmatpush1.msra.mxu0 %v2576
        %6439 = vmatprep.subr.mxu0 %v2590
        %6440 = vmatpush1.msra.mxu0 %v2589
        %6441 = vmatprep.subr.mxu0 %v2603
        %6442 = vmatpush1.msra.mxu0 %v2602
        %6443 = vmatprep.subr.mxu0 %v2616
        %6444 = vmatpush1.msra.mxu0 %v2615
        %6445 = vmatprep.subr.mxu0 %v2629
        %6446 = vmatpush1.msra.mxu0 %v2628
        %6447 = vmatprep.subr.mxu0 %v2642
        %6448 = vmatpush1.msra.mxu0 %v2641
        %6449 = vmatprep.subr.mxu0 %v2655
        %6450 = vmatpush1.msra.mxu0 %v2654
        %6451 = vmatprep.subr.mxu0 %v2668
        %6452 = vmatpush1.msra.mxu0 %v2667
        %6453 = vmatprep.subr.mxu0 %v2681
        %6454 = vmatpush1.msra.mxu0 %v2680
        %6455 = vmatprep.subr.mxu0 %v2694
        %6456 = vmatpush1.msra.mxu0 %v2693
        %6457 = vmatprep.subr.mxu0 %v2707
        %6458 = vmatpush1.msra.mxu0 %v2706
        %6459 = vmatprep.mubr.f32.mxu0 %v1354
        %6460 = vmatmul.mubr.f32.gmra.mrb[0].mxu0 %v1353
        %v6461 = vpop.f32.mrb[0].mxu0
        %v6462 = vadd.f32 %v6301, %v6461
        %v6463 = vpop.f32.mrb[0].mxu0
        %v6464 = vadd.f32 %v6303, %v6463
        %6465 = vmatprep.mubr.f32.mxu0 %v1361
        %6466 = vmatmul.mubr.f32.gmra.mrb[0].mxu0 %v1360
        %v6467 = vpop.f32.mrb[0].mxu0
        %v6468 = vadd.f32 %v6307, %v6467
        %v6469 = vpop.f32.mrb[0].mxu0
        %v6470 = vadd.f32 %v6309, %v6469
        %6471 = vmatprep.mubr.f32.mxu0 %v1368
        %6472 = vmatmul.mubr.f32.gmra.mrb[0].mxu0 %v1367
        %v6473 = vpop.f32.mrb[0].mxu0
        %v6474 = vadd.f32 %v6313, %v6473
        %v6475 = vpop.f32.mrb[0].mxu0
        %v6476 = vadd.f32 %v6315, %v6475
        %6477 = vmatprep.mubr.f32.mxu0 %v1375
        %6478 = vmatmul.mubr.f32.gmra.mrb[0].mxu0 %v1374
        %v6479 = vpop.f32.mrb[0].mxu0
        %v6480 = vadd.f32 %v6319, %v6479
        %v6481 = vpop.f32.mrb[0].mxu0
        %v6482 = vadd.f32 %v6321, %v6481
        %6483 = vmatprep.mubr.f32.mxu0 %v1382
        %6484 = vmatmul.mubr.f32.gmra.mrb[0].mxu0 %v1381
        %v6485 = vpop.f32.mrb[0].mxu0
        %v6486 = vadd.f32 %v6325, %v6485
        %v6487 = vpop.f32.mrb[0].mxu0
        %v6488 = vadd.f32 %v6327, %v6487
        %6489 = vmatprep.mubr.f32.mxu0 %v1389
        %6490 = vmatmul.mubr.f32.gmra.mrb[0].mxu0 %v1388
        %v6491 = vpop.f32.mrb[0].mxu0
        %v6492 = vadd.f32 %v6331, %v6491
        %v6493 = vpop.f32.mrb[0].mxu0
        %v6494 = vadd.f32 %v6333, %v6493
        %6495 = vmatprep.mubr.f32.mxu0 %v1396
        %6496 = vmatmul.mubr.f32.gmra.mrb[0].mxu0 %v1395
        %v6497 = vpop.f32.mrb[0].mxu0
        %v6498 = vadd.f32 %v6337, %v6497
        %v6499 = vpop.f32.mrb[0].mxu0
        %v6500 = vadd.f32 %v6339, %v6499
        %6501 = vmatprep.mubr.f32.mxu0 %v1403
        %6502 = vmatmul.mubr.f32.gmra.mrb[0].mxu0 %v1402
        %v6503 = vpop.f32.mrb[0].mxu0
        %v6504 = vadd.f32 %v6343, %v6503
        %v6505 = vpop.f32.mrb[0].mxu0
        %v6506 = vadd.f32 %v6345, %v6505
        %6507 = vmatprep.mubr.f32.mxu0 %v1410
        %6508 = vmatmul.mubr.f32.gmra.mrb[0].mxu0 %v1409
        %v6509 = vpop.f32.mrb[0].mxu0
        %v6510 = vadd.f32 %v6349, %v6509
        %v6511 = vpop.f32.mrb[0].mxu0
        %v6512 = vadd.f32 %v6351, %v6511
        %6513 = vmatprep.mubr.f32.mxu0 %v1417
        %6514 = vmatmul.mubr.f32.gmra.mrb[0].mxu0 %v1416
        %v6515 = vpop.f32.mrb[0].mxu0
        %v6516 = vadd.f32 %v6355, %v6515
        %v6517 = vpop.f32.mrb[0].mxu0
        %v6518 = vadd.f32 %v6357, %v6517
        %6519 = vmatprep.mubr.f32.mxu0 %v1424
        %6520 = vmatmul.mubr.f32.gmra.mrb[0].mxu0 %v1423
        %v6521 = vpop.f32.mrb[0].mxu0
        %v6522 = vadd.f32 %v6361, %v6521
        %v6523 = vpop.f32.mrb[0].mxu0
        %v6524 = vadd.f32 %v6363, %v6523
        %6525 = vmatprep.mubr.f32.mxu0 %v1431
        %6526 = vmatmul.mubr.f32.gmra.mrb[0].mxu0 %v1430
        %v6527 = vpop.f32.mrb[0].mxu0
        %v6528 = vadd.f32 %v6367, %v6527
        %v6529 = vpop.f32.mrb[0].mxu0
        %v6530 = vadd.f32 %v6369, %v6529
        %6531 = vmatprep.mubr.f32.mxu0 %v1438
        %6532 = vmatmul.mubr.f32.gmra.mrb[0].mxu0 %v1437
        %v6533 = vpop.f32.mrb[0].mxu0
        %v6534 = vadd.f32 %v6373, %v6533
        %v6535 = vpop.f32.mrb[0].mxu0
        %v6536 = vadd.f32 %v6375, %v6535
        %6537 = vmatprep.mubr.f32.mxu0 %v1445
        %6538 = vmatmul.mubr.f32.gmra.mrb[0].mxu0 %v1444
        %v6539 = vpop.f32.mrb[0].mxu0
        %v6540 = vadd.f32 %v6379, %v6539
        %v6541 = vpop.f32.mrb[0].mxu0
        %v6542 = vadd.f32 %v6381, %v6541
        %6543 = vmatprep.mubr.f32.mxu0 %v1452
        %6544 = vmatmul.mubr.f32.gmra.mrb[0].mxu0 %v1451
        %v6545 = vpop.f32.mrb[0].mxu0
        %v6546 = vadd.f32 %v6385, %v6545
        %v6547 = vpop.f32.mrb[0].mxu0
        %v6548 = vadd.f32 %v6387, %v6547
        %6549 = vmatprep.mubr.f32.mxu0 %v1459
        %6550 = vmatmul.mubr.f32.gmra.mrb[0].mxu0 %v1458
        %v6551 = vpop.f32.mrb[0].mxu0
        %v6552 = vadd.f32 %v6391, %v6551
        %v6553 = vpop.f32.mrb[0].mxu0
        %v6554 = vadd.f32 %v6393, %v6553
        %6555 = vdwg.mxu0
        %6556 = vmatprep.subr.mxu0 %v2720
        %6557 = vmatpush1.msra.mxu0 %v2719
        %6558 = vmatprep.subr.mxu0 %v2733
        %6559 = vmatpush1.msra.mxu0 %v2732
        %6560 = vmatprep.subr.mxu0 0.0
        %6561 = vmatpush1.msra.mxu0 0.0
        %6562 = vmatprep.subr.mxu0 0.0
        %6563 = vmatpush1.msra.mxu0 0.0
        %6564 = vmatprep.subr.mxu0 0.0
        %6565 = vmatpush1.msra.mxu0 0.0
        %6566 = vmatprep.subr.mxu0 0.0
        %6567 = vmatpush1.msra.mxu0 0.0
        %6568 = vmatprep.subr.mxu0 0.0
        %6569 = vmatpush1.msra.mxu0 0.0
        %6570 = vmatprep.subr.mxu0 0.0
        %6571 = vmatpush1.msra.mxu0 0.0
        %6572 = vmatprep.subr.mxu0 0.0
        %6573 = vmatpush1.msra.mxu0 0.0
        %6574 = vmatprep.subr.mxu0 0.0
        %6575 = vmatpush1.msra.mxu0 0.0
        %6576 = vmatprep.subr.mxu0 0.0
        %6577 = vmatpush1.msra.mxu0 0.0
        %6578 = vmatprep.subr.mxu0 0.0
        %6579 = vmatpush1.msra.mxu0 0.0
        %6580 = vmatprep.subr.mxu0 0.0
        %6581 = vmatpush1.msra.mxu0 0.0
        %6582 = vmatprep.subr.mxu0 0.0
        %6583 = vmatpush1.msra.mxu0 0.0
        %6584 = vmatprep.subr.mxu0 0.0
        %6585 = vmatpush1.msra.mxu0 0.0
        %6586 = vmatprep.subr.mxu0 0.0
        %6587 = vmatpush1.msra.mxu0 0.0
        %6588 = vmatprep.subr.mxu0 0.0
        %6589 = vmatpush1.msra.mxu0 0.0
        %6590 = vmatprep.subr.mxu0 0.0
        %6591 = vmatpush1.msra.mxu0 0.0
        %6592 = vmatprep.subr.mxu0 0.0
        %6593 = vmatpush1.msra.mxu0 0.0
        %6594 = vmatprep.subr.mxu0 0.0
        %6595 = vmatpush1.msra.mxu0 0.0
        %6596 = vmatprep.subr.mxu0 0.0
        %6597 = vmatpush1.msra.mxu0 0.0
        %6598 = vmatprep.subr.mxu0 0.0
        %6599 = vmatpush1.msra.mxu0 0.0
        %6600 = vmatprep.subr.mxu0 0.0
        %6601 = vmatpush1.msra.mxu0 0.0
        %6602 = vmatprep.subr.mxu0 0.0
        %6603 = vmatpush1.msra.mxu0 0.0
        %6604 = vmatprep.subr.mxu0 0.0
        %6605 = vmatpush1.msra.mxu0 0.0
        %6606 = vmatprep.subr.mxu0 0.0
        %6607 = vmatpush1.msra.mxu0 0.0
        %6608 = vmatprep.subr.mxu0 0.0
        %6609 = vmatpush1.msra.mxu0 0.0
        %6610 = vmatprep.subr.mxu0 0.0
        %6611 = vmatpush1.msra.mxu0 0.0
        %6612 = vmatprep.subr.mxu0 0.0
        %6613 = vmatpush1.msra.mxu0 0.0
        %6614 = vmatprep.subr.mxu0 0.0
        %6615 = vmatpush1.msra.mxu0 0.0
        %6616 = vmatprep.subr.mxu0 0.0
        %6617 = vmatpush1.msra.mxu0 0.0
        %6618 = vmatprep.subr.mxu0 0.0
        %6619 = vmatpush1.msra.mxu0 0.0
        %6620 = vmatprep.mubr.f32.mxu0 0.0
        %6621 = vmatmul.mubr.f32.gmra.mrb[0].mxu0 %v2806
        %v6622 = vpop.f32.mrb[0].mxu0
        %v6623 = vadd.f32 %v6462, %v6622
        %v6624 = vpop.f32.mrb[0].mxu0
        %v6625 = vadd.f32 %v6464, %v6624
        %6626 = vmatprep.mubr.f32.mxu0 0.0
        %6627 = vmatmul.mubr.f32.gmra.mrb[0].mxu0 %v2809
        %v6628 = vpop.f32.mrb[0].mxu0
        %v6629 = vadd.f32 %v6468, %v6628
        %v6630 = vpop.f32.mrb[0].mxu0
        %v6631 = vadd.f32 %v6470, %v6630
        %6632 = vmatprep.mubr.f32.mxu0 0.0
        %6633 = vmatmul.mubr.f32.gmra.mrb[0].mxu0 %v2812
        %v6634 = vpop.f32.mrb[0].mxu0
        %v6635 = vadd.f32 %v6474, %v6634
        %v6636 = vpop.f32.mrb[0].mxu0
        %v6637 = vadd.f32 %v6476, %v6636
        %6638 = vmatprep.mubr.f32.mxu0 0.0
        %6639 = vmatmul.mubr.f32.gmra.mrb[0].mxu0 %v2815
        %v6640 = vpop.f32.mrb[0].mxu0
        %v6641 = vadd.f32 %v6480, %v6640
        %v6642 = vpop.f32.mrb[0].mxu0
        %v6643 = vadd.f32 %v6482, %v6642
        %6644 = vmatprep.mubr.f32.mxu0 0.0
        %6645 = vmatmul.mubr.f32.gmra.mrb[0].mxu0 %v2818
        %v6646 = vpop.f32.mrb[0].mxu0
        %v6647 = vadd.f32 %v6486, %v6646
        %v6648 = vpop.f32.mrb[0].mxu0
        %v6649 = vadd.f32 %v6488, %v6648
        %6650 = vmatprep.mubr.f32.mxu0 0.0
        %6651 = vmatmul.mubr.f32.gmra.mrb[0].mxu0 %v2821
        %v6652 = vpop.f32.mrb[0].mxu0
        %v6653 = vadd.f32 %v6492, %v6652
        %v6654 = vpop.f32.mrb[0].mxu0
        %v6655 = vadd.f32 %v6494, %v6654
        %6656 = vmatprep.mubr.f32.mxu0 0.0
        %6657 = vmatmul.mubr.f32.gmra.mrb[0].mxu0 %v2824
        %v6658 = vpop.f32.mrb[0].mxu0
        %v6659 = vadd.f32 %v6498, %v6658
        %v6660 = vpop.f32.mrb[0].mxu0
        %v6661 = vadd.f32 %v6500, %v6660
        %6662 = vmatprep.mubr.f32.mxu0 0.0
        %6663 = vmatmul.mubr.f32.gmra.mrb[0].mxu0 %v2827
        %v6664 = vpop.f32.mrb[0].mxu0
        %v6665 = vadd.f32 %v6504, %v6664
        %v6666 = vpop.f32.mrb[0].mxu0
        %v6667 = vadd.f32 %v6506, %v6666
        %6668 = vmatprep.mubr.f32.mxu0 0.0
        %6669 = vmatmul.mubr.f32.gmra.mrb[0].mxu0 %v2830
        %v6670 = vpop.f32.mrb[0].mxu0
        %v6671 = vadd.f32 %v6510, %v6670
        %v6672 = vpop.f32.mrb[0].mxu0
        %v6673 = vadd.f32 %v6512, %v6672
        %6674 = vmatprep.mubr.f32.mxu0 0.0
        %6675 = vmatmul.mubr.f32.gmra.mrb[0].mxu0 %v2833
        %v6676 = vpop.f32.mrb[0].mxu0
        %v6677 = vadd.f32 %v6516, %v6676
        %v6678 = vpop.f32.mrb[0].mxu0
        %v6679 = vadd.f32 %v6518, %v6678
        %6680 = vmatprep.mubr.f32.mxu0 0.0
        %6681 = vmatmul.mubr.f32.gmra.mrb[0].mxu0 %v2836
        %v6682 = vpop.f32.mrb[0].mxu0
        %v6683 = vadd.f32 %v6522, %v6682
        %v6684 = vpop.f32.mrb[0].mxu0
        %v6685 = vadd.f32 %v6524, %v6684
        %6686 = vmatprep.mubr.f32.mxu0 0.0
        %6687 = vmatmul.mubr.f32.gmra.mrb[0].mxu0 %v2839
        %v6688 = vpop.f32.mrb[0].mxu0
        %v6689 = vadd.f32 %v6528, %v6688
        %v6690 = vpop.f32.mrb[0].mxu0
        %v6691 = vadd.f32 %v6530, %v6690
        %6692 = vmatprep.mubr.f32.mxu0 0.0
        %6693 = vmatmul.mubr.f32.gmra.mrb[0].mxu0 %v2842
        %v6694 = vpop.f32.mrb[0].mxu0
        %v6695 = vadd.f32 %v6534, %v6694
        %v6696 = vpop.f32.mrb[0].mxu0
        %v6697 = vadd.f32 %v6536, %v6696
        %6698 = vmatprep.mubr.f32.mxu0 0.0
        %6699 = vmatmul.mubr.f32.gmra.mrb[0].mxu0 %v2845
        %v6700 = vpop.f32.mrb[0].mxu0
        %v6701 = vadd.f32 %v6540, %v6700
        %v6702 = vpop.f32.mrb[0].mxu0
        %v6703 = vadd.f32 %v6542, %v6702
        %6704 = vmatprep.mubr.f32.mxu0 0.0
        %6705 = vmatmul.mubr.f32.gmra.mrb[0].mxu0 %v2848
        %v6706 = vpop.f32.mrb[0].mxu0
        %v6707 = vadd.f32 %v6546, %v6706
        %v6708 = vpop.f32.mrb[0].mxu0
        %v6709 = vadd.f32 %v6548, %v6708
        %6710 = vmatprep.mubr.f32.mxu0 0.0
        %6711 = vmatmul.mubr.f32.gmra.mrb[0].mxu0 %v2851
        %v6712 = vpop.f32.mrb[0].mxu0
        %v6713 = vadd.f32 %v6552, %v6712
        %v6714 = vpop.f32.mrb[0].mxu0
        %v6715 = vadd.f32 %v6554, %v6714
        %6716 = vdwg.mxu0
        %6717 = vmatprep.subr.mxu0 0.0
        %6718 = vmatpush1.msra.mxu0 %v1473
        %6719 = vmatprep.subr.mxu0 0.0
        %6720 = vmatpush1.msra.mxu0 %v1486
        %6721 = vmatprep.subr.mxu0 0.0
        %6722 = vmatpush1.msra.mxu0 %v1499
        %6723 = vmatprep.subr.mxu0 0.0
        %6724 = vmatpush1.msra.mxu0 %v1512
        %6725 = vmatprep.subr.mxu0 0.0
        %6726 = vmatpush1.msra.mxu0 %v1525
        %6727 = vmatprep.subr.mxu0 0.0
        %6728 = vmatpush1.msra.mxu0 %v1538
        %6729 = vmatprep.subr.mxu0 0.0
        %6730 = vmatpush1.msra.mxu0 %v1551
        %6731 = vmatprep.subr.mxu0 0.0
        %6732 = vmatpush1.msra.mxu0 %v1564
        %6733 = vmatprep.subr.mxu0 0.0
        %6734 = vmatpush1.msra.mxu0 %v1577
        %6735 = vmatprep.subr.mxu0 0.0
        %6736 = vmatpush1.msra.mxu0 %v1590
        %6737 = vmatprep.subr.mxu0 0.0
        %6738 = vmatpush1.msra.mxu0 %v1603
        %6739 = vmatprep.subr.mxu0 0.0
        %6740 = vmatpush1.msra.mxu0 %v1616
        %6741 = vmatprep.subr.mxu0 0.0
        %6742 = vmatpush1.msra.mxu0 %v1629
        %6743 = vmatprep.subr.mxu0 0.0
        %6744 = vmatpush1.msra.mxu0 %v1642
        %6745 = vmatprep.subr.mxu0 0.0
        %6746 = vmatpush1.msra.mxu0 %v1655
        %6747 = vmatprep.subr.mxu0 0.0
        %6748 = vmatpush1.msra.mxu0 %v1668
        %6749 = vmatprep.subr.mxu0 0.0
        %6750 = vmatpush1.msra.mxu0 %v1681
        %6751 = vmatprep.subr.mxu0 0.0
        %6752 = vmatpush1.msra.mxu0 %v1694
        %6753 = vmatprep.subr.mxu0 0.0
        %6754 = vmatpush1.msra.mxu0 %v1707
        %6755 = vmatprep.subr.mxu0 0.0
        %6756 = vmatpush1.msra.mxu0 %v1720
        %6757 = vmatprep.subr.mxu0 0.0
        %6758 = vmatpush1.msra.mxu0 %v1733
        %6759 = vmatprep.subr.mxu0 0.0
        %6760 = vmatpush1.msra.mxu0 %v1746
        %6761 = vmatprep.subr.mxu0 0.0
        %6762 = vmatpush1.msra.mxu0 %v1759
        %6763 = vmatprep.subr.mxu0 0.0
        %6764 = vmatpush1.msra.mxu0 %v1772
        %6765 = vmatprep.subr.mxu0 0.0
        %6766 = vmatpush1.msra.mxu0 %v1785
        %6767 = vmatprep.subr.mxu0 0.0
        %6768 = vmatpush1.msra.mxu0 %v1798
        %6769 = vmatprep.subr.mxu0 0.0
        %6770 = vmatpush1.msra.mxu0 %v1811
        %6771 = vmatprep.subr.mxu0 0.0
        %6772 = vmatpush1.msra.mxu0 %v1824
        %6773 = vmatprep.subr.mxu0 0.0
        %6774 = vmatpush1.msra.mxu0 %v1837
        %6775 = vmatprep.subr.mxu0 0.0
        %6776 = vmatpush1.msra.mxu0 %v1850
        %6777 = vmatprep.subr.mxu0 0.0
        %6778 = vmatpush1.msra.mxu0 %v1863
        %6779 = vmatprep.subr.mxu0 0.0
        %6780 = vmatpush1.msra.mxu0 %v1876
        %6781 = vmatprep.mubr.f32.mxu0 %v1350
        %6782 = vmatmul.mubr.f32.gmra.mrb[0].mxu0 %v1349
        %v6783 = vpop.f32.mrb[0].mxu0
        %v6784 = vadd.f32 %v2790, %v6783
        %v6785 = vpop.f32.mrb[0].mxu0
        %6786 = vmatprep.mubr.f32.mxu0 %v1357
        %6787 = vmatmul.mubr.f32.gmra.mrb[0].mxu0 %v1356
        %v6788 = vpop.f32.mrb[0].mxu0
        %v6789 = vadd.f32 %v2790, %v6788
        %v6790 = vpop.f32.mrb[0].mxu0
        %6791 = vmatprep.mubr.f32.mxu0 %v1364
        %6792 = vmatmul.mubr.f32.gmra.mrb[0].mxu0 %v1363
        %v6793 = vpop.f32.mrb[0].mxu0
        %v6794 = vadd.f32 %v2790, %v6793
        %v6795 = vpop.f32.mrb[0].mxu0
        %6796 = vmatprep.mubr.f32.mxu0 %v1371
        %6797 = vmatmul.mubr.f32.gmra.mrb[0].mxu0 %v1370
        %v6798 = vpop.f32.mrb[0].mxu0
        %v6799 = vadd.f32 %v2790, %v6798
        %v6800 = vpop.f32.mrb[0].mxu0
        %6801 = vmatprep.mubr.f32.mxu0 %v1378
        %6802 = vmatmul.mubr.f32.gmra.mrb[0].mxu0 %v1377
        %v6803 = vpop.f32.mrb[0].mxu0
        %v6804 = vadd.f32 %v2790, %v6803
        %v6805 = vpop.f32.mrb[0].mxu0
        %6806 = vmatprep.mubr.f32.mxu0 %v1385
        %6807 = vmatmul.mubr.f32.gmra.mrb[0].mxu0 %v1384
        %v6808 = vpop.f32.mrb[0].mxu0
        %v6809 = vadd.f32 %v2790, %v6808
        %v6810 = vpop.f32.mrb[0].mxu0
        %6811 = vmatprep.mubr.f32.mxu0 %v1392
        %6812 = vmatmul.mubr.f32.gmra.mrb[0].mxu0 %v1391
        %v6813 = vpop.f32.mrb[0].mxu0
        %v6814 = vadd.f32 %v2790, %v6813
        %v6815 = vpop.f32.mrb[0].mxu0
        %6816 = vmatprep.mubr.f32.mxu0 %v1399
        %6817 = vmatmul.mubr.f32.gmra.mrb[0].mxu0 %v1398
        %v6818 = vpop.f32.mrb[0].mxu0
        %v6819 = vadd.f32 %v2790, %v6818
        %v6820 = vpop.f32.mrb[0].mxu0
        %6821 = vmatprep.mubr.f32.mxu0 %v1406
        %6822 = vmatmul.mubr.f32.gmra.mrb[0].mxu0 %v1405
        %v6823 = vpop.f32.mrb[0].mxu0
        %v6824 = vadd.f32 %v2790, %v6823
        %v6825 = vpop.f32.mrb[0].mxu0
        %6826 = vmatprep.mubr.f32.mxu0 %v1413
        %6827 = vmatmul.mubr.f32.gmra.mrb[0].mxu0 %v1412
        %v6828 = vpop.f32.mrb[0].mxu0
        %v6829 = vadd.f32 %v2790, %v6828
        %v6830 = vpop.f32.mrb[0].mxu0
        %6831 = vmatprep.mubr.f32.mxu0 %v1420
        %6832 = vmatmul.mubr.f32.gmra.mrb[0].mxu0 %v1419
        %v6833 = vpop.f32.mrb[0].mxu0
        %v6834 = vadd.f32 %v2790, %v6833
        %v6835 = vpop.f32.mrb[0].mxu0
        %6836 = vmatprep.mubr.f32.mxu0 %v1427
        %6837 = vmatmul.mubr.f32.gmra.mrb[0].mxu0 %v1426
        %v6838 = vpop.f32.mrb[0].mxu0
        %v6839 = vadd.f32 %v2790, %v6838
        %v6840 = vpop.f32.mrb[0].mxu0
        %6841 = vmatprep.mubr.f32.mxu0 %v1434
        %6842 = vmatmul.mubr.f32.gmra.mrb[0].mxu0 %v1433
        %v6843 = vpop.f32.mrb[0].mxu0
        %v6844 = vadd.f32 %v2790, %v6843
        %v6845 = vpop.f32.mrb[0].mxu0
        %6846 = vmatprep.mubr.f32.mxu0 %v1441
        %6847 = vmatmul.mubr.f32.gmra.mrb[0].mxu0 %v1440
        %v6848 = vpop.f32.mrb[0].mxu0
        %v6849 = vadd.f32 %v2790, %v6848
        %v6850 = vpop.f32.mrb[0].mxu0
        %6851 = vmatprep.mubr.f32.mxu0 %v1448
        %6852 = vmatmul.mubr.f32.gmra.mrb[0].mxu0 %v1447
        %v6853 = vpop.f32.mrb[0].mxu0
        %v6854 = vadd.f32 %v2790, %v6853
        %v6855 = vpop.f32.mrb[0].mxu0
        %6856 = vmatprep.mubr.f32.mxu0 %v1455
        %6857 = vmatmul.mubr.f32.gmra.mrb[0].mxu0 %v1454
        %v6858 = vpop.f32.mrb[0].mxu0
        %v6859 = vadd.f32 %v2790, %v6858
        %v6860 = vpop.f32.mrb[0].mxu0
        %6861 = vdwg.mxu0
        %6862 = vmatprep.subr.mxu0 0.0
        %6863 = vmatpush1.msra.mxu0 %v1889
        %6864 = vmatprep.subr.mxu0 0.0
        %6865 = vmatpush1.msra.mxu0 %v1902
        %6866 = vmatprep.subr.mxu0 0.0
        %6867 = vmatpush1.msra.mxu0 %v1915
        %6868 = vmatprep.subr.mxu0 0.0
        %6869 = vmatpush1.msra.mxu0 %v1928
        %6870 = vmatprep.subr.mxu0 0.0
        %6871 = vmatpush1.msra.mxu0 %v1941
        %6872 = vmatprep.subr.mxu0 0.0
        %6873 = vmatpush1.msra.mxu0 %v1954
        %6874 = vmatprep.subr.mxu0 0.0
        %6875 = vmatpush1.msra.mxu0 %v1967
        %6876 = vmatprep.subr.mxu0 0.0
        %6877 = vmatpush1.msra.mxu0 %v1980
        %6878 = vmatprep.subr.mxu0 0.0
        %6879 = vmatpush1.msra.mxu0 %v1993
        %6880 = vmatprep.subr.mxu0 0.0
        %6881 = vmatpush1.msra.mxu0 %v2006
        %6882 = vmatprep.subr.mxu0 0.0
        %6883 = vmatpush1.msra.mxu0 %v2019
        %6884 = vmatprep.subr.mxu0 0.0
        %6885 = vmatpush1.msra.mxu0 %v2032
        %6886 = vmatprep.subr.mxu0 0.0
        %6887 = vmatpush1.msra.mxu0 %v2045
        %6888 = vmatprep.subr.mxu0 0.0
        %6889 = vmatpush1.msra.mxu0 %v2058
        %6890 = vmatprep.subr.mxu0 0.0
        %6891 = vmatpush1.msra.mxu0 %v2071
        %6892 = vmatprep.subr.mxu0 0.0
        %6893 = vmatpush1.msra.mxu0 %v2084
        %6894 = vmatprep.subr.mxu0 0.0
        %6895 = vmatpush1.msra.mxu0 %v2097
        %6896 = vmatprep.subr.mxu0 0.0
        %6897 = vmatpush1.msra.mxu0 %v2110
        %6898 = vmatprep.subr.mxu0 0.0
        %6899 = vmatpush1.msra.mxu0 %v2123
        %6900 = vmatprep.subr.mxu0 0.0
        %6901 = vmatpush1.msra.mxu0 %v2136
        %6902 = vmatprep.subr.mxu0 0.0
        %6903 = vmatpush1.msra.mxu0 %v2149
        %6904 = vmatprep.subr.mxu0 0.0
        %6905 = vmatpush1.msra.mxu0 %v2162
        %6906 = vmatprep.subr.mxu0 0.0
        %6907 = vmatpush1.msra.mxu0 %v2175
        %6908 = vmatprep.subr.mxu0 0.0
        %6909 = vmatpush1.msra.mxu0 %v2188
        %6910 = vmatprep.subr.mxu0 0.0
        %6911 = vmatpush1.msra.mxu0 %v2201
        %6912 = vmatprep.subr.mxu0 0.0
        %6913 = vmatpush1.msra.mxu0 %v2214
        %6914 = vmatprep.subr.mxu0 0.0
        %6915 = vmatpush1.msra.mxu0 %v2227
        %6916 = vmatprep.subr.mxu0 0.0
        %6917 = vmatpush1.msra.mxu0 %v2240
        %6918 = vmatprep.subr.mxu0 0.0
        %6919 = vmatpush1.msra.mxu0 %v2253
        %6920 = vmatprep.subr.mxu0 0.0
        %6921 = vmatpush1.msra.mxu0 %v2266
        %6922 = vmatprep.subr.mxu0 0.0
        %6923 = vmatpush1.msra.mxu0 %v2279
        %6924 = vmatprep.subr.mxu0 0.0
        %6925 = vmatpush1.msra.mxu0 %v2292
        %6926 = vmatprep.mubr.f32.mxu0 %v1352
        %6927 = vmatmul.mubr.f32.gmra.mrb[0].mxu0 %v1351
        %v6928 = vpop.f32.mrb[0].mxu0
        %v6929 = vadd.f32 %v6784, %v6928
        %v6930 = vpop.f32.mrb[0].mxu0
        %6931 = vmatprep.mubr.f32.mxu0 %v1359
        %6932 = vmatmul.mubr.f32.gmra.mrb[0].mxu0 %v1358
        %v6933 = vpop.f32.mrb[0].mxu0
        %v6934 = vadd.f32 %v6789, %v6933
        %v6935 = vpop.f32.mrb[0].mxu0
        %6936 = vmatprep.mubr.f32.mxu0 %v1366
        %6937 = vmatmul.mubr.f32.gmra.mrb[0].mxu0 %v1365
        %v6938 = vpop.f32.mrb[0].mxu0
        %v6939 = vadd.f32 %v6794, %v6938
        %v6940 = vpop.f32.mrb[0].mxu0
        %6941 = vmatprep.mubr.f32.mxu0 %v1373
        %6942 = vmatmul.mubr.f32.gmra.mrb[0].mxu0 %v1372
        %v6943 = vpop.f32.mrb[0].mxu0
        %v6944 = vadd.f32 %v6799, %v6943
        %v6945 = vpop.f32.mrb[0].mxu0
        %6946 = vmatprep.mubr.f32.mxu0 %v1380
        %6947 = vmatmul.mubr.f32.gmra.mrb[0].mxu0 %v1379
        %v6948 = vpop.f32.mrb[0].mxu0
        %v6949 = vadd.f32 %v6804, %v6948
        %v6950 = vpop.f32.mrb[0].mxu0
        %6951 = vmatprep.mubr.f32.mxu0 %v1387
        %6952 = vmatmul.mubr.f32.gmra.mrb[0].mxu0 %v1386
        %v6953 = vpop.f32.mrb[0].mxu0
        %v6954 = vadd.f32 %v6809, %v6953
        %v6955 = vpop.f32.mrb[0].mxu0
        %6956 = vmatprep.mubr.f32.mxu0 %v1394
        %6957 = vmatmul.mubr.f32.gmra.mrb[0].mxu0 %v1393
        %v6958 = vpop.f32.mrb[0].mxu0
        %v6959 = vadd.f32 %v6814, %v6958
        %v6960 = vpop.f32.mrb[0].mxu0
        %6961 = vmatprep.mubr.f32.mxu0 %v1401
        %6962 = vmatmul.mubr.f32.gmra.mrb[0].mxu0 %v1400
        %v6963 = vpop.f32.mrb[0].mxu0
        %v6964 = vadd.f32 %v6819, %v6963
        %v6965 = vpop.f32.mrb[0].mxu0
        %6966 = vmatprep.mubr.f32.mxu0 %v1408
        %6967 = vmatmul.mubr.f32.gmra.mrb[0].mxu0 %v1407
        %v6968 = vpop.f32.mrb[0].mxu0
        %v6969 = vadd.f32 %v6824, %v6968
        %v6970 = vpop.f32.mrb[0].mxu0
        %6971 = vmatprep.mubr.f32.mxu0 %v1415
        %6972 = vmatmul.mubr.f32.gmra.mrb[0].mxu0 %v1414
        %v6973 = vpop.f32.mrb[0].mxu0
        %v6974 = vadd.f32 %v6829, %v6973
        %v6975 = vpop.f32.mrb[0].mxu0
        %6976 = vmatprep.mubr.f32.mxu0 %v1422
        %6977 = vmatmul.mubr.f32.gmra.mrb[0].mxu0 %v1421
        %v6978 = vpop.f32.mrb[0].mxu0
        %v6979 = vadd.f32 %v6834, %v6978
        %v6980 = vpop.f32.mrb[0].mxu0
        %6981 = vmatprep.mubr.f32.mxu0 %v1429
        %6982 = vmatmul.mubr.f32.gmra.mrb[0].mxu0 %v1428
        %v6983 = vpop.f32.mrb[0].mxu0
        %v6984 = vadd.f32 %v6839, %v6983
        %v6985 = vpop.f32.mrb[0].mxu0
        %6986 = vmatprep.mubr.f32.mxu0 %v1436
        %6987 = vmatmul.mubr.f32.gmra.mrb[0].mxu0 %v1435
        %v6988 = vpop.f32.mrb[0].mxu0
        %v6989 = vadd.f32 %v6844, %v6988
        %v6990 = vpop.f32.mrb[0].mxu0
        %6991 = vmatprep.mubr.f32.mxu0 %v1443
        %6992 = vmatmul.mubr.f32.gmra.mrb[0].mxu0 %v1442
        %v6993 = vpop.f32.mrb[0].mxu0
        %v6994 = vadd.f32 %v6849, %v6993
        %v6995 = vpop.f32.mrb[0].mxu0
        %6996 = vmatprep.mubr.f32.mxu0 %v1450
        %6997 = vmatmul.mubr.f32.gmra.mrb[0].mxu0 %v1449
        %v6998 = vpop.f32.mrb[0].mxu0
        %v6999 = vadd.f32 %v6854, %v6998
        %v7000 = vpop.f32.mrb[0].mxu0
        %7001 = vmatprep.mubr.f32.mxu0 %v1457
        %7002 = vmatmul.mubr.f32.gmra.mrb[0].mxu0 %v1456
        %v7003 = vpop.f32.mrb[0].mxu0
        %v7004 = vadd.f32 %v6859, %v7003
        %v7005 = vpop.f32.mrb[0].mxu0
        %7006 = vdwg.mxu0
        %7007 = vmatprep.subr.mxu0 0.0
        %7008 = vmatpush1.msra.mxu0 %v2305
        %7009 = vmatprep.subr.mxu0 0.0
        %7010 = vmatpush1.msra.mxu0 %v2318
        %7011 = vmatprep.subr.mxu0 0.0
        %7012 = vmatpush1.msra.mxu0 %v2331
        %7013 = vmatprep.subr.mxu0 0.0
        %7014 = vmatpush1.msra.mxu0 %v2344
        %7015 = vmatprep.subr.mxu0 0.0
        %7016 = vmatpush1.msra.mxu0 %v2357
        %7017 = vmatprep.subr.mxu0 0.0
        %7018 = vmatpush1.msra.mxu0 %v2370
        %7019 = vmatprep.subr.mxu0 0.0
        %7020 = vmatpush1.msra.mxu0 %v2383
        %7021 = vmatprep.subr.mxu0 0.0
        %7022 = vmatpush1.msra.mxu0 %v2396
        %7023 = vmatprep.subr.mxu0 0.0
        %7024 = vmatpush1.msra.mxu0 %v2409
        %7025 = vmatprep.subr.mxu0 0.0
        %7026 = vmatpush1.msra.mxu0 %v2422
        %7027 = vmatprep.subr.mxu0 0.0
        %7028 = vmatpush1.msra.mxu0 %v2435
        %7029 = vmatprep.subr.mxu0 0.0
        %7030 = vmatpush1.msra.mxu0 %v2448
        %7031 = vmatprep.subr.mxu0 0.0
        %7032 = vmatpush1.msra.mxu0 %v2461
        %7033 = vmatprep.subr.mxu0 0.0
        %7034 = vmatpush1.msra.mxu0 %v2474
        %7035 = vmatprep.subr.mxu0 0.0
        %7036 = vmatpush1.msra.mxu0 %v2487
        %7037 = vmatprep.subr.mxu0 0.0
        %7038 = vmatpush1.msra.mxu0 %v2500
        %7039 = vmatprep.subr.mxu0 0.0
        %7040 = vmatpush1.msra.mxu0 %v2513
        %7041 = vmatprep.subr.mxu0 0.0
        %7042 = vmatpush1.msra.mxu0 %v2526
        %7043 = vmatprep.subr.mxu0 0.0
        %7044 = vmatpush1.msra.mxu0 %v2539
        %7045 = vmatprep.subr.mxu0 0.0
        %7046 = vmatpush1.msra.mxu0 %v2552
        %7047 = vmatprep.subr.mxu0 0.0
        %7048 = vmatpush1.msra.mxu0 %v2565
        %7049 = vmatprep.subr.mxu0 0.0
        %7050 = vmatpush1.msra.mxu0 %v2578
        %7051 = vmatprep.subr.mxu0 0.0
        %7052 = vmatpush1.msra.mxu0 %v2591
        %7053 = vmatprep.subr.mxu0 0.0
        %7054 = vmatpush1.msra.mxu0 %v2604
        %7055 = vmatprep.subr.mxu0 0.0
        %7056 = vmatpush1.msra.mxu0 %v2617
        %7057 = vmatprep.subr.mxu0 0.0
        %7058 = vmatpush1.msra.mxu0 %v2630
        %7059 = vmatprep.subr.mxu0 0.0
        %7060 = vmatpush1.msra.mxu0 %v2643
        %7061 = vmatprep.subr.mxu0 0.0
        %7062 = vmatpush1.msra.mxu0 %v2656
        %7063 = vmatprep.subr.mxu0 0.0
        %7064 = vmatpush1.msra.mxu0 %v2669
        %7065 = vmatprep.subr.mxu0 0.0
        %7066 = vmatpush1.msra.mxu0 %v2682
        %7067 = vmatprep.subr.mxu0 0.0
        %7068 = vmatpush1.msra.mxu0 %v2695
        %7069 = vmatprep.subr.mxu0 0.0
        %7070 = vmatpush1.msra.mxu0 %v2708
        %7071 = vmatprep.mubr.f32.mxu0 %v1354
        %7072 = vmatmul.mubr.f32.gmra.mrb[0].mxu0 %v1353
        %v7073 = vpop.f32.mrb[0].mxu0
        %v7074 = vadd.f32 %v6929, %v7073
        %v7075 = vpop.f32.mrb[0].mxu0
        %7076 = vmatprep.mubr.f32.mxu0 %v1361
        %7077 = vmatmul.mubr.f32.gmra.mrb[0].mxu0 %v1360
        %v7078 = vpop.f32.mrb[0].mxu0
        %v7079 = vadd.f32 %v6934, %v7078
        %v7080 = vpop.f32.mrb[0].mxu0
        %7081 = vmatprep.mubr.f32.mxu0 %v1368
        %7082 = vmatmul.mubr.f32.gmra.mrb[0].mxu0 %v1367
        %v7083 = vpop.f32.mrb[0].mxu0
        %v7084 = vadd.f32 %v6939, %v7083
        %v7085 = vpop.f32.mrb[0].mxu0
        %7086 = vmatprep.mubr.f32.mxu0 %v1375
        %7087 = vmatmul.mubr.f32.gmra.mrb[0].mxu0 %v1374
        %v7088 = vpop.f32.mrb[0].mxu0
        %v7089 = vadd.f32 %v6944, %v7088
        %v7090 = vpop.f32.mrb[0].mxu0
        %7091 = vmatprep.mubr.f32.mxu0 %v1382
        %7092 = vmatmul.mubr.f32.gmra.mrb[0].mxu0 %v1381
        %v7093 = vpop.f32.mrb[0].mxu0
        %v7094 = vadd.f32 %v6949, %v7093
        %v7095 = vpop.f32.mrb[0].mxu0
        %7096 = vmatprep.mubr.f32.mxu0 %v1389
        %7097 = vmatmul.mubr.f32.gmra.mrb[0].mxu0 %v1388
        %v7098 = vpop.f32.mrb[0].mxu0
        %v7099 = vadd.f32 %v6954, %v7098
        %v7100 = vpop.f32.mrb[0].mxu0
        %7101 = vmatprep.mubr.f32.mxu0 %v1396
        %7102 = vmatmul.mubr.f32.gmra.mrb[0].mxu0 %v1395
        %v7103 = vpop.f32.mrb[0].mxu0
        %v7104 = vadd.f32 %v6959, %v7103
        %v7105 = vpop.f32.mrb[0].mxu0
        %7106 = vmatprep.mubr.f32.mxu0 %v1403
        %7107 = vmatmul.mubr.f32.gmra.mrb[0].mxu0 %v1402
        %v7108 = vpop.f32.mrb[0].mxu0
        %v7109 = vadd.f32 %v6964, %v7108
        %v7110 = vpop.f32.mrb[0].mxu0
        %7111 = vmatprep.mubr.f32.mxu0 %v1410
        %7112 = vmatmul.mubr.f32.gmra.mrb[0].mxu0 %v1409
        %v7113 = vpop.f32.mrb[0].mxu0
        %v7114 = vadd.f32 %v6969, %v7113
        %v7115 = vpop.f32.mrb[0].mxu0
        %7116 = vmatprep.mubr.f32.mxu0 %v1417
        %7117 = vmatmul.mubr.f32.gmra.mrb[0].mxu0 %v1416
        %v7118 = vpop.f32.mrb[0].mxu0
        %v7119 = vadd.f32 %v6974, %v7118
        %v7120 = vpop.f32.mrb[0].mxu0
        %7121 = vmatprep.mubr.f32.mxu0 %v1424
        %7122 = vmatmul.mubr.f32.gmra.mrb[0].mxu0 %v1423
        %v7123 = vpop.f32.mrb[0].mxu0
        %v7124 = vadd.f32 %v6979, %v7123
        %v7125 = vpop.f32.mrb[0].mxu0
        %7126 = vmatprep.mubr.f32.mxu0 %v1431
        %7127 = vmatmul.mubr.f32.gmra.mrb[0].mxu0 %v1430
        %v7128 = vpop.f32.mrb[0].mxu0
        %v7129 = vadd.f32 %v6984, %v7128
        %v7130 = vpop.f32.mrb[0].mxu0
        %7131 = vmatprep.mubr.f32.mxu0 %v1438
        %7132 = vmatmul.mubr.f32.gmra.mrb[0].mxu0 %v1437
        %v7133 = vpop.f32.mrb[0].mxu0
        %v7134 = vadd.f32 %v6989, %v7133
        %v7135 = vpop.f32.mrb[0].mxu0
        %7136 = vmatprep.mubr.f32.mxu0 %v1445
        %7137 = vmatmul.mubr.f32.gmra.mrb[0].mxu0 %v1444
        %v7138 = vpop.f32.mrb[0].mxu0
        %v7139 = vadd.f32 %v6994, %v7138
        %v7140 = vpop.f32.mrb[0].mxu0
        %7141 = vmatprep.mubr.f32.mxu0 %v1452
        %7142 = vmatmul.mubr.f32.gmra.mrb[0].mxu0 %v1451
        %v7143 = vpop.f32.mrb[0].mxu0
        %v7144 = vadd.f32 %v6999, %v7143
        %v7145 = vpop.f32.mrb[0].mxu0
        %7146 = vmatprep.mubr.f32.mxu0 %v1459
        %7147 = vmatmul.mubr.f32.gmra.mrb[0].mxu0 %v1458
        %v7148 = vpop.f32.mrb[0].mxu0
        %v7149 = vadd.f32 %v7004, %v7148
        %v7150 = vpop.f32.mrb[0].mxu0
        %7151 = vdwg.mxu0
        %7152 = vmatprep.subr.mxu0 0.0
        %7153 = vmatpush1.msra.mxu0 %v2721
        %7154 = vmatprep.subr.mxu0 0.0
        %7155 = vmatpush1.msra.mxu0 %v2734
        %7156 = vmatprep.subr.mxu0 0.0
        %7157 = vmatpush1.msra.mxu0 0.0
        %7158 = vmatprep.subr.mxu0 0.0
        %7159 = vmatpush1.msra.mxu0 0.0
        %7160 = vmatprep.subr.mxu0 0.0
        %7161 = vmatpush1.msra.mxu0 0.0
        %7162 = vmatprep.subr.mxu0 0.0
        %7163 = vmatpush1.msra.mxu0 0.0
        %7164 = vmatprep.subr.mxu0 0.0
        %7165 = vmatpush1.msra.mxu0 0.0
        %7166 = vmatprep.subr.mxu0 0.0
        %7167 = vmatpush1.msra.mxu0 0.0
        %7168 = vmatprep.subr.mxu0 0.0
        %7169 = vmatpush1.msra.mxu0 0.0
        %7170 = vmatprep.subr.mxu0 0.0
        %7171 = vmatpush1.msra.mxu0 0.0
        %7172 = vmatprep.subr.mxu0 0.0
        %7173 = vmatpush1.msra.mxu0 0.0
        %7174 = vmatprep.subr.mxu0 0.0
        %7175 = vmatpush1.msra.mxu0 0.0
        %7176 = vmatprep.subr.mxu0 0.0
        %7177 = vmatpush1.msra.mxu0 0.0
        %7178 = vmatprep.subr.mxu0 0.0
        %7179 = vmatpush1.msra.mxu0 0.0
        %7180 = vmatprep.subr.mxu0 0.0
        %7181 = vmatpush1.msra.mxu0 0.0
        %7182 = vmatprep.subr.mxu0 0.0
        %7183 = vmatpush1.msra.mxu0 0.0
        %7184 = vmatprep.subr.mxu0 0.0
        %7185 = vmatpush1.msra.mxu0 0.0
        %7186 = vmatprep.subr.mxu0 0.0
        %7187 = vmatpush1.msra.mxu0 0.0
        %7188 = vmatprep.subr.mxu0 0.0
        %7189 = vmatpush1.msra.mxu0 0.0
        %7190 = vmatprep.subr.mxu0 0.0
        %7191 = vmatpush1.msra.mxu0 0.0
        %7192 = vmatprep.subr.mxu0 0.0
        %7193 = vmatpush1.msra.mxu0 0.0
        %7194 = vmatprep.subr.mxu0 0.0
        %7195 = vmatpush1.msra.mxu0 0.0
        %7196 = vmatprep.subr.mxu0 0.0
        %7197 = vmatpush1.msra.mxu0 0.0
        %7198 = vmatprep.subr.mxu0 0.0
        %7199 = vmatpush1.msra.mxu0 0.0
        %7200 = vmatprep.subr.mxu0 0.0
        %7201 = vmatpush1.msra.mxu0 0.0
        %7202 = vmatprep.subr.mxu0 0.0
        %7203 = vmatpush1.msra.mxu0 0.0
        %7204 = vmatprep.subr.mxu0 0.0
        %7205 = vmatpush1.msra.mxu0 0.0
        %7206 = vmatprep.subr.mxu0 0.0
        %7207 = vmatpush1.msra.mxu0 0.0
        %7208 = vmatprep.subr.mxu0 0.0
        %7209 = vmatpush1.msra.mxu0 0.0
        %7210 = vmatprep.subr.mxu0 0.0
        %7211 = vmatpush1.msra.mxu0 0.0
        %7212 = vmatprep.subr.mxu0 0.0
        %7213 = vmatpush1.msra.mxu0 0.0
        %7214 = vmatprep.subr.mxu0 0.0
        %7215 = vmatpush1.msra.mxu0 0.0
        %7216 = vmatprep.mubr.f32.mxu0 0.0
        %7217 = vmatmul.mubr.f32.gmra.mrb[0].mxu0 %v2806
        %v7218 = vpop.f32.mrb[0].mxu0
        %v7219 = vadd.f32 %v7074, %v7218
        %v7220 = vpop.f32.mrb[0].mxu0
        %7221 = vmatprep.mubr.f32.mxu0 0.0
        %7222 = vmatmul.mubr.f32.gmra.mrb[0].mxu0 %v2809
        %v7223 = vpop.f32.mrb[0].mxu0
        %v7224 = vadd.f32 %v7079, %v7223
        %v7225 = vpop.f32.mrb[0].mxu0
        %7226 = vmatprep.mubr.f32.mxu0 0.0
        %7227 = vmatmul.mubr.f32.gmra.mrb[0].mxu0 %v2812
        %v7228 = vpop.f32.mrb[0].mxu0
        %v7229 = vadd.f32 %v7084, %v7228
        %v7230 = vpop.f32.mrb[0].mxu0
        %7231 = vmatprep.mubr.f32.mxu0 0.0
        %7232 = vmatmul.mubr.f32.gmra.mrb[0].mxu0 %v2815
        %v7233 = vpop.f32.mrb[0].mxu0
        %v7234 = vadd.f32 %v7089, %v7233
        %v7235 = vpop.f32.mrb[0].mxu0
        %7236 = vmatprep.mubr.f32.mxu0 0.0
        %7237 = vmatmul.mubr.f32.gmra.mrb[0].mxu0 %v2818
        %v7238 = vpop.f32.mrb[0].mxu0
        %v7239 = vadd.f32 %v7094, %v7238
        %v7240 = vpop.f32.mrb[0].mxu0
        %7241 = vmatprep.mubr.f32.mxu0 0.0
        %7242 = vmatmul.mubr.f32.gmra.mrb[0].mxu0 %v2821
        %v7243 = vpop.f32.mrb[0].mxu0
        %v7244 = vadd.f32 %v7099, %v7243
        %v7245 = vpop.f32.mrb[0].mxu0
        %7246 = vmatprep.mubr.f32.mxu0 0.0
        %7247 = vmatmul.mubr.f32.gmra.mrb[0].mxu0 %v2824
        %v7248 = vpop.f32.mrb[0].mxu0
        %v7249 = vadd.f32 %v7104, %v7248
        %v7250 = vpop.f32.mrb[0].mxu0
        %7251 = vmatprep.mubr.f32.mxu0 0.0
        %7252 = vmatmul.mubr.f32.gmra.mrb[0].mxu0 %v2827
        %v7253 = vpop.f32.mrb[0].mxu0
        %v7254 = vadd.f32 %v7109, %v7253
        %v7255 = vpop.f32.mrb[0].mxu0
        %7256 = vmatprep.mubr.f32.mxu0 0.0
        %7257 = vmatmul.mubr.f32.gmra.mrb[0].mxu0 %v2830
        %v7258 = vpop.f32.mrb[0].mxu0
        %v7259 = vadd.f32 %v7114, %v7258
        %v7260 = vpop.f32.mrb[0].mxu0
        %7261 = vmatprep.mubr.f32.mxu0 0.0
        %7262 = vmatmul.mubr.f32.gmra.mrb[0].mxu0 %v2833
        %v7263 = vpop.f32.mrb[0].mxu0
        %v7264 = vadd.f32 %v7119, %v7263
        %v7265 = vpop.f32.mrb[0].mxu0
        %7266 = vmatprep.mubr.f32.mxu0 0.0
        %7267 = vmatmul.mubr.f32.gmra.mrb[0].mxu0 %v2836
        %v7268 = vpop.f32.mrb[0].mxu0
        %v7269 = vadd.f32 %v7124, %v7268
        %v7270 = vpop.f32.mrb[0].mxu0
        %7271 = vmatprep.mubr.f32.mxu0 0.0
        %7272 = vmatmul.mubr.f32.gmra.mrb[0].mxu0 %v2839
        %v7273 = vpop.f32.mrb[0].mxu0
        %v7274 = vadd.f32 %v7129, %v7273
        %v7275 = vpop.f32.mrb[0].mxu0
        %7276 = vmatprep.mubr.f32.mxu0 0.0
        %7277 = vmatmul.mubr.f32.gmra.mrb[0].mxu0 %v2842
        %v7278 = vpop.f32.mrb[0].mxu0
        %v7279 = vadd.f32 %v7134, %v7278
        %v7280 = vpop.f32.mrb[0].mxu0
        %7281 = vmatprep.mubr.f32.mxu0 0.0
        %7282 = vmatmul.mubr.f32.gmra.mrb[0].mxu0 %v2845
        %v7283 = vpop.f32.mrb[0].mxu0
        %v7284 = vadd.f32 %v7139, %v7283
        %v7285 = vpop.f32.mrb[0].mxu0
        %7286 = vmatprep.mubr.f32.mxu0 0.0
        %7287 = vmatmul.mubr.f32.gmra.mrb[0].mxu0 %v2848
        %v7288 = vpop.f32.mrb[0].mxu0
        %v7289 = vadd.f32 %v7144, %v7288
        %v7290 = vpop.f32.mrb[0].mxu0
        %7291 = vmatprep.mubr.f32.mxu0 0.0
        %7292 = vmatmul.mubr.f32.gmra.mrb[0].mxu0 %v2851
        %v7293 = vpop.f32.mrb[0].mxu0
        %v7294 = vadd.f32 %v7149, %v7293
        %v7295 = vpop.f32.mrb[0].mxu0
        %7296 = vdwg.mxu0
        %v7297 = vmax.f32 %v3403, 0.0
        %v7298 = vmax.f32 %v3405, 0.0
        %v7299 = vmax.f32 %v4047, 0.0
        %v7300 = vmax.f32 %v4049, 0.0
        %v7301 = vmax.f32 %v4691, 0.0
        %v7302 = vmax.f32 %v4693, 0.0
        %v7303 = vmax.f32 %v5335, 0.0
        %v7304 = vmax.f32 %v5337, 0.0
        %v7305 = vmax.f32 %v5979, 0.0
        %v7306 = vmax.f32 %v5981, 0.0
        %v7307 = vmax.f32 %v6623, 0.0
        %v7308 = vmax.f32 %v6625, 0.0
        %v7309 = vmax.f32 %v7219, 0.0
        %v7310 = vmax.f32 %v3409, 0.0
        %v7311 = vmax.f32 %v3411, 0.0
        %v7312 = vmax.f32 %v4053, 0.0
        %v7313 = vmax.f32 %v4055, 0.0
        %v7314 = vmax.f32 %v4697, 0.0
        %v7315 = vmax.f32 %v4699, 0.0
        %v7316 = vmax.f32 %v5341, 0.0
        %v7317 = vmax.f32 %v5343, 0.0
        %v7318 = vmax.f32 %v5985, 0.0
        %v7319 = vmax.f32 %v5987, 0.0
        %v7320 = vmax.f32 %v6629, 0.0
        %v7321 = vmax.f32 %v6631, 0.0
        %v7322 = vmax.f32 %v7224, 0.0
        %v7323 = vmax.f32 %v3415, 0.0
        %v7324 = vmax.f32 %v3417, 0.0
        %v7325 = vmax.f32 %v4059, 0.0
        %v7326 = vmax.f32 %v4061, 0.0
        %v7327 = vmax.f32 %v4703, 0.0
        %v7328 = vmax.f32 %v4705, 0.0
        %v7329 = vmax.f32 %v5347, 0.0
        %v7330 = vmax.f32 %v5349, 0.0
        %v7331 = vmax.f32 %v5991, 0.0
        %v7332 = vmax.f32 %v5993, 0.0
        %v7333 = vmax.f32 %v6635, 0.0
        %v7334 = vmax.f32 %v6637, 0.0
        %v7335 = vmax.f32 %v7229, 0.0
        %v7336 = vmax.f32 %v3421, 0.0
        %v7337 = vmax.f32 %v3423, 0.0
        %v7338 = vmax.f32 %v4065, 0.0
        %v7339 = vmax.f32 %v4067, 0.0
        %v7340 = vmax.f32 %v4709, 0.0
        %v7341 = vmax.f32 %v4711, 0.0
        %v7342 = vmax.f32 %v5353, 0.0
        %v7343 = vmax.f32 %v5355, 0.0
        %v7344 = vmax.f32 %v5997, 0.0
        %v7345 = vmax.f32 %v5999, 0.0
        %v7346 = vmax.f32 %v6641, 0.0
        %v7347 = vmax.f32 %v6643, 0.0
        %v7348 = vmax.f32 %v7234, 0.0
        %v7349 = vmax.f32 %v3427, 0.0
        %v7350 = vmax.f32 %v3429, 0.0
        %v7351 = vmax.f32 %v4071, 0.0
        %v7352 = vmax.f32 %v4073, 0.0
        %v7353 = vmax.f32 %v4715, 0.0
        %v7354 = vmax.f32 %v4717, 0.0
        %v7355 = vmax.f32 %v5359, 0.0
        %v7356 = vmax.f32 %v5361, 0.0
        %v7357 = vmax.f32 %v6003, 0.0
        %v7358 = vmax.f32 %v6005, 0.0
        %v7359 = vmax.f32 %v6647, 0.0
        %v7360 = vmax.f32 %v6649, 0.0
        %v7361 = vmax.f32 %v7239, 0.0
        %v7362 = vmax.f32 %v3433, 0.0
        %v7363 = vmax.f32 %v3435, 0.0
        %v7364 = vmax.f32 %v4077, 0.0
        %v7365 = vmax.f32 %v4079, 0.0
        %v7366 = vmax.f32 %v4721, 0.0
        %v7367 = vmax.f32 %v4723, 0.0
        %v7368 = vmax.f32 %v5365, 0.0
        %v7369 = vmax.f32 %v5367, 0.0
        %v7370 = vmax.f32 %v6009, 0.0
        %v7371 = vmax.f32 %v6011, 0.0
        %v7372 = vmax.f32 %v6653, 0.0
        %v7373 = vmax.f32 %v6655, 0.0
        %v7374 = vmax.f32 %v7244, 0.0
        %v7375 = vmax.f32 %v3439, 0.0
        %v7376 = vmax.f32 %v3441, 0.0
        %v7377 = vmax.f32 %v4083, 0.0
        %v7378 = vmax.f32 %v4085, 0.0
        %v7379 = vmax.f32 %v4727, 0.0
        %v7380 = vmax.f32 %v4729, 0.0
        %v7381 = vmax.f32 %v5371, 0.0
        %v7382 = vmax.f32 %v5373, 0.0
        %v7383 = vmax.f32 %v6015, 0.0
        %v7384 = vmax.f32 %v6017, 0.0
        %v7385 = vmax.f32 %v6659, 0.0
        %v7386 = vmax.f32 %v6661, 0.0
        %v7387 = vmax.f32 %v7249, 0.0
        %v7388 = vmax.f32 %v3445, 0.0
        %v7389 = vmax.f32 %v3447, 0.0
        %v7390 = vmax.f32 %v4089, 0.0
        %v7391 = vmax.f32 %v4091, 0.0
        %v7392 = vmax.f32 %v4733, 0.0
        %v7393 = vmax.f32 %v4735, 0.0
        %v7394 = vmax.f32 %v5377, 0.0
        %v7395 = vmax.f32 %v5379, 0.0
        %v7396 = vmax.f32 %v6021, 0.0
        %v7397 = vmax.f32 %v6023, 0.0
        %v7398 = vmax.f32 %v6665, 0.0
        %v7399 = vmax.f32 %v6667, 0.0
        %v7400 = vmax.f32 %v7254, 0.0
        %v7401 = vmax.f32 %v3451, 0.0
        %v7402 = vmax.f32 %v3453, 0.0
        %v7403 = vmax.f32 %v4095, 0.0
        %v7404 = vmax.f32 %v4097, 0.0
        %v7405 = vmax.f32 %v4739, 0.0
        %v7406 = vmax.f32 %v4741, 0.0
        %v7407 = vmax.f32 %v5383, 0.0
        %v7408 = vmax.f32 %v5385, 0.0
        %v7409 = vmax.f32 %v6027, 0.0
        %v7410 = vmax.f32 %v6029, 0.0
        %v7411 = vmax.f32 %v6671, 0.0
        %v7412 = vmax.f32 %v6673, 0.0
        %v7413 = vmax.f32 %v7259, 0.0
        %v7414 = vmax.f32 %v3457, 0.0
        %v7415 = vmax.f32 %v3459, 0.0
        %v7416 = vmax.f32 %v4101, 0.0
        %v7417 = vmax.f32 %v4103, 0.0
        %v7418 = vmax.f32 %v4745, 0.0
        %v7419 = vmax.f32 %v4747, 0.0
        %v7420 = vmax.f32 %v5389, 0.0
        %v7421 = vmax.f32 %v5391, 0.0
        %v7422 = vmax.f32 %v6033, 0.0
        %v7423 = vmax.f32 %v6035, 0.0
        %v7424 = vmax.f32 %v6677, 0.0
        %v7425 = vmax.f32 %v6679, 0.0
        %v7426 = vmax.f32 %v7264, 0.0
        %v7427 = vmax.f32 %v3463, 0.0
        %v7428 = vmax.f32 %v3465, 0.0
        %v7429 = vmax.f32 %v4107, 0.0
        %v7430 = vmax.f32 %v4109, 0.0
        %v7431 = vmax.f32 %v4751, 0.0
        %v7432 = vmax.f32 %v4753, 0.0
        %v7433 = vmax.f32 %v5395, 0.0
        %v7434 = vmax.f32 %v5397, 0.0
        %v7435 = vmax.f32 %v6039, 0.0
        %v7436 = vmax.f32 %v6041, 0.0
        %v7437 = vmax.f32 %v6683, 0.0
        %v7438 = vmax.f32 %v6685, 0.0
        %v7439 = vmax.f32 %v7269, 0.0
        %v7440 = vmax.f32 %v3469, 0.0
        %v7441 = vmax.f32 %v3471, 0.0
        %v7442 = vmax.f32 %v4113, 0.0
        %v7443 = vmax.f32 %v4115, 0.0
        %v7444 = vmax.f32 %v4757, 0.0
        %v7445 = vmax.f32 %v4759, 0.0
        %v7446 = vmax.f32 %v5401, 0.0
        %v7447 = vmax.f32 %v5403, 0.0
        %v7448 = vmax.f32 %v6045, 0.0
        %v7449 = vmax.f32 %v6047, 0.0
        %v7450 = vmax.f32 %v6689, 0.0
        %v7451 = vmax.f32 %v6691, 0.0
        %v7452 = vmax.f32 %v7274, 0.0
        %v7453 = vmax.f32 %v3475, 0.0
        %v7454 = vmax.f32 %v3477, 0.0
        %v7455 = vmax.f32 %v4119, 0.0
        %v7456 = vmax.f32 %v4121, 0.0
        %v7457 = vmax.f32 %v4763, 0.0
        %v7458 = vmax.f32 %v4765, 0.0
        %v7459 = vmax.f32 %v5407, 0.0
        %v7460 = vmax.f32 %v5409, 0.0
        %v7461 = vmax.f32 %v6051, 0.0
        %v7462 = vmax.f32 %v6053, 0.0
        %v7463 = vmax.f32 %v6695, 0.0
        %v7464 = vmax.f32 %v6697, 0.0
        %v7465 = vmax.f32 %v7279, 0.0
        %v7466 = vmax.f32 %v3481, 0.0
        %v7467 = vmax.f32 %v3483, 0.0
        %v7468 = vmax.f32 %v4125, 0.0
        %v7469 = vmax.f32 %v4127, 0.0
        %v7470 = vmax.f32 %v4769, 0.0
        %v7471 = vmax.f32 %v4771, 0.0
        %v7472 = vmax.f32 %v5413, 0.0
        %v7473 = vmax.f32 %v5415, 0.0
        %v7474 = vmax.f32 %v6057, 0.0
        %v7475 = vmax.f32 %v6059, 0.0
        %v7476 = vmax.f32 %v6701, 0.0
        %v7477 = vmax.f32 %v6703, 0.0
        %v7478 = vmax.f32 %v7284, 0.0
        %v7479 = vmax.f32 %v3487, 0.0
        %v7480 = vmax.f32 %v3489, 0.0
        %v7481 = vmax.f32 %v4131, 0.0
        %v7482 = vmax.f32 %v4133, 0.0
        %v7483 = vmax.f32 %v4775, 0.0
        %v7484 = vmax.f32 %v4777, 0.0
        %v7485 = vmax.f32 %v5419, 0.0
        %v7486 = vmax.f32 %v5421, 0.0
        %v7487 = vmax.f32 %v6063, 0.0
        %v7488 = vmax.f32 %v6065, 0.0
        %v7489 = vmax.f32 %v6707, 0.0
        %v7490 = vmax.f32 %v6709, 0.0
        %v7491 = vmax.f32 %v7289, 0.0
        %v7492 = vmax.f32 %v3493, 0.0
        %v7493 = vmax.f32 %v3495, 0.0
        %v7494 = vmax.f32 %v4137, 0.0
        %v7495 = vmax.f32 %v4139, 0.0
        %v7496 = vmax.f32 %v4781, 0.0
        %v7497 = vmax.f32 %v4783, 0.0
        %v7498 = vmax.f32 %v5425, 0.0
        %v7499 = vmax.f32 %v5427, 0.0
        %v7500 = vmax.f32 %v6069, 0.0
        %v7501 = vmax.f32 %v6071, 0.0
        %v7502 = vmax.f32 %v6713, 0.0
        %v7503 = vmax.f32 %v6715, 0.0
        %v7504 = vmax.f32 %v7294, 0.0
        %v7505 = vld [vmem:[#allocation9] sm:$0xff]
        %v7506 = vld [vmem:[#allocation9 + $0x8] sm:$0xff]
        %v7507 = vld [vmem:[#allocation9 + $0x10] sm:$0xff]
        %v7508 = vld [vmem:[#allocation9 + $0x18] sm:$0xff]
        %v7509 = vld [vmem:[#allocation9 + $0x20] sm:$0xff]
        %v7510 = vld [vmem:[#allocation9 + $0x28] sm:$0xff]
        %v7511 = vld [vmem:[#allocation9 + $0x30] sm:$0xff]
        %v7512 = vld [vmem:[#allocation9 + $0x38] sm:$0xff]
        %v7513 = vld [vmem:[#allocation9 + $0x40] sm:$0xff]
        %v7514 = vld [vmem:[#allocation9 + $0x48] sm:$0xff]
        %v7515 = vld [vmem:[#allocation9 + $0x50] sm:$0xff]
        %v7516 = vld [vmem:[#allocation9 + $0x58] sm:$0xff]
        %v7517 = vld [vmem:[#allocation9 + $0x60] sm:$0xff]
        %v7518 = vld [vmem:[#allocation9 + $0x68] sm:$0xff]
        %v7519 = vld [vmem:[#allocation9 + $0x70] sm:$0xff]
        %v7520 = vld [vmem:[#allocation9 + $0x78] sm:$0xff]
        %v7521 = vld [vmem:[#allocation9 + $0x80] sm:$0xff]
        %v7522 = vld [vmem:[#allocation9 + $0x88] sm:$0xff]
        %v7523 = vld [vmem:[#allocation9 + $0x90] sm:$0xff]
        %v7524 = vld [vmem:[#allocation9 + $0x98] sm:$0xff]
        %v7525 = vld [vmem:[#allocation9 + $0xa0] sm:$0xff]
        %v7526 = vld [vmem:[#allocation9 + $0xa8] sm:$0xff]
        %v7527 = vld [vmem:[#allocation9 + $0xb0] sm:$0xff]
        %v7528 = vld [vmem:[#allocation9 + $0xb8] sm:$0xff]
        %v7529 = vld [vmem:[#allocation9 + $0xc0] sm:$0xff]
        %v7530 = vld [vmem:[#allocation9 + $0xc8] sm:$0xff]
        %v7531 = vld [vmem:[#allocation9 + $0xd0] sm:$0xff]
        %v7532 = vld [vmem:[#allocation9 + $0xd8] sm:$0xff]
        %v7533 = vld [vmem:[#allocation9 + $0xe0] sm:$0xff]
        %v7534 = vld [vmem:[#allocation9 + $0xe8] sm:$0xff]
        %v7535 = vld [vmem:[#allocation9 + $0xf0] sm:$0xff]
        %v7536 = vld [vmem:[#allocation9 + $0xf8] sm:$0xff]
        %v7537 = vld [vmem:[#allocation9 + $0x100] sm:$0xff]
        %v7538 = vld [vmem:[#allocation9 + $0x108] sm:$0xff]
        %v7539 = vld [vmem:[#allocation9 + $0x110] sm:$0xff]
        %v7540 = vld [vmem:[#allocation9 + $0x118] sm:$0xff]
        %v7541 = vld [vmem:[#allocation9 + $0x120] sm:$0xff]
        %v7542 = vld [vmem:[#allocation9 + $0x128] sm:$0xff]
        %v7543 = vld [vmem:[#allocation9 + $0x130] sm:$0xff]
        %v7544 = vld [vmem:[#allocation9 + $0x138] sm:$0xff]
        %v7545 = vld [vmem:[#allocation9 + $0x140] sm:$0xff]
        %v7546 = vld [vmem:[#allocation9 + $0x148] sm:$0xff]
        %v7547 = vld [vmem:[#allocation9 + $0x150] sm:$0xff]
        %v7548 = vld [vmem:[#allocation9 + $0x158] sm:$0xff]
        %v7549 = vld [vmem:[#allocation9 + $0x160] sm:$0xff]
        %v7550 = vld [vmem:[#allocation9 + $0x168] sm:$0xff]
        %v7551 = vld [vmem:[#allocation9 + $0x170] sm:$0xff]
        %v7552 = vld [vmem:[#allocation9 + $0x178] sm:$0xff]
        %v7553 = vld [vmem:[#allocation9 + $0x180] sm:$0xff]
        %v7554 = vld [vmem:[#allocation9 + $0x188] sm:$0xff]
        %v7555 = vld [vmem:[#allocation9 + $0x190] sm:$0xff]
        %v7556 = vld [vmem:[#allocation9 + $0x198] sm:$0xff]
        %v7557 = vld [vmem:[#allocation9 + $0x1a0] sm:$0xff]
        %v7558 = vld [vmem:[#allocation9 + $0x1a8] sm:$0xff]
        %v7559 = vld [vmem:[#allocation9 + $0x1b0] sm:$0xff]
        %v7560 = vld [vmem:[#allocation9 + $0x1b8] sm:$0xff]
        %v7561 = vld [vmem:[#allocation9 + $0x1c0] sm:$0xff]
        %v7562 = vld [vmem:[#allocation9 + $0x1c8] sm:$0xff]
        %v7563 = vld [vmem:[#allocation9 + $0x1d0] sm:$0xff]
        %v7564 = vld [vmem:[#allocation9 + $0x1d8] sm:$0xff]
        %v7565 = vld [vmem:[#allocation9 + $0x1e0] sm:$0xff]
        %v7566 = vld [vmem:[#allocation9 + $0x1e8] sm:$0xff]
        %v7567 = vld [vmem:[#allocation9 + $0x1f0] sm:$0xff]
        %v7568 = vld [vmem:[#allocation9 + $0x1f8] sm:$0xff]
        %v7569 = vld [vmem:[#allocation9 + $0x200] sm:$0xff]
        %v7570 = vld [vmem:[#allocation9 + $0x208] sm:$0xff]
        %v7571 = vld [vmem:[#allocation9 + $0x210] sm:$0xff]
        %v7572 = vld [vmem:[#allocation9 + $0x218] sm:$0xff]
        %v7573 = vld [vmem:[#allocation9 + $0x220] sm:$0xff]
        %v7574 = vld [vmem:[#allocation9 + $0x228] sm:$0xff]
        %v7575 = vld [vmem:[#allocation9 + $0x230] sm:$0xff]
        %v7576 = vld [vmem:[#allocation9 + $0x238] sm:$0xff]
        %v7577 = vld [vmem:[#allocation9 + $0x240] sm:$0xff]
        %v7578 = vld [vmem:[#allocation9 + $0x248] sm:$0xff]
        %v7579 = vld [vmem:[#allocation9 + $0x250] sm:$0xff]
        %v7580 = vld [vmem:[#allocation9 + $0x258] sm:$0xff]
        %v7581 = vld [vmem:[#allocation9 + $0x260] sm:$0xff]
        %v7582 = vld [vmem:[#allocation9 + $0x268] sm:$0xff]
        %v7583 = vld [vmem:[#allocation9 + $0x270] sm:$0xff]
        %v7584 = vld [vmem:[#allocation9 + $0x278] sm:$0xff]
        %v7585 = vld [vmem:[#allocation9 + $0x280] sm:$0xff]
        %v7586 = vld [vmem:[#allocation9 + $0x288] sm:$0xff]
        %v7587 = vld [vmem:[#allocation9 + $0x290] sm:$0xff]
        %v7588 = vld [vmem:[#allocation9 + $0x298] sm:$0xff]
        %v7589 = vld [vmem:[#allocation9 + $0x2a0] sm:$0xff]
        %v7590 = vld [vmem:[#allocation9 + $0x2a8] sm:$0xff]
        %v7591 = vld [vmem:[#allocation9 + $0x2b0] sm:$0xff]
        %v7592 = vld [vmem:[#allocation9 + $0x2b8] sm:$0xff]
        %v7593 = vld [vmem:[#allocation9 + $0x2c0] sm:$0xff]
        %v7594 = vld [vmem:[#allocation9 + $0x2c8] sm:$0xff]
        %v7595 = vld [vmem:[#allocation9 + $0x2d0] sm:$0xff]
        %v7596 = vld [vmem:[#allocation9 + $0x2d8] sm:$0xff]
        %v7597 = vld [vmem:[#allocation9 + $0x2e0] sm:$0xff]
        %v7598 = vld [vmem:[#allocation9 + $0x2e8] sm:$0xff]
        %v7599 = vld [vmem:[#allocation9 + $0x2f0] sm:$0xff]
        %v7600 = vld [vmem:[#allocation9 + $0x2f8] sm:$0xff]
        %v7601 = vld [vmem:[#allocation9 + $0x300] sm:$0xff]
        %v7602 = vld [vmem:[#allocation9 + $0x308] sm:$0xff]
        %v7603 = vld [vmem:[#allocation9 + $0x310] sm:$0xff]
        %v7604 = vld [vmem:[#allocation9 + $0x318] sm:$0xff]
        %v7605 = vld [vmem:[#allocation9 + $0x320] sm:$0xff]
        %v7606 = vld [vmem:[#allocation9 + $0x328] sm:$0xff]
        %v7607 = vld [vmem:[#allocation9 + $0x330] sm:$0xff]
        %v7608 = vld [vmem:[#allocation9 + $0x338] sm:$0xff]
        %v7609 = vld [vmem:[#allocation9 + $0x340] sm:$0xff]
        %v7610 = vld [vmem:[#allocation9 + $0x348] sm:$0xff]
        %v7611 = vld [vmem:[#allocation9 + $0x350] sm:$0xff]
        %v7612 = vld [vmem:[#allocation9 + $0x358] sm:$0xff]
        %v7613 = vld [vmem:[#allocation9 + $0x360] sm:$0xff]
        %v7614 = vld [vmem:[#allocation9 + $0x368] sm:$0xff]
        %v7615 = vld [vmem:[#allocation9 + $0x370] sm:$0xff]
        %v7616 = vld [vmem:[#allocation9 + $0x378] sm:$0xff]
        %v7617 = vld [vmem:[#allocation9 + $0x380] sm:$0xff]
        %v7618 = vld [vmem:[#allocation9 + $0x388] sm:$0xff]
        %v7619 = vld [vmem:[#allocation9 + $0x390] sm:$0xff]
        %v7620 = vld [vmem:[#allocation9 + $0x398] sm:$0xff]
        %v7621 = vld [vmem:[#allocation9 + $0x3a0] sm:$0xff]
        %v7622 = vld [vmem:[#allocation9 + $0x3a8] sm:$0xff]
        %v7623 = vld [vmem:[#allocation9 + $0x3b0] sm:$0xff]
        %v7624 = vld [vmem:[#allocation9 + $0x3b8] sm:$0xff]
        %v7625 = vld [vmem:[#allocation9 + $0x3c0] sm:$0xff]
        %v7626 = vld [vmem:[#allocation9 + $0x3c8] sm:$0xff]
        %v7627 = vld [vmem:[#allocation9 + $0x3d0] sm:$0xff]
        %v7628 = vld [vmem:[#allocation9 + $0x3d8] sm:$0xff]
        %v7629 = vld [vmem:[#allocation9 + $0x3e0] sm:$0xff]
        %v7630 = vld [vmem:[#allocation9 + $0x3e8] sm:$0xff]
        %v7631 = vld [vmem:[#allocation9 + $0x3f0] sm:$0xff]
        %v7632 = vld [vmem:[#allocation9 + $0x3f8] sm:$0xff]
        %v7633 = vld [vmem:[#allocation9 + $0x400] sm:$0xff]
        %v7634 = vld [vmem:[#allocation9 + $0x408] sm:$0xff]
        %v7635 = vld [vmem:[#allocation9 + $0x410] sm:$0xff]
        %v7636 = vld [vmem:[#allocation9 + $0x418] sm:$0xff]
        %v7637 = vld [vmem:[#allocation9 + $0x420] sm:$0xff]
        %v7638 = vld [vmem:[#allocation9 + $0x428] sm:$0xff]
        %v7639 = vld [vmem:[#allocation9 + $0x430] sm:$0xff]
        %v7640 = vld [vmem:[#allocation9 + $0x438] sm:$0xff]
        %v7641 = vld [vmem:[#allocation9 + $0x440] sm:$0xff]
        %v7642 = vld [vmem:[#allocation9 + $0x448] sm:$0xff]
        %v7643 = vld [vmem:[#allocation9 + $0x450] sm:$0xff]
        %v7644 = vld [vmem:[#allocation9 + $0x458] sm:$0xff]
        %v7645 = vld [vmem:[#allocation9 + $0x460] sm:$0xff]
        %v7646 = vld [vmem:[#allocation9 + $0x468] sm:$0xff]
        %v7647 = vld [vmem:[#allocation9 + $0x470] sm:$0xff]
        %v7648 = vld [vmem:[#allocation9 + $0x478] sm:$0xff]
        %v7649 = vld [vmem:[#allocation9 + $0x480] sm:$0xff]
        %v7650 = vld [vmem:[#allocation9 + $0x488] sm:$0xff]
        %v7651 = vld [vmem:[#allocation9 + $0x490] sm:$0xff]
        %v7652 = vld [vmem:[#allocation9 + $0x498] sm:$0xff]
        %v7653 = vld [vmem:[#allocation9 + $0x4a0] sm:$0xff]
        %v7654 = vld [vmem:[#allocation9 + $0x4a8] sm:$0xff]
        %v7655 = vld [vmem:[#allocation9 + $0x4b0] sm:$0xff]
        %v7656 = vld [vmem:[#allocation9 + $0x4b8] sm:$0xff]
        %v7657 = vld [vmem:[#allocation9 + $0x4c0] sm:$0xff]
        %v7658 = vld [vmem:[#allocation9 + $0x4c8] sm:$0xff]
        %v7659 = vld [vmem:[#allocation9 + $0x4d0] sm:$0xff]
        %v7660 = vld [vmem:[#allocation9 + $0x4d8] sm:$0xff]
        %v7661 = vld [vmem:[#allocation9 + $0x4e0] sm:$0xff]
        %v7662 = vld [vmem:[#allocation9 + $0x4e8] sm:$0xff]
        %v7663 = vld [vmem:[#allocation9 + $0x4f0] sm:$0xff]
        %v7664 = vld [vmem:[#allocation9 + $0x4f8] sm:$0xff]
        %v7665 = vld [vmem:[#allocation9 + $0x500] sm:$0xff]
        %v7666 = vld [vmem:[#allocation9 + $0x508] sm:$0xff]
        %v7667 = vld [vmem:[#allocation9 + $0x510] sm:$0xff]
        %v7668 = vld [vmem:[#allocation9 + $0x518] sm:$0xff]
        %v7669 = vld [vmem:[#allocation9 + $0x520] sm:$0xff]
        %v7670 = vld [vmem:[#allocation9 + $0x528] sm:$0xff]
        %v7671 = vld [vmem:[#allocation9 + $0x530] sm:$0xff]
        %v7672 = vld [vmem:[#allocation9 + $0x538] sm:$0xff]
        %v7673 = vld [vmem:[#allocation9 + $0x540] sm:$0xff]
        %v7674 = vld [vmem:[#allocation9 + $0x548] sm:$0xff]
        %v7675 = vld [vmem:[#allocation9 + $0x550] sm:$0xff]
        %v7676 = vld [vmem:[#allocation9 + $0x558] sm:$0xff]
        %v7677 = vld [vmem:[#allocation9 + $0x560] sm:$0xff]
        %v7678 = vld [vmem:[#allocation9 + $0x568] sm:$0xff]
        %v7679 = vld [vmem:[#allocation9 + $0x570] sm:$0xff]
        %v7680 = vld [vmem:[#allocation9 + $0x578] sm:$0xff]
        %v7681 = vld [vmem:[#allocation9 + $0x580] sm:$0xff]
        %v7682 = vld [vmem:[#allocation9 + $0x588] sm:$0xff]
        %v7683 = vld [vmem:[#allocation9 + $0x590] sm:$0xff]
        %v7684 = vld [vmem:[#allocation9 + $0x598] sm:$0xff]
        %v7685 = vld [vmem:[#allocation9 + $0x5a0] sm:$0xff]
        %v7686 = vld [vmem:[#allocation9 + $0x5a8] sm:$0xff]
        %v7687 = vld [vmem:[#allocation9 + $0x5b0] sm:$0xff]
        %v7688 = vld [vmem:[#allocation9 + $0x5b8] sm:$0xff]
        %v7689 = vld [vmem:[#allocation9 + $0x5c0] sm:$0xff]
        %v7690 = vld [vmem:[#allocation9 + $0x5c8] sm:$0xff]
        %v7691 = vld [vmem:[#allocation9 + $0x5d0] sm:$0xff]
        %v7692 = vld [vmem:[#allocation9 + $0x5d8] sm:$0xff]
        %v7693 = vld [vmem:[#allocation9 + $0x5e0] sm:$0xff]
        %v7694 = vld [vmem:[#allocation9 + $0x5e8] sm:$0xff]
        %v7695 = vld [vmem:[#allocation9 + $0x5f0] sm:$0xff]
        %v7696 = vld [vmem:[#allocation9 + $0x5f8] sm:$0xff]
        %v7697 = vld [vmem:[#allocation9 + $0x600] sm:$0xff]
        %v7698 = vld [vmem:[#allocation9 + $0x608] sm:$0xff]
        %v7699 = vld [vmem:[#allocation9 + $0x610] sm:$0xff]
        %v7700 = vld [vmem:[#allocation9 + $0x618] sm:$0xff]
        %v7701 = vld [vmem:[#allocation10] sm:$0x1]
        %v7703 = vlaneseq
        %v7704 = vshrl.u32 %v7703, 7
        %v7705 = vsub.s32 0, %v7704
        %v7706 = vrot.slane %v7701, %v7705
        %vm7708 = vcmask 261120
        %v7710 = vsel %vm7708, %v7309, 0
        %v7713 = vsel %vm7708, %v7322, 0
        %v7716 = vsel %vm7708, %v7335, 0
        %v7719 = vsel %vm7708, %v7348, 0
        %v7722 = vsel %vm7708, %v7361, 0
        %v7725 = vsel %vm7708, %v7374, 0
        %v7728 = vsel %vm7708, %v7387, 0
        %v7731 = vsel %vm7708, %v7400, 0
        %v7734 = vsel %vm7708, %v7413, 0
        %v7737 = vsel %vm7708, %v7426, 0
        %v7740 = vsel %vm7708, %v7439, 0
        %v7743 = vsel %vm7708, %v7452, 0
        %v7746 = vsel %vm7708, %v7465, 0
        %v7749 = vsel %vm7708, %v7478, 0
        %v7752 = vsel %vm7708, %v7491, 0
        %v7755 = vsel %vm7708, %v7504, 0
        %7757 = vmatprep.subr.mxu0 0.0
        %7758 = vmatpush1.msra.mxu0 %v7505
        %7759 = vmatprep.subr.mxu0 0.0
        %7760 = vmatpush1.msra.mxu0 %v7506
        %7761 = vmatprep.subr.mxu0 0.0
        %7762 = vmatpush1.msra.mxu0 %v7507
        %7763 = vmatprep.subr.mxu0 0.0
        %7764 = vmatpush1.msra.mxu0 %v7508
        %7765 = vmatprep.subr.mxu0 0.0
        %7766 = vmatpush1.msra.mxu0 %v7509
        %7767 = vmatprep.subr.mxu0 0.0
        %7768 = vmatpush1.msra.mxu0 %v7510
        %7769 = vmatprep.subr.mxu0 0.0
        %7770 = vmatpush1.msra.mxu0 %v7511
        %7771 = vmatprep.subr.mxu0 0.0
        %7772 = vmatpush1.msra.mxu0 %v7512
        %7773 = vmatprep.subr.mxu0 0.0
        %7774 = vmatpush1.msra.mxu0 %v7513
        %7775 = vmatprep.subr.mxu0 0.0
        %7776 = vmatpush1.msra.mxu0 %v7514
        %7777 = vmatprep.subr.mxu0 0.0
        %7778 = vmatpush1.msra.mxu0 %v7515
        %7779 = vmatprep.subr.mxu0 0.0
        %7780 = vmatpush1.msra.mxu0 %v7516
        %7781 = vmatprep.subr.mxu0 0.0
        %7782 = vmatpush1.msra.mxu0 %v7517
        %7783 = vmatprep.subr.mxu0 0.0
        %7784 = vmatpush1.msra.mxu0 %v7518
        %7785 = vmatprep.subr.mxu0 0.0
        %7786 = vmatpush1.msra.mxu0 %v7519
        %7787 = vmatprep.subr.mxu0 0.0
        %7788 = vmatpush1.msra.mxu0 %v7520
        %7789 = vmatprep.subr.mxu0 0.0
        %7790 = vmatpush1.msra.mxu0 %v7521
        %7791 = vmatprep.subr.mxu0 0.0
        %7792 = vmatpush1.msra.mxu0 %v7522
        %7793 = vmatprep.subr.mxu0 0.0
        %7794 = vmatpush1.msra.mxu0 %v7523
        %7795 = vmatprep.subr.mxu0 0.0
        %7796 = vmatpush1.msra.mxu0 %v7524
        %7797 = vmatprep.subr.mxu0 0.0
        %7798 = vmatpush1.msra.mxu0 %v7525
        %7799 = vmatprep.subr.mxu0 0.0
        %7800 = vmatpush1.msra.mxu0 %v7526
        %7801 = vmatprep.subr.mxu0 0.0
        %7802 = vmatpush1.msra.mxu0 %v7527
        %7803 = vmatprep.subr.mxu0 0.0
        %7804 = vmatpush1.msra.mxu0 %v7528
        %7805 = vmatprep.subr.mxu0 0.0
        %7806 = vmatpush1.msra.mxu0 %v7529
        %7807 = vmatprep.subr.mxu0 0.0
        %7808 = vmatpush1.msra.mxu0 %v7530
        %7809 = vmatprep.subr.mxu0 0.0
        %7810 = vmatpush1.msra.mxu0 %v7531
        %7811 = vmatprep.subr.mxu0 0.0
        %7812 = vmatpush1.msra.mxu0 %v7532
        %7813 = vmatprep.subr.mxu0 0.0
        %7814 = vmatpush1.msra.mxu0 %v7533
        %7815 = vmatprep.subr.mxu0 0.0
        %7816 = vmatpush1.msra.mxu0 %v7534
        %7817 = vmatprep.subr.mxu0 0.0
        %7818 = vmatpush1.msra.mxu0 %v7535
        %7819 = vmatprep.subr.mxu0 0.0
        %7820 = vmatpush1.msra.mxu0 %v7536
        %7821 = vmatprep.mubr.f32.mxu0 %v7298
        %7822 = vmatmul.mubr.f32.gmra.mrb[0].mxu0 %v7297
        %v7823 = vpop.f32.mrb[0].mxu0
        %v7824 = vadd.f32 %v7706, %v7823
        %v7825 = vpop.f32.mrb[0].mxu0
        %7826 = vmatprep.mubr.f32.mxu0 %v7311
        %7827 = vmatmul.mubr.f32.gmra.mrb[0].mxu0 %v7310
        %v7828 = vpop.f32.mrb[0].mxu0
        %v7829 = vadd.f32 %v7706, %v7828
        %v7830 = vpop.f32.mrb[0].mxu0
        %7831 = vmatprep.mubr.f32.mxu0 %v7324
        %7832 = vmatmul.mubr.f32.gmra.mrb[0].mxu0 %v7323
        %v7833 = vpop.f32.mrb[0].mxu0
        %v7834 = vadd.f32 %v7706, %v7833
        %v7835 = vpop.f32.mrb[0].mxu0
        %7836 = vmatprep.mubr.f32.mxu0 %v7337
        %7837 = vmatmul.mubr.f32.gmra.mrb[0].mxu0 %v7336
        %v7838 = vpop.f32.mrb[0].mxu0
        %v7839 = vadd.f32 %v7706, %v7838
        %v7840 = vpop.f32.mrb[0].mxu0
        %7841 = vmatprep.mubr.f32.mxu0 %v7350
        %7842 = vmatmul.mubr.f32.gmra.mrb[0].mxu0 %v7349
        %v7843 = vpop.f32.mrb[0].mxu0
        %v7844 = vadd.f32 %v7706, %v7843
        %v7845 = vpop.f32.mrb[0].mxu0
        %7846 = vmatprep.mubr.f32.mxu0 %v7363
        %7847 = vmatmul.mubr.f32.gmra.mrb[0].mxu0 %v7362
        %v7848 = vpop.f32.mrb[0].mxu0
        %v7849 = vadd.f32 %v7706, %v7848
        %v7850 = vpop.f32.mrb[0].mxu0
        %7851 = vmatprep.mubr.f32.mxu0 %v7376
        %7852 = vmatmul.mubr.f32.gmra.mrb[0].mxu0 %v7375
        %v7853 = vpop.f32.mrb[0].mxu0
        %v7854 = vadd.f32 %v7706, %v7853
        %v7855 = vpop.f32.mrb[0].mxu0
        %7856 = vmatprep.mubr.f32.mxu0 %v7389
        %7857 = vmatmul.mubr.f32.gmra.mrb[0].mxu0 %v7388
        %v7858 = vpop.f32.mrb[0].mxu0
        %v7859 = vadd.f32 %v7706, %v7858
        %v7860 = vpop.f32.mrb[0].mxu0
        %7861 = vmatprep.mubr.f32.mxu0 %v7402
        %7862 = vmatmul.mubr.f32.gmra.mrb[0].mxu0 %v7401
        %v7863 = vpop.f32.mrb[0].mxu0
        %v7864 = vadd.f32 %v7706, %v7863
        %v7865 = vpop.f32.mrb[0].mxu0
        %7866 = vmatprep.mubr.f32.mxu0 %v7415
        %7867 = vmatmul.mubr.f32.gmra.mrb[0].mxu0 %v7414
        %v7868 = vpop.f32.mrb[0].mxu0
        %v7869 = vadd.f32 %v7706, %v7868
        %v7870 = vpop.f32.mrb[0].mxu0
        %7871 = vmatprep.mubr.f32.mxu0 %v7428
        %7872 = vmatmul.mubr.f32.gmra.mrb[0].mxu0 %v7427
        %v7873 = vpop.f32.mrb[0].mxu0
        %v7874 = vadd.f32 %v7706, %v7873
        %v7875 = vpop.f32.mrb[0].mxu0
        %7876 = vmatprep.mubr.f32.mxu0 %v7441
        %7877 = vmatmul.mubr.f32.gmra.mrb[0].mxu0 %v7440
        %v7878 = vpop.f32.mrb[0].mxu0
        %v7879 = vadd.f32 %v7706, %v7878
        %v7880 = vpop.f32.mrb[0].mxu0
        %7881 = vmatprep.mubr.f32.mxu0 %v7454
        %7882 = vmatmul.mubr.f32.gmra.mrb[0].mxu0 %v7453
        %v7883 = vpop.f32.mrb[0].mxu0
        %v7884 = vadd.f32 %v7706, %v7883
        %v7885 = vpop.f32.mrb[0].mxu0
        %7886 = vmatprep.mubr.f32.mxu0 %v7467
        %7887 = vmatmul.mubr.f32.gmra.mrb[0].mxu0 %v7466
        %v7888 = vpop.f32.mrb[0].mxu0
        %v7889 = vadd.f32 %v7706, %v7888
        %v7890 = vpop.f32.mrb[0].mxu0
        %7891 = vmatprep.mubr.f32.mxu0 %v7480
        %7892 = vmatmul.mubr.f32.gmra.mrb[0].mxu0 %v7479
        %v7893 = vpop.f32.mrb[0].mxu0
        %v7894 = vadd.f32 %v7706, %v7893
        %v7895 = vpop.f32.mrb[0].mxu0
        %7896 = vmatprep.mubr.f32.mxu0 %v7493
        %7897 = vmatmul.mubr.f32.gmra.mrb[0].mxu0 %v7492
        %v7898 = vpop.f32.mrb[0].mxu0
        %v7899 = vadd.f32 %v7706, %v7898
        %v7900 = vpop.f32.mrb[0].mxu0
        %7901 = vdwg.mxu0
        %7902 = vmatprep.subr.mxu0 0.0
        %7903 = vmatpush1.msra.mxu0 %v7537
        %7904 = vmatprep.subr.mxu0 0.0
        %7905 = vmatpush1.msra.mxu0 %v7538
        %7906 = vmatprep.subr.mxu0 0.0
        %7907 = vmatpush1.msra.mxu0 %v7539
        %7908 = vmatprep.subr.mxu0 0.0
        %7909 = vmatpush1.msra.mxu0 %v7540
        %7910 = vmatprep.subr.mxu0 0.0
        %7911 = vmatpush1.msra.mxu0 %v7541
        %7912 = vmatprep.subr.mxu0 0.0
        %7913 = vmatpush1.msra.mxu0 %v7542
        %7914 = vmatprep.subr.mxu0 0.0
        %7915 = vmatpush1.msra.mxu0 %v7543
        %7916 = vmatprep.subr.mxu0 0.0
        %7917 = vmatpush1.msra.mxu0 %v7544
        %7918 = vmatprep.subr.mxu0 0.0
        %7919 = vmatpush1.msra.mxu0 %v7545
        %7920 = vmatprep.subr.mxu0 0.0
        %7921 = vmatpush1.msra.mxu0 %v7546
        %7922 = vmatprep.subr.mxu0 0.0
        %7923 = vmatpush1.msra.mxu0 %v7547
        %7924 = vmatprep.subr.mxu0 0.0
        %7925 = vmatpush1.msra.mxu0 %v7548
        %7926 = vmatprep.subr.mxu0 0.0
        %7927 = vmatpush1.msra.mxu0 %v7549
        %7928 = vmatprep.subr.mxu0 0.0
        %7929 = vmatpush1.msra.mxu0 %v7550
        %7930 = vmatprep.subr.mxu0 0.0
        %7931 = vmatpush1.msra.mxu0 %v7551
        %7932 = vmatprep.subr.mxu0 0.0
        %7933 = vmatpush1.msra.mxu0 %v7552
        %7934 = vmatprep.subr.mxu0 0.0
        %7935 = vmatpush1.msra.mxu0 %v7553
        %7936 = vmatprep.subr.mxu0 0.0
        %7937 = vmatpush1.msra.mxu0 %v7554
        %7938 = vmatprep.subr.mxu0 0.0
        %7939 = vmatpush1.msra.mxu0 %v7555
        %7940 = vmatprep.subr.mxu0 0.0
        %7941 = vmatpush1.msra.mxu0 %v7556
        %7942 = vmatprep.subr.mxu0 0.0
        %7943 = vmatpush1.msra.mxu0 %v7557
        %7944 = vmatprep.subr.mxu0 0.0
        %7945 = vmatpush1.msra.mxu0 %v7558
        %7946 = vmatprep.subr.mxu0 0.0
        %7947 = vmatpush1.msra.mxu0 %v7559
        %7948 = vmatprep.subr.mxu0 0.0
        %7949 = vmatpush1.msra.mxu0 %v7560
        %7950 = vmatprep.subr.mxu0 0.0
        %7951 = vmatpush1.msra.mxu0 %v7561
        %7952 = vmatprep.subr.mxu0 0.0
        %7953 = vmatpush1.msra.mxu0 %v7562
        %7954 = vmatprep.subr.mxu0 0.0
        %7955 = vmatpush1.msra.mxu0 %v7563
        %7956 = vmatprep.subr.mxu0 0.0
        %7957 = vmatpush1.msra.mxu0 %v7564
        %7958 = vmatprep.subr.mxu0 0.0
        %7959 = vmatpush1.msra.mxu0 %v7565
        %7960 = vmatprep.subr.mxu0 0.0
        %7961 = vmatpush1.msra.mxu0 %v7566
        %7962 = vmatprep.subr.mxu0 0.0
        %7963 = vmatpush1.msra.mxu0 %v7567
        %7964 = vmatprep.subr.mxu0 0.0
        %7965 = vmatpush1.msra.mxu0 %v7568
        %7966 = vmatprep.mubr.f32.mxu0 %v7300
        %7967 = vmatmul.mubr.f32.gmra.mrb[0].mxu0 %v7299
        %v7968 = vpop.f32.mrb[0].mxu0
        %v7969 = vadd.f32 %v7824, %v7968
        %v7970 = vpop.f32.mrb[0].mxu0
        %7971 = vmatprep.mubr.f32.mxu0 %v7313
        %7972 = vmatmul.mubr.f32.gmra.mrb[0].mxu0 %v7312
        %v7973 = vpop.f32.mrb[0].mxu0
        %v7974 = vadd.f32 %v7829, %v7973
        %v7975 = vpop.f32.mrb[0].mxu0
        %7976 = vmatprep.mubr.f32.mxu0 %v7326
        %7977 = vmatmul.mubr.f32.gmra.mrb[0].mxu0 %v7325
        %v7978 = vpop.f32.mrb[0].mxu0
        %v7979 = vadd.f32 %v7834, %v7978
        %v7980 = vpop.f32.mrb[0].mxu0
        %7981 = vmatprep.mubr.f32.mxu0 %v7339
        %7982 = vmatmul.mubr.f32.gmra.mrb[0].mxu0 %v7338
        %v7983 = vpop.f32.mrb[0].mxu0
        %v7984 = vadd.f32 %v7839, %v7983
        %v7985 = vpop.f32.mrb[0].mxu0
        %7986 = vmatprep.mubr.f32.mxu0 %v7352
        %7987 = vmatmul.mubr.f32.gmra.mrb[0].mxu0 %v7351
        %v7988 = vpop.f32.mrb[0].mxu0
        %v7989 = vadd.f32 %v7844, %v7988
        %v7990 = vpop.f32.mrb[0].mxu0
        %7991 = vmatprep.mubr.f32.mxu0 %v7365
        %7992 = vmatmul.mubr.f32.gmra.mrb[0].mxu0 %v7364
        %v7993 = vpop.f32.mrb[0].mxu0
        %v7994 = vadd.f32 %v7849, %v7993
        %v7995 = vpop.f32.mrb[0].mxu0
        %7996 = vmatprep.mubr.f32.mxu0 %v7378
        %7997 = vmatmul.mubr.f32.gmra.mrb[0].mxu0 %v7377
        %v7998 = vpop.f32.mrb[0].mxu0
        %v7999 = vadd.f32 %v7854, %v7998
        %v8000 = vpop.f32.mrb[0].mxu0
        %8001 = vmatprep.mubr.f32.mxu0 %v7391
        %8002 = vmatmul.mubr.f32.gmra.mrb[0].mxu0 %v7390
        %v8003 = vpop.f32.mrb[0].mxu0
        %v8004 = vadd.f32 %v7859, %v8003
        %v8005 = vpop.f32.mrb[0].mxu0
        %8006 = vmatprep.mubr.f32.mxu0 %v7404
        %8007 = vmatmul.mubr.f32.gmra.mrb[0].mxu0 %v7403
        %v8008 = vpop.f32.mrb[0].mxu0
        %v8009 = vadd.f32 %v7864, %v8008
        %v8010 = vpop.f32.mrb[0].mxu0
        %8011 = vmatprep.mubr.f32.mxu0 %v7417
        %8012 = vmatmul.mubr.f32.gmra.mrb[0].mxu0 %v7416
        %v8013 = vpop.f32.mrb[0].mxu0
        %v8014 = vadd.f32 %v7869, %v8013
        %v8015 = vpop.f32.mrb[0].mxu0
        %8016 = vmatprep.mubr.f32.mxu0 %v7430
        %8017 = vmatmul.mubr.f32.gmra.mrb[0].mxu0 %v7429
        %v8018 = vpop.f32.mrb[0].mxu0
        %v8019 = vadd.f32 %v7874, %v8018
        %v8020 = vpop.f32.mrb[0].mxu0
        %8021 = vmatprep.mubr.f32.mxu0 %v7443
        %8022 = vmatmul.mubr.f32.gmra.mrb[0].mxu0 %v7442
        %v8023 = vpop.f32.mrb[0].mxu0
        %v8024 = vadd.f32 %v7879, %v8023
        %v8025 = vpop.f32.mrb[0].mxu0
        %8026 = vmatprep.mubr.f32.mxu0 %v7456
        %8027 = vmatmul.mubr.f32.gmra.mrb[0].mxu0 %v7455
        %v8028 = vpop.f32.mrb[0].mxu0
        %v8029 = vadd.f32 %v7884, %v8028
        %v8030 = vpop.f32.mrb[0].mxu0
        %8031 = vmatprep.mubr.f32.mxu0 %v7469
        %8032 = vmatmul.mubr.f32.gmra.mrb[0].mxu0 %v7468
        %v8033 = vpop.f32.mrb[0].mxu0
        %v8034 = vadd.f32 %v7889, %v8033
        %v8035 = vpop.f32.mrb[0].mxu0
        %8036 = vmatprep.mubr.f32.mxu0 %v7482
        %8037 = vmatmul.mubr.f32.gmra.mrb[0].mxu0 %v7481
        %v8038 = vpop.f32.mrb[0].mxu0
        %v8039 = vadd.f32 %v7894, %v8038
        %v8040 = vpop.f32.mrb[0].mxu0
        %8041 = vmatprep.mubr.f32.mxu0 %v7495
        %8042 = vmatmul.mubr.f32.gmra.mrb[0].mxu0 %v7494
        %v8043 = vpop.f32.mrb[0].mxu0
        %v8044 = vadd.f32 %v7899, %v8043
        %v8045 = vpop.f32.mrb[0].mxu0
        %8046 = vdwg.mxu0
        %8047 = vmatprep.subr.mxu0 0.0
        %8048 = vmatpush1.msra.mxu0 %v7569
        %8049 = vmatprep.subr.mxu0 0.0
        %8050 = vmatpush1.msra.mxu0 %v7570
        %8051 = vmatprep.subr.mxu0 0.0
        %8052 = vmatpush1.msra.mxu0 %v7571
        %8053 = vmatprep.subr.mxu0 0.0
        %8054 = vmatpush1.msra.mxu0 %v7572
        %8055 = vmatprep.subr.mxu0 0.0
        %8056 = vmatpush1.msra.mxu0 %v7573
        %8057 = vmatprep.subr.mxu0 0.0
        %8058 = vmatpush1.msra.mxu0 %v7574
        %8059 = vmatprep.subr.mxu0 0.0
        %8060 = vmatpush1.msra.mxu0 %v7575
        %8061 = vmatprep.subr.mxu0 0.0
        %8062 = vmatpush1.msra.mxu0 %v7576
        %8063 = vmatprep.subr.mxu0 0.0
        %8064 = vmatpush1.msra.mxu0 %v7577
        %8065 = vmatprep.subr.mxu0 0.0
        %8066 = vmatpush1.msra.mxu0 %v7578
        %8067 = vmatprep.subr.mxu0 0.0
        %8068 = vmatpush1.msra.mxu0 %v7579
        %8069 = vmatprep.subr.mxu0 0.0
        %8070 = vmatpush1.msra.mxu0 %v7580
        %8071 = vmatprep.subr.mxu0 0.0
        %8072 = vmatpush1.msra.mxu0 %v7581
        %8073 = vmatprep.subr.mxu0 0.0
        %8074 = vmatpush1.msra.mxu0 %v7582
        %8075 = vmatprep.subr.mxu0 0.0
        %8076 = vmatpush1.msra.mxu0 %v7583
        %8077 = vmatprep.subr.mxu0 0.0
        %8078 = vmatpush1.msra.mxu0 %v7584
        %8079 = vmatprep.subr.mxu0 0.0
        %8080 = vmatpush1.msra.mxu0 %v7585
        %8081 = vmatprep.subr.mxu0 0.0
        %8082 = vmatpush1.msra.mxu0 %v7586
        %8083 = vmatprep.subr.mxu0 0.0
        %8084 = vmatpush1.msra.mxu0 %v7587
        %8085 = vmatprep.subr.mxu0 0.0
        %8086 = vmatpush1.msra.mxu0 %v7588
        %8087 = vmatprep.subr.mxu0 0.0
        %8088 = vmatpush1.msra.mxu0 %v7589
        %8089 = vmatprep.subr.mxu0 0.0
        %8090 = vmatpush1.msra.mxu0 %v7590
        %8091 = vmatprep.subr.mxu0 0.0
        %8092 = vmatpush1.msra.mxu0 %v7591
        %8093 = vmatprep.subr.mxu0 0.0
        %8094 = vmatpush1.msra.mxu0 %v7592
        %8095 = vmatprep.subr.mxu0 0.0
        %8096 = vmatpush1.msra.mxu0 %v7593
        %8097 = vmatprep.subr.mxu0 0.0
        %8098 = vmatpush1.msra.mxu0 %v7594
        %8099 = vmatprep.subr.mxu0 0.0
        %8100 = vmatpush1.msra.mxu0 %v7595
        %8101 = vmatprep.subr.mxu0 0.0
        %8102 = vmatpush1.msra.mxu0 %v7596
        %8103 = vmatprep.subr.mxu0 0.0
        %8104 = vmatpush1.msra.mxu0 %v7597
        %8105 = vmatprep.subr.mxu0 0.0
        %8106 = vmatpush1.msra.mxu0 %v7598
        %8107 = vmatprep.subr.mxu0 0.0
        %8108 = vmatpush1.msra.mxu0 %v7599
        %8109 = vmatprep.subr.mxu0 0.0
        %8110 = vmatpush1.msra.mxu0 %v7600
        %8111 = vmatprep.mubr.f32.mxu0 %v7302
        %8112 = vmatmul.mubr.f32.gmra.mrb[0].mxu0 %v7301
        %v8113 = vpop.f32.mrb[0].mxu0
        %v8114 = vadd.f32 %v7969, %v8113
        %v8115 = vpop.f32.mrb[0].mxu0
        %8116 = vmatprep.mubr.f32.mxu0 %v7315
        %8117 = vmatmul.mubr.f32.gmra.mrb[0].mxu0 %v7314
        %v8118 = vpop.f32.mrb[0].mxu0
        %v8119 = vadd.f32 %v7974, %v8118
        %v8120 = vpop.f32.mrb[0].mxu0
        %8121 = vmatprep.mubr.f32.mxu0 %v7328
        %8122 = vmatmul.mubr.f32.gmra.mrb[0].mxu0 %v7327
        %v8123 = vpop.f32.mrb[0].mxu0
        %v8124 = vadd.f32 %v7979, %v8123
        %v8125 = vpop.f32.mrb[0].mxu0
        %8126 = vmatprep.mubr.f32.mxu0 %v7341
        %8127 = vmatmul.mubr.f32.gmra.mrb[0].mxu0 %v7340
        %v8128 = vpop.f32.mrb[0].mxu0
        %v8129 = vadd.f32 %v7984, %v8128
        %v8130 = vpop.f32.mrb[0].mxu0
        %8131 = vmatprep.mubr.f32.mxu0 %v7354
        %8132 = vmatmul.mubr.f32.gmra.mrb[0].mxu0 %v7353
        %v8133 = vpop.f32.mrb[0].mxu0
        %v8134 = vadd.f32 %v7989, %v8133
        %v8135 = vpop.f32.mrb[0].mxu0
        %8136 = vmatprep.mubr.f32.mxu0 %v7367
        %8137 = vmatmul.mubr.f32.gmra.mrb[0].mxu0 %v7366
        %v8138 = vpop.f32.mrb[0].mxu0
        %v8139 = vadd.f32 %v7994, %v8138
        %v8140 = vpop.f32.mrb[0].mxu0
        %8141 = vmatprep.mubr.f32.mxu0 %v7380
        %8142 = vmatmul.mubr.f32.gmra.mrb[0].mxu0 %v7379
        %v8143 = vpop.f32.mrb[0].mxu0
        %v8144 = vadd.f32 %v7999, %v8143
        %v8145 = vpop.f32.mrb[0].mxu0
        %8146 = vmatprep.mubr.f32.mxu0 %v7393
        %8147 = vmatmul.mubr.f32.gmra.mrb[0].mxu0 %v7392
        %v8148 = vpop.f32.mrb[0].mxu0
        %v8149 = vadd.f32 %v8004, %v8148
        %v8150 = vpop.f32.mrb[0].mxu0
        %8151 = vmatprep.mubr.f32.mxu0 %v7406
        %8152 = vmatmul.mubr.f32.gmra.mrb[0].mxu0 %v7405
        %v8153 = vpop.f32.mrb[0].mxu0
        %v8154 = vadd.f32 %v8009, %v8153
        %v8155 = vpop.f32.mrb[0].mxu0
        %8156 = vmatprep.mubr.f32.mxu0 %v7419
        %8157 = vmatmul.mubr.f32.gmra.mrb[0].mxu0 %v7418
        %v8158 = vpop.f32.mrb[0].mxu0
        %v8159 = vadd.f32 %v8014, %v8158
        %v8160 = vpop.f32.mrb[0].mxu0
        %8161 = vmatprep.mubr.f32.mxu0 %v7432
        %8162 = vmatmul.mubr.f32.gmra.mrb[0].mxu0 %v7431
        %v8163 = vpop.f32.mrb[0].mxu0
        %v8164 = vadd.f32 %v8019, %v8163
        %v8165 = vpop.f32.mrb[0].mxu0
        %8166 = vmatprep.mubr.f32.mxu0 %v7445
        %8167 = vmatmul.mubr.f32.gmra.mrb[0].mxu0 %v7444
        %v8168 = vpop.f32.mrb[0].mxu0
        %v8169 = vadd.f32 %v8024, %v8168
        %v8170 = vpop.f32.mrb[0].mxu0
        %8171 = vmatprep.mubr.f32.mxu0 %v7458
        %8172 = vmatmul.mubr.f32.gmra.mrb[0].mxu0 %v7457
        %v8173 = vpop.f32.mrb[0].mxu0
        %v8174 = vadd.f32 %v8029, %v8173
        %v8175 = vpop.f32.mrb[0].mxu0
        %8176 = vmatprep.mubr.f32.mxu0 %v7471
        %8177 = vmatmul.mubr.f32.gmra.mrb[0].mxu0 %v7470
        %v8178 = vpop.f32.mrb[0].mxu0
        %v8179 = vadd.f32 %v8034, %v8178
        %v8180 = vpop.f32.mrb[0].mxu0
        %8181 = vmatprep.mubr.f32.mxu0 %v7484
        %8182 = vmatmul.mubr.f32.gmra.mrb[0].mxu0 %v7483
        %v8183 = vpop.f32.mrb[0].mxu0
        %v8184 = vadd.f32 %v8039, %v8183
        %v8185 = vpop.f32.mrb[0].mxu0
        %8186 = vmatprep.mubr.f32.mxu0 %v7497
        %8187 = vmatmul.mubr.f32.gmra.mrb[0].mxu0 %v7496
        %v8188 = vpop.f32.mrb[0].mxu0
        %v8189 = vadd.f32 %v8044, %v8188
        %v8190 = vpop.f32.mrb[0].mxu0
        %8191 = vdwg.mxu0
        %8192 = vmatprep.subr.mxu0 0.0
        %8193 = vmatpush1.msra.mxu0 %v7601
        %8194 = vmatprep.subr.mxu0 0.0
        %8195 = vmatpush1.msra.mxu0 %v7602
        %8196 = vmatprep.subr.mxu0 0.0
        %8197 = vmatpush1.msra.mxu0 %v7603
        %8198 = vmatprep.subr.mxu0 0.0
        %8199 = vmatpush1.msra.mxu0 %v7604
        %8200 = vmatprep.subr.mxu0 0.0
        %8201 = vmatpush1.msra.mxu0 %v7605
        %8202 = vmatprep.subr.mxu0 0.0
        %8203 = vmatpush1.msra.mxu0 %v7606
        %8204 = vmatprep.subr.mxu0 0.0
        %8205 = vmatpush1.msra.mxu0 %v7607
        %8206 = vmatprep.subr.mxu0 0.0
        %8207 = vmatpush1.msra.mxu0 %v7608
        %8208 = vmatprep.subr.mxu0 0.0
        %8209 = vmatpush1.msra.mxu0 %v7609
        %8210 = vmatprep.subr.mxu0 0.0
        %8211 = vmatpush1.msra.mxu0 %v7610
        %8212 = vmatprep.subr.mxu0 0.0
        %8213 = vmatpush1.msra.mxu0 %v7611
        %8214 = vmatprep.subr.mxu0 0.0
        %8215 = vmatpush1.msra.mxu0 %v7612
        %8216 = vmatprep.subr.mxu0 0.0
        %8217 = vmatpush1.msra.mxu0 %v7613
        %8218 = vmatprep.subr.mxu0 0.0
        %8219 = vmatpush1.msra.mxu0 %v7614
        %8220 = vmatprep.subr.mxu0 0.0
        %8221 = vmatpush1.msra.mxu0 %v7615
        %8222 = vmatprep.subr.mxu0 0.0
        %8223 = vmatpush1.msra.mxu0 %v7616
        %8224 = vmatprep.subr.mxu0 0.0
        %8225 = vmatpush1.msra.mxu0 %v7617
        %8226 = vmatprep.subr.mxu0 0.0
        %8227 = vmatpush1.msra.mxu0 %v7618
        %8228 = vmatprep.subr.mxu0 0.0
        %8229 = vmatpush1.msra.mxu0 %v7619
        %8230 = vmatprep.subr.mxu0 0.0
        %8231 = vmatpush1.msra.mxu0 %v7620
        %8232 = vmatprep.subr.mxu0 0.0
        %8233 = vmatpush1.msra.mxu0 %v7621
        %8234 = vmatprep.subr.mxu0 0.0
        %8235 = vmatpush1.msra.mxu0 %v7622
        %8236 = vmatprep.subr.mxu0 0.0
        %8237 = vmatpush1.msra.mxu0 %v7623
        %8238 = vmatprep.subr.mxu0 0.0
        %8239 = vmatpush1.msra.mxu0 %v7624
        %8240 = vmatprep.subr.mxu0 0.0
        %8241 = vmatpush1.msra.mxu0 %v7625
        %8242 = vmatprep.subr.mxu0 0.0
        %8243 = vmatpush1.msra.mxu0 %v7626
        %8244 = vmatprep.subr.mxu0 0.0
        %8245 = vmatpush1.msra.mxu0 %v7627
        %8246 = vmatprep.subr.mxu0 0.0
        %8247 = vmatpush1.msra.mxu0 %v7628
        %8248 = vmatprep.subr.mxu0 0.0
        %8249 = vmatpush1.msra.mxu0 %v7629
        %8250 = vmatprep.subr.mxu0 0.0
        %8251 = vmatpush1.msra.mxu0 %v7630
        %8252 = vmatprep.subr.mxu0 0.0
        %8253 = vmatpush1.msra.mxu0 %v7631
        %8254 = vmatprep.subr.mxu0 0.0
        %8255 = vmatpush1.msra.mxu0 %v7632
        %8256 = vmatprep.mubr.f32.mxu0 %v7304
        %8257 = vmatmul.mubr.f32.gmra.mrb[0].mxu0 %v7303
        %v8258 = vpop.f32.mrb[0].mxu0
        %v8259 = vadd.f32 %v8114, %v8258
        %v8260 = vpop.f32.mrb[0].mxu0
        %8261 = vmatprep.mubr.f32.mxu0 %v7317
        %8262 = vmatmul.mubr.f32.gmra.mrb[0].mxu0 %v7316
        %v8263 = vpop.f32.mrb[0].mxu0
        %v8264 = vadd.f32 %v8119, %v8263
        %v8265 = vpop.f32.mrb[0].mxu0
        %8266 = vmatprep.mubr.f32.mxu0 %v7330
        %8267 = vmatmul.mubr.f32.gmra.mrb[0].mxu0 %v7329
        %v8268 = vpop.f32.mrb[0].mxu0
        %v8269 = vadd.f32 %v8124, %v8268
        %v8270 = vpop.f32.mrb[0].mxu0
        %8271 = vmatprep.mubr.f32.mxu0 %v7343
        %8272 = vmatmul.mubr.f32.gmra.mrb[0].mxu0 %v7342
        %v8273 = vpop.f32.mrb[0].mxu0
        %v8274 = vadd.f32 %v8129, %v8273
        %v8275 = vpop.f32.mrb[0].mxu0
        %8276 = vmatprep.mubr.f32.mxu0 %v7356
        %8277 = vmatmul.mubr.f32.gmra.mrb[0].mxu0 %v7355
        %v8278 = vpop.f32.mrb[0].mxu0
        %v8279 = vadd.f32 %v8134, %v8278
        %v8280 = vpop.f32.mrb[0].mxu0
        %8281 = vmatprep.mubr.f32.mxu0 %v7369
        %8282 = vmatmul.mubr.f32.gmra.mrb[0].mxu0 %v7368
        %v8283 = vpop.f32.mrb[0].mxu0
        %v8284 = vadd.f32 %v8139, %v8283
        %v8285 = vpop.f32.mrb[0].mxu0
        %8286 = vmatprep.mubr.f32.mxu0 %v7382
        %8287 = vmatmul.mubr.f32.gmra.mrb[0].mxu0 %v7381
        %v8288 = vpop.f32.mrb[0].mxu0
        %v8289 = vadd.f32 %v8144, %v8288
        %v8290 = vpop.f32.mrb[0].mxu0
        %8291 = vmatprep.mubr.f32.mxu0 %v7395
        %8292 = vmatmul.mubr.f32.gmra.mrb[0].mxu0 %v7394
        %v8293 = vpop.f32.mrb[0].mxu0
        %v8294 = vadd.f32 %v8149, %v8293
        %v8295 = vpop.f32.mrb[0].mxu0
        %8296 = vmatprep.mubr.f32.mxu0 %v7408
        %8297 = vmatmul.mubr.f32.gmra.mrb[0].mxu0 %v7407
        %v8298 = vpop.f32.mrb[0].mxu0
        %v8299 = vadd.f32 %v8154, %v8298
        %v8300 = vpop.f32.mrb[0].mxu0
        %8301 = vmatprep.mubr.f32.mxu0 %v7421
        %8302 = vmatmul.mubr.f32.gmra.mrb[0].mxu0 %v7420
        %v8303 = vpop.f32.mrb[0].mxu0
        %v8304 = vadd.f32 %v8159, %v8303
        %v8305 = vpop.f32.mrb[0].mxu0
        %8306 = vmatprep.mubr.f32.mxu0 %v7434
        %8307 = vmatmul.mubr.f32.gmra.mrb[0].mxu0 %v7433
        %v8308 = vpop.f32.mrb[0].mxu0
        %v8309 = vadd.f32 %v8164, %v8308
        %v8310 = vpop.f32.mrb[0].mxu0
        %8311 = vmatprep.mubr.f32.mxu0 %v7447
        %8312 = vmatmul.mubr.f32.gmra.mrb[0].mxu0 %v7446
        %v8313 = vpop.f32.mrb[0].mxu0
        %v8314 = vadd.f32 %v8169, %v8313
        %v8315 = vpop.f32.mrb[0].mxu0
        %8316 = vmatprep.mubr.f32.mxu0 %v7460
        %8317 = vmatmul.mubr.f32.gmra.mrb[0].mxu0 %v7459
        %v8318 = vpop.f32.mrb[0].mxu0
        %v8319 = vadd.f32 %v8174, %v8318
        %v8320 = vpop.f32.mrb[0].mxu0
        %8321 = vmatprep.mubr.f32.mxu0 %v7473
        %8322 = vmatmul.mubr.f32.gmra.mrb[0].mxu0 %v7472
        %v8323 = vpop.f32.mrb[0].mxu0
        %v8324 = vadd.f32 %v8179, %v8323
        %v8325 = vpop.f32.mrb[0].mxu0
        %8326 = vmatprep.mubr.f32.mxu0 %v7486
        %8327 = vmatmul.mubr.f32.gmra.mrb[0].mxu0 %v7485
        %v8328 = vpop.f32.mrb[0].mxu0
        %v8329 = vadd.f32 %v8184, %v8328
        %v8330 = vpop.f32.mrb[0].mxu0
        %8331 = vmatprep.mubr.f32.mxu0 %v7499
        %8332 = vmatmul.mubr.f32.gmra.mrb[0].mxu0 %v7498
        %v8333 = vpop.f32.mrb[0].mxu0
        %v8334 = vadd.f32 %v8189, %v8333
        %v8335 = vpop.f32.mrb[0].mxu0
        %8336 = vdwg.mxu0
        %8337 = vmatprep.subr.mxu0 0.0
        %8338 = vmatpush1.msra.mxu0 %v7633
        %8339 = vmatprep.subr.mxu0 0.0
        %8340 = vmatpush1.msra.mxu0 %v7634
        %8341 = vmatprep.subr.mxu0 0.0
        %8342 = vmatpush1.msra.mxu0 %v7635
        %8343 = vmatprep.subr.mxu0 0.0
        %8344 = vmatpush1.msra.mxu0 %v7636
        %8345 = vmatprep.subr.mxu0 0.0
        %8346 = vmatpush1.msra.mxu0 %v7637
        %8347 = vmatprep.subr.mxu0 0.0
        %8348 = vmatpush1.msra.mxu0 %v7638
        %8349 = vmatprep.subr.mxu0 0.0
        %8350 = vmatpush1.msra.mxu0 %v7639
        %8351 = vmatprep.subr.mxu0 0.0
        %8352 = vmatpush1.msra.mxu0 %v7640
        %8353 = vmatprep.subr.mxu0 0.0
        %8354 = vmatpush1.msra.mxu0 %v7641
        %8355 = vmatprep.subr.mxu0 0.0
        %8356 = vmatpush1.msra.mxu0 %v7642
        %8357 = vmatprep.subr.mxu0 0.0
        %8358 = vmatpush1.msra.mxu0 %v7643
        %8359 = vmatprep.subr.mxu0 0.0
        %8360 = vmatpush1.msra.mxu0 %v7644
        %8361 = vmatprep.subr.mxu0 0.0
        %8362 = vmatpush1.msra.mxu0 %v7645
        %8363 = vmatprep.subr.mxu0 0.0
        %8364 = vmatpush1.msra.mxu0 %v7646
        %8365 = vmatprep.subr.mxu0 0.0
        %8366 = vmatpush1.msra.mxu0 %v7647
        %8367 = vmatprep.subr.mxu0 0.0
        %8368 = vmatpush1.msra.mxu0 %v7648
        %8369 = vmatprep.subr.mxu0 0.0
        %8370 = vmatpush1.msra.mxu0 %v7649
        %8371 = vmatprep.subr.mxu0 0.0
        %8372 = vmatpush1.msra.mxu0 %v7650
        %8373 = vmatprep.subr.mxu0 0.0
        %8374 = vmatpush1.msra.mxu0 %v7651
        %8375 = vmatprep.subr.mxu0 0.0
        %8376 = vmatpush1.msra.mxu0 %v7652
        %8377 = vmatprep.subr.mxu0 0.0
        %8378 = vmatpush1.msra.mxu0 %v7653
        %8379 = vmatprep.subr.mxu0 0.0
        %8380 = vmatpush1.msra.mxu0 %v7654
        %8381 = vmatprep.subr.mxu0 0.0
        %8382 = vmatpush1.msra.mxu0 %v7655
        %8383 = vmatprep.subr.mxu0 0.0
        %8384 = vmatpush1.msra.mxu0 %v7656
        %8385 = vmatprep.subr.mxu0 0.0
        %8386 = vmatpush1.msra.mxu0 %v7657
        %8387 = vmatprep.subr.mxu0 0.0
        %8388 = vmatpush1.msra.mxu0 %v7658
        %8389 = vmatprep.subr.mxu0 0.0
        %8390 = vmatpush1.msra.mxu0 %v7659
        %8391 = vmatprep.subr.mxu0 0.0
        %8392 = vmatpush1.msra.mxu0 %v7660
        %8393 = vmatprep.subr.mxu0 0.0
        %8394 = vmatpush1.msra.mxu0 %v7661
        %8395 = vmatprep.subr.mxu0 0.0
        %8396 = vmatpush1.msra.mxu0 %v7662
        %8397 = vmatprep.subr.mxu0 0.0
        %8398 = vmatpush1.msra.mxu0 %v7663
        %8399 = vmatprep.subr.mxu0 0.0
        %8400 = vmatpush1.msra.mxu0 %v7664
        %8401 = vmatprep.mubr.f32.mxu0 %v7306
        %8402 = vmatmul.mubr.f32.gmra.mrb[0].mxu0 %v7305
        %v8403 = vpop.f32.mrb[0].mxu0
        %v8404 = vadd.f32 %v8259, %v8403
        %v8405 = vpop.f32.mrb[0].mxu0
        %8406 = vmatprep.mubr.f32.mxu0 %v7319
        %8407 = vmatmul.mubr.f32.gmra.mrb[0].mxu0 %v7318
        %v8408 = vpop.f32.mrb[0].mxu0
        %v8409 = vadd.f32 %v8264, %v8408
        %v8410 = vpop.f32.mrb[0].mxu0
        %8411 = vmatprep.mubr.f32.mxu0 %v7332
        %8412 = vmatmul.mubr.f32.gmra.mrb[0].mxu0 %v7331
        %v8413 = vpop.f32.mrb[0].mxu0
        %v8414 = vadd.f32 %v8269, %v8413
        %v8415 = vpop.f32.mrb[0].mxu0
        %8416 = vmatprep.mubr.f32.mxu0 %v7345
        %8417 = vmatmul.mubr.f32.gmra.mrb[0].mxu0 %v7344
        %v8418 = vpop.f32.mrb[0].mxu0
        %v8419 = vadd.f32 %v8274, %v8418
        %v8420 = vpop.f32.mrb[0].mxu0
        %8421 = vmatprep.mubr.f32.mxu0 %v7358
        %8422 = vmatmul.mubr.f32.gmra.mrb[0].mxu0 %v7357
        %v8423 = vpop.f32.mrb[0].mxu0
        %v8424 = vadd.f32 %v8279, %v8423
        %v8425 = vpop.f32.mrb[0].mxu0
        %8426 = vmatprep.mubr.f32.mxu0 %v7371
        %8427 = vmatmul.mubr.f32.gmra.mrb[0].mxu0 %v7370
        %v8428 = vpop.f32.mrb[0].mxu0
        %v8429 = vadd.f32 %v8284, %v8428
        %v8430 = vpop.f32.mrb[0].mxu0
        %8431 = vmatprep.mubr.f32.mxu0 %v7384
        %8432 = vmatmul.mubr.f32.gmra.mrb[0].mxu0 %v7383
        %v8433 = vpop.f32.mrb[0].mxu0
        %v8434 = vadd.f32 %v8289, %v8433
        %v8435 = vpop.f32.mrb[0].mxu0
        %8436 = vmatprep.mubr.f32.mxu0 %v7397
        %8437 = vmatmul.mubr.f32.gmra.mrb[0].mxu0 %v7396
        %v8438 = vpop.f32.mrb[0].mxu0
        %v8439 = vadd.f32 %v8294, %v8438
        %v8440 = vpop.f32.mrb[0].mxu0
        %8441 = vmatprep.mubr.f32.mxu0 %v7410
        %8442 = vmatmul.mubr.f32.gmra.mrb[0].mxu0 %v7409
        %v8443 = vpop.f32.mrb[0].mxu0
        %v8444 = vadd.f32 %v8299, %v8443
        %v8445 = vpop.f32.mrb[0].mxu0
        %8446 = vmatprep.mubr.f32.mxu0 %v7423
        %8447 = vmatmul.mubr.f32.gmra.mrb[0].mxu0 %v7422
        %v8448 = vpop.f32.mrb[0].mxu0
        %v8449 = vadd.f32 %v8304, %v8448
        %v8450 = vpop.f32.mrb[0].mxu0
        %8451 = vmatprep.mubr.f32.mxu0 %v7436
        %8452 = vmatmul.mubr.f32.gmra.mrb[0].mxu0 %v7435
        %v8453 = vpop.f32.mrb[0].mxu0
        %v8454 = vadd.f32 %v8309, %v8453
        %v8455 = vpop.f32.mrb[0].mxu0
        %8456 = vmatprep.mubr.f32.mxu0 %v7449
        %8457 = vmatmul.mubr.f32.gmra.mrb[0].mxu0 %v7448
        %v8458 = vpop.f32.mrb[0].mxu0
        %v8459 = vadd.f32 %v8314, %v8458
        %v8460 = vpop.f32.mrb[0].mxu0
        %8461 = vmatprep.mubr.f32.mxu0 %v7462
        %8462 = vmatmul.mubr.f32.gmra.mrb[0].mxu0 %v7461
        %v8463 = vpop.f32.mrb[0].mxu0
        %v8464 = vadd.f32 %v8319, %v8463
        %v8465 = vpop.f32.mrb[0].mxu0
        %8466 = vmatprep.mubr.f32.mxu0 %v7475
        %8467 = vmatmul.mubr.f32.gmra.mrb[0].mxu0 %v7474
        %v8468 = vpop.f32.mrb[0].mxu0
        %v8469 = vadd.f32 %v8324, %v8468
        %v8470 = vpop.f32.mrb[0].mxu0
        %8471 = vmatprep.mubr.f32.mxu0 %v7488
        %8472 = vmatmul.mubr.f32.gmra.mrb[0].mxu0 %v7487
        %v8473 = vpop.f32.mrb[0].mxu0
        %v8474 = vadd.f32 %v8329, %v8473
        %v8475 = vpop.f32.mrb[0].mxu0
        %8476 = vmatprep.mubr.f32.mxu0 %v7501
        %8477 = vmatmul.mubr.f32.gmra.mrb[0].mxu0 %v7500
        %v8478 = vpop.f32.mrb[0].mxu0
        %v8479 = vadd.f32 %v8334, %v8478
        %v8480 = vpop.f32.mrb[0].mxu0
        %8481 = vdwg.mxu0
        %8482 = vmatprep.subr.mxu0 0.0
        %8483 = vmatpush1.msra.mxu0 %v7665
        %8484 = vmatprep.subr.mxu0 0.0
        %8485 = vmatpush1.msra.mxu0 %v7666
        %8486 = vmatprep.subr.mxu0 0.0
        %8487 = vmatpush1.msra.mxu0 %v7667
        %8488 = vmatprep.subr.mxu0 0.0
        %8489 = vmatpush1.msra.mxu0 %v7668
        %8490 = vmatprep.subr.mxu0 0.0
        %8491 = vmatpush1.msra.mxu0 %v7669
        %8492 = vmatprep.subr.mxu0 0.0
        %8493 = vmatpush1.msra.mxu0 %v7670
        %8494 = vmatprep.subr.mxu0 0.0
        %8495 = vmatpush1.msra.mxu0 %v7671
        %8496 = vmatprep.subr.mxu0 0.0
        %8497 = vmatpush1.msra.mxu0 %v7672
        %8498 = vmatprep.subr.mxu0 0.0
        %8499 = vmatpush1.msra.mxu0 %v7673
        %8500 = vmatprep.subr.mxu0 0.0
        %8501 = vmatpush1.msra.mxu0 %v7674
        %8502 = vmatprep.subr.mxu0 0.0
        %8503 = vmatpush1.msra.mxu0 %v7675
        %8504 = vmatprep.subr.mxu0 0.0
        %8505 = vmatpush1.msra.mxu0 %v7676
        %8506 = vmatprep.subr.mxu0 0.0
        %8507 = vmatpush1.msra.mxu0 %v7677
        %8508 = vmatprep.subr.mxu0 0.0
        %8509 = vmatpush1.msra.mxu0 %v7678
        %8510 = vmatprep.subr.mxu0 0.0
        %8511 = vmatpush1.msra.mxu0 %v7679
        %8512 = vmatprep.subr.mxu0 0.0
        %8513 = vmatpush1.msra.mxu0 %v7680
        %8514 = vmatprep.subr.mxu0 0.0
        %8515 = vmatpush1.msra.mxu0 %v7681
        %8516 = vmatprep.subr.mxu0 0.0
        %8517 = vmatpush1.msra.mxu0 %v7682
        %8518 = vmatprep.subr.mxu0 0.0
        %8519 = vmatpush1.msra.mxu0 %v7683
        %8520 = vmatprep.subr.mxu0 0.0
        %8521 = vmatpush1.msra.mxu0 %v7684
        %8522 = vmatprep.subr.mxu0 0.0
        %8523 = vmatpush1.msra.mxu0 %v7685
        %8524 = vmatprep.subr.mxu0 0.0
        %8525 = vmatpush1.msra.mxu0 %v7686
        %8526 = vmatprep.subr.mxu0 0.0
        %8527 = vmatpush1.msra.mxu0 %v7687
        %8528 = vmatprep.subr.mxu0 0.0
        %8529 = vmatpush1.msra.mxu0 %v7688
        %8530 = vmatprep.subr.mxu0 0.0
        %8531 = vmatpush1.msra.mxu0 %v7689
        %8532 = vmatprep.subr.mxu0 0.0
        %8533 = vmatpush1.msra.mxu0 %v7690
        %8534 = vmatprep.subr.mxu0 0.0
        %8535 = vmatpush1.msra.mxu0 %v7691
        %8536 = vmatprep.subr.mxu0 0.0
        %8537 = vmatpush1.msra.mxu0 %v7692
        %8538 = vmatprep.subr.mxu0 0.0
        %8539 = vmatpush1.msra.mxu0 %v7693
        %8540 = vmatprep.subr.mxu0 0.0
        %8541 = vmatpush1.msra.mxu0 %v7694
        %8542 = vmatprep.subr.mxu0 0.0
        %8543 = vmatpush1.msra.mxu0 %v7695
        %8544 = vmatprep.subr.mxu0 0.0
        %8545 = vmatpush1.msra.mxu0 %v7696
        %8546 = vmatprep.mubr.f32.mxu0 %v7308
        %8547 = vmatmul.mubr.f32.gmra.mrb[0].mxu0 %v7307
        %v8548 = vpop.f32.mrb[0].mxu0
        %v8549 = vadd.f32 %v8404, %v8548
        %v8550 = vpop.f32.mrb[0].mxu0
        %8551 = vmatprep.mubr.f32.mxu0 %v7321
        %8552 = vmatmul.mubr.f32.gmra.mrb[0].mxu0 %v7320
        %v8553 = vpop.f32.mrb[0].mxu0
        %v8554 = vadd.f32 %v8409, %v8553
        %v8555 = vpop.f32.mrb[0].mxu0
        %8556 = vmatprep.mubr.f32.mxu0 %v7334
        %8557 = vmatmul.mubr.f32.gmra.mrb[0].mxu0 %v7333
        %v8558 = vpop.f32.mrb[0].mxu0
        %v8559 = vadd.f32 %v8414, %v8558
        %v8560 = vpop.f32.mrb[0].mxu0
        %8561 = vmatprep.mubr.f32.mxu0 %v7347
        %8562 = vmatmul.mubr.f32.gmra.mrb[0].mxu0 %v7346
        %v8563 = vpop.f32.mrb[0].mxu0
        %v8564 = vadd.f32 %v8419, %v8563
        %v8565 = vpop.f32.mrb[0].mxu0
        %8566 = vmatprep.mubr.f32.mxu0 %v7360
        %8567 = vmatmul.mubr.f32.gmra.mrb[0].mxu0 %v7359
        %v8568 = vpop.f32.mrb[0].mxu0
        %v8569 = vadd.f32 %v8424, %v8568
        %v8570 = vpop.f32.mrb[0].mxu0
        %8571 = vmatprep.mubr.f32.mxu0 %v7373
        %8572 = vmatmul.mubr.f32.gmra.mrb[0].mxu0 %v7372
        %v8573 = vpop.f32.mrb[0].mxu0
        %v8574 = vadd.f32 %v8429, %v8573
        %v8575 = vpop.f32.mrb[0].mxu0
        %8576 = vmatprep.mubr.f32.mxu0 %v7386
        %8577 = vmatmul.mubr.f32.gmra.mrb[0].mxu0 %v7385
        %v8578 = vpop.f32.mrb[0].mxu0
        %v8579 = vadd.f32 %v8434, %v8578
        %v8580 = vpop.f32.mrb[0].mxu0
        %8581 = vmatprep.mubr.f32.mxu0 %v7399
        %8582 = vmatmul.mubr.f32.gmra.mrb[0].mxu0 %v7398
        %v8583 = vpop.f32.mrb[0].mxu0
        %v8584 = vadd.f32 %v8439, %v8583
        %v8585 = vpop.f32.mrb[0].mxu0
        %8586 = vmatprep.mubr.f32.mxu0 %v7412
        %8587 = vmatmul.mubr.f32.gmra.mrb[0].mxu0 %v7411
        %v8588 = vpop.f32.mrb[0].mxu0
        %v8589 = vadd.f32 %v8444, %v8588
        %v8590 = vpop.f32.mrb[0].mxu0
        %8591 = vmatprep.mubr.f32.mxu0 %v7425
        %8592 = vmatmul.mubr.f32.gmra.mrb[0].mxu0 %v7424
        %v8593 = vpop.f32.mrb[0].mxu0
        %v8594 = vadd.f32 %v8449, %v8593
        %v8595 = vpop.f32.mrb[0].mxu0
        %8596 = vmatprep.mubr.f32.mxu0 %v7438
        %8597 = vmatmul.mubr.f32.gmra.mrb[0].mxu0 %v7437
        %v8598 = vpop.f32.mrb[0].mxu0
        %v8599 = vadd.f32 %v8454, %v8598
        %v8600 = vpop.f32.mrb[0].mxu0
        %8601 = vmatprep.mubr.f32.mxu0 %v7451
        %8602 = vmatmul.mubr.f32.gmra.mrb[0].mxu0 %v7450
        %v8603 = vpop.f32.mrb[0].mxu0
        %v8604 = vadd.f32 %v8459, %v8603
        %v8605 = vpop.f32.mrb[0].mxu0
        %8606 = vmatprep.mubr.f32.mxu0 %v7464
        %8607 = vmatmul.mubr.f32.gmra.mrb[0].mxu0 %v7463
        %v8608 = vpop.f32.mrb[0].mxu0
        %v8609 = vadd.f32 %v8464, %v8608
        %v8610 = vpop.f32.mrb[0].mxu0
        %8611 = vmatprep.mubr.f32.mxu0 %v7477
        %8612 = vmatmul.mubr.f32.gmra.mrb[0].mxu0 %v7476
        %v8613 = vpop.f32.mrb[0].mxu0
        %v8614 = vadd.f32 %v8469, %v8613
        %v8615 = vpop.f32.mrb[0].mxu0
        %8616 = vmatprep.mubr.f32.mxu0 %v7490
        %8617 = vmatmul.mubr.f32.gmra.mrb[0].mxu0 %v7489
        %v8618 = vpop.f32.mrb[0].mxu0
        %v8619 = vadd.f32 %v8474, %v8618
        %v8620 = vpop.f32.mrb[0].mxu0
        %8621 = vmatprep.mubr.f32.mxu0 %v7503
        %8622 = vmatmul.mubr.f32.gmra.mrb[0].mxu0 %v7502
        %v8623 = vpop.f32.mrb[0].mxu0
        %v8624 = vadd.f32 %v8479, %v8623
        %v8625 = vpop.f32.mrb[0].mxu0
        %8626 = vdwg.mxu0
        %8627 = vmatprep.subr.mxu0 0.0
        %8628 = vmatpush1.msra.mxu0 %v7697
        %8629 = vmatprep.subr.mxu0 0.0
        %8630 = vmatpush1.msra.mxu0 %v7698
        %8631 = vmatprep.subr.mxu0 0.0
        %8632 = vmatpush1.msra.mxu0 %v7699
        %8633 = vmatprep.subr.mxu0 0.0
        %8634 = vmatpush1.msra.mxu0 %v7700
        %8635 = vmatprep.subr.mxu0 0.0
        %8636 = vmatpush1.msra.mxu0 0.0
        %8637 = vmatprep.subr.mxu0 0.0
        %8638 = vmatpush1.msra.mxu0 0.0
        %8639 = vmatprep.subr.mxu0 0.0
        %8640 = vmatpush1.msra.mxu0 0.0
        %8641 = vmatprep.subr.mxu0 0.0
        %8642 = vmatpush1.msra.mxu0 0.0
        %8643 = vmatprep.subr.mxu0 0.0
        %8644 = vmatpush1.msra.mxu0 0.0
        %8645 = vmatprep.subr.mxu0 0.0
        %8646 = vmatpush1.msra.mxu0 0.0
        %8647 = vmatprep.subr.mxu0 0.0
        %8648 = vmatpush1.msra.mxu0 0.0
        %8649 = vmatprep.subr.mxu0 0.0
        %8650 = vmatpush1.msra.mxu0 0.0
        %8651 = vmatprep.subr.mxu0 0.0
        %8652 = vmatpush1.msra.mxu0 0.0
        %8653 = vmatprep.subr.mxu0 0.0
        %8654 = vmatpush1.msra.mxu0 0.0
        %8655 = vmatprep.subr.mxu0 0.0
        %8656 = vmatpush1.msra.mxu0 0.0
        %8657 = vmatprep.subr.mxu0 0.0
        %8658 = vmatpush1.msra.mxu0 0.0
        %8659 = vmatprep.subr.mxu0 0.0
        %8660 = vmatpush1.msra.mxu0 0.0
        %8661 = vmatprep.subr.mxu0 0.0
        %8662 = vmatpush1.msra.mxu0 0.0
        %8663 = vmatprep.subr.mxu0 0.0
        %8664 = vmatpush1.msra.mxu0 0.0
        %8665 = vmatprep.subr.mxu0 0.0
        %8666 = vmatpush1.msra.mxu0 0.0
        %8667 = vmatprep.subr.mxu0 0.0
        %8668 = vmatpush1.msra.mxu0 0.0
        %8669 = vmatprep.subr.mxu0 0.0
        %8670 = vmatpush1.msra.mxu0 0.0
        %8671 = vmatprep.subr.mxu0 0.0
        %8672 = vmatpush1.msra.mxu0 0.0
        %8673 = vmatprep.subr.mxu0 0.0
        %8674 = vmatpush1.msra.mxu0 0.0
        %8675 = vmatprep.subr.mxu0 0.0
        %8676 = vmatpush1.msra.mxu0 0.0
        %8677 = vmatprep.subr.mxu0 0.0
        %8678 = vmatpush1.msra.mxu0 0.0
        %8679 = vmatprep.subr.mxu0 0.0
        %8680 = vmatpush1.msra.mxu0 0.0
        %8681 = vmatprep.subr.mxu0 0.0
        %8682 = vmatpush1.msra.mxu0 0.0
        %8683 = vmatprep.subr.mxu0 0.0
        %8684 = vmatpush1.msra.mxu0 0.0
        %8685 = vmatprep.subr.mxu0 0.0
        %8686 = vmatpush1.msra.mxu0 0.0
        %8687 = vmatprep.subr.mxu0 0.0
        %8688 = vmatpush1.msra.mxu0 0.0
        %8689 = vmatprep.subr.mxu0 0.0
        %8690 = vmatpush1.msra.mxu0 0.0
        %8691 = vmatprep.mubr.f32.mxu0 0.0
        %8692 = vmatmul.mubr.f32.gmra.mrb[0].mxu0 %v7710
        %v8693 = vpop.f32.mrb[0].mxu0
        %v8694 = vadd.f32 %v8549, %v8693
        %v8695 = vpop.f32.mrb[0].mxu0
        %8696 = vmatprep.mubr.f32.mxu0 0.0
        %8697 = vmatmul.mubr.f32.gmra.mrb[0].mxu0 %v7713
        %v8698 = vpop.f32.mrb[0].mxu0
        %v8699 = vadd.f32 %v8554, %v8698
        %v8700 = vpop.f32.mrb[0].mxu0
        %8701 = vmatprep.mubr.f32.mxu0 0.0
        %8702 = vmatmul.mubr.f32.gmra.mrb[0].mxu0 %v7716
        %v8703 = vpop.f32.mrb[0].mxu0
        %v8704 = vadd.f32 %v8559, %v8703
        %v8705 = vpop.f32.mrb[0].mxu0
        %8706 = vmatprep.mubr.f32.mxu0 0.0
        %8707 = vmatmul.mubr.f32.gmra.mrb[0].mxu0 %v7719
        %v8708 = vpop.f32.mrb[0].mxu0
        %v8709 = vadd.f32 %v8564, %v8708
        %v8710 = vpop.f32.mrb[0].mxu0
        %8711 = vmatprep.mubr.f32.mxu0 0.0
        %8712 = vmatmul.mubr.f32.gmra.mrb[0].mxu0 %v7722
        %v8713 = vpop.f32.mrb[0].mxu0
        %v8714 = vadd.f32 %v8569, %v8713
        %v8715 = vpop.f32.mrb[0].mxu0
        %8716 = vmatprep.mubr.f32.mxu0 0.0
        %8717 = vmatmul.mubr.f32.gmra.mrb[0].mxu0 %v7725
        %v8718 = vpop.f32.mrb[0].mxu0
        %v8719 = vadd.f32 %v8574, %v8718
        %v8720 = vpop.f32.mrb[0].mxu0
        %8721 = vmatprep.mubr.f32.mxu0 0.0
        %8722 = vmatmul.mubr.f32.gmra.mrb[0].mxu0 %v7728
        %v8723 = vpop.f32.mrb[0].mxu0
        %v8724 = vadd.f32 %v8579, %v8723
        %v8725 = vpop.f32.mrb[0].mxu0
        %8726 = vmatprep.mubr.f32.mxu0 0.0
        %8727 = vmatmul.mubr.f32.gmra.mrb[0].mxu0 %v7731
        %v8728 = vpop.f32.mrb[0].mxu0
        %v8729 = vadd.f32 %v8584, %v8728
        %v8730 = vpop.f32.mrb[0].mxu0
        %8731 = vmatprep.mubr.f32.mxu0 0.0
        %8732 = vmatmul.mubr.f32.gmra.mrb[0].mxu0 %v7734
        %v8733 = vpop.f32.mrb[0].mxu0
        %v8734 = vadd.f32 %v8589, %v8733
        %v8735 = vpop.f32.mrb[0].mxu0
        %8736 = vmatprep.mubr.f32.mxu0 0.0
        %8737 = vmatmul.mubr.f32.gmra.mrb[0].mxu0 %v7737
        %v8738 = vpop.f32.mrb[0].mxu0
        %v8739 = vadd.f32 %v8594, %v8738
        %v8740 = vpop.f32.mrb[0].mxu0
        %8741 = vmatprep.mubr.f32.mxu0 0.0
        %8742 = vmatmul.mubr.f32.gmra.mrb[0].mxu0 %v7740
        %v8743 = vpop.f32.mrb[0].mxu0
        %v8744 = vadd.f32 %v8599, %v8743
        %v8745 = vpop.f32.mrb[0].mxu0
        %8746 = vmatprep.mubr.f32.mxu0 0.0
        %8747 = vmatmul.mubr.f32.gmra.mrb[0].mxu0 %v7743
        %v8748 = vpop.f32.mrb[0].mxu0
        %v8749 = vadd.f32 %v8604, %v8748
        %v8750 = vpop.f32.mrb[0].mxu0
        %8751 = vmatprep.mubr.f32.mxu0 0.0
        %8752 = vmatmul.mubr.f32.gmra.mrb[0].mxu0 %v7746
        %v8753 = vpop.f32.mrb[0].mxu0
        %v8754 = vadd.f32 %v8609, %v8753
        %v8755 = vpop.f32.mrb[0].mxu0
        %8756 = vmatprep.mubr.f32.mxu0 0.0
        %8757 = vmatmul.mubr.f32.gmra.mrb[0].mxu0 %v7749
        %v8758 = vpop.f32.mrb[0].mxu0
        %v8759 = vadd.f32 %v8614, %v8758
        %v8760 = vpop.f32.mrb[0].mxu0
        %8761 = vmatprep.mubr.f32.mxu0 0.0
        %8762 = vmatmul.mubr.f32.gmra.mrb[0].mxu0 %v7752
        %v8763 = vpop.f32.mrb[0].mxu0
        %v8764 = vadd.f32 %v8619, %v8763
        %v8765 = vpop.f32.mrb[0].mxu0
        %8766 = vmatprep.mubr.f32.mxu0 0.0
        %8767 = vmatmul.mubr.f32.gmra.mrb[0].mxu0 %v7755
        %v8768 = vpop.f32.mrb[0].mxu0
        %v8769 = vadd.f32 %v8624, %v8768
        %v8770 = vpop.f32.mrb[0].mxu0
        %8771 = vdwg.mxu0
        %v8772 = vmax.f32 %v8694, 0.0
        %v8773 = vmax.f32 %v8699, 0.0
        %v8774 = vmax.f32 %v8704, 0.0
        %v8775 = vmax.f32 %v8709, 0.0
        %v8776 = vmax.f32 %v8714, 0.0
        %v8777 = vmax.f32 %v8719, 0.0
        %v8778 = vmax.f32 %v8724, 0.0
        %v8779 = vmax.f32 %v8729, 0.0
        %v8780 = vmax.f32 %v8734, 0.0
        %v8781 = vmax.f32 %v8739, 0.0
        %v8782 = vmax.f32 %v8744, 0.0
        %v8783 = vmax.f32 %v8749, 0.0
        %v8784 = vmax.f32 %v8754, 0.0
        %v8785 = vmax.f32 %v8759, 0.0
        %v8786 = vmax.f32 %v8764, 0.0
        %v8787 = vmax.f32 %v8769, 0.0
        %v8788 = vld [vmem:[#allocation12] sm:$0xff]
        %v8789 = vld [vmem:[#allocation12 + $0x8] sm:$0xff]
        %v8790 = vld [vmem:[#allocation12 + $0x10] sm:$0xff]
        %v8791 = vld [vmem:[#allocation12 + $0x18] sm:$0xff]
        %v8792 = vld [vmem:[#allocation12 + $0x20] sm:$0xff]
        %v8793 = vld [vmem:[#allocation12 + $0x28] sm:$0xff]
        %v8794 = vld [vmem:[#allocation12 + $0x30] sm:$0xff]
        %v8795 = vld [vmem:[#allocation12 + $0x38] sm:$0xff]
        %v8796 = vld [vmem:[#allocation12 + $0x40] sm:$0xff]
        %v8797 = vld [vmem:[#allocation12 + $0x48] sm:$0xff]
        %v8798 = vld [vmem:[#allocation12 + $0x50] sm:$0xff]
        %v8799 = vld [vmem:[#allocation12 + $0x58] sm:$0xff]
        %v8800 = vld [vmem:[#allocation12 + $0x60] sm:$0xff]
        %v8801 = vld [vmem:[#allocation12 + $0x68] sm:$0xff]
        %v8802 = vld [vmem:[#allocation12 + $0x70] sm:$0xff]
        %v8803 = vld [vmem:[#allocation12 + $0x78] sm:$0xff]
        %v8804 = vld [vmem:[#allocation13] sm:$0x1]
        %v8806 = vlaneseq
        %v8807 = vshrl.u32 %v8806, 7
        %v8808 = vsub.s32 0, %v8807
        %v8809 = vrot.slane %v8804, %v8808
        %8811 = vmatprep.subr.mxu0 0.0
        %8812 = vmatpush1.msra.mxu0 %v8788
        %8813 = vmatprep.subr.mxu0 0.0
        %8814 = vmatpush1.msra.mxu0 %v8789
        %8815 = vmatprep.subr.mxu0 0.0
        %8816 = vmatpush1.msra.mxu0 %v8790
        %8817 = vmatprep.subr.mxu0 0.0
        %8818 = vmatpush1.msra.mxu0 %v8791
        %8819 = vmatprep.subr.mxu0 0.0
        %8820 = vmatpush1.msra.mxu0 %v8792
        %8821 = vmatprep.subr.mxu0 0.0
        %8822 = vmatpush1.msra.mxu0 %v8793
        %8823 = vmatprep.subr.mxu0 0.0
        %8824 = vmatpush1.msra.mxu0 %v8794
        %8825 = vmatprep.subr.mxu0 0.0
        %8826 = vmatpush1.msra.mxu0 %v8795
        %8827 = vmatprep.subr.mxu0 0.0
        %8828 = vmatpush1.msra.mxu0 %v8796
        %8829 = vmatprep.subr.mxu0 0.0
        %8830 = vmatpush1.msra.mxu0 %v8797
        %8831 = vmatprep.subr.mxu0 0.0
        %8832 = vmatpush1.msra.mxu0 %v8798
        %8833 = vmatprep.subr.mxu0 0.0
        %8834 = vmatpush1.msra.mxu0 %v8799
        %8835 = vmatprep.subr.mxu0 0.0
        %8836 = vmatpush1.msra.mxu0 %v8800
        %8837 = vmatprep.subr.mxu0 0.0
        %8838 = vmatpush1.msra.mxu0 %v8801
        %8839 = vmatprep.subr.mxu0 0.0
        %8840 = vmatpush1.msra.mxu0 %v8802
        %8841 = vmatprep.subr.mxu0 0.0
        %8842 = vmatpush1.msra.mxu0 %v8803
        %8843 = vmatprep.subr.mxu0 0.0
        %8844 = vmatpush1.msra.mxu0 0.0
        %8845 = vmatprep.subr.mxu0 0.0
        %8846 = vmatpush1.msra.mxu0 0.0
        %8847 = vmatprep.subr.mxu0 0.0
        %8848 = vmatpush1.msra.mxu0 0.0
        %8849 = vmatprep.subr.mxu0 0.0
        %8850 = vmatpush1.msra.mxu0 0.0
        %8851 = vmatprep.subr.mxu0 0.0
        %8852 = vmatpush1.msra.mxu0 0.0
        %8853 = vmatprep.subr.mxu0 0.0
        %8854 = vmatpush1.msra.mxu0 0.0
        %8855 = vmatprep.subr.mxu0 0.0
        %8856 = vmatpush1.msra.mxu0 0.0
        %8857 = vmatprep.subr.mxu0 0.0
        %8858 = vmatpush1.msra.mxu0 0.0
        %8859 = vmatprep.subr.mxu0 0.0
        %8860 = vmatpush1.msra.mxu0 0.0
        %8861 = vmatprep.subr.mxu0 0.0
        %8862 = vmatpush1.msra.mxu0 0.0
        %8863 = vmatprep.subr.mxu0 0.0
        %8864 = vmatpush1.msra.mxu0 0.0
        %8865 = vmatprep.subr.mxu0 0.0
        %8866 = vmatpush1.msra.mxu0 0.0
        %8867 = vmatprep.subr.mxu0 0.0
        %8868 = vmatpush1.msra.mxu0 0.0
        %8869 = vmatprep.subr.mxu0 0.0
        %8870 = vmatpush1.msra.mxu0 0.0
        %8871 = vmatprep.subr.mxu0 0.0
        %8872 = vmatpush1.msra.mxu0 0.0
        %8873 = vmatprep.subr.mxu0 0.0
        %8874 = vmatpush1.msra.mxu0 0.0
        %8875 = vmatprep.mubr.f32.mxu0 0.0
        %8876 = vmatmul.mubr.f32.gmra.mrb[0].mxu0 %v8772
        %v8877 = vpop.f32.mrb[0].mxu0
        %v8878 = vadd.f32 %v8809, %v8877
        %v8879 = vpop.f32.mrb[0].mxu0
        %8880 = vmatprep.mubr.f32.mxu0 0.0
        %8881 = vmatmul.mubr.f32.gmra.mrb[0].mxu0 %v8773
        %v8882 = vpop.f32.mrb[0].mxu0
        %v8883 = vadd.f32 %v8809, %v8882
        %v8884 = vpop.f32.mrb[0].mxu0
        %8885 = vmatprep.mubr.f32.mxu0 0.0
        %8886 = vmatmul.mubr.f32.gmra.mrb[0].mxu0 %v8774
        %v8887 = vpop.f32.mrb[0].mxu0
        %v8888 = vadd.f32 %v8809, %v8887
        %v8889 = vpop.f32.mrb[0].mxu0
        %8890 = vmatprep.mubr.f32.mxu0 0.0
        %8891 = vmatmul.mubr.f32.gmra.mrb[0].mxu0 %v8775
        %v8892 = vpop.f32.mrb[0].mxu0
        %v8893 = vadd.f32 %v8809, %v8892
        %v8894 = vpop.f32.mrb[0].mxu0
        %8895 = vmatprep.mubr.f32.mxu0 0.0
        %8896 = vmatmul.mubr.f32.gmra.mrb[0].mxu0 %v8776
        %v8897 = vpop.f32.mrb[0].mxu0
        %v8898 = vadd.f32 %v8809, %v8897
        %v8899 = vpop.f32.mrb[0].mxu0
        %8900 = vmatprep.mubr.f32.mxu0 0.0
        %8901 = vmatmul.mubr.f32.gmra.mrb[0].mxu0 %v8777
        %v8902 = vpop.f32.mrb[0].mxu0
        %v8903 = vadd.f32 %v8809, %v8902
        %v8904 = vpop.f32.mrb[0].mxu0
        %8905 = vmatprep.mubr.f32.mxu0 0.0
        %8906 = vmatmul.mubr.f32.gmra.mrb[0].mxu0 %v8778
        %v8907 = vpop.f32.mrb[0].mxu0
        %v8908 = vadd.f32 %v8809, %v8907
        %v8909 = vpop.f32.mrb[0].mxu0
        %8910 = vmatprep.mubr.f32.mxu0 0.0
        %8911 = vmatmul.mubr.f32.gmra.mrb[0].mxu0 %v8779
        %v8912 = vpop.f32.mrb[0].mxu0
        %v8913 = vadd.f32 %v8809, %v8912
        %v8914 = vpop.f32.mrb[0].mxu0
        %8915 = vmatprep.mubr.f32.mxu0 0.0
        %8916 = vmatmul.mubr.f32.gmra.mrb[0].mxu0 %v8780
        %v8917 = vpop.f32.mrb[0].mxu0
        %v8918 = vadd.f32 %v8809, %v8917
        %v8919 = vpop.f32.mrb[0].mxu0
        %8920 = vmatprep.mubr.f32.mxu0 0.0
        %8921 = vmatmul.mubr.f32.gmra.mrb[0].mxu0 %v8781
        %v8922 = vpop.f32.mrb[0].mxu0
        %v8923 = vadd.f32 %v8809, %v8922
        %v8924 = vpop.f32.mrb[0].mxu0
        %8925 = vmatprep.mubr.f32.mxu0 0.0
        %8926 = vmatmul.mubr.f32.gmra.mrb[0].mxu0 %v8782
        %v8927 = vpop.f32.mrb[0].mxu0
        %v8928 = vadd.f32 %v8809, %v8927
        %v8929 = vpop.f32.mrb[0].mxu0
        %8930 = vmatprep.mubr.f32.mxu0 0.0
        %8931 = vmatmul.mubr.f32.gmra.mrb[0].mxu0 %v8783
        %v8932 = vpop.f32.mrb[0].mxu0
        %v8933 = vadd.f32 %v8809, %v8932
        %v8934 = vpop.f32.mrb[0].mxu0
        %8935 = vmatprep.mubr.f32.mxu0 0.0
        %8936 = vmatmul.mubr.f32.gmra.mrb[0].mxu0 %v8784
        %v8937 = vpop.f32.mrb[0].mxu0
        %v8938 = vadd.f32 %v8809, %v8937
        %v8939 = vpop.f32.mrb[0].mxu0
        %8940 = vmatprep.mubr.f32.mxu0 0.0
        %8941 = vmatmul.mubr.f32.gmra.mrb[0].mxu0 %v8785
        %v8942 = vpop.f32.mrb[0].mxu0
        %v8943 = vadd.f32 %v8809, %v8942
        %v8944 = vpop.f32.mrb[0].mxu0
        %8945 = vmatprep.mubr.f32.mxu0 0.0
        %8946 = vmatmul.mubr.f32.gmra.mrb[0].mxu0 %v8786
        %v8947 = vpop.f32.mrb[0].mxu0
        %v8948 = vadd.f32 %v8809, %v8947
        %v8949 = vpop.f32.mrb[0].mxu0
        %8950 = vmatprep.mubr.f32.mxu0 0.0
        %8951 = vmatmul.mubr.f32.gmra.mrb[0].mxu0 %v8787
        %v8952 = vpop.f32.mrb[0].mxu0
        %v8953 = vadd.f32 %v8809, %v8952
        %v8954 = vpop.f32.mrb[0].mxu0
        %8955 = vdwg.mxu0
        %8956 = vst [vmem:[%s446] sm:$0xff] %v8878
        %8957 = vst [vmem:[%s446 + $0x8] sm:$0xff] %v8883
        %8958 = vst [vmem:[%s446 + $0x10] sm:$0xff] %v8888
        %8959 = vst [vmem:[%s446 + $0x18] sm:$0xff] %v8893
        %8960 = vst [vmem:[%s446 + $0x20] sm:$0xff] %v8898
        %8961 = vst [vmem:[%s446 + $0x28] sm:$0xff] %v8903
        %8962 = vst [vmem:[%s446 + $0x30] sm:$0xff] %v8908
        %8963 = vst [vmem:[%s446 + $0x38] sm:$0xff] %v8913
        %8964 = vst [vmem:[%s446 + $0x40] sm:$0xff] %v8918
        %8965 = vst [vmem:[%s446 + $0x48] sm:$0xff] %v8923
        %8966 = vst [vmem:[%s446 + $0x50] sm:$0xff] %v8928
        %8967 = vst [vmem:[%s446 + $0x58] sm:$0xff] %v8933
        %8968 = vst [vmem:[%s446 + $0x60] sm:$0xff] %v8938
        %8969 = vst [vmem:[%s446 + $0x68] sm:$0xff] %v8943
        %8970 = vst [vmem:[%s446 + $0x70] sm:$0xff] %v8948
        %8971 = vst [vmem:[%s446 + $0x78] sm:$0xff] %v8953
        %s8972 = smul.u32 16, %s25
        %p8973 = scmp.lt.s32.totalorder %s8972, 31
        %s8974 = scalar_select %p8973, %s8972, 31
        %s8975 = smul.addr %s8974, 8
        %s8976 = scalar_lea.vmem %s9, %s8975
        // Predicated region
        $region89: #{forward.1} parent=55 // pred_check
          %p8977 = pneg %p237
        $region90: #{forward.1} parent=55 // pred_check_branch
          %8979 = sbr.rel (%p8977) target = $region92
        $region91: #{forward.1} parent=55 // pred_region
          %s8980 = smul.u32 16, %s25
        $region92: #{forward.1} parent=55 // pred_fallthru
          _
      $region56: #{forward.1} parent=5 // pred_fallthru
        _
      %p8981 = scmp.le.s32.totalorder 2, %s20
      // Predicated region
      $region93: #{forward.1} parent=5 // pred_check
        %p8982 = pneg %p8981
      $region94: #{forward.1} parent=5 // pred_check_branch
        %8984 = sbr.rel (%p8982) target = $region96
      $region95: #{forward.1} parent=5 // pred_region
        %s8985 = ssub.s32 %s20, 2
        // Predicated region
        $region97: #{forward.1} parent=95 // pred_check
          %p8986 = pneg %p243
        $region98: #{forward.1} parent=95 // pred_check_branch
          %8988 = sbr.rel (%p8986) target = $region100
        $region99: #{forward.1} parent=95 // pred_region
          %s8989 = smul.u32 16, %s26
          %p8990 = scmp.lt.s32.totalorder %s8989, 31
          %s8991 = scalar_select %p8990, %s8989, 31
          %s8992 = smul.addr %s8991, 8
          %s8993 = scalar_lea.vmem %s9, %s8992
        $region100: #{forward.1} parent=95 // pred_fallthru
          _
      $region96: #{forward.1} parent=5 // pred_fallthru
        _
    $region6: #{forward.1} parent=1 // loop_footer
      %s24 = sadd.s32 1, %s20
    $region7: #{forward.1} parent=1 // loop_footer_branch
      %19 = sbr.rel target = $region3
    $region8: #{forward.1} parent=1 // loop_exit
      _
    %8994 = vsyncpa [#allocation3], 1
    %s8995 = scalar_lea.sflag [#allocation3], 1
    %8996 = vsyncpa %s8995, 1
    %8997 = vsyncpa [#allocation5], 1
    %8998 = vsyncpa [#allocation8], 1
    %8999 = vsyncpa [#allocation11], 1
    %9000 = vsyncpa [#allocation14], 1

</llo_original>
